<compile_context>
chip_gen: v6e
topology: v6e:2x2x1
jax: 0.10.0
libtpu: 0.0.40
codegen_flags: <defaults>
</compile_context>

<pallas_src>
import functools

import jax
import jax.numpy as jnp
import numpy as np
from jax import lax
from jax.experimental import pallas as pl
from jax.experimental.pallas import tpu as pltpu

EPS = 1e-5
C_BRANCH = 96            # per-branch output channels (fixed by the module)
C_POOL = 128             # pooled-branch channels (512 - 4*96)
DILATIONS = (6, 12, 18)
PAD = max(DILATIONS)     # halo of the largest dilation (= its zero padding)


# ----------------------------- Pallas kernel --------------------------------

def _aspp_fused_kernel(x16p_ref, pool_ref, wbr_ref, bbr_ref, wcom_ref, bcom_ref,
                       o_ref, patch_ref, *, cin, tr, w):
    # x16p_ref : (1, Hp, Wp, Cin) bf16  zero-padded x_16 image of this batch
    #                                   (resident across the row-tile axis)
    # pool_ref : (M, C8)          bf16  pre-pooled x_8 rows for this tile
    # wbr_ref  : (27*Cin, 384)    bf16  fused branch weight (BN folded, 1x1
    #                                   weights embedded in d=6 centre-tap rows)
    # bbr_ref  : (1, 384)         f32   fused branch bias (folded BN)
    # wcom_ref : (512, Cout)      bf16  final 1x1 conv weight (BN folded)
    # bcom_ref : (1, Cout)        f32   final folded BN bias
    # o_ref    : (1, Cout, M)     f32   output tile, channel-major (lane-dense)
    # patch_ref: (TR, W, 27*Cin)  bf16  VMEM scratch for the in-kernel im2col
    r = pl.program_id(1)
    m = tr * w
    row_base = r * tr                      # first output row of this tile

    # In-kernel im2col: 27 shifted (TR, W, Cin) windows of the resident padded
    # image written into lane slices of the scratch -- never touches HBM.
    tap = 0
    for d in DILATIONS:
        for ky in range(3):
            for kx in range(3):
                r0 = row_base + PAD + (ky - 1) * d     # dynamic row offset
                c0 = PAD + (kx - 1) * d                # static col offset
                patch_ref[:, :, tap * cin:(tap + 1) * cin] = (
                    x16p_ref[0, pl.ds(r0, tr), pl.ds(c0, w), :])
                tap += 1

    patches = patch_ref[...].reshape(m, 27 * cin)

    # All four conv branches in ONE MXU matmul; bias + ReLU epilogue.
    z = jnp.dot(patches, wbr_ref[...], preferred_element_type=jnp.float32)
    z = jnp.maximum(z + bbr_ref[...], 0.0)             # (M, 384)

    # 512-wide concat lives only in VMEM; single full-depth K=512 'com' matmul.
    cat = jnp.concatenate([z.astype(wcom_ref.dtype), pool_ref[...]], axis=-1)
    acc = jnp.dot(cat, wcom_ref[...], preferred_element_type=jnp.float32)
    out = jnp.maximum(acc + bcom_ref[...], 0.0)         # (M, Cout)

    # Lane-dense store, directly in flattened-NCHW layout: (Cout, M).
    o_ref[0] = jnp.transpose(out)


# ------------------------- VMEM-aware tile planning --------------------------

def _rup(x, m):
    return -(-x // m) * m


def _tile_pad_bytes(rows, cols, itemsize):
    """Bytes of a 2-D slab in VMEM with (8,128) native tiling (bf16 packs 16 sublanes)."""
    sub = 8 * (4 // itemsize)
    return _rup(max(rows, 1), sub) * _rup(max(cols, 1), 128) * itemsize


def _vmem_budget_bytes():
    cap = 64 * 1024 * 1024                 # conservative default (v7x per-core VMEM)
    try:
        cap = int(pltpu.get_tpu_info().vmem_capacity_bytes)
    except Exception:
        pass
    # ~3/4 of capacity, never above 96 MiB: <=48 MiB on v7x, <=96 MiB on v5e/v6e.
    return min(int(cap * 3 // 4), 96 * 1024 * 1024)


def _vmem_bytes_estimate(tr, H, W, Cin, C8, Cout):
    m = tr * W
    k27 = 27 * Cin
    hp, wp = H + 2 * PAD, W + 2 * PAD
    kcat = 4 * C_BRANCH + C8
    resident = (
        2 * hp * _tile_pad_bytes(wp, Cin, 2)              # padded x_16 image (x2 buffers)
        + 2 * (_tile_pad_bytes(k27, 4 * C_BRANCH, 2)      # wbr
               + _tile_pad_bytes(1, 4 * C_BRANCH, 4)      # bbr
               + _tile_pad_bytes(kcat, Cout, 2)           # wcom
               + _tile_pad_bytes(1, Cout, 4)))            # bcom
    per_tile = (
        2 * _tile_pad_bytes(m, C8, 2)                     # pooled block (x2 buffers)
        + 2 * _tile_pad_bytes(Cout, m, 4)                 # output block (x2 buffers)
        + tr * _tile_pad_bytes(W, k27, 2)                 # im2col scratch
        + _tile_pad_bytes(m, k27, 2)                      # patches value
        + _tile_pad_bytes(m, 4 * C_BRANCH, 4)             # z
        + _tile_pad_bytes(m, kcat, 2)                     # cat
        + 2 * _tile_pad_bytes(m, Cout, 4))                # acc / out
    return resident + per_tile


def _plan_tiles(B, H, W, Cin, C8, Cout, min_steps=2):
    """Largest row tile that fits the VMEM budget and the (8,128) layout rules."""
    budget = _vmem_budget_bytes()
    cands = []
    for tr in sorted((t for t in range(1, H + 1) if H % t == 0), reverse=True):
        m = tr * W
        if m % 8 != 0:
            continue                               # sublane rule for (M, C8) block
        if m % 128 != 0 and tr != H:
            continue                               # lane-dense (Cout, M) output block
        if _vmem_bytes_estimate(tr, H, W, Cin, C8, Cout) > budget:
            continue
        cands.append(tr)
    if not cands:
        # TODO(synk): pad W/H on the host for shapes that violate the (8,128) rule.
        raise ValueError(
            "ASPP Pallas kernel: no row tile of H=%d satisfies the VMEM budget "
            "and (8,128) layout constraints (W=%d, Cin=%d)." % (H, W, Cin))
    pref = [t for t in cands if B * (H // t) >= min_steps]
    tr = max(pref) if pref else max(cands)
    est = _vmem_bytes_estimate(tr, H, W, Cin, C8, Cout)
    vmem_limit = int(min(budget, max(int(est * 1.25), 16 * 1024 * 1024)))
    return tr, vmem_limit


# ------------------------------- JAX glue ------------------------------------

def fold_bn(bn):
    scale = bn['gamma'] / jnp.sqrt(bn['var'] + EPS)
    bias = bn['beta'] - bn['mean'] * scale
    return scale, bias


def init_raw_params(key, in_plant, out_plant):
    ks = jax.random.split(key, 10)

    def bn(k, c):
        k1, k2, k3, k4 = jax.random.split(k, 4)
        return dict(
            gamma=1.0 + 0.1 * jax.random.normal(k1, (c,), jnp.float32),
            beta=0.1 * jax.random.normal(k2, (c,), jnp.float32),
            mean=0.1 * jax.random.normal(k3, (c,), jnp.float32),
            var=jax.random.uniform(k4, (c,), jnp.float32, minval=0.5, maxval=1.5),
        )

    return {
        'w1': 0.1 * jax.random.normal(ks[0], (96, in_plant, 1, 1), jnp.float32),
        'bn1': bn(ks[1], 96),
        'w6': 0.1 * jax.random.normal(ks[2], (96, in_plant, 3, 3), jnp.float32),
        'bn6': bn(ks[3], 96),
        'w12': 0.1 * jax.random.normal(ks[4], (96, in_plant, 3, 3), jnp.float32),
        'bn12': bn(ks[5], 96),
        'w18': 0.1 * jax.random.normal(ks[6], (96, in_plant, 3, 3), jnp.float32),
        'bn18': bn(ks[7], 96),
        'wcom': 0.1 * jax.random.normal(ks[8], (out_plant, 512, 1, 1), jnp.float32),
        'bncom': bn(ks[9], out_plant),
    }


def to_kernel_params(raw):
    """Fold inference-mode BN into the conv weights and pack for the fused kernel.

    wbr layout: rows = [d6 taps | d12 taps | d18 taps], each tap = Cin rows in
    (ky, kx) raster order; columns = [out1 | out2(d6) | out3(d12) | out4(d18)].
    The 1x1 weights are embedded in the d=6 centre-tap rows of the out1 columns.
    """
    s1, b1 = fold_bn(raw['bn1'])
    w1 = jnp.transpose(raw['w1'][:, :, 0, 0], (1, 0)) * s1[None, :]        # (Cin, 96)
    cin = w1.shape[0]

    wbr = jnp.zeros((27 * cin, 4 * C_BRANCH), jnp.float32)
    biases = [b1]
    for idx, d in enumerate(DILATIONS):
        s, b = fold_bn(raw[f'bn{d}'])
        w = raw[f'w{d}']                                                   # (96, Cin, 3, 3)
        w9 = jnp.transpose(w, (2, 3, 1, 0)).reshape(9 * cin, C_BRANCH)     # tap-major, cin-minor
        w9 = w9 * s[None, :]
        r0 = idx * 9 * cin
        c0 = (idx + 1) * C_BRANCH
        wbr = wbr.at[r0:r0 + 9 * cin, c0:c0 + C_BRANCH].set(w9)
        biases.append(b)
    ctr = 4 * cin                                   # centre tap (ky=1, kx=1) of d=6
    wbr = wbr.at[ctr:ctr + cin, 0:C_BRANCH].set(w1)
    bbr = jnp.concatenate(biases).reshape(1, 4 * C_BRANCH)

    scom, bcom = fold_bn(raw['bncom'])
    wcom = jnp.transpose(raw['wcom'][:, :, 0, 0], (1, 0)) * scom[None, :]  # (512, Cout)

    return dict(
        wbr=wbr.astype(jnp.bfloat16),                   # (27*Cin, 384)
        bbr=bbr.astype(jnp.float32),                    # (1, 384)
        wcom=wcom.astype(jnp.bfloat16),                 # (512, Cout)
        bcom=bcom.reshape(1, -1).astype(jnp.float32),   # (1, Cout)
    )


@jax.jit
def aspp_forward_pallas(x_8, x_16, kp):
    """x_8: (B, 128, 2H, 2W), x_16: (B, Cin, H, W), both NCHW f32. Returns NCHW f32."""
    B, Cin, H, W = x_16.shape
    B8, C8, H8, W8 = x_8.shape
    assert B8 == B and H8 == 2 * H and W8 == 2 * W
    assert 4 * C_BRANCH + C8 == kp['wcom'].shape[0]
    Cout = kp['wcom'].shape[1]
    N = B * H * W

    # 2x2 max-pool + bf16 cast of x_8 BEFORE any layout change: full-res x_8 is
    # the dominant HBM traffic, this cuts the transpose + kernel DMA bytes ~8x.
    pooled = lax.reduce_window(x_8, -jnp.inf, lax.max,
                               (1, 1, 2, 2), (1, 1, 2, 2), 'VALID')
    pooled = jnp.transpose(pooled.astype(jnp.bfloat16), (0, 2, 3, 1)).reshape(N, C8)

    # Zero-padded NHWC bf16 copy of x_16 (halo = 18 = max dilation).  The kernel
    # builds all 27 dilated im2col taps from this in VMEM, so no (N, 9*Cin)
    # im2col intermediates are ever materialized in HBM.
    x16p = jnp.transpose(x_16.astype(jnp.bfloat16), (0, 2, 3, 1))
    x16p = jnp.pad(x16p, ((0, 0), (PAD, PAD), (PAD, PAD), (0, 0)))
    Hp, Wp = H + 2 * PAD, W + 2 * PAD

    TR, vmem_limit = _plan_tiles(B, H, W, Cin, C8, Cout)
    RT = H // TR
    M = TR * W

    kernel = functools.partial(_aspp_fused_kernel, cin=Cin, tr=TR, w=W)

    out_flat = pl.pallas_call(
        kernel,
        out_shape=jax.ShapeDtypeStruct((B, Cout, H * W), jnp.float32),
        grid_spec=pltpu.PrefetchScalarGridSpec(
            num_scalar_prefetch=0,
            grid=(B, RT),
            in_specs=[
                # Full padded image of batch b; index constant along r, so it is
                # DMA'd once per batch and stays resident across the row tiles.
                pl.BlockSpec((1, Hp, Wp, Cin), lambda b, r: (b, 0, 0, 0)),
                pl.BlockSpec((M, C8), lambda b, r: (b * RT + r, 0)),
                pl.BlockSpec(kp['wbr'].shape, lambda b, r: (0, 0)),
                pl.BlockSpec(kp['bbr'].shape, lambda b, r: (0, 0)),
                pl.BlockSpec(kp['wcom'].shape, lambda b, r: (0, 0)),
                pl.BlockSpec(kp['bcom'].shape, lambda b, r: (0, 0)),
            ],
            out_specs=pl.BlockSpec((1, Cout, M), lambda b, r: (b, 0, r)),
            scratch_shapes=[pltpu.VMEM((TR, W, 27 * Cin), jnp.bfloat16)],
        ),
        compiler_params=pltpu.CompilerParams(
            dimension_semantics=("parallel", "parallel"),
            vmem_limit_bytes=vmem_limit,
        ),
    )(x16p, pooled, kp['wbr'], kp['bbr'], kp['wcom'], kp['bcom'])

    # (B, Cout, H*W) is already flattened NCHW -> pure metadata reshape.
    return out_flat.reshape(B, Cout, H, W)


# --------------------------- pure-JAX reference ------------------------------

def aspp_forward_ref(x_8, x_16, raw):
    def cbr(x, w, bn, pad, dil):
        y = lax.conv_general_dilated(
            x, w, window_strides=(1, 1),
            padding=[(pad, pad), (pad, pad)],
            rhs_dilation=(dil, dil),
            dimension_numbers=('NCHW', 'OIHW', 'NCHW'),
            precision=lax.Precision.HIGHEST)
        scale, bias = fold_bn(bn)
        y = y * scale[None, :, None, None] + bias[None, :, None, None]
        return jnp.maximum(y, 0.0)

    out1 = cbr(x_16, raw['w1'], raw['bn1'], 0, 1)
    out2 = cbr(x_16, raw['w6'], raw['bn6'], 6, 6)
    out3 = cbr(x_16, raw['w12'], raw['bn12'], 12, 12)
    out4 = cbr(x_16, raw['w18'], raw['bn18'], 18, 18)
    out5 = lax.reduce_window(x_8, -jnp.inf, lax.max,
                             (1, 1, 2, 2), (1, 1, 2, 2), 'VALID')
    cat = jnp.concatenate([out1, out2, out3, out4, out5], axis=1)
    return cbr(cat, raw['wcom'], raw['bncom'], 0, 1)


# ---------------------------------- main -------------------------------------

if __name__ == "__main__":
    key = jax.random.PRNGKey(0)
    k1, k2, k3 = jax.random.split(key, 3)

    in_plant, out_plant = 4, 8
    B, H, W = 2, 16, 16
    # x_8 must have 128 channels (4*96 + 128 = 512 for the concat) and 2x the
    # spatial size of x_16 so the max-pooled branch matches the conv branches.
    x_16 = jax.random.normal(k1, (B, in_plant, H, W), jnp.float32)
    x_8 = jax.random.normal(k2, (B, C_POOL, 2 * H, 2 * W), jnp.float32)

    raw = init_raw_params(k3, in_plant, out_plant)
    kp = to_kernel_params(raw)

    out = jax.block_until_ready(aspp_forward_pallas(x_8, x_16, kp))
    ref = jax.block_until_ready(aspp_forward_ref(x_8, x_16, raw))

    assert out.shape == (B, out_plant, H, W), out.shape
    # The kernel stores activations/weights in bf16 (f32 accumulation); the
    # reference is pure f32, so use a bf16-appropriate tolerance.
    np.testing.assert_allclose(np.asarray(out), np.asarray(ref),
                               rtol=3e-2, atol=3e-2)
    print("KERNEL_OK")
</pallas_src>

<mosaic_0001>
module attributes {stable_mosaic.version = 11 : i64} {
  func.func @_aspp_fused_kernel(%arg0: i32, %arg1: i32, %arg2: memref<1x52x52x4xbf16, #tpu.memory_space<vmem>>, %arg3: memref<256x128xbf16, #tpu.memory_space<vmem>>, %arg4: memref<108x384xbf16, #tpu.memory_space<vmem>>, %arg5: memref<1x384xf32, #tpu.memory_space<vmem>>, %arg6: memref<512x8xbf16, #tpu.memory_space<vmem>>, %arg7: memref<1x8xf32, #tpu.memory_space<vmem>>, %arg8: memref<1x8x256xf32, #tpu.memory_space<vmem>>, %arg9: memref<16x16x108xbf16, #tpu.memory_space<vmem>>) attributes {dimension_semantics = [#tpu.dimension_semantics<parallel>, #tpu.dimension_semantics<parallel>], iteration_bounds = array<i64: 2, 1>, scalar_prefetch = 0 : i64, scratch_operands = 1 : i64, tpu.core_type = #tpu.core_type<tc>, window_params = [{transform_indices = @transform_0, window_bounds = array<i64: 1, 52, 52, 4>}, {transform_indices = @transform_1, window_bounds = array<i64: 256, 128>}, {pipeline_mode = #tpu.pipeline_mode<synchronous>, transform_indices = @transform_2, window_bounds = array<i64: 108, 384>}, {pipeline_mode = #tpu.pipeline_mode<synchronous>, transform_indices = @transform_3, window_bounds = array<i64: 1, 384>}, {pipeline_mode = #tpu.pipeline_mode<synchronous>, transform_indices = @transform_4, window_bounds = array<i64: 512, 8>}, {pipeline_mode = #tpu.pipeline_mode<synchronous>, transform_indices = @transform_5, window_bounds = array<i64: 1, 8>}, {transform_indices = @transform_6, window_bounds = array<i64: 1, 8, 256>}]} {
    %c16_i32 = arith.constant 16 : i32
    %0 = arith.muli %arg1, %c16_i32 : i32
    %c18_i32 = arith.constant 18 : i32
    %1 = arith.addi %0, %c18_i32 : i32
    %c-6_i32 = arith.constant -6 : i32
    %2 = arith.addi %1, %c-6_i32 : i32
    %c0 = arith.constant 0 : index
    %3 = arith.index_cast %2 : i32 to index
    %c12 = arith.constant 12 : index
    %c0_0 = arith.constant 0 : index
    %4 = vector.load %arg2[%c0, %3, %c12, %c0_0] : memref<1x52x52x4xbf16, #tpu.memory_space<vmem>>, vector<1x16x16x4xbf16>
    %5 = vector.shape_cast %4 : vector<1x16x16x4xbf16> to vector<16x16x4xbf16>
    %c0_1 = arith.constant 0 : index
    %c0_2 = arith.constant 0 : index
    %c0_3 = arith.constant 0 : index
    %6 = vector.load %arg9[%c0_1, %c0_2, %c0_3] : memref<16x16x108xbf16, #tpu.memory_space<vmem>>, vector<16x16x4xbf16>
    tpu.vector_store %arg9[%c0_1, %c0_2, %c0_3], %5 {strides = array<i32>} : memref<16x16x108xbf16, #tpu.memory_space<vmem>>, vector<16x16x4xbf16>,
    %c18_i32_4 = arith.constant 18 : i32
    %7 = arith.addi %0, %c18_i32_4 : i32
    %c-6_i32_5 = arith.constant -6 : i32
    %8 = arith.addi %7, %c-6_i32_5 : i32
    %c0_6 = arith.constant 0 : index
    %9 = arith.index_cast %8 : i32 to index
    %c18 = arith.constant 18 : index
    %c0_7 = arith.constant 0 : index
    %10 = vector.load %arg2[%c0_6, %9, %c18, %c0_7] : memref<1x52x52x4xbf16, #tpu.memory_space<vmem>>, vector<1x16x16x4xbf16>
    %11 = vector.shape_cast %10 : vector<1x16x16x4xbf16> to vector<16x16x4xbf16>
    %c0_8 = arith.constant 0 : index
    %c0_9 = arith.constant 0 : index
    %c4 = arith.constant 4 : index
    %12 = vector.load %arg9[%c0_8, %c0_9, %c4] : memref<16x16x108xbf16, #tpu.memory_space<vmem>>, vector<16x16x4xbf16>
    tpu.vector_store %arg9[%c0_8, %c0_9, %c4], %11 {strides = array<i32>} : memref<16x16x108xbf16, #tpu.memory_space<vmem>>, vector<16x16x4xbf16>,
    %c18_i32_10 = arith.constant 18 : i32
    %13 = arith.addi %0, %c18_i32_10 : i32
    %c-6_i32_11 = arith.constant -6 : i32
    %14 = arith.addi %13, %c-6_i32_11 : i32
    %c0_12 = arith.constant 0 : index
    %15 = arith.index_cast %14 : i32 to index
    %c24 = arith.constant 24 : index
    %c0_13 = arith.constant 0 : index
    %16 = vector.load %arg2[%c0_12, %15, %c24, %c0_13] : memref<1x52x52x4xbf16, #tpu.memory_space<vmem>>, vector<1x16x16x4xbf16>
    %17 = vector.shape_cast %16 : vector<1x16x16x4xbf16> to vector<16x16x4xbf16>
    %c0_14 = arith.constant 0 : index
    %c0_15 = arith.constant 0 : index
    %c8 = arith.constant 8 : index
    %18 = vector.load %arg9[%c0_14, %c0_15, %c8] : memref<16x16x108xbf16, #tpu.memory_space<vmem>>, vector<16x16x4xbf16>
    tpu.vector_store %arg9[%c0_14, %c0_15, %c8], %17 {strides = array<i32>} : memref<16x16x108xbf16, #tpu.memory_space<vmem>>, vector<16x16x4xbf16>,
    %c18_i32_16 = arith.constant 18 : i32
    %19 = arith.addi %0, %c18_i32_16 : i32
    %c0_i32 = arith.constant 0 : i32
    %20 = arith.addi %19, %c0_i32 : i32
    %c0_17 = arith.constant 0 : index
    %21 = arith.index_cast %20 : i32 to index
    %c12_18 = arith.constant 12 : index
    %c0_19 = arith.constant 0 : index
    %22 = vector.load %arg2[%c0_17, %21, %c12_18, %c0_19] : memref<1x52x52x4xbf16, #tpu.memory_space<vmem>>, vector<1x16x16x4xbf16>
    %23 = vector.shape_cast %22 : vector<1x16x16x4xbf16> to vector<16x16x4xbf16>
    %c0_20 = arith.constant 0 : index
    %c0_21 = arith.constant 0 : index
    %c12_22 = arith.constant 12 : index
    %24 = vector.load %arg9[%c0_20, %c0_21, %c12_22] : memref<16x16x108xbf16, #tpu.memory_space<vmem>>, vector<16x16x4xbf16>
    tpu.vector_store %arg9[%c0_20, %c0_21, %c12_22], %23 {strides = array<i32>} : memref<16x16x108xbf16, #tpu.memory_space<vmem>>, vector<16x16x4xbf16>,
    %c18_i32_23 = arith.constant 18 : i32
    %25 = arith.addi %0, %c18_i32_23 : i32
    %c0_i32_24 = arith.constant 0 : i32
    %26 = arith.addi %25, %c0_i32_24 : i32
    %c0_25 = arith.constant 0 : index
    %27 = arith.index_cast %26 : i32 to index
    %c18_26 = arith.constant 18 : index
    %c0_27 = arith.constant 0 : index
    %28 = vector.load %arg2[%c0_25, %27, %c18_26, %c0_27] : memref<1x52x52x4xbf16, #tpu.memory_space<vmem>>, vector<1x16x16x4xbf16>
    %29 = vector.shape_cast %28 : vector<1x16x16x4xbf16> to vector<16x16x4xbf16>
    %c0_28 = arith.constant 0 : index
    %c0_29 = arith.constant 0 : index
    %c16 = arith.constant 16 : index
    %30 = vector.load %arg9[%c0_28, %c0_29, %c16] : memref<16x16x108xbf16, #tpu.memory_space<vmem>>, vector<16x16x4xbf16>
    tpu.vector_store %arg9[%c0_28, %c0_29, %c16], %29 {strides = array<i32>} : memref<16x16x108xbf16, #tpu.memory_space<vmem>>, vector<16x16x4xbf16>,
    %c18_i32_30 = arith.constant 18 : i32
    %31 = arith.addi %0, %c18_i32_30 : i32
    %c0_i32_31 = arith.constant 0 : i32
    %32 = arith.addi %31, %c0_i32_31 : i32
    %c0_32 = arith.constant 0 : index
    %33 = arith.index_cast %32 : i32 to index
    %c24_33 = arith.constant 24 : index
    %c0_34 = arith.constant 0 : index
    %34 = vector.load %arg2[%c0_32, %33, %c24_33, %c0_34] : memref<1x52x52x4xbf16, #tpu.memory_space<vmem>>, vector<1x16x16x4xbf16>
    %35 = vector.shape_cast %34 : vector<1x16x16x4xbf16> to vector<16x16x4xbf16>
    %c0_35 = arith.constant 0 : index
    %c0_36 = arith.constant 0 : index
    %c20 = arith.constant 20 : index
    %36 = vector.load %arg9[%c0_35, %c0_36, %c20] : memref<16x16x108xbf16, #tpu.memory_space<vmem>>, vector<16x16x4xbf16>
    tpu.vector_store %arg9[%c0_35, %c0_36, %c20], %35 {strides = array<i32>} : memref<16x16x108xbf16, #tpu.memory_space<vmem>>, vector<16x16x4xbf16>,
    %c18_i32_37 = arith.constant 18 : i32
    %37 = arith.addi %0, %c18_i32_37 : i32
    %c6_i32 = arith.constant 6 : i32
    %38 = arith.addi %37, %c6_i32 : i32
    %c0_38 = arith.constant 0 : index
    %39 = arith.index_cast %38 : i32 to index
    %c12_39 = arith.constant 12 : index
    %c0_40 = arith.constant 0 : index
    %40 = vector.load %arg2[%c0_38, %39, %c12_39, %c0_40] : memref<1x52x52x4xbf16, #tpu.memory_space<vmem>>, vector<1x16x16x4xbf16>
    %41 = vector.shape_cast %40 : vector<1x16x16x4xbf16> to vector<16x16x4xbf16>
    %c0_41 = arith.constant 0 : index
    %c0_42 = arith.constant 0 : index
    %c24_43 = arith.constant 24 : index
    %42 = vector.load %arg9[%c0_41, %c0_42, %c24_43] : memref<16x16x108xbf16, #tpu.memory_space<vmem>>, vector<16x16x4xbf16>
    tpu.vector_store %arg9[%c0_41, %c0_42, %c24_43], %41 {strides = array<i32>} : memref<16x16x108xbf16, #tpu.memory_space<vmem>>, vector<16x16x4xbf16>,
    %c18_i32_44 = arith.constant 18 : i32
    %43 = arith.addi %0, %c18_i32_44 : i32
    %c6_i32_45 = arith.constant 6 : i32
    %44 = arith.addi %43, %c6_i32_45 : i32
    %c0_46 = arith.constant 0 : index
    %45 = arith.index_cast %44 : i32 to index
    %c18_47 = arith.constant 18 : index
    %c0_48 = arith.constant 0 : index
    %46 = vector.load %arg2[%c0_46, %45, %c18_47, %c0_48] : memref<1x52x52x4xbf16, #tpu.memory_space<vmem>>, vector<1x16x16x4xbf16>
    %47 = vector.shape_cast %46 : vector<1x16x16x4xbf16> to vector<16x16x4xbf16>
    %c0_49 = arith.constant 0 : index
    %c0_50 = arith.constant 0 : index
    %c28 = arith.constant 28 : index
    %48 = vector.load %arg9[%c0_49, %c0_50, %c28] : memref<16x16x108xbf16, #tpu.memory_space<vmem>>, vector<16x16x4xbf16>
    tpu.vector_store %arg9[%c0_49, %c0_50, %c28], %47 {strides = array<i32>} : memref<16x16x108xbf16, #tpu.memory_space<vmem>>, vector<16x16x4xbf16>,
    %c18_i32_51 = arith.constant 18 : i32
    %49 = arith.addi %0, %c18_i32_51 : i32
    %c6_i32_52 = arith.constant 6 : i32
    %50 = arith.addi %49, %c6_i32_52 : i32
    %c0_53 = arith.constant 0 : index
    %51 = arith.index_cast %50 : i32 to index
    %c24_54 = arith.constant 24 : index
    %c0_55 = arith.constant 0 : index
    %52 = vector.load %arg2[%c0_53, %51, %c24_54, %c0_55] : memref<1x52x52x4xbf16, #tpu.memory_space<vmem>>, vector<1x16x16x4xbf16>
    %53 = vector.shape_cast %52 : vector<1x16x16x4xbf16> to vector<16x16x4xbf16>
    %c0_56 = arith.constant 0 : index
    %c0_57 = arith.constant 0 : index
    %c32 = arith.constant 32 : index
    %54 = vector.load %arg9[%c0_56, %c0_57, %c32] : memref<16x16x108xbf16, #tpu.memory_space<vmem>>, vector<16x16x4xbf16>
    tpu.vector_store %arg9[%c0_56, %c0_57, %c32], %53 {strides = array<i32>} : memref<16x16x108xbf16, #tpu.memory_space<vmem>>, vector<16x16x4xbf16>,
    %c18_i32_58 = arith.constant 18 : i32
    %55 = arith.addi %0, %c18_i32_58 : i32
    %c-12_i32 = arith.constant -12 : i32
    %56 = arith.addi %55, %c-12_i32 : i32
    %c0_59 = arith.constant 0 : index
    %57 = arith.index_cast %56 : i32 to index
    %c6 = arith.constant 6 : index
    %c0_60 = arith.constant 0 : index
    %58 = vector.load %arg2[%c0_59, %57, %c6, %c0_60] : memref<1x52x52x4xbf16, #tpu.memory_space<vmem>>, vector<1x16x16x4xbf16>
    %59 = vector.shape_cast %58 : vector<1x16x16x4xbf16> to vector<16x16x4xbf16>
    %c0_61 = arith.constant 0 : index
    %c0_62 = arith.constant 0 : index
    %c36 = arith.constant 36 : index
    %60 = vector.load %arg9[%c0_61, %c0_62, %c36] : memref<16x16x108xbf16, #tpu.memory_space<vmem>>, vector<16x16x4xbf16>
    tpu.vector_store %arg9[%c0_61, %c0_62, %c36], %59 {strides = array<i32>} : memref<16x16x108xbf16, #tpu.memory_space<vmem>>, vector<16x16x4xbf16>,
    %c18_i32_63 = arith.constant 18 : i32
    %61 = arith.addi %0, %c18_i32_63 : i32
    %c-12_i32_64 = arith.constant -12 : i32
    %62 = arith.addi %61, %c-12_i32_64 : i32
    %c0_65 = arith.constant 0 : index
    %63 = arith.index_cast %62 : i32 to index
    %c18_66 = arith.constant 18 : index
    %c0_67 = arith.constant 0 : index
    %64 = vector.load %arg2[%c0_65, %63, %c18_66, %c0_67] : memref<1x52x52x4xbf16, #tpu.memory_space<vmem>>, vector<1x16x16x4xbf16>
    %65 = vector.shape_cast %64 : vector<1x16x16x4xbf16> to vector<16x16x4xbf16>
    %c0_68 = arith.constant 0 : index
    %c0_69 = arith.constant 0 : index
    %c40 = arith.constant 40 : index
    %66 = vector.load %arg9[%c0_68, %c0_69, %c40] : memref<16x16x108xbf16, #tpu.memory_space<vmem>>, vector<16x16x4xbf16>
    tpu.vector_store %arg9[%c0_68, %c0_69, %c40], %65 {strides = array<i32>} : memref<16x16x108xbf16, #tpu.memory_space<vmem>>, vector<16x16x4xbf16>,
    %c18_i32_70 = arith.constant 18 : i32
    %67 = arith.addi %0, %c18_i32_70 : i32
    %c-12_i32_71 = arith.constant -12 : i32
    %68 = arith.addi %67, %c-12_i32_71 : i32
    %c0_72 = arith.constant 0 : index
    %69 = arith.index_cast %68 : i32 to index
    %c30 = arith.constant 30 : index
    %c0_73 = arith.constant 0 : index
    %70 = vector.load %arg2[%c0_72, %69, %c30, %c0_73] : memref<1x52x52x4xbf16, #tpu.memory_space<vmem>>, vector<1x16x16x4xbf16>
    %71 = vector.shape_cast %70 : vector<1x16x16x4xbf16> to vector<16x16x4xbf16>
    %c0_74 = arith.constant 0 : index
    %c0_75 = arith.constant 0 : index
    %c44 = arith.constant 44 : index
    %72 = vector.load %arg9[%c0_74, %c0_75, %c44] : memref<16x16x108xbf16, #tpu.memory_space<vmem>>, vector<16x16x4xbf16>
    tpu.vector_store %arg9[%c0_74, %c0_75, %c44], %71 {strides = array<i32>} : memref<16x16x108xbf16, #tpu.memory_space<vmem>>, vector<16x16x4xbf16>,
    %c18_i32_76 = arith.constant 18 : i32
    %73 = arith.addi %0, %c18_i32_76 : i32
    %c0_i32_77 = arith.constant 0 : i32
    %74 = arith.addi %73, %c0_i32_77 : i32
    %c0_78 = arith.constant 0 : index
    %75 = arith.index_cast %74 : i32 to index
    %c6_79 = arith.constant 6 : index
    %c0_80 = arith.constant 0 : index
    %76 = vector.load %arg2[%c0_78, %75, %c6_79, %c0_80] : memref<1x52x52x4xbf16, #tpu.memory_space<vmem>>, vector<1x16x16x4xbf16>
    %77 = vector.shape_cast %76 : vector<1x16x16x4xbf16> to vector<16x16x4xbf16>
    %c0_81 = arith.constant 0 : index
    %c0_82 = arith.constant 0 : index
    %c48 = arith.constant 48 : index
    %78 = vector.load %arg9[%c0_81, %c0_82, %c48] : memref<16x16x108xbf16, #tpu.memory_space<vmem>>, vector<16x16x4xbf16>
    tpu.vector_store %arg9[%c0_81, %c0_82, %c48], %77 {strides = array<i32>} : memref<16x16x108xbf16, #tpu.memory_space<vmem>>, vector<16x16x4xbf16>,
    %c18_i32_83 = arith.constant 18 : i32
    %79 = arith.addi %0, %c18_i32_83 : i32
    %c0_i32_84 = arith.constant 0 : i32
    %80 = arith.addi %79, %c0_i32_84 : i32
    %c0_85 = arith.constant 0 : index
    %81 = arith.index_cast %80 : i32 to index
    %c18_86 = arith.constant 18 : index
    %c0_87 = arith.constant 0 : index
    %82 = vector.load %arg2[%c0_85, %81, %c18_86, %c0_87] : memref<1x52x52x4xbf16, #tpu.memory_space<vmem>>, vector<1x16x16x4xbf16>
    %83 = vector.shape_cast %82 : vector<1x16x16x4xbf16> to vector<16x16x4xbf16>
    %c0_88 = arith.constant 0 : index
    %c0_89 = arith.constant 0 : index
    %c52 = arith.constant 52 : index
    %84 = vector.load %arg9[%c0_88, %c0_89, %c52] : memref<16x16x108xbf16, #tpu.memory_space<vmem>>, vector<16x16x4xbf16>
    tpu.vector_store %arg9[%c0_88, %c0_89, %c52], %83 {strides = array<i32>} : memref<16x16x108xbf16, #tpu.memory_space<vmem>>, vector<16x16x4xbf16>,
    %c18_i32_90 = arith.constant 18 : i32
    %85 = arith.addi %0, %c18_i32_90 : i32
    %c0_i32_91 = arith.constant 0 : i32
    %86 = arith.addi %85, %c0_i32_91 : i32
    %c0_92 = arith.constant 0 : index
    %87 = arith.index_cast %86 : i32 to index
    %c30_93 = arith.constant 30 : index
    %c0_94 = arith.constant 0 : index
    %88 = vector.load %arg2[%c0_92, %87, %c30_93, %c0_94] : memref<1x52x52x4xbf16, #tpu.memory_space<vmem>>, vector<1x16x16x4xbf16>
    %89 = vector.shape_cast %88 : vector<1x16x16x4xbf16> to vector<16x16x4xbf16>
    %c0_95 = arith.constant 0 : index
    %c0_96 = arith.constant 0 : index
    %c56 = arith.constant 56 : index
    %90 = vector.load %arg9[%c0_95, %c0_96, %c56] : memref<16x16x108xbf16, #tpu.memory_space<vmem>>, vector<16x16x4xbf16>
    tpu.vector_store %arg9[%c0_95, %c0_96, %c56], %89 {strides = array<i32>} : memref<16x16x108xbf16, #tpu.memory_space<vmem>>, vector<16x16x4xbf16>,
    %c18_i32_97 = arith.constant 18 : i32
    %91 = arith.addi %0, %c18_i32_97 : i32
    %c12_i32 = arith.constant 12 : i32
    %92 = arith.addi %91, %c12_i32 : i32
    %c0_98 = arith.constant 0 : index
    %93 = arith.index_cast %92 : i32 to index
    %c6_99 = arith.constant 6 : index
    %c0_100 = arith.constant 0 : index
    %94 = vector.load %arg2[%c0_98, %93, %c6_99, %c0_100] : memref<1x52x52x4xbf16, #tpu.memory_space<vmem>>, vector<1x16x16x4xbf16>
    %95 = vector.shape_cast %94 : vector<1x16x16x4xbf16> to vector<16x16x4xbf16>
    %c0_101 = arith.constant 0 : index
    %c0_102 = arith.constant 0 : index
    %c60 = arith.constant 60 : index
    %96 = vector.load %arg9[%c0_101, %c0_102, %c60] : memref<16x16x108xbf16, #tpu.memory_space<vmem>>, vector<16x16x4xbf16>
    tpu.vector_store %arg9[%c0_101, %c0_102, %c60], %95 {strides = array<i32>} : memref<16x16x108xbf16, #tpu.memory_space<vmem>>, vector<16x16x4xbf16>,
    %c18_i32_103 = arith.constant 18 : i32
    %97 = arith.addi %0, %c18_i32_103 : i32
    %c12_i32_104 = arith.constant 12 : i32
    %98 = arith.addi %97, %c12_i32_104 : i32
    %c0_105 = arith.constant 0 : index
    %99 = arith.index_cast %98 : i32 to index
    %c18_106 = arith.constant 18 : index
    %c0_107 = arith.constant 0 : index
    %100 = vector.load %arg2[%c0_105, %99, %c18_106, %c0_107] : memref<1x52x52x4xbf16, #tpu.memory_space<vmem>>, vector<1x16x16x4xbf16>
    %101 = vector.shape_cast %100 : vector<1x16x16x4xbf16> to vector<16x16x4xbf16>
    %c0_108 = arith.constant 0 : index
    %c0_109 = arith.constant 0 : index
    %c64 = arith.constant 64 : index
    %102 = vector.load %arg9[%c0_108, %c0_109, %c64] : memref<16x16x108xbf16, #tpu.memory_space<vmem>>, vector<16x16x4xbf16>
    tpu.vector_store %arg9[%c0_108, %c0_109, %c64], %101 {strides = array<i32>} : memref<16x16x108xbf16, #tpu.memory_space<vmem>>, vector<16x16x4xbf16>,
    %c18_i32_110 = arith.constant 18 : i32
    %103 = arith.addi %0, %c18_i32_110 : i32
    %c12_i32_111 = arith.constant 12 : i32
    %104 = arith.addi %103, %c12_i32_111 : i32
    %c0_112 = arith.constant 0 : index
    %105 = arith.index_cast %104 : i32 to index
    %c30_113 = arith.constant 30 : index
    %c0_114 = arith.constant 0 : index
    %106 = vector.load %arg2[%c0_112, %105, %c30_113, %c0_114] : memref<1x52x52x4xbf16, #tpu.memory_space<vmem>>, vector<1x16x16x4xbf16>
    %107 = vector.shape_cast %106 : vector<1x16x16x4xbf16> to vector<16x16x4xbf16>
    %c0_115 = arith.constant 0 : index
    %c0_116 = arith.constant 0 : index
    %c68 = arith.constant 68 : index
    %108 = vector.load %arg9[%c0_115, %c0_116, %c68] : memref<16x16x108xbf16, #tpu.memory_space<vmem>>, vector<16x16x4xbf16>
    tpu.vector_store %arg9[%c0_115, %c0_116, %c68], %107 {strides = array<i32>} : memref<16x16x108xbf16, #tpu.memory_space<vmem>>, vector<16x16x4xbf16>,
    %c18_i32_117 = arith.constant 18 : i32
    %109 = arith.addi %0, %c18_i32_117 : i32
    %c-18_i32 = arith.constant -18 : i32
    %110 = arith.addi %109, %c-18_i32 : i32
    %c0_118 = arith.constant 0 : index
    %111 = arith.index_cast %110 : i32 to index
    %c0_119 = arith.constant 0 : index
    %c0_120 = arith.constant 0 : index
    %112 = vector.load %arg2[%c0_118, %111, %c0_119, %c0_120] : memref<1x52x52x4xbf16, #tpu.memory_space<vmem>>, vector<1x16x16x4xbf16>
    %113 = vector.shape_cast %112 : vector<1x16x16x4xbf16> to vector<16x16x4xbf16>
    %c0_121 = arith.constant 0 : index
    %c0_122 = arith.constant 0 : index
    %c72 = arith.constant 72 : index
    %114 = vector.load %arg9[%c0_121, %c0_122, %c72] : memref<16x16x108xbf16, #tpu.memory_space<vmem>>, vector<16x16x4xbf16>
    tpu.vector_store %arg9[%c0_121, %c0_122, %c72], %113 {strides = array<i32>} : memref<16x16x108xbf16, #tpu.memory_space<vmem>>, vector<16x16x4xbf16>,
    %c18_i32_123 = arith.constant 18 : i32
    %115 = arith.addi %0, %c18_i32_123 : i32
    %c-18_i32_124 = arith.constant -18 : i32
    %116 = arith.addi %115, %c-18_i32_124 : i32
    %c0_125 = arith.constant 0 : index
    %117 = arith.index_cast %116 : i32 to index
    %c18_126 = arith.constant 18 : index
    %c0_127 = arith.constant 0 : index
    %118 = vector.load %arg2[%c0_125, %117, %c18_126, %c0_127] : memref<1x52x52x4xbf16, #tpu.memory_space<vmem>>, vector<1x16x16x4xbf16>
    %119 = vector.shape_cast %118 : vector<1x16x16x4xbf16> to vector<16x16x4xbf16>
    %c0_128 = arith.constant 0 : index
    %c0_129 = arith.constant 0 : index
    %c76 = arith.constant 76 : index
    %120 = vector.load %arg9[%c0_128, %c0_129, %c76] : memref<16x16x108xbf16, #tpu.memory_space<vmem>>, vector<16x16x4xbf16>
    tpu.vector_store %arg9[%c0_128, %c0_129, %c76], %119 {strides = array<i32>} : memref<16x16x108xbf16, #tpu.memory_space<vmem>>, vector<16x16x4xbf16>,
    %c18_i32_130 = arith.constant 18 : i32
    %121 = arith.addi %0, %c18_i32_130 : i32
    %c-18_i32_131 = arith.constant -18 : i32
    %122 = arith.addi %121, %c-18_i32_131 : i32
    %c0_132 = arith.constant 0 : index
    %123 = arith.index_cast %122 : i32 to index
    %c36_133 = arith.constant 36 : index
    %c0_134 = arith.constant 0 : index
    %124 = vector.load %arg2[%c0_132, %123, %c36_133, %c0_134] : memref<1x52x52x4xbf16, #tpu.memory_space<vmem>>, vector<1x16x16x4xbf16>
    %125 = vector.shape_cast %124 : vector<1x16x16x4xbf16> to vector<16x16x4xbf16>
    %c0_135 = arith.constant 0 : index
    %c0_136 = arith.constant 0 : index
    %c80 = arith.constant 80 : index
    %126 = vector.load %arg9[%c0_135, %c0_136, %c80] : memref<16x16x108xbf16, #tpu.memory_space<vmem>>, vector<16x16x4xbf16>
    tpu.vector_store %arg9[%c0_135, %c0_136, %c80], %125 {strides = array<i32>} : memref<16x16x108xbf16, #tpu.memory_space<vmem>>, vector<16x16x4xbf16>,
    %c18_i32_137 = arith.constant 18 : i32
    %127 = arith.addi %0, %c18_i32_137 : i32
    %c0_i32_138 = arith.constant 0 : i32
    %128 = arith.addi %127, %c0_i32_138 : i32
    %c0_139 = arith.constant 0 : index
    %129 = arith.index_cast %128 : i32 to index
    %c0_140 = arith.constant 0 : index
    %c0_141 = arith.constant 0 : index
    %130 = vector.load %arg2[%c0_139, %129, %c0_140, %c0_141] : memref<1x52x52x4xbf16, #tpu.memory_space<vmem>>, vector<1x16x16x4xbf16>
    %131 = vector.shape_cast %130 : vector<1x16x16x4xbf16> to vector<16x16x4xbf16>
    %c0_142 = arith.constant 0 : index
    %c0_143 = arith.constant 0 : index
    %c84 = arith.constant 84 : index
    %132 = vector.load %arg9[%c0_142, %c0_143, %c84] : memref<16x16x108xbf16, #tpu.memory_space<vmem>>, vector<16x16x4xbf16>
    tpu.vector_store %arg9[%c0_142, %c0_143, %c84], %131 {strides = array<i32>} : memref<16x16x108xbf16, #tpu.memory_space<vmem>>, vector<16x16x4xbf16>,
    %c18_i32_144 = arith.constant 18 : i32
    %133 = arith.addi %0, %c18_i32_144 : i32
    %c0_i32_145 = arith.constant 0 : i32
    %134 = arith.addi %133, %c0_i32_145 : i32
    %c0_146 = arith.constant 0 : index
    %135 = arith.index_cast %134 : i32 to index
    %c18_147 = arith.constant 18 : index
    %c0_148 = arith.constant 0 : index
    %136 = vector.load %arg2[%c0_146, %135, %c18_147, %c0_148] : memref<1x52x52x4xbf16, #tpu.memory_space<vmem>>, vector<1x16x16x4xbf16>
    %137 = vector.shape_cast %136 : vector<1x16x16x4xbf16> to vector<16x16x4xbf16>
    %c0_149 = arith.constant 0 : index
    %c0_150 = arith.constant 0 : index
    %c88 = arith.constant 88 : index
    %138 = vector.load %arg9[%c0_149, %c0_150, %c88] : memref<16x16x108xbf16, #tpu.memory_space<vmem>>, vector<16x16x4xbf16>
    tpu.vector_store %arg9[%c0_149, %c0_150, %c88], %137 {strides = array<i32>} : memref<16x16x108xbf16, #tpu.memory_space<vmem>>, vector<16x16x4xbf16>,
    %c18_i32_151 = arith.constant 18 : i32
    %139 = arith.addi %0, %c18_i32_151 : i32
    %c0_i32_152 = arith.constant 0 : i32
    %140 = arith.addi %139, %c0_i32_152 : i32
    %c0_153 = arith.constant 0 : index
    %141 = arith.index_cast %140 : i32 to index
    %c36_154 = arith.constant 36 : index
    %c0_155 = arith.constant 0 : index
    %142 = vector.load %arg2[%c0_153, %141, %c36_154, %c0_155] : memref<1x52x52x4xbf16, #tpu.memory_space<vmem>>, vector<1x16x16x4xbf16>
    %143 = vector.shape_cast %142 : vector<1x16x16x4xbf16> to vector<16x16x4xbf16>
    %c0_156 = arith.constant 0 : index
    %c0_157 = arith.constant 0 : index
    %c92 = arith.constant 92 : index
    %144 = vector.load %arg9[%c0_156, %c0_157, %c92] : memref<16x16x108xbf16, #tpu.memory_space<vmem>>, vector<16x16x4xbf16>
    tpu.vector_store %arg9[%c0_156, %c0_157, %c92], %143 {strides = array<i32>} : memref<16x16x108xbf16, #tpu.memory_space<vmem>>, vector<16x16x4xbf16>,
    %c18_i32_158 = arith.constant 18 : i32
    %145 = arith.addi %0, %c18_i32_158 : i32
    %c18_i32_159 = arith.constant 18 : i32
    %146 = arith.addi %145, %c18_i32_159 : i32
    %c0_160 = arith.constant 0 : index
    %147 = arith.index_cast %146 : i32 to index
    %c0_161 = arith.constant 0 : index
    %c0_162 = arith.constant 0 : index
    %148 = vector.load %arg2[%c0_160, %147, %c0_161, %c0_162] : memref<1x52x52x4xbf16, #tpu.memory_space<vmem>>, vector<1x16x16x4xbf16>
    %149 = vector.shape_cast %148 : vector<1x16x16x4xbf16> to vector<16x16x4xbf16>
    %c0_163 = arith.constant 0 : index
    %c0_164 = arith.constant 0 : index
    %c96 = arith.constant 96 : index
    %150 = vector.load %arg9[%c0_163, %c0_164, %c96] : memref<16x16x108xbf16, #tpu.memory_space<vmem>>, vector<16x16x4xbf16>
    tpu.vector_store %arg9[%c0_163, %c0_164, %c96], %149 {strides = array<i32>} : memref<16x16x108xbf16, #tpu.memory_space<vmem>>, vector<16x16x4xbf16>,
    %c18_i32_165 = arith.constant 18 : i32
    %151 = arith.addi %0, %c18_i32_165 : i32
    %c18_i32_166 = arith.constant 18 : i32
    %152 = arith.addi %151, %c18_i32_166 : i32
    %c0_167 = arith.constant 0 : index
    %153 = arith.index_cast %152 : i32 to index
    %c18_168 = arith.constant 18 : index
    %c0_169 = arith.constant 0 : index
    %154 = vector.load %arg2[%c0_167, %153, %c18_168, %c0_169] : memref<1x52x52x4xbf16, #tpu.memory_space<vmem>>, vector<1x16x16x4xbf16>
    %155 = vector.shape_cast %154 : vector<1x16x16x4xbf16> to vector<16x16x4xbf16>
    %c0_170 = arith.constant 0 : index
    %c0_171 = arith.constant 0 : index
    %c100 = arith.constant 100 : index
    %156 = vector.load %arg9[%c0_170, %c0_171, %c100] : memref<16x16x108xbf16, #tpu.memory_space<vmem>>, vector<16x16x4xbf16>
    tpu.vector_store %arg9[%c0_170, %c0_171, %c100], %155 {strides = array<i32>} : memref<16x16x108xbf16, #tpu.memory_space<vmem>>, vector<16x16x4xbf16>,
    %c18_i32_172 = arith.constant 18 : i32
    %157 = arith.addi %0, %c18_i32_172 : i32
    %c18_i32_173 = arith.constant 18 : i32
    %158 = arith.addi %157, %c18_i32_173 : i32
    %c0_174 = arith.constant 0 : index
    %159 = arith.index_cast %158 : i32 to index
    %c36_175 = arith.constant 36 : index
    %c0_176 = arith.constant 0 : index
    %160 = vector.load %arg2[%c0_174, %159, %c36_175, %c0_176] : memref<1x52x52x4xbf16, #tpu.memory_space<vmem>>, vector<1x16x16x4xbf16>
    %161 = vector.shape_cast %160 : vector<1x16x16x4xbf16> to vector<16x16x4xbf16>
    %c0_177 = arith.constant 0 : index
    %c0_178 = arith.constant 0 : index
    %c104 = arith.constant 104 : index
    %162 = vector.load %arg9[%c0_177, %c0_178, %c104] : memref<16x16x108xbf16, #tpu.memory_space<vmem>>, vector<16x16x4xbf16>
    tpu.vector_store %arg9[%c0_177, %c0_178, %c104], %161 {strides = array<i32>} : memref<16x16x108xbf16, #tpu.memory_space<vmem>>, vector<16x16x4xbf16>,
    %c0_179 = arith.constant 0 : index
    %c0_180 = arith.constant 0 : index
    %c0_181 = arith.constant 0 : index
    %163 = vector.load %arg9[%c0_179, %c0_180, %c0_181] : memref<16x16x108xbf16, #tpu.memory_space<vmem>>, vector<16x16x108xbf16>
    %164 = vector.shape_cast %163 : vector<16x16x108xbf16> to vector<256x108xbf16>
    %c0_182 = arith.constant 0 : index
    %c0_183 = arith.constant 0 : index
    %165 = vector.load %arg4[%c0_182, %c0_183] : memref<108x384xbf16, #tpu.memory_space<vmem>>, vector<108x384xbf16>
    %cst = arith.constant dense<0.000000e+00> : vector<256x384xf32>
    %166 = tpu.matmul %164, %165, %cst {dimension_numbers = #tpu.dot_dimension_numbers<[1], [0], [0], [1], [0, 0, 1, 1], [], []>} : vector<256x108xbf16>, vector<108x384xbf16>, vector<256x384xf32> -> vector<256x384xf32>
    %c0_184 = arith.constant 0 : index
    %c0_185 = arith.constant 0 : index
    %167 = vector.load %arg5[%c0_184, %c0_185] : memref<1x384xf32, #tpu.memory_space<vmem>>, vector<1x384xf32>
    %168 = vector.broadcast %167 : vector<1x384xf32> to vector<256x384xf32>
    %169 = arith.addf %166, %168 : vector<256x384xf32>
    %cst_186 = arith.constant 0.000000e+00 : f32
    %170 = vector.broadcast %cst_186 : f32 to vector<256x384xf32>
    %171 = arith.maximumf %169, %170 : vector<256x384xf32>
    %172 = arith.truncf %171 : vector<256x384xf32> to vector<256x384xbf16>
    %c0_187 = arith.constant 0 : index
    %c0_188 = arith.constant 0 : index
    %173 = vector.load %arg3[%c0_187, %c0_188] : memref<256x128xbf16, #tpu.memory_space<vmem>>, vector<256x128xbf16>
    %174 = tpu.concatenate %172, %173 in 1 : vector<256x384xbf16>, vector<256x128xbf16> -> vector<256x512xbf16>
    %c0_189 = arith.constant 0 : index
    %c0_190 = arith.constant 0 : index
    %175 = vector.load %arg6[%c0_189, %c0_190] : memref<512x8xbf16, #tpu.memory_space<vmem>>, vector<512x8xbf16>
    %cst_191 = arith.constant dense<0.000000e+00> : vector<256x8xf32>
    %176 = tpu.matmul %174, %175, %cst_191 {dimension_numbers = #tpu.dot_dimension_numbers<[1], [0], [0], [1], [0, 0, 1, 1], [], []>} : vector<256x512xbf16>, vector<512x8xbf16>, vector<256x8xf32> -> vector<256x8xf32>
    %c0_192 = arith.constant 0 : index
    %c0_193 = arith.constant 0 : index
    %177 = vector.load %arg7[%c0_192, %c0_193] : memref<1x8xf32, #tpu.memory_space<vmem>>, vector<1x8xf32>
    %178 = vector.broadcast %177 : vector<1x8xf32> to vector<256x8xf32>
    %179 = arith.addf %176, %178 : vector<256x8xf32>
    %cst_194 = arith.constant 0.000000e+00 : f32
    %180 = vector.broadcast %cst_194 : f32 to vector<256x8xf32>
    %181 = arith.maximumf %179, %180 : vector<256x8xf32>
    %182 = tpu.transpose %181, [1, 0] : vector<256x8xf32> -> vector<8x256xf32>
    %c0_195 = arith.constant 0 : index
    %c0_196 = arith.constant 0 : index
    %c0_197 = arith.constant 0 : index
    %183 = vector.load %arg8[%c0_195, %c0_196, %c0_197] : memref<1x8x256xf32, #tpu.memory_space<vmem>>, vector<1x8x256xf32>
    %184 = vector.shape_cast %183 : vector<1x8x256xf32> to vector<8x256xf32>
    %185 = vector.shape_cast %182 : vector<8x256xf32> to vector<1x8x256xf32>
    tpu.vector_store %arg8[%c0_195, %c0_196, %c0_197], %185 {strides = array<i32>} : memref<1x8x256xf32, #tpu.memory_space<vmem>>, vector<1x8x256xf32>,
    return
  }
  func.func @transform_0(%arg0: i32, %arg1: i32) -> (i32, i32, i32, i32) {
    %c0_i32 = arith.constant 0 : i32
    %c0_i32_0 = arith.constant 0 : i32
    %c0_i32_1 = arith.constant 0 : i32
    %c0_i32_2 = arith.constant 0 : i32
    return %arg0, %c0_i32, %c0_i32_0, %c0_i32_1 : i32, i32, i32, i32
  }
  func.func @transform_1(%arg0: i32, %arg1: i32) -> (i32, i32) {
    %c1_i32 = arith.constant 1 : i32
    %0 = arith.muli %arg0, %c1_i32 : i32
    %1 = arith.addi %0, %arg1 : i32
    %c0_i32 = arith.constant 0 : i32
    %c0_i32_0 = arith.constant 0 : i32
    return %1, %c0_i32 : i32, i32
  }
  func.func @transform_2(%arg0: i32, %arg1: i32) -> (i32, i32) {
    %c0_i32 = arith.constant 0 : i32
    %c0_i32_0 = arith.constant 0 : i32
    %c0_i32_1 = arith.constant 0 : i32
    return %c0_i32, %c0_i32_0 : i32, i32
  }
  func.func @transform_3(%arg0: i32, %arg1: i32) -> (i32, i32) {
    %c0_i32 = arith.constant 0 : i32
    %c0_i32_0 = arith.constant 0 : i32
    %c0_i32_1 = arith.constant 0 : i32
    return %c0_i32, %c0_i32_0 : i32, i32
  }
  func.func @transform_4(%arg0: i32, %arg1: i32) -> (i32, i32) {
    %c0_i32 = arith.constant 0 : i32
    %c0_i32_0 = arith.constant 0 : i32
    %c0_i32_1 = arith.constant 0 : i32
    return %c0_i32, %c0_i32_0 : i32, i32
  }
  func.func @transform_5(%arg0: i32, %arg1: i32) -> (i32, i32) {
    %c0_i32 = arith.constant 0 : i32
    %c0_i32_0 = arith.constant 0 : i32
    %c0_i32_1 = arith.constant 0 : i32
    return %c0_i32, %c0_i32_0 : i32, i32
  }
  func.func @transform_6(%arg0: i32, %arg1: i32) -> (i32, i32, i32) {
    %c0_i32 = arith.constant 0 : i32
    %c0_i32_0 = arith.constant 0 : i32
    return %arg0, %c0_i32, %arg1 : i32, i32, i32
  }
}

</mosaic_0001>

<llo_original>
// kernel: aspp_forward_pallas.1
$region0: #{aspp_forward_pallas.1}
  #allocation0 [shape = 'u32[]', space=smem, size = 0x4, offset = 0x4, fixed_abs, tag = 'smem constant byte address 0x4 - core index']
  #allocation1 [shape = 'u32[144,128]{1,0:T(1,128)}', space=vmem, size = 0x12000, scoped, tag = 'internal scratch']
  #allocation2 [shape = 'bf16[16,16,108]{2,1,0:T(8,128)(2,1)}', space=vmem, size = 0x10000, scoped, tag = 'scratch operand']
  %s0 = inlined_call_operand.vmem [shape: bf16[2,52,52,4], index: 0, kind: input, shape index: {}]
  %s1 = inlined_call_operand.vmem [shape: bf16[512,128], index: 1, kind: input, shape index: {}]
  %s2 = inlined_call_operand.vmem [shape: bf16[108,384], index: 2, kind: input, shape index: {}]
  %s3 = inlined_call_operand.vmem [shape: f32[1,384], index: 3, kind: input, shape index: {}]
  %s4 = inlined_call_operand.vmem [shape: bf16[512,8], index: 4, kind: input, shape index: {}]
  %s5 = inlined_call_operand.vmem [shape: f32[1,8], index: 5, kind: input, shape index: {}]
  %s6 = inlined_call_operand.vmem [shape: f32[2,8,256], index: 6, kind: output, shape index: {}]
  %s7 = sld [smem:[#allocation0]]
  $region57: #{aspp_forward_pallas.1} parent=0
    _
  %s9 = ssub.s32 1, %s7
  %s10 = scalar_select 0, %s9, %s7
  loop: start=0, step=1, limit=4
  $region2: #{aspp_forward_pallas.1} parent=0 // loop_pre_header
    _
  $region3: #{aspp_forward_pallas.1} parent=0 // loop_header
    %s12 = sphi 0, %s16
    %p13 = scmp.ge.s32.totalorder %s12, 4
    %s19 = sphi 0, %s31
    %s20 = sphi 0, %s27
    %s21 = sphi 0, %s19
    %s22 = sphi 0, %s20
    %s23 = sphi 0, %s21
    %s24 = sphi 0, %s22
    %s34 = sphi 0, %s36
    %s37 = sphi 0, %s34
    %s38 = sphi 0, %s37
    %s54 = sphi 0, %s38
    %s62 = sphi 0, %s64
    %s65 = sphi 0, %s62
    %s66 = sphi 0, %s65
    %s82 = sphi 0, %s66
    %s86 = sphi 0, %s86
    %s88 = sphi 0, %s86
    %s89 = sphi 0, %s88
    %s103 = sphi 0, %s89
    %s107 = sphi 0, %s107
    %s109 = sphi 0, %s107
    %s110 = sphi 0, %s109
    %s124 = sphi 0, %s110
    %s128 = sphi 0, %s128
    %s130 = sphi 0, %s128
    %s131 = sphi 0, %s130
    %s145 = sphi 0, %s131
    %s149 = sphi 0, %s149
    %s151 = sphi 0, %s149
    %s152 = sphi 0, %s151
    %s166 = sphi 0, %s152
    %s174 = sphi 0, %s176
    %s177 = sphi 0, %s174
    %s178 = sphi 0, %s177
    %s194 = sphi 0, %s178
  $region4: #{aspp_forward_pallas.1} parent=0 // loop_header_branch
    %15 = sbr.rel (%p13) target = $region8
  $region5: #{aspp_forward_pallas.1} parent=0 // loop_body
    %s17 = ssub.s32 %s12, 1
    %s18 = ssub.s32 %s12, 2
    %s25 = sadd.s32 1, %s20
    %p26 = scmp.ge.s32.totalorder %s25, 1
    %s27 = scalar_select %p26, 0, %s25
    %s28 = sadd.s32 1, %s19
    %s29 = scalar_select %p26, %s28, %s19
    %p30 = scmp.ge.s32.totalorder %s29, 2
    %s31 = scalar_select %p30, 0, %s29
    %s32 = ssub.s32 %s19, %s31
    %p33 = scmp.eq.s32.totalorder %s32, 0
    %s35 = sadd.s32 %s34, 1
    %s36 = scalar_select %p33, %s34, %s35
    %p39 = pneg %p33
    %p40 = scmp.eq.s32.totalorder %s12, 1
    %p41 = por %p39, %p40
    %p42 = scmp.ne.s32.totalorder %s34, %s37
    %p43 = scmp.eq.s32.totalorder %s12, 0
    %p44 = por %p42, %p43
    %p45 = scmp.ne.s32.totalorder %s34, %s37
    %p46 = scmp.eq.s32.totalorder %s17, 1
    %p47 = por %p45, %p46
    %p48 = scmp.ne.s32.totalorder %s37, %s38
    %p49 = scmp.eq.s32.totalorder %s17, 0
    %p50 = por %p48, %p49
    %p51 = scmp.ne.s32.totalorder %s37, %s38
    %p52 = scmp.eq.s32.totalorder %s18, 1
    %p53 = por %p51, %p52
    %p55 = scmp.ne.s32.totalorder %s38, %s54
    %p56 = scmp.eq.s32.totalorder %s18, 0
    %p57 = por %p55, %p56
    %s58 = sadd.s32 %s19, %s20
    %s59 = sadd.s32 %s31, %s27
    %s60 = ssub.s32 %s58, %s59
    %p61 = scmp.eq.s32.totalorder %s60, 0
    %s63 = sadd.s32 %s62, 1
    %s64 = scalar_select %p61, %s62, %s63
    %p67 = pneg %p61
    %p68 = scmp.eq.s32.totalorder %s12, 1
    %p69 = por %p67, %p68
    %p70 = scmp.ne.s32.totalorder %s62, %s65
    %p71 = scmp.eq.s32.totalorder %s12, 0
    %p72 = por %p70, %p71
    %p73 = scmp.ne.s32.totalorder %s62, %s65
    %p74 = scmp.eq.s32.totalorder %s17, 1
    %p75 = por %p73, %p74
    %p76 = scmp.ne.s32.totalorder %s65, %s66
    %p77 = scmp.eq.s32.totalorder %s17, 0
    %p78 = por %p76, %p77
    %p79 = scmp.ne.s32.totalorder %s65, %s66
    %p80 = scmp.eq.s32.totalorder %s18, 1
    %p81 = por %p79, %p80
    %p83 = scmp.ne.s32.totalorder %s66, %s82
    %p84 = scmp.eq.s32.totalorder %s18, 0
    %p85 = por %p83, %p84
    %s87 = sadd.s32 %s86, 1
    %p90 = scmp.eq.s32.totalorder %s12, 1
    %p91 = scmp.ne.s32.totalorder %s86, %s88
    %p92 = scmp.eq.s32.totalorder %s12, 0
    %p93 = por %p91, %p92
    %p94 = scmp.ne.s32.totalorder %s86, %s88
    %p95 = scmp.eq.s32.totalorder %s17, 1
    %p96 = por %p94, %p95
    %p97 = scmp.ne.s32.totalorder %s88, %s89
    %p98 = scmp.eq.s32.totalorder %s17, 0
    %p99 = por %p97, %p98
    %p100 = scmp.ne.s32.totalorder %s88, %s89
    %p101 = scmp.eq.s32.totalorder %s18, 1
    %p102 = por %p100, %p101
    %p104 = scmp.ne.s32.totalorder %s89, %s103
    %p105 = scmp.eq.s32.totalorder %s18, 0
    %p106 = por %p104, %p105
    %s108 = sadd.s32 %s107, 1
    %p111 = scmp.eq.s32.totalorder %s12, 1
    %p112 = scmp.ne.s32.totalorder %s107, %s109
    %p113 = scmp.eq.s32.totalorder %s12, 0
    %p114 = por %p112, %p113
    %p115 = scmp.ne.s32.totalorder %s107, %s109
    %p116 = scmp.eq.s32.totalorder %s17, 1
    %p117 = por %p115, %p116
    %p118 = scmp.ne.s32.totalorder %s109, %s110
    %p119 = scmp.eq.s32.totalorder %s17, 0
    %p120 = por %p118, %p119
    %p121 = scmp.ne.s32.totalorder %s109, %s110
    %p122 = scmp.eq.s32.totalorder %s18, 1
    %p123 = por %p121, %p122
    %p125 = scmp.ne.s32.totalorder %s110, %s124
    %p126 = scmp.eq.s32.totalorder %s18, 0
    %p127 = por %p125, %p126
    %s129 = sadd.s32 %s128, 1
    %p132 = scmp.eq.s32.totalorder %s12, 1
    %p133 = scmp.ne.s32.totalorder %s128, %s130
    %p134 = scmp.eq.s32.totalorder %s12, 0
    %p135 = por %p133, %p134
    %p136 = scmp.ne.s32.totalorder %s128, %s130
    %p137 = scmp.eq.s32.totalorder %s17, 1
    %p138 = por %p136, %p137
    %p139 = scmp.ne.s32.totalorder %s130, %s131
    %p140 = scmp.eq.s32.totalorder %s17, 0
    %p141 = por %p139, %p140
    %p142 = scmp.ne.s32.totalorder %s130, %s131
    %p143 = scmp.eq.s32.totalorder %s18, 1
    %p144 = por %p142, %p143
    %p146 = scmp.ne.s32.totalorder %s131, %s145
    %p147 = scmp.eq.s32.totalorder %s18, 0
    %p148 = por %p146, %p147
    %s150 = sadd.s32 %s149, 1
    %p153 = scmp.eq.s32.totalorder %s12, 1
    %p154 = scmp.ne.s32.totalorder %s149, %s151
    %p155 = scmp.eq.s32.totalorder %s12, 0
    %p156 = por %p154, %p155
    %p157 = scmp.ne.s32.totalorder %s149, %s151
    %p158 = scmp.eq.s32.totalorder %s17, 1
    %p159 = por %p157, %p158
    %p160 = scmp.ne.s32.totalorder %s151, %s152
    %p161 = scmp.eq.s32.totalorder %s17, 0
    %p162 = por %p160, %p161
    %p163 = scmp.ne.s32.totalorder %s151, %s152
    %p164 = scmp.eq.s32.totalorder %s18, 1
    %p165 = por %p163, %p164
    %p167 = scmp.ne.s32.totalorder %s152, %s166
    %p168 = scmp.eq.s32.totalorder %s18, 0
    %p169 = por %p167, %p168
    %s170 = ssub.s32 %s19, %s31
    %s171 = ssub.s32 %s20, %s27
    %s172 = sor.u32 %s170, %s171
    %p173 = scmp.eq.s32.totalorder %s172, 0
    %s175 = sadd.s32 %s174, 1
    %s176 = scalar_select %p173, %s174, %s175
    %p179 = pneg %p173
    %p180 = scmp.eq.s32.totalorder %s12, 1
    %p181 = por %p179, %p180
    %p182 = scmp.ne.s32.totalorder %s174, %s177
    %p183 = scmp.eq.s32.totalorder %s12, 0
    %p184 = por %p182, %p183
    %p185 = scmp.ne.s32.totalorder %s174, %s177
    %p186 = scmp.eq.s32.totalorder %s17, 1
    %p187 = por %p185, %p186
    %p188 = scmp.ne.s32.totalorder %s177, %s178
    %p189 = scmp.eq.s32.totalorder %s17, 0
    %p190 = por %p188, %p189
    %p191 = scmp.ne.s32.totalorder %s177, %s178
    %p192 = scmp.eq.s32.totalorder %s18, 1
    %p193 = por %p191, %p192
    %p195 = scmp.ne.s32.totalorder %s178, %s194
    %p196 = scmp.eq.s32.totalorder %s18, 0
    %p197 = por %p195, %p196
    %p198 = scmp.le.s32.totalorder 1, %s12
    %p199 = scmp.lt.s32.totalorder %s12, 3
    %p200 = pnand %p198, %p199
    %p201 = pneg %p200
    // Predicated region
    $region9: #{aspp_forward_pallas.1} parent=5 // pred_check
      _
    $region10: #{aspp_forward_pallas.1} parent=5 // pred_check_branch
      %203 = sbr.rel (%p200) target = $region12
    $region11: #{aspp_forward_pallas.1} parent=5 // pred_region
      %s204 = ssub.s32 %s12, 1
      // Predicated region
      $region13: #{aspp_forward_pallas.1} parent=11 // pred_check
        %p205 = pneg %p99
      $region14: #{aspp_forward_pallas.1} parent=11 // pred_check_branch
        %207 = sbr.rel (%p205) target = $region16
      $region15: #{aspp_forward_pallas.1} parent=11 // pred_region
        _
      $region16: #{aspp_forward_pallas.1} parent=11 // pred_fallthru
        _
      // Predicated region
      $region17: #{aspp_forward_pallas.1} parent=11 // pred_check
        %p208 = pneg %p120
      $region18: #{aspp_forward_pallas.1} parent=11 // pred_check_branch
        %210 = sbr.rel (%p208) target = $region20
      $region19: #{aspp_forward_pallas.1} parent=11 // pred_region
        _
      $region20: #{aspp_forward_pallas.1} parent=11 // pred_fallthru
        _
      // Predicated region
      $region21: #{aspp_forward_pallas.1} parent=11 // pred_check
        %p211 = pneg %p141
      $region22: #{aspp_forward_pallas.1} parent=11 // pred_check_branch
        %213 = sbr.rel (%p211) target = $region24
      $region23: #{aspp_forward_pallas.1} parent=11 // pred_region
        _
      $region24: #{aspp_forward_pallas.1} parent=11 // pred_fallthru
        _
      // Predicated region
      $region25: #{aspp_forward_pallas.1} parent=11 // pred_check
        %p214 = pneg %p162
      $region26: #{aspp_forward_pallas.1} parent=11 // pred_check_branch
        %216 = sbr.rel (%p214) target = $region28
      $region27: #{aspp_forward_pallas.1} parent=11 // pred_region
        _
      $region28: #{aspp_forward_pallas.1} parent=11 // pred_fallthru
        _
    $region12: #{aspp_forward_pallas.1} parent=5 // pred_fallthru
      _
    %p217 = scmp.lt.s32.totalorder %s12, 2
    // Predicated region
    $region29: #{aspp_forward_pallas.1} parent=5 // pred_check
      %p218 = pneg %p217
    $region30: #{aspp_forward_pallas.1} parent=5 // pred_check_branch
      %220 = sbr.rel (%p218) target = $region32
    $region31: #{aspp_forward_pallas.1} parent=5 // pred_region
      // Predicated region
      $region33: #{aspp_forward_pallas.1} parent=31 // pred_check
        %p221 = pneg %p44
      $region34: #{aspp_forward_pallas.1} parent=31 // pred_check_branch
        %223 = sbr.rel (%p221) target = $region36
      $region35: #{aspp_forward_pallas.1} parent=31 // pred_region
        %p224 = scmp.lt.s32.totalorder %s19, 1
        %s225 = scalar_select %p224, %s19, 1
        %s226 = smul.addr %s225, 364
        %s227 = smul.addr %s226, 4
        %s228 = scalar_lea.vmem %s0, %s227
      $region36: #{aspp_forward_pallas.1} parent=31 // pred_fallthru
        _
      // Predicated region
      $region37: #{aspp_forward_pallas.1} parent=31 // pred_check
        %p229 = pneg %p72
      $region38: #{aspp_forward_pallas.1} parent=31 // pred_check_branch
        %231 = sbr.rel (%p229) target = $region40
      $region39: #{aspp_forward_pallas.1} parent=31 // pred_region
        %s232 = sadd.s32 %s19, %s20
        %s233 = smul.u32 32, %s232
        %p234 = scmp.lt.s32.totalorder %s233, 63
        %s235 = scalar_select %p234, %s233, 63
        %s236 = smul.addr %s235, 4
        %s237 = scalar_lea.vmem %s1, %s236
        %s238 = sadd.s32 %s19, %s20
        %s239 = smul.u32 32, %s238
      $region40: #{aspp_forward_pallas.1} parent=31 // pred_fallthru
        _
    $region32: #{aspp_forward_pallas.1} parent=5 // pred_fallthru
      _
    %p240 = scmp.le.s32.totalorder 1, %s12
    %p241 = scmp.lt.s32.totalorder %s12, 3
    %p242 = pnand %p240, %p241
    %p243 = pneg %p242
    // Predicated region
    $region41: #{aspp_forward_pallas.1} parent=5 // pred_check
      _
    $region42: #{aspp_forward_pallas.1} parent=5 // pred_check_branch
      %245 = sbr.rel (%p242) target = $region44
    $region43: #{aspp_forward_pallas.1} parent=5 // pred_region
      %s246 = ssub.s32 %s12, 1
      %p247 = scmp.lt.s32.totalorder %s21, 1
      %s248 = scalar_select %p247, %s21, 1
      %s249 = smul.addr %s248, 364
      %s250 = smul.addr %s249, 4
      %s251 = scalar_lea.vmem %s0, %s250
      %p252 = pneg %p50
      %p253 = pneg %p47
      %s254 = sadd.s32 %s21, %s22
      %s255 = smul.u32 32, %s254
      %p256 = scmp.lt.s32.totalorder %s255, 63
      %s257 = scalar_select %p256, %s255, 63
      %s258 = smul.addr %s257, 4
      %s259 = scalar_lea.vmem %s1, %s258
      %p260 = pneg %p78
      %p261 = pneg %p75
      %p262 = pneg %p99
      %p263 = pneg %p96
      %p264 = pneg %p120
      %p265 = pneg %p117
      %p266 = pneg %p141
      %p267 = pneg %p138
      %p268 = pneg %p162
      %p269 = pneg %p159
      %p270 = pneg %p190
      %p271 = pneg %p187
      %s272 = smul.u32 2, %s22
      %p273 = scmp.lt.s32.totalorder %s21, 1
      %s274 = scalar_select %p273, %s21, 1
      %p275 = scmp.lt.s32.totalorder %s272, 1
      %s276 = scalar_select %p275, %s272, 1
      %s277 = smul.addr %s274, 2
      %s278 = sadd.s32 %s276, %s277
      %s279 = smul.addr %s278, 8
      %s280 = scalar_lea.vmem %s6, %s279
      %p281 = scmp.lt.s32.totalorder %s21, 1
      %s282 = scalar_select %p281, %s21, 1
      %s283 = smul.addr %s282, 364
      %s284 = smul.addr %s283, 4
      %s285 = scalar_lea.vmem %s0, %s284
      %s286 = sadd.s32 %s21, %s22
      %s287 = smul.u32 32, %s286
      %p288 = scmp.lt.s32.totalorder %s287, 63
      %s289 = scalar_select %p288, %s287, 63
      %s290 = smul.addr %s289, 4
      %s291 = scalar_lea.vmem %s1, %s290
      %s292 = sadd.s32 %s21, %s22
      %s293 = smul.u32 32, %s292
      %s294 = smul.u32 2, %s22
      %p295 = scmp.lt.s32.totalorder %s21, 1
      %s296 = scalar_select %p295, %s21, 1
      %p297 = scmp.lt.s32.totalorder %s294, 1
      %s298 = scalar_select %p297, %s294, 1
      %s299 = smul.addr %s296, 2
      %s300 = sadd.s32 %s298, %s299
      %s301 = smul.addr %s300, 8
      %s302 = scalar_lea.vmem %s6, %s301
      %s303 = smul.u32 2, %s22
      %s305 = smul.u32 %s22, 16
      %s306 = sadd.s32 %s305, 12
      %s307 = smul.u32 %s306, 7
      %s308 = smul.addr %s307, 4
      %s309 = scalar_lea.vmem %s285, %s308
      %v310 = vld [vmem:[%s309 + $0x4] sm:$0xc]
      %v311 = vld [vmem:[%s309 + $0x8] sm:$0xf]
      %v312 = vld [vmem:[%s309 + $0xc] sm:$0x3]
      %v313 = vld [vmem:[%s309 + $0x20] sm:$0xc]
      %v314 = vld [vmem:[%s309 + $0x24] sm:$0xf]
      %v315 = vld [vmem:[%s309 + $0x28] sm:$0x3]
      %v316 = vld [vmem:[%s309 + $0x3c] sm:$0xc]
      %v317 = vld [vmem:[%s309 + $0x40] sm:$0xf]
      %v318 = vld [vmem:[%s309 + $0x44] sm:$0x3]
      %v319 = vld [vmem:[%s309 + $0x58] sm:$0xc]
      %v320 = vld [vmem:[%s309 + $0x5c] sm:$0xf]
      %v321 = vld [vmem:[%s309 + $0x60] sm:$0x3]
      %v322 = vld [vmem:[%s309 + $0x74] sm:$0xc]
      %v323 = vld [vmem:[%s309 + $0x78] sm:$0xf]
      %v324 = vld [vmem:[%s309 + $0x7c] sm:$0x3]
      %v325 = vld [vmem:[%s309 + $0x90] sm:$0xc]
      %v326 = vld [vmem:[%s309 + $0x94] sm:$0xf]
      %v327 = vld [vmem:[%s309 + $0x98] sm:$0x3]
      %v328 = vld [vmem:[%s309 + $0xac] sm:$0xc]
      %v329 = vld [vmem:[%s309 + $0xb0] sm:$0xf]
      %v330 = vld [vmem:[%s309 + $0xb4] sm:$0x3]
      %v331 = vld [vmem:[%s309 + $0xc8] sm:$0xc]
      %v332 = vld [vmem:[%s309 + $0xcc] sm:$0xf]
      %v333 = vld [vmem:[%s309 + $0xd0] sm:$0x3]
      %v334 = vld [vmem:[%s309 + $0xe4] sm:$0xc]
      %v335 = vld [vmem:[%s309 + $0xe8] sm:$0xf]
      %v336 = vld [vmem:[%s309 + $0xec] sm:$0x3]
      %v337 = vld [vmem:[%s309 + $0x100] sm:$0xc]
      %v338 = vld [vmem:[%s309 + $0x104] sm:$0xf]
      %v339 = vld [vmem:[%s309 + $0x108] sm:$0x3]
      %v340 = vld [vmem:[%s309 + $0x11c] sm:$0xc]
      %v341 = vld [vmem:[%s309 + $0x120] sm:$0xf]
      %v342 = vld [vmem:[%s309 + $0x124] sm:$0x3]
      %v343 = vld [vmem:[%s309 + $0x138] sm:$0xc]
      %v344 = vld [vmem:[%s309 + $0x13c] sm:$0xf]
      %v345 = vld [vmem:[%s309 + $0x140] sm:$0x3]
      %v346 = vld [vmem:[%s309 + $0x154] sm:$0xc]
      %v347 = vld [vmem:[%s309 + $0x158] sm:$0xf]
      %v348 = vld [vmem:[%s309 + $0x15c] sm:$0x3]
      %v349 = vld [vmem:[%s309 + $0x170] sm:$0xc]
      %v350 = vld [vmem:[%s309 + $0x174] sm:$0xf]
      %v351 = vld [vmem:[%s309 + $0x178] sm:$0x3]
      %v352 = vld [vmem:[%s309 + $0x18c] sm:$0xc]
      %v353 = vld [vmem:[%s309 + $0x190] sm:$0xf]
      %v354 = vld [vmem:[%s309 + $0x194] sm:$0x3]
      %v355 = vld [vmem:[%s309 + $0x1a8] sm:$0xc]
      %v356 = vld [vmem:[%s309 + $0x1ac] sm:$0xf]
      %v357 = vld [vmem:[%s309 + $0x1b0] sm:$0x3]
      %vm406 = vcmask 1041408
      %vm407 = vcmask 1045508
      %vm408 = vmor %vm406, %vm407
      %v409 = vrot.slane %v310, 6
      %v410 = vrot.slane %v409, 4
      %v411 = vrot.slane %v311, 6
      %v412 = vsel %vm408, %v410, %v411
      %v413 = vrot.slane %v411, 4
      %v414 = vrot.slane %v312, 6
      %v415 = vsel %vm408, %v413, %v414
      %v416 = vrot.slane %v313, 6
      %v417 = vrot.slane %v416, 4
      %v418 = vrot.slane %v314, 6
      %v419 = vsel %vm408, %v417, %v418
      %v420 = vrot.slane %v418, 4
      %v421 = vrot.slane %v315, 6
      %v422 = vsel %vm408, %v420, %v421
      %v423 = vrot.slane %v316, 6
      %v424 = vrot.slane %v423, 4
      %v425 = vrot.slane %v317, 6
      %v426 = vsel %vm408, %v424, %v425
      %v427 = vrot.slane %v425, 4
      %v428 = vrot.slane %v318, 6
      %v429 = vsel %vm408, %v427, %v428
      %v430 = vrot.slane %v319, 6
      %v431 = vrot.slane %v430, 4
      %v432 = vrot.slane %v320, 6
      %v433 = vsel %vm408, %v431, %v432
      %v434 = vrot.slane %v432, 4
      %v435 = vrot.slane %v321, 6
      %v436 = vsel %vm408, %v434, %v435
      %v437 = vrot.slane %v322, 6
      %v438 = vrot.slane %v437, 4
      %v439 = vrot.slane %v323, 6
      %v440 = vsel %vm408, %v438, %v439
      %v441 = vrot.slane %v439, 4
      %v442 = vrot.slane %v324, 6
      %v443 = vsel %vm408, %v441, %v442
      %v444 = vrot.slane %v325, 6
      %v445 = vrot.slane %v444, 4
      %v446 = vrot.slane %v326, 6
      %v447 = vsel %vm408, %v445, %v446
      %v448 = vrot.slane %v446, 4
      %v449 = vrot.slane %v327, 6
      %v450 = vsel %vm408, %v448, %v449
      %v451 = vrot.slane %v328, 6
      %v452 = vrot.slane %v451, 4
      %v453 = vrot.slane %v329, 6
      %v454 = vsel %vm408, %v452, %v453
      %v455 = vrot.slane %v453, 4
      %v456 = vrot.slane %v330, 6
      %v457 = vsel %vm408, %v455, %v456
      %v458 = vrot.slane %v331, 6
      %v459 = vrot.slane %v458, 4
      %v460 = vrot.slane %v332, 6
      %v461 = vsel %vm408, %v459, %v460
      %v462 = vrot.slane %v460, 4
      %v463 = vrot.slane %v333, 6
      %v464 = vsel %vm408, %v462, %v463
      %v465 = vrot.slane %v334, 6
      %v466 = vrot.slane %v465, 4
      %v467 = vrot.slane %v335, 6
      %v468 = vsel %vm408, %v466, %v467
      %v469 = vrot.slane %v467, 4
      %v470 = vrot.slane %v336, 6
      %v471 = vsel %vm408, %v469, %v470
      %v472 = vrot.slane %v337, 6
      %v473 = vrot.slane %v472, 4
      %v474 = vrot.slane %v338, 6
      %v475 = vsel %vm408, %v473, %v474
      %v476 = vrot.slane %v474, 4
      %v477 = vrot.slane %v339, 6
      %v478 = vsel %vm408, %v476, %v477
      %v479 = vrot.slane %v340, 6
      %v480 = vrot.slane %v479, 4
      %v481 = vrot.slane %v341, 6
      %v482 = vsel %vm408, %v480, %v481
      %v483 = vrot.slane %v481, 4
      %v484 = vrot.slane %v342, 6
      %v485 = vsel %vm408, %v483, %v484
      %v486 = vrot.slane %v343, 6
      %v487 = vrot.slane %v486, 4
      %v488 = vrot.slane %v344, 6
      %v489 = vsel %vm408, %v487, %v488
      %v490 = vrot.slane %v488, 4
      %v491 = vrot.slane %v345, 6
      %v492 = vsel %vm408, %v490, %v491
      %v493 = vrot.slane %v346, 6
      %v494 = vrot.slane %v493, 4
      %v495 = vrot.slane %v347, 6
      %v496 = vsel %vm408, %v494, %v495
      %v497 = vrot.slane %v495, 4
      %v498 = vrot.slane %v348, 6
      %v499 = vsel %vm408, %v497, %v498
      %v500 = vrot.slane %v349, 6
      %v501 = vrot.slane %v500, 4
      %v502 = vrot.slane %v350, 6
      %v503 = vsel %vm408, %v501, %v502
      %v504 = vrot.slane %v502, 4
      %v505 = vrot.slane %v351, 6
      %v506 = vsel %vm408, %v504, %v505
      %v507 = vrot.slane %v352, 6
      %v508 = vrot.slane %v507, 4
      %v509 = vrot.slane %v353, 6
      %v510 = vsel %vm408, %v508, %v509
      %v511 = vrot.slane %v509, 4
      %v512 = vrot.slane %v354, 6
      %v513 = vsel %vm408, %v511, %v512
      %v514 = vrot.slane %v355, 6
      %v515 = vrot.slane %v514, 4
      %v516 = vrot.slane %v356, 6
      %v517 = vsel %vm408, %v515, %v516
      %v518 = vrot.slane %v516, 4
      %v519 = vrot.slane %v357, 6
      %v520 = vsel %vm408, %v518, %v519
      %vm553 = vcmask 27648
      %554 = vst.msk [vmem:[#allocation2] sm:$0xf] %vm553, %v412
      %555 = vst.msk [vmem:[#allocation2 + $0x4] sm:$0xf] %vm553, %v415
      %556 = vst.msk [vmem:[#allocation2 + $0x8] sm:$0xf] %vm553, %v419
      %557 = vst.msk [vmem:[#allocation2 + $0xc] sm:$0xf] %vm553, %v422
      %558 = vst.msk [vmem:[#allocation2 + $0x10] sm:$0xf] %vm553, %v426
      %559 = vst.msk [vmem:[#allocation2 + $0x14] sm:$0xf] %vm553, %v429
      %560 = vst.msk [vmem:[#allocation2 + $0x18] sm:$0xf] %vm553, %v433
      %561 = vst.msk [vmem:[#allocation2 + $0x1c] sm:$0xf] %vm553, %v436
      %562 = vst.msk [vmem:[#allocation2 + $0x20] sm:$0xf] %vm553, %v440
      %563 = vst.msk [vmem:[#allocation2 + $0x24] sm:$0xf] %vm553, %v443
      %564 = vst.msk [vmem:[#allocation2 + $0x28] sm:$0xf] %vm553, %v447
      %565 = vst.msk [vmem:[#allocation2 + $0x2c] sm:$0xf] %vm553, %v450
      %566 = vst.msk [vmem:[#allocation2 + $0x30] sm:$0xf] %vm553, %v454
      %567 = vst.msk [vmem:[#allocation2 + $0x34] sm:$0xf] %vm553, %v457
      %568 = vst.msk [vmem:[#allocation2 + $0x38] sm:$0xf] %vm553, %v461
      %569 = vst.msk [vmem:[#allocation2 + $0x3c] sm:$0xf] %vm553, %v464
      %570 = vst.msk [vmem:[#allocation2 + $0x40] sm:$0xf] %vm553, %v468
      %571 = vst.msk [vmem:[#allocation2 + $0x44] sm:$0xf] %vm553, %v471
      %572 = vst.msk [vmem:[#allocation2 + $0x48] sm:$0xf] %vm553, %v475
      %573 = vst.msk [vmem:[#allocation2 + $0x4c] sm:$0xf] %vm553, %v478
      %574 = vst.msk [vmem:[#allocation2 + $0x50] sm:$0xf] %vm553, %v482
      %575 = vst.msk [vmem:[#allocation2 + $0x54] sm:$0xf] %vm553, %v485
      %576 = vst.msk [vmem:[#allocation2 + $0x58] sm:$0xf] %vm553, %v489
      %577 = vst.msk [vmem:[#allocation2 + $0x5c] sm:$0xf] %vm553, %v492
      %578 = vst.msk [vmem:[#allocation2 + $0x60] sm:$0xf] %vm553, %v496
      %579 = vst.msk [vmem:[#allocation2 + $0x64] sm:$0xf] %vm553, %v499
      %580 = vst.msk [vmem:[#allocation2 + $0x68] sm:$0xf] %vm553, %v503
      %581 = vst.msk [vmem:[#allocation2 + $0x6c] sm:$0xf] %vm553, %v506
      %582 = vst.msk [vmem:[#allocation2 + $0x70] sm:$0xf] %vm553, %v510
      %583 = vst.msk [vmem:[#allocation2 + $0x74] sm:$0xf] %vm553, %v513
      %584 = vst.msk [vmem:[#allocation2 + $0x78] sm:$0xf] %vm553, %v517
      %585 = vst.msk [vmem:[#allocation2 + $0x7c] sm:$0xf] %vm553, %v520
      %v586 = vld [vmem:[%s309 + $0x8] sm:$0xe]
      %v587 = vld [vmem:[%s309 + $0xc] sm:$0xf]
      %v588 = vld [vmem:[%s309 + $0x10] sm:$0x1]
      %v589 = vld [vmem:[%s309 + $0x24] sm:$0xe]
      %v590 = vld [vmem:[%s309 + $0x28] sm:$0xf]
      %v591 = vld [vmem:[%s309 + $0x2c] sm:$0x1]
      %v592 = vld [vmem:[%s309 + $0x40] sm:$0xe]
      %v593 = vld [vmem:[%s309 + $0x44] sm:$0xf]
      %v594 = vld [vmem:[%s309 + $0x48] sm:$0x1]
      %v595 = vld [vmem:[%s309 + $0x5c] sm:$0xe]
      %v596 = vld [vmem:[%s309 + $0x60] sm:$0xf]
      %v597 = vld [vmem:[%s309 + $0x64] sm:$0x1]
      %v598 = vld [vmem:[%s309 + $0x78] sm:$0xe]
      %v599 = vld [vmem:[%s309 + $0x7c] sm:$0xf]
      %v600 = vld [vmem:[%s309 + $0x80] sm:$0x1]
      %v601 = vld [vmem:[%s309 + $0x94] sm:$0xe]
      %v602 = vld [vmem:[%s309 + $0x98] sm:$0xf]
      %v603 = vld [vmem:[%s309 + $0x9c] sm:$0x1]
      %v604 = vld [vmem:[%s309 + $0xb0] sm:$0xe]
      %v605 = vld [vmem:[%s309 + $0xb4] sm:$0xf]
      %v606 = vld [vmem:[%s309 + $0xb8] sm:$0x1]
      %v607 = vld [vmem:[%s309 + $0xcc] sm:$0xe]
      %v608 = vld [vmem:[%s309 + $0xd0] sm:$0xf]
      %v609 = vld [vmem:[%s309 + $0xd4] sm:$0x1]
      %v610 = vld [vmem:[%s309 + $0xe8] sm:$0xe]
      %v611 = vld [vmem:[%s309 + $0xec] sm:$0xf]
      %v612 = vld [vmem:[%s309 + $0xf0] sm:$0x1]
      %v613 = vld [vmem:[%s309 + $0x104] sm:$0xe]
      %v614 = vld [vmem:[%s309 + $0x108] sm:$0xf]
      %v615 = vld [vmem:[%s309 + $0x10c] sm:$0x1]
      %v616 = vld [vmem:[%s309 + $0x120] sm:$0xe]
      %v617 = vld [vmem:[%s309 + $0x124] sm:$0xf]
      %v618 = vld [vmem:[%s309 + $0x128] sm:$0x1]
      %v619 = vld [vmem:[%s309 + $0x13c] sm:$0xe]
      %v620 = vld [vmem:[%s309 + $0x140] sm:$0xf]
      %v621 = vld [vmem:[%s309 + $0x144] sm:$0x1]
      %v622 = vld [vmem:[%s309 + $0x158] sm:$0xe]
      %v623 = vld [vmem:[%s309 + $0x15c] sm:$0xf]
      %v624 = vld [vmem:[%s309 + $0x160] sm:$0x1]
      %v625 = vld [vmem:[%s309 + $0x174] sm:$0xe]
      %v626 = vld [vmem:[%s309 + $0x178] sm:$0xf]
      %v627 = vld [vmem:[%s309 + $0x17c] sm:$0x1]
      %v628 = vld [vmem:[%s309 + $0x190] sm:$0xe]
      %v629 = vld [vmem:[%s309 + $0x194] sm:$0xf]
      %v630 = vld [vmem:[%s309 + $0x198] sm:$0x1]
      %v631 = vld [vmem:[%s309 + $0x1ac] sm:$0xe]
      %v632 = vld [vmem:[%s309 + $0x1b0] sm:$0xf]
      %v633 = vld [vmem:[%s309 + $0x1b4] sm:$0x1]
      %vm682 = vcmask 1042432
      %vm683 = vcmask 1046532
      %vm684 = vmor %vm682, %vm683
      %v685 = vrot.slane %v586, 5
      %v686 = vrot.slane %v685, 4
      %v687 = vrot.slane %v587, 5
      %v688 = vsel %vm684, %v686, %v687
      %v689 = vrot.slane %v687, 4
      %v690 = vrot.slane %v588, 5
      %v691 = vsel %vm684, %v689, %v690
      %v692 = vrot.slane %v589, 5
      %v693 = vrot.slane %v692, 4
      %v694 = vrot.slane %v590, 5
      %v695 = vsel %vm684, %v693, %v694
      %v696 = vrot.slane %v694, 4
      %v697 = vrot.slane %v591, 5
      %v698 = vsel %vm684, %v696, %v697
      %v699 = vrot.slane %v592, 5
      %v700 = vrot.slane %v699, 4
      %v701 = vrot.slane %v593, 5
      %v702 = vsel %vm684, %v700, %v701
      %v703 = vrot.slane %v701, 4
      %v704 = vrot.slane %v594, 5
      %v705 = vsel %vm684, %v703, %v704
      %v706 = vrot.slane %v595, 5
      %v707 = vrot.slane %v706, 4
      %v708 = vrot.slane %v596, 5
      %v709 = vsel %vm684, %v707, %v708
      %v710 = vrot.slane %v708, 4
      %v711 = vrot.slane %v597, 5
      %v712 = vsel %vm684, %v710, %v711
      %v713 = vrot.slane %v598, 5
      %v714 = vrot.slane %v713, 4
      %v715 = vrot.slane %v599, 5
      %v716 = vsel %vm684, %v714, %v715
      %v717 = vrot.slane %v715, 4
      %v718 = vrot.slane %v600, 5
      %v719 = vsel %vm684, %v717, %v718
      %v720 = vrot.slane %v601, 5
      %v721 = vrot.slane %v720, 4
      %v722 = vrot.slane %v602, 5
      %v723 = vsel %vm684, %v721, %v722
      %v724 = vrot.slane %v722, 4
      %v725 = vrot.slane %v603, 5
      %v726 = vsel %vm684, %v724, %v725
      %v727 = vrot.slane %v604, 5
      %v728 = vrot.slane %v727, 4
      %v729 = vrot.slane %v605, 5
      %v730 = vsel %vm684, %v728, %v729
      %v731 = vrot.slane %v729, 4
      %v732 = vrot.slane %v606, 5
      %v733 = vsel %vm684, %v731, %v732
      %v734 = vrot.slane %v607, 5
      %v735 = vrot.slane %v734, 4
      %v736 = vrot.slane %v608, 5
      %v737 = vsel %vm684, %v735, %v736
      %v738 = vrot.slane %v736, 4
      %v739 = vrot.slane %v609, 5
      %v740 = vsel %vm684, %v738, %v739
      %v741 = vrot.slane %v610, 5
      %v742 = vrot.slane %v741, 4
      %v743 = vrot.slane %v611, 5
      %v744 = vsel %vm684, %v742, %v743
      %v745 = vrot.slane %v743, 4
      %v746 = vrot.slane %v612, 5
      %v747 = vsel %vm684, %v745, %v746
      %v748 = vrot.slane %v613, 5
      %v749 = vrot.slane %v748, 4
      %v750 = vrot.slane %v614, 5
      %v751 = vsel %vm684, %v749, %v750
      %v752 = vrot.slane %v750, 4
      %v753 = vrot.slane %v615, 5
      %v754 = vsel %vm684, %v752, %v753
      %v755 = vrot.slane %v616, 5
      %v756 = vrot.slane %v755, 4
      %v757 = vrot.slane %v617, 5
      %v758 = vsel %vm684, %v756, %v757
      %v759 = vrot.slane %v757, 4
      %v760 = vrot.slane %v618, 5
      %v761 = vsel %vm684, %v759, %v760
      %v762 = vrot.slane %v619, 5
      %v763 = vrot.slane %v762, 4
      %v764 = vrot.slane %v620, 5
      %v765 = vsel %vm684, %v763, %v764
      %v766 = vrot.slane %v764, 4
      %v767 = vrot.slane %v621, 5
      %v768 = vsel %vm684, %v766, %v767
      %v769 = vrot.slane %v622, 5
      %v770 = vrot.slane %v769, 4
      %v771 = vrot.slane %v623, 5
      %v772 = vsel %vm684, %v770, %v771
      %v773 = vrot.slane %v771, 4
      %v774 = vrot.slane %v624, 5
      %v775 = vsel %vm684, %v773, %v774
      %v776 = vrot.slane %v625, 5
      %v777 = vrot.slane %v776, 4
      %v778 = vrot.slane %v626, 5
      %v779 = vsel %vm684, %v777, %v778
      %v780 = vrot.slane %v778, 4
      %v781 = vrot.slane %v627, 5
      %v782 = vsel %vm684, %v780, %v781
      %v783 = vrot.slane %v628, 5
      %v784 = vrot.slane %v783, 4
      %v785 = vrot.slane %v629, 5
      %v786 = vsel %vm684, %v784, %v785
      %v787 = vrot.slane %v785, 4
      %v788 = vrot.slane %v630, 5
      %v789 = vsel %vm684, %v787, %v788
      %v790 = vrot.slane %v631, 5
      %v791 = vrot.slane %v790, 4
      %v792 = vrot.slane %v632, 5
      %v793 = vsel %vm684, %v791, %v792
      %v794 = vrot.slane %v792, 4
      %v795 = vrot.slane %v633, 5
      %v796 = vsel %vm684, %v794, %v795
      %797 = vrot.lane.b32.xlu0 %v688, 4
      %v798 = vpop.permute.xlu0 %797
      %799 = vrot.lane.b32.xlu0 %v691, 4
      %v800 = vpop.permute.xlu0 %799
      %801 = vrot.lane.b32.xlu0 %v695, 4
      %v802 = vpop.permute.xlu0 %801
      %803 = vrot.lane.b32.xlu0 %v698, 4
      %v804 = vpop.permute.xlu0 %803
      %805 = vrot.lane.b32.xlu0 %v702, 4
      %v806 = vpop.permute.xlu0 %805
      %807 = vrot.lane.b32.xlu0 %v705, 4
      %v808 = vpop.permute.xlu0 %807
      %809 = vrot.lane.b32.xlu0 %v709, 4
      %v810 = vpop.permute.xlu0 %809
      %811 = vrot.lane.b32.xlu0 %v712, 4
      %v812 = vpop.permute.xlu0 %811
      %813 = vrot.lane.b32.xlu0 %v716, 4
      %v814 = vpop.permute.xlu0 %813
      %815 = vrot.lane.b32.xlu0 %v719, 4
      %v816 = vpop.permute.xlu0 %815
      %817 = vrot.lane.b32.xlu0 %v723, 4
      %v818 = vpop.permute.xlu0 %817
      %819 = vrot.lane.b32.xlu0 %v726, 4
      %v820 = vpop.permute.xlu0 %819
      %821 = vrot.lane.b32.xlu0 %v730, 4
      %v822 = vpop.permute.xlu0 %821
      %823 = vrot.lane.b32.xlu0 %v733, 4
      %v824 = vpop.permute.xlu0 %823
      %825 = vrot.lane.b32.xlu0 %v737, 4
      %v826 = vpop.permute.xlu0 %825
      %827 = vrot.lane.b32.xlu0 %v740, 4
      %v828 = vpop.permute.xlu0 %827
      %829 = vrot.lane.b32.xlu0 %v744, 4
      %v830 = vpop.permute.xlu0 %829
      %831 = vrot.lane.b32.xlu0 %v747, 4
      %v832 = vpop.permute.xlu0 %831
      %833 = vrot.lane.b32.xlu0 %v751, 4
      %v834 = vpop.permute.xlu0 %833
      %835 = vrot.lane.b32.xlu0 %v754, 4
      %v836 = vpop.permute.xlu0 %835
      %837 = vrot.lane.b32.xlu0 %v758, 4
      %v838 = vpop.permute.xlu0 %837
      %839 = vrot.lane.b32.xlu0 %v761, 4
      %v840 = vpop.permute.xlu0 %839
      %841 = vrot.lane.b32.xlu0 %v765, 4
      %v842 = vpop.permute.xlu0 %841
      %843 = vrot.lane.b32.xlu0 %v768, 4
      %v844 = vpop.permute.xlu0 %843
      %845 = vrot.lane.b32.xlu0 %v772, 4
      %v846 = vpop.permute.xlu0 %845
      %847 = vrot.lane.b32.xlu0 %v775, 4
      %v848 = vpop.permute.xlu0 %847
      %849 = vrot.lane.b32.xlu0 %v779, 4
      %v850 = vpop.permute.xlu0 %849
      %851 = vrot.lane.b32.xlu0 %v782, 4
      %v852 = vpop.permute.xlu0 %851
      %853 = vrot.lane.b32.xlu0 %v786, 4
      %v854 = vpop.permute.xlu0 %853
      %855 = vrot.lane.b32.xlu0 %v789, 4
      %v856 = vpop.permute.xlu0 %855
      %857 = vrot.lane.b32.xlu0 %v793, 4
      %v858 = vpop.permute.xlu0 %857
      %859 = vrot.lane.b32.xlu0 %v796, 4
      %v860 = vpop.permute.xlu0 %859
      %vm893 = vcmask 60448
      %894 = vst.msk [vmem:[#allocation2] sm:$0xf] %vm893, %v798
      %895 = vst.msk [vmem:[#allocation2 + $0x4] sm:$0xf] %vm893, %v800
      %896 = vst.msk [vmem:[#allocation2 + $0x8] sm:$0xf] %vm893, %v802
      %897 = vst.msk [vmem:[#allocation2 + $0xc] sm:$0xf] %vm893, %v804
      %898 = vst.msk [vmem:[#allocation2 + $0x10] sm:$0xf] %vm893, %v806
      %899 = vst.msk [vmem:[#allocation2 + $0x14] sm:$0xf] %vm893, %v808
      %900 = vst.msk [vmem:[#allocation2 + $0x18] sm:$0xf] %vm893, %v810
      %901 = vst.msk [vmem:[#allocation2 + $0x1c] sm:$0xf] %vm893, %v812
      %902 = vst.msk [vmem:[#allocation2 + $0x20] sm:$0xf] %vm893, %v814
      %903 = vst.msk [vmem:[#allocation2 + $0x24] sm:$0xf] %vm893, %v816
      %904 = vst.msk [vmem:[#allocation2 + $0x28] sm:$0xf] %vm893, %v818
      %905 = vst.msk [vmem:[#allocation2 + $0x2c] sm:$0xf] %vm893, %v820
      %906 = vst.msk [vmem:[#allocation2 + $0x30] sm:$0xf] %vm893, %v822
      %907 = vst.msk [vmem:[#allocation2 + $0x34] sm:$0xf] %vm893, %v824
      %908 = vst.msk [vmem:[#allocation2 + $0x38] sm:$0xf] %vm893, %v826
      %909 = vst.msk [vmem:[#allocation2 + $0x3c] sm:$0xf] %vm893, %v828
      %910 = vst.msk [vmem:[#allocation2 + $0x40] sm:$0xf] %vm893, %v830
      %911 = vst.msk [vmem:[#allocation2 + $0x44] sm:$0xf] %vm893, %v832
      %912 = vst.msk [vmem:[#allocation2 + $0x48] sm:$0xf] %vm893, %v834
      %913 = vst.msk [vmem:[#allocation2 + $0x4c] sm:$0xf] %vm893, %v836
      %914 = vst.msk [vmem:[#allocation2 + $0x50] sm:$0xf] %vm893, %v838
      %915 = vst.msk [vmem:[#allocation2 + $0x54] sm:$0xf] %vm893, %v840
      %916 = vst.msk [vmem:[#allocation2 + $0x58] sm:$0xf] %vm893, %v842
      %917 = vst.msk [vmem:[#allocation2 + $0x5c] sm:$0xf] %vm893, %v844
      %918 = vst.msk [vmem:[#allocation2 + $0x60] sm:$0xf] %vm893, %v846
      %919 = vst.msk [vmem:[#allocation2 + $0x64] sm:$0xf] %vm893, %v848
      %920 = vst.msk [vmem:[#allocation2 + $0x68] sm:$0xf] %vm893, %v850
      %921 = vst.msk [vmem:[#allocation2 + $0x6c] sm:$0xf] %vm893, %v852
      %922 = vst.msk [vmem:[#allocation2 + $0x70] sm:$0xf] %vm893, %v854
      %923 = vst.msk [vmem:[#allocation2 + $0x74] sm:$0xf] %vm893, %v856
      %924 = vst.msk [vmem:[#allocation2 + $0x78] sm:$0xf] %vm893, %v858
      %925 = vst.msk [vmem:[#allocation2 + $0x7c] sm:$0xf] %vm893, %v860
      %v926 = vld [vmem:[%s309 + $0xc] sm:$0xf]
      %v927 = vld [vmem:[%s309 + $0x10] sm:$0xf]
      %v928 = vld [vmem:[%s309 + $0x28] sm:$0xf]
      %v929 = vld [vmem:[%s309 + $0x2c] sm:$0xf]
      %v930 = vld [vmem:[%s309 + $0x44] sm:$0xf]
      %v931 = vld [vmem:[%s309 + $0x48] sm:$0xf]
      %v932 = vld [vmem:[%s309 + $0x60] sm:$0xf]
      %v933 = vld [vmem:[%s309 + $0x64] sm:$0xf]
      %v934 = vld [vmem:[%s309 + $0x7c] sm:$0xf]
      %v935 = vld [vmem:[%s309 + $0x80] sm:$0xf]
      %v936 = vld [vmem:[%s309 + $0x98] sm:$0xf]
      %v937 = vld [vmem:[%s309 + $0x9c] sm:$0xf]
      %v938 = vld [vmem:[%s309 + $0xb4] sm:$0xf]
      %v939 = vld [vmem:[%s309 + $0xb8] sm:$0xf]
      %v940 = vld [vmem:[%s309 + $0xd0] sm:$0xf]
      %v941 = vld [vmem:[%s309 + $0xd4] sm:$0xf]
      %v942 = vld [vmem:[%s309 + $0xec] sm:$0xf]
      %v943 = vld [vmem:[%s309 + $0xf0] sm:$0xf]
      %v944 = vld [vmem:[%s309 + $0x108] sm:$0xf]
      %v945 = vld [vmem:[%s309 + $0x10c] sm:$0xf]
      %v946 = vld [vmem:[%s309 + $0x124] sm:$0xf]
      %v947 = vld [vmem:[%s309 + $0x128] sm:$0xf]
      %v948 = vld [vmem:[%s309 + $0x140] sm:$0xf]
      %v949 = vld [vmem:[%s309 + $0x144] sm:$0xf]
      %v950 = vld [vmem:[%s309 + $0x15c] sm:$0xf]
      %v951 = vld [vmem:[%s309 + $0x160] sm:$0xf]
      %v952 = vld [vmem:[%s309 + $0x178] sm:$0xf]
      %v953 = vld [vmem:[%s309 + $0x17c] sm:$0xf]
      %v954 = vld [vmem:[%s309 + $0x194] sm:$0xf]
      %v955 = vld [vmem:[%s309 + $0x198] sm:$0xf]
      %v956 = vld [vmem:[%s309 + $0x1b0] sm:$0xf]
      %v957 = vld [vmem:[%s309 + $0x1b4] sm:$0xf]
      %990 = vrot.lane.b32.xlu0 %v926, 8
      %v991 = vpop.permute.xlu0 %990
      %992 = vrot.lane.b32.xlu0 %v927, 8
      %v993 = vpop.permute.xlu0 %992
      %994 = vrot.lane.b32.xlu0 %v928, 8
      %v995 = vpop.permute.xlu0 %994
      %996 = vrot.lane.b32.xlu0 %v929, 8
      %v997 = vpop.permute.xlu0 %996
      %998 = vrot.lane.b32.xlu0 %v930, 8
      %v999 = vpop.permute.xlu0 %998
      %1000 = vrot.lane.b32.xlu0 %v931, 8
      %v1001 = vpop.permute.xlu0 %1000
      %1002 = vrot.lane.b32.xlu0 %v932, 8
      %v1003 = vpop.permute.xlu0 %1002
      %1004 = vrot.lane.b32.xlu0 %v933, 8
      %v1005 = vpop.permute.xlu0 %1004
      %1006 = vrot.lane.b32.xlu0 %v934, 8
      %v1007 = vpop.permute.xlu0 %1006
      %1008 = vrot.lane.b32.xlu0 %v935, 8
      %v1009 = vpop.permute.xlu0 %1008
      %1010 = vrot.lane.b32.xlu0 %v936, 8
      %v1011 = vpop.permute.xlu0 %1010
      %1012 = vrot.lane.b32.xlu0 %v937, 8
      %v1013 = vpop.permute.xlu0 %1012
      %1014 = vrot.lane.b32.xlu0 %v938, 8
      %v1015 = vpop.permute.xlu0 %1014
      %1016 = vrot.lane.b32.xlu0 %v939, 8
      %v1017 = vpop.permute.xlu0 %1016
      %1018 = vrot.lane.b32.xlu0 %v940, 8
      %v1019 = vpop.permute.xlu0 %1018
      %1020 = vrot.lane.b32.xlu0 %v941, 8
      %v1021 = vpop.permute.xlu0 %1020
      %1022 = vrot.lane.b32.xlu0 %v942, 8
      %v1023 = vpop.permute.xlu0 %1022
      %1024 = vrot.lane.b32.xlu0 %v943, 8
      %v1025 = vpop.permute.xlu0 %1024
      %1026 = vrot.lane.b32.xlu0 %v944, 8
      %v1027 = vpop.permute.xlu0 %1026
      %1028 = vrot.lane.b32.xlu0 %v945, 8
      %v1029 = vpop.permute.xlu0 %1028
      %1030 = vrot.lane.b32.xlu0 %v946, 8
      %v1031 = vpop.permute.xlu0 %1030
      %1032 = vrot.lane.b32.xlu0 %v947, 8
      %v1033 = vpop.permute.xlu0 %1032
      %1034 = vrot.lane.b32.xlu0 %v948, 8
      %v1035 = vpop.permute.xlu0 %1034
      %1036 = vrot.lane.b32.xlu0 %v949, 8
      %v1037 = vpop.permute.xlu0 %1036
      %1038 = vrot.lane.b32.xlu0 %v950, 8
      %v1039 = vpop.permute.xlu0 %1038
      %1040 = vrot.lane.b32.xlu0 %v951, 8
      %v1041 = vpop.permute.xlu0 %1040
      %1042 = vrot.lane.b32.xlu0 %v952, 8
      %v1043 = vpop.permute.xlu0 %1042
      %1044 = vrot.lane.b32.xlu0 %v953, 8
      %v1045 = vpop.permute.xlu0 %1044
      %1046 = vrot.lane.b32.xlu0 %v954, 8
      %v1047 = vpop.permute.xlu0 %1046
      %1048 = vrot.lane.b32.xlu0 %v955, 8
      %v1049 = vpop.permute.xlu0 %1048
      %1050 = vrot.lane.b32.xlu0 %v956, 8
      %v1051 = vpop.permute.xlu0 %1050
      %1052 = vrot.lane.b32.xlu0 %v957, 8
      %v1053 = vpop.permute.xlu0 %1052
      %vm1086 = vcmask 93248
      %1087 = vst.msk [vmem:[#allocation2] sm:$0xf] %vm1086, %v991
      %1088 = vst.msk [vmem:[#allocation2 + $0x4] sm:$0xf] %vm1086, %v993
      %1089 = vst.msk [vmem:[#allocation2 + $0x8] sm:$0xf] %vm1086, %v995
      %1090 = vst.msk [vmem:[#allocation2 + $0xc] sm:$0xf] %vm1086, %v997
      %1091 = vst.msk [vmem:[#allocation2 + $0x10] sm:$0xf] %vm1086, %v999
      %1092 = vst.msk [vmem:[#allocation2 + $0x14] sm:$0xf] %vm1086, %v1001
      %1093 = vst.msk [vmem:[#allocation2 + $0x18] sm:$0xf] %vm1086, %v1003
      %1094 = vst.msk [vmem:[#allocation2 + $0x1c] sm:$0xf] %vm1086, %v1005
      %1095 = vst.msk [vmem:[#allocation2 + $0x20] sm:$0xf] %vm1086, %v1007
      %1096 = vst.msk [vmem:[#allocation2 + $0x24] sm:$0xf] %vm1086, %v1009
      %1097 = vst.msk [vmem:[#allocation2 + $0x28] sm:$0xf] %vm1086, %v1011
      %1098 = vst.msk [vmem:[#allocation2 + $0x2c] sm:$0xf] %vm1086, %v1013
      %1099 = vst.msk [vmem:[#allocation2 + $0x30] sm:$0xf] %vm1086, %v1015
      %1100 = vst.msk [vmem:[#allocation2 + $0x34] sm:$0xf] %vm1086, %v1017
      %1101 = vst.msk [vmem:[#allocation2 + $0x38] sm:$0xf] %vm1086, %v1019
      %1102 = vst.msk [vmem:[#allocation2 + $0x3c] sm:$0xf] %vm1086, %v1021
      %1103 = vst.msk [vmem:[#allocation2 + $0x40] sm:$0xf] %vm1086, %v1023
      %1104 = vst.msk [vmem:[#allocation2 + $0x44] sm:$0xf] %vm1086, %v1025
      %1105 = vst.msk [vmem:[#allocation2 + $0x48] sm:$0xf] %vm1086, %v1027
      %1106 = vst.msk [vmem:[#allocation2 + $0x4c] sm:$0xf] %vm1086, %v1029
      %1107 = vst.msk [vmem:[#allocation2 + $0x50] sm:$0xf] %vm1086, %v1031
      %1108 = vst.msk [vmem:[#allocation2 + $0x54] sm:$0xf] %vm1086, %v1033
      %1109 = vst.msk [vmem:[#allocation2 + $0x58] sm:$0xf] %vm1086, %v1035
      %1110 = vst.msk [vmem:[#allocation2 + $0x5c] sm:$0xf] %vm1086, %v1037
      %1111 = vst.msk [vmem:[#allocation2 + $0x60] sm:$0xf] %vm1086, %v1039
      %1112 = vst.msk [vmem:[#allocation2 + $0x64] sm:$0xf] %vm1086, %v1041
      %1113 = vst.msk [vmem:[#allocation2 + $0x68] sm:$0xf] %vm1086, %v1043
      %1114 = vst.msk [vmem:[#allocation2 + $0x6c] sm:$0xf] %vm1086, %v1045
      %1115 = vst.msk [vmem:[#allocation2 + $0x70] sm:$0xf] %vm1086, %v1047
      %1116 = vst.msk [vmem:[#allocation2 + $0x74] sm:$0xf] %vm1086, %v1049
      %1117 = vst.msk [vmem:[#allocation2 + $0x78] sm:$0xf] %vm1086, %v1051
      %1118 = vst.msk [vmem:[#allocation2 + $0x7c] sm:$0xf] %vm1086, %v1053
      %s1119 = sadd.s32 %s305, 18
      %s1120 = smul.u32 %s1119, 7
      %s1121 = smul.addr %s1120, 4
      %s1122 = scalar_lea.vmem %s285, %s1121
      %v1123 = vld [vmem:[%s1122 + $0x4] sm:$0xc]
      %v1124 = vld [vmem:[%s1122 + $0x8] sm:$0xf]
      %v1125 = vld [vmem:[%s1122 + $0xc] sm:$0x3]
      %v1126 = vld [vmem:[%s1122 + $0x20] sm:$0xc]
      %v1127 = vld [vmem:[%s1122 + $0x24] sm:$0xf]
      %v1128 = vld [vmem:[%s1122 + $0x28] sm:$0x3]
      %v1129 = vld [vmem:[%s1122 + $0x3c] sm:$0xc]
      %v1130 = vld [vmem:[%s1122 + $0x40] sm:$0xf]
      %v1131 = vld [vmem:[%s1122 + $0x44] sm:$0x3]
      %v1132 = vld [vmem:[%s1122 + $0x58] sm:$0xc]
      %v1133 = vld [vmem:[%s1122 + $0x5c] sm:$0xf]
      %v1134 = vld [vmem:[%s1122 + $0x60] sm:$0x3]
      %v1135 = vld [vmem:[%s1122 + $0x74] sm:$0xc]
      %v1136 = vld [vmem:[%s1122 + $0x78] sm:$0xf]
      %v1137 = vld [vmem:[%s1122 + $0x7c] sm:$0x3]
      %v1138 = vld [vmem:[%s1122 + $0x90] sm:$0xc]
      %v1139 = vld [vmem:[%s1122 + $0x94] sm:$0xf]
      %v1140 = vld [vmem:[%s1122 + $0x98] sm:$0x3]
      %v1141 = vld [vmem:[%s1122 + $0xac] sm:$0xc]
      %v1142 = vld [vmem:[%s1122 + $0xb0] sm:$0xf]
      %v1143 = vld [vmem:[%s1122 + $0xb4] sm:$0x3]
      %v1144 = vld [vmem:[%s1122 + $0xc8] sm:$0xc]
      %v1145 = vld [vmem:[%s1122 + $0xcc] sm:$0xf]
      %v1146 = vld [vmem:[%s1122 + $0xd0] sm:$0x3]
      %v1147 = vld [vmem:[%s1122 + $0xe4] sm:$0xc]
      %v1148 = vld [vmem:[%s1122 + $0xe8] sm:$0xf]
      %v1149 = vld [vmem:[%s1122 + $0xec] sm:$0x3]
      %v1150 = vld [vmem:[%s1122 + $0x100] sm:$0xc]
      %v1151 = vld [vmem:[%s1122 + $0x104] sm:$0xf]
      %v1152 = vld [vmem:[%s1122 + $0x108] sm:$0x3]
      %v1153 = vld [vmem:[%s1122 + $0x11c] sm:$0xc]
      %v1154 = vld [vmem:[%s1122 + $0x120] sm:$0xf]
      %v1155 = vld [vmem:[%s1122 + $0x124] sm:$0x3]
      %v1156 = vld [vmem:[%s1122 + $0x138] sm:$0xc]
      %v1157 = vld [vmem:[%s1122 + $0x13c] sm:$0xf]
      %v1158 = vld [vmem:[%s1122 + $0x140] sm:$0x3]
      %v1159 = vld [vmem:[%s1122 + $0x154] sm:$0xc]
      %v1160 = vld [vmem:[%s1122 + $0x158] sm:$0xf]
      %v1161 = vld [vmem:[%s1122 + $0x15c] sm:$0x3]
      %v1162 = vld [vmem:[%s1122 + $0x170] sm:$0xc]
      %v1163 = vld [vmem:[%s1122 + $0x174] sm:$0xf]
      %v1164 = vld [vmem:[%s1122 + $0x178] sm:$0x3]
      %v1165 = vld [vmem:[%s1122 + $0x18c] sm:$0xc]
      %v1166 = vld [vmem:[%s1122 + $0x190] sm:$0xf]
      %v1167 = vld [vmem:[%s1122 + $0x194] sm:$0x3]
      %v1168 = vld [vmem:[%s1122 + $0x1a8] sm:$0xc]
      %v1169 = vld [vmem:[%s1122 + $0x1ac] sm:$0xf]
      %v1170 = vld [vmem:[%s1122 + $0x1b0] sm:$0x3]
      %v1219 = vrot.slane %v1123, 6
      %v1220 = vrot.slane %v1219, 4
      %v1221 = vrot.slane %v1124, 6
      %v1222 = vsel %vm408, %v1220, %v1221
      %v1223 = vrot.slane %v1221, 4
      %v1224 = vrot.slane %v1125, 6
      %v1225 = vsel %vm408, %v1223, %v1224
      %v1226 = vrot.slane %v1126, 6
      %v1227 = vrot.slane %v1226, 4
      %v1228 = vrot.slane %v1127, 6
      %v1229 = vsel %vm408, %v1227, %v1228
      %v1230 = vrot.slane %v1228, 4
      %v1231 = vrot.slane %v1128, 6
      %v1232 = vsel %vm408, %v1230, %v1231
      %v1233 = vrot.slane %v1129, 6
      %v1234 = vrot.slane %v1233, 4
      %v1235 = vrot.slane %v1130, 6
      %v1236 = vsel %vm408, %v1234, %v1235
      %v1237 = vrot.slane %v1235, 4
      %v1238 = vrot.slane %v1131, 6
      %v1239 = vsel %vm408, %v1237, %v1238
      %v1240 = vrot.slane %v1132, 6
      %v1241 = vrot.slane %v1240, 4
      %v1242 = vrot.slane %v1133, 6
      %v1243 = vsel %vm408, %v1241, %v1242
      %v1244 = vrot.slane %v1242, 4
      %v1245 = vrot.slane %v1134, 6
      %v1246 = vsel %vm408, %v1244, %v1245
      %v1247 = vrot.slane %v1135, 6
      %v1248 = vrot.slane %v1247, 4
      %v1249 = vrot.slane %v1136, 6
      %v1250 = vsel %vm408, %v1248, %v1249
      %v1251 = vrot.slane %v1249, 4
      %v1252 = vrot.slane %v1137, 6
      %v1253 = vsel %vm408, %v1251, %v1252
      %v1254 = vrot.slane %v1138, 6
      %v1255 = vrot.slane %v1254, 4
      %v1256 = vrot.slane %v1139, 6
      %v1257 = vsel %vm408, %v1255, %v1256
      %v1258 = vrot.slane %v1256, 4
      %v1259 = vrot.slane %v1140, 6
      %v1260 = vsel %vm408, %v1258, %v1259
      %v1261 = vrot.slane %v1141, 6
      %v1262 = vrot.slane %v1261, 4
      %v1263 = vrot.slane %v1142, 6
      %v1264 = vsel %vm408, %v1262, %v1263
      %v1265 = vrot.slane %v1263, 4
      %v1266 = vrot.slane %v1143, 6
      %v1267 = vsel %vm408, %v1265, %v1266
      %v1268 = vrot.slane %v1144, 6
      %v1269 = vrot.slane %v1268, 4
      %v1270 = vrot.slane %v1145, 6
      %v1271 = vsel %vm408, %v1269, %v1270
      %v1272 = vrot.slane %v1270, 4
      %v1273 = vrot.slane %v1146, 6
      %v1274 = vsel %vm408, %v1272, %v1273
      %v1275 = vrot.slane %v1147, 6
      %v1276 = vrot.slane %v1275, 4
      %v1277 = vrot.slane %v1148, 6
      %v1278 = vsel %vm408, %v1276, %v1277
      %v1279 = vrot.slane %v1277, 4
      %v1280 = vrot.slane %v1149, 6
      %v1281 = vsel %vm408, %v1279, %v1280
      %v1282 = vrot.slane %v1150, 6
      %v1283 = vrot.slane %v1282, 4
      %v1284 = vrot.slane %v1151, 6
      %v1285 = vsel %vm408, %v1283, %v1284
      %v1286 = vrot.slane %v1284, 4
      %v1287 = vrot.slane %v1152, 6
      %v1288 = vsel %vm408, %v1286, %v1287
      %v1289 = vrot.slane %v1153, 6
      %v1290 = vrot.slane %v1289, 4
      %v1291 = vrot.slane %v1154, 6
      %v1292 = vsel %vm408, %v1290, %v1291
      %v1293 = vrot.slane %v1291, 4
      %v1294 = vrot.slane %v1155, 6
      %v1295 = vsel %vm408, %v1293, %v1294
      %v1296 = vrot.slane %v1156, 6
      %v1297 = vrot.slane %v1296, 4
      %v1298 = vrot.slane %v1157, 6
      %v1299 = vsel %vm408, %v1297, %v1298
      %v1300 = vrot.slane %v1298, 4
      %v1301 = vrot.slane %v1158, 6
      %v1302 = vsel %vm408, %v1300, %v1301
      %v1303 = vrot.slane %v1159, 6
      %v1304 = vrot.slane %v1303, 4
      %v1305 = vrot.slane %v1160, 6
      %v1306 = vsel %vm408, %v1304, %v1305
      %v1307 = vrot.slane %v1305, 4
      %v1308 = vrot.slane %v1161, 6
      %v1309 = vsel %vm408, %v1307, %v1308
      %v1310 = vrot.slane %v1162, 6
      %v1311 = vrot.slane %v1310, 4
      %v1312 = vrot.slane %v1163, 6
      %v1313 = vsel %vm408, %v1311, %v1312
      %v1314 = vrot.slane %v1312, 4
      %v1315 = vrot.slane %v1164, 6
      %v1316 = vsel %vm408, %v1314, %v1315
      %v1317 = vrot.slane %v1165, 6
      %v1318 = vrot.slane %v1317, 4
      %v1319 = vrot.slane %v1166, 6
      %v1320 = vsel %vm408, %v1318, %v1319
      %v1321 = vrot.slane %v1319, 4
      %v1322 = vrot.slane %v1167, 6
      %v1323 = vsel %vm408, %v1321, %v1322
      %v1324 = vrot.slane %v1168, 6
      %v1325 = vrot.slane %v1324, 4
      %v1326 = vrot.slane %v1169, 6
      %v1327 = vsel %vm408, %v1325, %v1326
      %v1328 = vrot.slane %v1326, 4
      %v1329 = vrot.slane %v1170, 6
      %v1330 = vsel %vm408, %v1328, %v1329
      %1331 = vrot.lane.b32.xlu0 %v1222, 12
      %v1332 = vpop.permute.xlu0 %1331
      %1333 = vrot.lane.b32.xlu0 %v1225, 12
      %v1334 = vpop.permute.xlu0 %1333
      %1335 = vrot.lane.b32.xlu0 %v1229, 12
      %v1336 = vpop.permute.xlu0 %1335
      %1337 = vrot.lane.b32.xlu0 %v1232, 12
      %v1338 = vpop.permute.xlu0 %1337
      %1339 = vrot.lane.b32.xlu0 %v1236, 12
      %v1340 = vpop.permute.xlu0 %1339
      %1341 = vrot.lane.b32.xlu0 %v1239, 12
      %v1342 = vpop.permute.xlu0 %1341
      %1343 = vrot.lane.b32.xlu0 %v1243, 12
      %v1344 = vpop.permute.xlu0 %1343
      %1345 = vrot.lane.b32.xlu0 %v1246, 12
      %v1346 = vpop.permute.xlu0 %1345
      %1347 = vrot.lane.b32.xlu0 %v1250, 12
      %v1348 = vpop.permute.xlu0 %1347
      %1349 = vrot.lane.b32.xlu0 %v1253, 12
      %v1350 = vpop.permute.xlu0 %1349
      %1351 = vrot.lane.b32.xlu0 %v1257, 12
      %v1352 = vpop.permute.xlu0 %1351
      %1353 = vrot.lane.b32.xlu0 %v1260, 12
      %v1354 = vpop.permute.xlu0 %1353
      %1355 = vrot.lane.b32.xlu0 %v1264, 12
      %v1356 = vpop.permute.xlu0 %1355
      %1357 = vrot.lane.b32.xlu0 %v1267, 12
      %v1358 = vpop.permute.xlu0 %1357
      %1359 = vrot.lane.b32.xlu0 %v1271, 12
      %v1360 = vpop.permute.xlu0 %1359
      %1361 = vrot.lane.b32.xlu0 %v1274, 12
      %v1362 = vpop.permute.xlu0 %1361
      %1363 = vrot.lane.b32.xlu0 %v1278, 12
      %v1364 = vpop.permute.xlu0 %1363
      %1365 = vrot.lane.b32.xlu0 %v1281, 12
      %v1366 = vpop.permute.xlu0 %1365
      %1367 = vrot.lane.b32.xlu0 %v1285, 12
      %v1368 = vpop.permute.xlu0 %1367
      %1369 = vrot.lane.b32.xlu0 %v1288, 12
      %v1370 = vpop.permute.xlu0 %1369
      %1371 = vrot.lane.b32.xlu0 %v1292, 12
      %v1372 = vpop.permute.xlu0 %1371
      %1373 = vrot.lane.b32.xlu0 %v1295, 12
      %v1374 = vpop.permute.xlu0 %1373
      %1375 = vrot.lane.b32.xlu0 %v1299, 12
      %v1376 = vpop.permute.xlu0 %1375
      %1377 = vrot.lane.b32.xlu0 %v1302, 12
      %v1378 = vpop.permute.xlu0 %1377
      %1379 = vrot.lane.b32.xlu0 %v1306, 12
      %v1380 = vpop.permute.xlu0 %1379
      %1381 = vrot.lane.b32.xlu0 %v1309, 12
      %v1382 = vpop.permute.xlu0 %1381
      %1383 = vrot.lane.b32.xlu0 %v1313, 12
      %v1384 = vpop.permute.xlu0 %1383
      %1385 = vrot.lane.b32.xlu0 %v1316, 12
      %v1386 = vpop.permute.xlu0 %1385
      %1387 = vrot.lane.b32.xlu0 %v1320, 12
      %v1388 = vpop.permute.xlu0 %1387
      %1389 = vrot.lane.b32.xlu0 %v1323, 12
      %v1390 = vpop.permute.xlu0 %1389
      %1391 = vrot.lane.b32.xlu0 %v1327, 12
      %v1392 = vpop.permute.xlu0 %1391
      %1393 = vrot.lane.b32.xlu0 %v1330, 12
      %v1394 = vpop.permute.xlu0 %1393
      %vm1427 = vcmask 126048
      %1428 = vst.msk [vmem:[#allocation2] sm:$0xf] %vm1427, %v1332
      %1429 = vst.msk [vmem:[#allocation2 + $0x4] sm:$0xf] %vm1427, %v1334
      %1430 = vst.msk [vmem:[#allocation2 + $0x8] sm:$0xf] %vm1427, %v1336
      %1431 = vst.msk [vmem:[#allocation2 + $0xc] sm:$0xf] %vm1427, %v1338
      %1432 = vst.msk [vmem:[#allocation2 + $0x10] sm:$0xf] %vm1427, %v1340
      %1433 = vst.msk [vmem:[#allocation2 + $0x14] sm:$0xf] %vm1427, %v1342
      %1434 = vst.msk [vmem:[#allocation2 + $0x18] sm:$0xf] %vm1427, %v1344
      %1435 = vst.msk [vmem:[#allocation2 + $0x1c] sm:$0xf] %vm1427, %v1346
      %1436 = vst.msk [vmem:[#allocation2 + $0x20] sm:$0xf] %vm1427, %v1348
      %1437 = vst.msk [vmem:[#allocation2 + $0x24] sm:$0xf] %vm1427, %v1350
      %1438 = vst.msk [vmem:[#allocation2 + $0x28] sm:$0xf] %vm1427, %v1352
      %1439 = vst.msk [vmem:[#allocation2 + $0x2c] sm:$0xf] %vm1427, %v1354
      %1440 = vst.msk [vmem:[#allocation2 + $0x30] sm:$0xf] %vm1427, %v1356
      %1441 = vst.msk [vmem:[#allocation2 + $0x34] sm:$0xf] %vm1427, %v1358
      %1442 = vst.msk [vmem:[#allocation2 + $0x38] sm:$0xf] %vm1427, %v1360
      %1443 = vst.msk [vmem:[#allocation2 + $0x3c] sm:$0xf] %vm1427, %v1362
      %1444 = vst.msk [vmem:[#allocation2 + $0x40] sm:$0xf] %vm1427, %v1364
      %1445 = vst.msk [vmem:[#allocation2 + $0x44] sm:$0xf] %vm1427, %v1366
      %1446 = vst.msk [vmem:[#allocation2 + $0x48] sm:$0xf] %vm1427, %v1368
      %1447 = vst.msk [vmem:[#allocation2 + $0x4c] sm:$0xf] %vm1427, %v1370
      %1448 = vst.msk [vmem:[#allocation2 + $0x50] sm:$0xf] %vm1427, %v1372
      %1449 = vst.msk [vmem:[#allocation2 + $0x54] sm:$0xf] %vm1427, %v1374
      %1450 = vst.msk [vmem:[#allocation2 + $0x58] sm:$0xf] %vm1427, %v1376
      %1451 = vst.msk [vmem:[#allocation2 + $0x5c] sm:$0xf] %vm1427, %v1378
      %1452 = vst.msk [vmem:[#allocation2 + $0x60] sm:$0xf] %vm1427, %v1380
      %1453 = vst.msk [vmem:[#allocation2 + $0x64] sm:$0xf] %vm1427, %v1382
      %1454 = vst.msk [vmem:[#allocation2 + $0x68] sm:$0xf] %vm1427, %v1384
      %1455 = vst.msk [vmem:[#allocation2 + $0x6c] sm:$0xf] %vm1427, %v1386
      %1456 = vst.msk [vmem:[#allocation2 + $0x70] sm:$0xf] %vm1427, %v1388
      %1457 = vst.msk [vmem:[#allocation2 + $0x74] sm:$0xf] %vm1427, %v1390
      %1458 = vst.msk [vmem:[#allocation2 + $0x78] sm:$0xf] %vm1427, %v1392
      %1459 = vst.msk [vmem:[#allocation2 + $0x7c] sm:$0xf] %vm1427, %v1394
      %v1460 = vld [vmem:[%s1122 + $0x8] sm:$0xe]
      %v1461 = vld [vmem:[%s1122 + $0xc] sm:$0xf]
      %v1462 = vld [vmem:[%s1122 + $0x10] sm:$0x1]
      %v1463 = vld [vmem:[%s1122 + $0x24] sm:$0xe]
      %v1464 = vld [vmem:[%s1122 + $0x28] sm:$0xf]
      %v1465 = vld [vmem:[%s1122 + $0x2c] sm:$0x1]
      %v1466 = vld [vmem:[%s1122 + $0x40] sm:$0xe]
      %v1467 = vld [vmem:[%s1122 + $0x44] sm:$0xf]
      %v1468 = vld [vmem:[%s1122 + $0x48] sm:$0x1]
      %v1469 = vld [vmem:[%s1122 + $0x5c] sm:$0xe]
      %v1470 = vld [vmem:[%s1122 + $0x60] sm:$0xf]
      %v1471 = vld [vmem:[%s1122 + $0x64] sm:$0x1]
      %v1472 = vld [vmem:[%s1122 + $0x78] sm:$0xe]
      %v1473 = vld [vmem:[%s1122 + $0x7c] sm:$0xf]
      %v1474 = vld [vmem:[%s1122 + $0x80] sm:$0x1]
      %v1475 = vld [vmem:[%s1122 + $0x94] sm:$0xe]
      %v1476 = vld [vmem:[%s1122 + $0x98] sm:$0xf]
      %v1477 = vld [vmem:[%s1122 + $0x9c] sm:$0x1]
      %v1478 = vld [vmem:[%s1122 + $0xb0] sm:$0xe]
      %v1479 = vld [vmem:[%s1122 + $0xb4] sm:$0xf]
      %v1480 = vld [vmem:[%s1122 + $0xb8] sm:$0x1]
      %v1481 = vld [vmem:[%s1122 + $0xcc] sm:$0xe]
      %v1482 = vld [vmem:[%s1122 + $0xd0] sm:$0xf]
      %v1483 = vld [vmem:[%s1122 + $0xd4] sm:$0x1]
      %v1484 = vld [vmem:[%s1122 + $0xe8] sm:$0xe]
      %v1485 = vld [vmem:[%s1122 + $0xec] sm:$0xf]
      %v1486 = vld [vmem:[%s1122 + $0xf0] sm:$0x1]
      %v1487 = vld [vmem:[%s1122 + $0x104] sm:$0xe]
      %v1488 = vld [vmem:[%s1122 + $0x108] sm:$0xf]
      %v1489 = vld [vmem:[%s1122 + $0x10c] sm:$0x1]
      %v1490 = vld [vmem:[%s1122 + $0x120] sm:$0xe]
      %v1491 = vld [vmem:[%s1122 + $0x124] sm:$0xf]
      %v1492 = vld [vmem:[%s1122 + $0x128] sm:$0x1]
      %v1493 = vld [vmem:[%s1122 + $0x13c] sm:$0xe]
      %v1494 = vld [vmem:[%s1122 + $0x140] sm:$0xf]
      %v1495 = vld [vmem:[%s1122 + $0x144] sm:$0x1]
      %v1496 = vld [vmem:[%s1122 + $0x158] sm:$0xe]
      %v1497 = vld [vmem:[%s1122 + $0x15c] sm:$0xf]
      %v1498 = vld [vmem:[%s1122 + $0x160] sm:$0x1]
      %v1499 = vld [vmem:[%s1122 + $0x174] sm:$0xe]
      %v1500 = vld [vmem:[%s1122 + $0x178] sm:$0xf]
      %v1501 = vld [vmem:[%s1122 + $0x17c] sm:$0x1]
      %v1502 = vld [vmem:[%s1122 + $0x190] sm:$0xe]
      %v1503 = vld [vmem:[%s1122 + $0x194] sm:$0xf]
      %v1504 = vld [vmem:[%s1122 + $0x198] sm:$0x1]
      %v1505 = vld [vmem:[%s1122 + $0x1ac] sm:$0xe]
      %v1506 = vld [vmem:[%s1122 + $0x1b0] sm:$0xf]
      %v1507 = vld [vmem:[%s1122 + $0x1b4] sm:$0x1]
      %v1556 = vrot.slane %v1460, 5
      %v1557 = vrot.slane %v1556, 4
      %v1558 = vrot.slane %v1461, 5
      %v1559 = vsel %vm684, %v1557, %v1558
      %v1560 = vrot.slane %v1558, 4
      %v1561 = vrot.slane %v1462, 5
      %v1562 = vsel %vm684, %v1560, %v1561
      %v1563 = vrot.slane %v1463, 5
      %v1564 = vrot.slane %v1563, 4
      %v1565 = vrot.slane %v1464, 5
      %v1566 = vsel %vm684, %v1564, %v1565
      %v1567 = vrot.slane %v1565, 4
      %v1568 = vrot.slane %v1465, 5
      %v1569 = vsel %vm684, %v1567, %v1568
      %v1570 = vrot.slane %v1466, 5
      %v1571 = vrot.slane %v1570, 4
      %v1572 = vrot.slane %v1467, 5
      %v1573 = vsel %vm684, %v1571, %v1572
      %v1574 = vrot.slane %v1572, 4
      %v1575 = vrot.slane %v1468, 5
      %v1576 = vsel %vm684, %v1574, %v1575
      %v1577 = vrot.slane %v1469, 5
      %v1578 = vrot.slane %v1577, 4
      %v1579 = vrot.slane %v1470, 5
      %v1580 = vsel %vm684, %v1578, %v1579
      %v1581 = vrot.slane %v1579, 4
      %v1582 = vrot.slane %v1471, 5
      %v1583 = vsel %vm684, %v1581, %v1582
      %v1584 = vrot.slane %v1472, 5
      %v1585 = vrot.slane %v1584, 4
      %v1586 = vrot.slane %v1473, 5
      %v1587 = vsel %vm684, %v1585, %v1586
      %v1588 = vrot.slane %v1586, 4
      %v1589 = vrot.slane %v1474, 5
      %v1590 = vsel %vm684, %v1588, %v1589
      %v1591 = vrot.slane %v1475, 5
      %v1592 = vrot.slane %v1591, 4
      %v1593 = vrot.slane %v1476, 5
      %v1594 = vsel %vm684, %v1592, %v1593
      %v1595 = vrot.slane %v1593, 4
      %v1596 = vrot.slane %v1477, 5
      %v1597 = vsel %vm684, %v1595, %v1596
      %v1598 = vrot.slane %v1478, 5
      %v1599 = vrot.slane %v1598, 4
      %v1600 = vrot.slane %v1479, 5
      %v1601 = vsel %vm684, %v1599, %v1600
      %v1602 = vrot.slane %v1600, 4
      %v1603 = vrot.slane %v1480, 5
      %v1604 = vsel %vm684, %v1602, %v1603
      %v1605 = vrot.slane %v1481, 5
      %v1606 = vrot.slane %v1605, 4
      %v1607 = vrot.slane %v1482, 5
      %v1608 = vsel %vm684, %v1606, %v1607
      %v1609 = vrot.slane %v1607, 4
      %v1610 = vrot.slane %v1483, 5
      %v1611 = vsel %vm684, %v1609, %v1610
      %v1612 = vrot.slane %v1484, 5
      %v1613 = vrot.slane %v1612, 4
      %v1614 = vrot.slane %v1485, 5
      %v1615 = vsel %vm684, %v1613, %v1614
      %v1616 = vrot.slane %v1614, 4
      %v1617 = vrot.slane %v1486, 5
      %v1618 = vsel %vm684, %v1616, %v1617
      %v1619 = vrot.slane %v1487, 5
      %v1620 = vrot.slane %v1619, 4
      %v1621 = vrot.slane %v1488, 5
      %v1622 = vsel %vm684, %v1620, %v1621
      %v1623 = vrot.slane %v1621, 4
      %v1624 = vrot.slane %v1489, 5
      %v1625 = vsel %vm684, %v1623, %v1624
      %v1626 = vrot.slane %v1490, 5
      %v1627 = vrot.slane %v1626, 4
      %v1628 = vrot.slane %v1491, 5
      %v1629 = vsel %vm684, %v1627, %v1628
      %v1630 = vrot.slane %v1628, 4
      %v1631 = vrot.slane %v1492, 5
      %v1632 = vsel %vm684, %v1630, %v1631
      %v1633 = vrot.slane %v1493, 5
      %v1634 = vrot.slane %v1633, 4
      %v1635 = vrot.slane %v1494, 5
      %v1636 = vsel %vm684, %v1634, %v1635
      %v1637 = vrot.slane %v1635, 4
      %v1638 = vrot.slane %v1495, 5
      %v1639 = vsel %vm684, %v1637, %v1638
      %v1640 = vrot.slane %v1496, 5
      %v1641 = vrot.slane %v1640, 4
      %v1642 = vrot.slane %v1497, 5
      %v1643 = vsel %vm684, %v1641, %v1642
      %v1644 = vrot.slane %v1642, 4
      %v1645 = vrot.slane %v1498, 5
      %v1646 = vsel %vm684, %v1644, %v1645
      %v1647 = vrot.slane %v1499, 5
      %v1648 = vrot.slane %v1647, 4
      %v1649 = vrot.slane %v1500, 5
      %v1650 = vsel %vm684, %v1648, %v1649
      %v1651 = vrot.slane %v1649, 4
      %v1652 = vrot.slane %v1501, 5
      %v1653 = vsel %vm684, %v1651, %v1652
      %v1654 = vrot.slane %v1502, 5
      %v1655 = vrot.slane %v1654, 4
      %v1656 = vrot.slane %v1503, 5
      %v1657 = vsel %vm684, %v1655, %v1656
      %v1658 = vrot.slane %v1656, 4
      %v1659 = vrot.slane %v1504, 5
      %v1660 = vsel %vm684, %v1658, %v1659
      %v1661 = vrot.slane %v1505, 5
      %v1662 = vrot.slane %v1661, 4
      %v1663 = vrot.slane %v1506, 5
      %v1664 = vsel %vm684, %v1662, %v1663
      %v1665 = vrot.slane %v1663, 4
      %v1666 = vrot.slane %v1507, 5
      %v1667 = vsel %vm684, %v1665, %v1666
      %1668 = vrot.lane.b32.xlu0 %v1559, 16
      %v1669 = vpop.permute.xlu0 %1668
      %1670 = vrot.lane.b32.xlu0 %v1562, 16
      %v1671 = vpop.permute.xlu0 %1670
      %1672 = vrot.lane.b32.xlu0 %v1566, 16
      %v1673 = vpop.permute.xlu0 %1672
      %1674 = vrot.lane.b32.xlu0 %v1569, 16
      %v1675 = vpop.permute.xlu0 %1674
      %1676 = vrot.lane.b32.xlu0 %v1573, 16
      %v1677 = vpop.permute.xlu0 %1676
      %1678 = vrot.lane.b32.xlu0 %v1576, 16
      %v1679 = vpop.permute.xlu0 %1678
      %1680 = vrot.lane.b32.xlu0 %v1580, 16
      %v1681 = vpop.permute.xlu0 %1680
      %1682 = vrot.lane.b32.xlu0 %v1583, 16
      %v1683 = vpop.permute.xlu0 %1682
      %1684 = vrot.lane.b32.xlu0 %v1587, 16
      %v1685 = vpop.permute.xlu0 %1684
      %1686 = vrot.lane.b32.xlu0 %v1590, 16
      %v1687 = vpop.permute.xlu0 %1686
      %1688 = vrot.lane.b32.xlu0 %v1594, 16
      %v1689 = vpop.permute.xlu0 %1688
      %1690 = vrot.lane.b32.xlu0 %v1597, 16
      %v1691 = vpop.permute.xlu0 %1690
      %1692 = vrot.lane.b32.xlu0 %v1601, 16
      %v1693 = vpop.permute.xlu0 %1692
      %1694 = vrot.lane.b32.xlu0 %v1604, 16
      %v1695 = vpop.permute.xlu0 %1694
      %1696 = vrot.lane.b32.xlu0 %v1608, 16
      %v1697 = vpop.permute.xlu0 %1696
      %1698 = vrot.lane.b32.xlu0 %v1611, 16
      %v1699 = vpop.permute.xlu0 %1698
      %1700 = vrot.lane.b32.xlu0 %v1615, 16
      %v1701 = vpop.permute.xlu0 %1700
      %1702 = vrot.lane.b32.xlu0 %v1618, 16
      %v1703 = vpop.permute.xlu0 %1702
      %1704 = vrot.lane.b32.xlu0 %v1622, 16
      %v1705 = vpop.permute.xlu0 %1704
      %1706 = vrot.lane.b32.xlu0 %v1625, 16
      %v1707 = vpop.permute.xlu0 %1706
      %1708 = vrot.lane.b32.xlu0 %v1629, 16
      %v1709 = vpop.permute.xlu0 %1708
      %1710 = vrot.lane.b32.xlu0 %v1632, 16
      %v1711 = vpop.permute.xlu0 %1710
      %1712 = vrot.lane.b32.xlu0 %v1636, 16
      %v1713 = vpop.permute.xlu0 %1712
      %1714 = vrot.lane.b32.xlu0 %v1639, 16
      %v1715 = vpop.permute.xlu0 %1714
      %1716 = vrot.lane.b32.xlu0 %v1643, 16
      %v1717 = vpop.permute.xlu0 %1716
      %1718 = vrot.lane.b32.xlu0 %v1646, 16
      %v1719 = vpop.permute.xlu0 %1718
      %1720 = vrot.lane.b32.xlu0 %v1650, 16
      %v1721 = vpop.permute.xlu0 %1720
      %1722 = vrot.lane.b32.xlu0 %v1653, 16
      %v1723 = vpop.permute.xlu0 %1722
      %1724 = vrot.lane.b32.xlu0 %v1657, 16
      %v1725 = vpop.permute.xlu0 %1724
      %1726 = vrot.lane.b32.xlu0 %v1660, 16
      %v1727 = vpop.permute.xlu0 %1726
      %1728 = vrot.lane.b32.xlu0 %v1664, 16
      %v1729 = vpop.permute.xlu0 %1728
      %1730 = vrot.lane.b32.xlu0 %v1667, 16
      %v1731 = vpop.permute.xlu0 %1730
      %vm1764 = vcmask 158848
      %1765 = vst.msk [vmem:[#allocation2] sm:$0xf] %vm1764, %v1669
      %1766 = vst.msk [vmem:[#allocation2 + $0x4] sm:$0xf] %vm1764, %v1671
      %1767 = vst.msk [vmem:[#allocation2 + $0x8] sm:$0xf] %vm1764, %v1673
      %1768 = vst.msk [vmem:[#allocation2 + $0xc] sm:$0xf] %vm1764, %v1675
      %1769 = vst.msk [vmem:[#allocation2 + $0x10] sm:$0xf] %vm1764, %v1677
      %1770 = vst.msk [vmem:[#allocation2 + $0x14] sm:$0xf] %vm1764, %v1679
      %1771 = vst.msk [vmem:[#allocation2 + $0x18] sm:$0xf] %vm1764, %v1681
      %1772 = vst.msk [vmem:[#allocation2 + $0x1c] sm:$0xf] %vm1764, %v1683
      %1773 = vst.msk [vmem:[#allocation2 + $0x20] sm:$0xf] %vm1764, %v1685
      %1774 = vst.msk [vmem:[#allocation2 + $0x24] sm:$0xf] %vm1764, %v1687
      %1775 = vst.msk [vmem:[#allocation2 + $0x28] sm:$0xf] %vm1764, %v1689
      %1776 = vst.msk [vmem:[#allocation2 + $0x2c] sm:$0xf] %vm1764, %v1691
      %1777 = vst.msk [vmem:[#allocation2 + $0x30] sm:$0xf] %vm1764, %v1693
      %1778 = vst.msk [vmem:[#allocation2 + $0x34] sm:$0xf] %vm1764, %v1695
      %1779 = vst.msk [vmem:[#allocation2 + $0x38] sm:$0xf] %vm1764, %v1697
      %1780 = vst.msk [vmem:[#allocation2 + $0x3c] sm:$0xf] %vm1764, %v1699
      %1781 = vst.msk [vmem:[#allocation2 + $0x40] sm:$0xf] %vm1764, %v1701
      %1782 = vst.msk [vmem:[#allocation2 + $0x44] sm:$0xf] %vm1764, %v1703
      %1783 = vst.msk [vmem:[#allocation2 + $0x48] sm:$0xf] %vm1764, %v1705
      %1784 = vst.msk [vmem:[#allocation2 + $0x4c] sm:$0xf] %vm1764, %v1707
      %1785 = vst.msk [vmem:[#allocation2 + $0x50] sm:$0xf] %vm1764, %v1709
      %1786 = vst.msk [vmem:[#allocation2 + $0x54] sm:$0xf] %vm1764, %v1711
      %1787 = vst.msk [vmem:[#allocation2 + $0x58] sm:$0xf] %vm1764, %v1713
      %1788 = vst.msk [vmem:[#allocation2 + $0x5c] sm:$0xf] %vm1764, %v1715
      %1789 = vst.msk [vmem:[#allocation2 + $0x60] sm:$0xf] %vm1764, %v1717
      %1790 = vst.msk [vmem:[#allocation2 + $0x64] sm:$0xf] %vm1764, %v1719
      %1791 = vst.msk [vmem:[#allocation2 + $0x68] sm:$0xf] %vm1764, %v1721
      %1792 = vst.msk [vmem:[#allocation2 + $0x6c] sm:$0xf] %vm1764, %v1723
      %1793 = vst.msk [vmem:[#allocation2 + $0x70] sm:$0xf] %vm1764, %v1725
      %1794 = vst.msk [vmem:[#allocation2 + $0x74] sm:$0xf] %vm1764, %v1727
      %1795 = vst.msk [vmem:[#allocation2 + $0x78] sm:$0xf] %vm1764, %v1729
      %1796 = vst.msk [vmem:[#allocation2 + $0x7c] sm:$0xf] %vm1764, %v1731
      %v1797 = vld [vmem:[%s1122 + $0xc] sm:$0xf]
      %v1798 = vld [vmem:[%s1122 + $0x10] sm:$0xf]
      %v1799 = vld [vmem:[%s1122 + $0x28] sm:$0xf]
      %v1800 = vld [vmem:[%s1122 + $0x2c] sm:$0xf]
      %v1801 = vld [vmem:[%s1122 + $0x44] sm:$0xf]
      %v1802 = vld [vmem:[%s1122 + $0x48] sm:$0xf]
      %v1803 = vld [vmem:[%s1122 + $0x60] sm:$0xf]
      %v1804 = vld [vmem:[%s1122 + $0x64] sm:$0xf]
      %v1805 = vld [vmem:[%s1122 + $0x7c] sm:$0xf]
      %v1806 = vld [vmem:[%s1122 + $0x80] sm:$0xf]
      %v1807 = vld [vmem:[%s1122 + $0x98] sm:$0xf]
      %v1808 = vld [vmem:[%s1122 + $0x9c] sm:$0xf]
      %v1809 = vld [vmem:[%s1122 + $0xb4] sm:$0xf]
      %v1810 = vld [vmem:[%s1122 + $0xb8] sm:$0xf]
      %v1811 = vld [vmem:[%s1122 + $0xd0] sm:$0xf]
      %v1812 = vld [vmem:[%s1122 + $0xd4] sm:$0xf]
      %v1813 = vld [vmem:[%s1122 + $0xec] sm:$0xf]
      %v1814 = vld [vmem:[%s1122 + $0xf0] sm:$0xf]
      %v1815 = vld [vmem:[%s1122 + $0x108] sm:$0xf]
      %v1816 = vld [vmem:[%s1122 + $0x10c] sm:$0xf]
      %v1817 = vld [vmem:[%s1122 + $0x124] sm:$0xf]
      %v1818 = vld [vmem:[%s1122 + $0x128] sm:$0xf]
      %v1819 = vld [vmem:[%s1122 + $0x140] sm:$0xf]
      %v1820 = vld [vmem:[%s1122 + $0x144] sm:$0xf]
      %v1821 = vld [vmem:[%s1122 + $0x15c] sm:$0xf]
      %v1822 = vld [vmem:[%s1122 + $0x160] sm:$0xf]
      %v1823 = vld [vmem:[%s1122 + $0x178] sm:$0xf]
      %v1824 = vld [vmem:[%s1122 + $0x17c] sm:$0xf]
      %v1825 = vld [vmem:[%s1122 + $0x194] sm:$0xf]
      %v1826 = vld [vmem:[%s1122 + $0x198] sm:$0xf]
      %v1827 = vld [vmem:[%s1122 + $0x1b0] sm:$0xf]
      %v1828 = vld [vmem:[%s1122 + $0x1b4] sm:$0xf]
      %1861 = vrot.lane.b32.xlu0 %v1797, 20
      %v1862 = vpop.permute.xlu0 %1861
      %1863 = vrot.lane.b32.xlu0 %v1798, 20
      %v1864 = vpop.permute.xlu0 %1863
      %1865 = vrot.lane.b32.xlu0 %v1799, 20
      %v1866 = vpop.permute.xlu0 %1865
      %1867 = vrot.lane.b32.xlu0 %v1800, 20
      %v1868 = vpop.permute.xlu0 %1867
      %1869 = vrot.lane.b32.xlu0 %v1801, 20
      %v1870 = vpop.permute.xlu0 %1869
      %1871 = vrot.lane.b32.xlu0 %v1802, 20
      %v1872 = vpop.permute.xlu0 %1871
      %1873 = vrot.lane.b32.xlu0 %v1803, 20
      %v1874 = vpop.permute.xlu0 %1873
      %1875 = vrot.lane.b32.xlu0 %v1804, 20
      %v1876 = vpop.permute.xlu0 %1875
      %1877 = vrot.lane.b32.xlu0 %v1805, 20
      %v1878 = vpop.permute.xlu0 %1877
      %1879 = vrot.lane.b32.xlu0 %v1806, 20
      %v1880 = vpop.permute.xlu0 %1879
      %1881 = vrot.lane.b32.xlu0 %v1807, 20
      %v1882 = vpop.permute.xlu0 %1881
      %1883 = vrot.lane.b32.xlu0 %v1808, 20
      %v1884 = vpop.permute.xlu0 %1883
      %1885 = vrot.lane.b32.xlu0 %v1809, 20
      %v1886 = vpop.permute.xlu0 %1885
      %1887 = vrot.lane.b32.xlu0 %v1810, 20
      %v1888 = vpop.permute.xlu0 %1887
      %1889 = vrot.lane.b32.xlu0 %v1811, 20
      %v1890 = vpop.permute.xlu0 %1889
      %1891 = vrot.lane.b32.xlu0 %v1812, 20
      %v1892 = vpop.permute.xlu0 %1891
      %1893 = vrot.lane.b32.xlu0 %v1813, 20
      %v1894 = vpop.permute.xlu0 %1893
      %1895 = vrot.lane.b32.xlu0 %v1814, 20
      %v1896 = vpop.permute.xlu0 %1895
      %1897 = vrot.lane.b32.xlu0 %v1815, 20
      %v1898 = vpop.permute.xlu0 %1897
      %1899 = vrot.lane.b32.xlu0 %v1816, 20
      %v1900 = vpop.permute.xlu0 %1899
      %1901 = vrot.lane.b32.xlu0 %v1817, 20
      %v1902 = vpop.permute.xlu0 %1901
      %1903 = vrot.lane.b32.xlu0 %v1818, 20
      %v1904 = vpop.permute.xlu0 %1903
      %1905 = vrot.lane.b32.xlu0 %v1819, 20
      %v1906 = vpop.permute.xlu0 %1905
      %1907 = vrot.lane.b32.xlu0 %v1820, 20
      %v1908 = vpop.permute.xlu0 %1907
      %1909 = vrot.lane.b32.xlu0 %v1821, 20
      %v1910 = vpop.permute.xlu0 %1909
      %1911 = vrot.lane.b32.xlu0 %v1822, 20
      %v1912 = vpop.permute.xlu0 %1911
      %1913 = vrot.lane.b32.xlu0 %v1823, 20
      %v1914 = vpop.permute.xlu0 %1913
      %1915 = vrot.lane.b32.xlu0 %v1824, 20
      %v1916 = vpop.permute.xlu0 %1915
      %1917 = vrot.lane.b32.xlu0 %v1825, 20
      %v1918 = vpop.permute.xlu0 %1917
      %1919 = vrot.lane.b32.xlu0 %v1826, 20
      %v1920 = vpop.permute.xlu0 %1919
      %1921 = vrot.lane.b32.xlu0 %v1827, 20
      %v1922 = vpop.permute.xlu0 %1921
      %1923 = vrot.lane.b32.xlu0 %v1828, 20
      %v1924 = vpop.permute.xlu0 %1923
      %vm1957 = vcmask 191648
      %1958 = vst.msk [vmem:[#allocation2] sm:$0xf] %vm1957, %v1862
      %1959 = vst.msk [vmem:[#allocation2 + $0x4] sm:$0xf] %vm1957, %v1864
      %1960 = vst.msk [vmem:[#allocation2 + $0x8] sm:$0xf] %vm1957, %v1866
      %1961 = vst.msk [vmem:[#allocation2 + $0xc] sm:$0xf] %vm1957, %v1868
      %1962 = vst.msk [vmem:[#allocation2 + $0x10] sm:$0xf] %vm1957, %v1870
      %1963 = vst.msk [vmem:[#allocation2 + $0x14] sm:$0xf] %vm1957, %v1872
      %1964 = vst.msk [vmem:[#allocation2 + $0x18] sm:$0xf] %vm1957, %v1874
      %1965 = vst.msk [vmem:[#allocation2 + $0x1c] sm:$0xf] %vm1957, %v1876
      %1966 = vst.msk [vmem:[#allocation2 + $0x20] sm:$0xf] %vm1957, %v1878
      %1967 = vst.msk [vmem:[#allocation2 + $0x24] sm:$0xf] %vm1957, %v1880
      %1968 = vst.msk [vmem:[#allocation2 + $0x28] sm:$0xf] %vm1957, %v1882
      %1969 = vst.msk [vmem:[#allocation2 + $0x2c] sm:$0xf] %vm1957, %v1884
      %1970 = vst.msk [vmem:[#allocation2 + $0x30] sm:$0xf] %vm1957, %v1886
      %1971 = vst.msk [vmem:[#allocation2 + $0x34] sm:$0xf] %vm1957, %v1888
      %1972 = vst.msk [vmem:[#allocation2 + $0x38] sm:$0xf] %vm1957, %v1890
      %1973 = vst.msk [vmem:[#allocation2 + $0x3c] sm:$0xf] %vm1957, %v1892
      %1974 = vst.msk [vmem:[#allocation2 + $0x40] sm:$0xf] %vm1957, %v1894
      %1975 = vst.msk [vmem:[#allocation2 + $0x44] sm:$0xf] %vm1957, %v1896
      %1976 = vst.msk [vmem:[#allocation2 + $0x48] sm:$0xf] %vm1957, %v1898
      %1977 = vst.msk [vmem:[#allocation2 + $0x4c] sm:$0xf] %vm1957, %v1900
      %1978 = vst.msk [vmem:[#allocation2 + $0x50] sm:$0xf] %vm1957, %v1902
      %1979 = vst.msk [vmem:[#allocation2 + $0x54] sm:$0xf] %vm1957, %v1904
      %1980 = vst.msk [vmem:[#allocation2 + $0x58] sm:$0xf] %vm1957, %v1906
      %1981 = vst.msk [vmem:[#allocation2 + $0x5c] sm:$0xf] %vm1957, %v1908
      %1982 = vst.msk [vmem:[#allocation2 + $0x60] sm:$0xf] %vm1957, %v1910
      %1983 = vst.msk [vmem:[#allocation2 + $0x64] sm:$0xf] %vm1957, %v1912
      %1984 = vst.msk [vmem:[#allocation2 + $0x68] sm:$0xf] %vm1957, %v1914
      %1985 = vst.msk [vmem:[#allocation2 + $0x6c] sm:$0xf] %vm1957, %v1916
      %1986 = vst.msk [vmem:[#allocation2 + $0x70] sm:$0xf] %vm1957, %v1918
      %1987 = vst.msk [vmem:[#allocation2 + $0x74] sm:$0xf] %vm1957, %v1920
      %1988 = vst.msk [vmem:[#allocation2 + $0x78] sm:$0xf] %vm1957, %v1922
      %1989 = vst.msk [vmem:[#allocation2 + $0x7c] sm:$0xf] %vm1957, %v1924
      %s1990 = sadd.s32 %s305, 24
      %s1991 = smul.u32 %s1990, 7
      %s1992 = smul.addr %s1991, 4
      %s1993 = scalar_lea.vmem %s285, %s1992
      %v1994 = vld [vmem:[%s1993 + $0x4] sm:$0xc]
      %v1995 = vld [vmem:[%s1993 + $0x8] sm:$0xf]
      %v1996 = vld [vmem:[%s1993 + $0xc] sm:$0x3]
      %v1997 = vld [vmem:[%s1993 + $0x20] sm:$0xc]
      %v1998 = vld [vmem:[%s1993 + $0x24] sm:$0xf]
      %v1999 = vld [vmem:[%s1993 + $0x28] sm:$0x3]
      %v2000 = vld [vmem:[%s1993 + $0x3c] sm:$0xc]
      %v2001 = vld [vmem:[%s1993 + $0x40] sm:$0xf]
      %v2002 = vld [vmem:[%s1993 + $0x44] sm:$0x3]
      %v2003 = vld [vmem:[%s1993 + $0x58] sm:$0xc]
      %v2004 = vld [vmem:[%s1993 + $0x5c] sm:$0xf]
      %v2005 = vld [vmem:[%s1993 + $0x60] sm:$0x3]
      %v2006 = vld [vmem:[%s1993 + $0x74] sm:$0xc]
      %v2007 = vld [vmem:[%s1993 + $0x78] sm:$0xf]
      %v2008 = vld [vmem:[%s1993 + $0x7c] sm:$0x3]
      %v2009 = vld [vmem:[%s1993 + $0x90] sm:$0xc]
      %v2010 = vld [vmem:[%s1993 + $0x94] sm:$0xf]
      %v2011 = vld [vmem:[%s1993 + $0x98] sm:$0x3]
      %v2012 = vld [vmem:[%s1993 + $0xac] sm:$0xc]
      %v2013 = vld [vmem:[%s1993 + $0xb0] sm:$0xf]
      %v2014 = vld [vmem:[%s1993 + $0xb4] sm:$0x3]
      %v2015 = vld [vmem:[%s1993 + $0xc8] sm:$0xc]
      %v2016 = vld [vmem:[%s1993 + $0xcc] sm:$0xf]
      %v2017 = vld [vmem:[%s1993 + $0xd0] sm:$0x3]
      %v2018 = vld [vmem:[%s1993 + $0xe4] sm:$0xc]
      %v2019 = vld [vmem:[%s1993 + $0xe8] sm:$0xf]
      %v2020 = vld [vmem:[%s1993 + $0xec] sm:$0x3]
      %v2021 = vld [vmem:[%s1993 + $0x100] sm:$0xc]
      %v2022 = vld [vmem:[%s1993 + $0x104] sm:$0xf]
      %v2023 = vld [vmem:[%s1993 + $0x108] sm:$0x3]
      %v2024 = vld [vmem:[%s1993 + $0x11c] sm:$0xc]
      %v2025 = vld [vmem:[%s1993 + $0x120] sm:$0xf]
      %v2026 = vld [vmem:[%s1993 + $0x124] sm:$0x3]
      %v2027 = vld [vmem:[%s1993 + $0x138] sm:$0xc]
      %v2028 = vld [vmem:[%s1993 + $0x13c] sm:$0xf]
      %v2029 = vld [vmem:[%s1993 + $0x140] sm:$0x3]
      %v2030 = vld [vmem:[%s1993 + $0x154] sm:$0xc]
      %v2031 = vld [vmem:[%s1993 + $0x158] sm:$0xf]
      %v2032 = vld [vmem:[%s1993 + $0x15c] sm:$0x3]
      %v2033 = vld [vmem:[%s1993 + $0x170] sm:$0xc]
      %v2034 = vld [vmem:[%s1993 + $0x174] sm:$0xf]
      %v2035 = vld [vmem:[%s1993 + $0x178] sm:$0x3]
      %v2036 = vld [vmem:[%s1993 + $0x18c] sm:$0xc]
      %v2037 = vld [vmem:[%s1993 + $0x190] sm:$0xf]
      %v2038 = vld [vmem:[%s1993 + $0x194] sm:$0x3]
      %v2039 = vld [vmem:[%s1993 + $0x1a8] sm:$0xc]
      %v2040 = vld [vmem:[%s1993 + $0x1ac] sm:$0xf]
      %v2041 = vld [vmem:[%s1993 + $0x1b0] sm:$0x3]
      %v2090 = vrot.slane %v1994, 6
      %v2091 = vrot.slane %v2090, 4
      %v2092 = vrot.slane %v1995, 6
      %v2093 = vsel %vm408, %v2091, %v2092
      %v2094 = vrot.slane %v2092, 4
      %v2095 = vrot.slane %v1996, 6
      %v2096 = vsel %vm408, %v2094, %v2095
      %v2097 = vrot.slane %v1997, 6
      %v2098 = vrot.slane %v2097, 4
      %v2099 = vrot.slane %v1998, 6
      %v2100 = vsel %vm408, %v2098, %v2099
      %v2101 = vrot.slane %v2099, 4
      %v2102 = vrot.slane %v1999, 6
      %v2103 = vsel %vm408, %v2101, %v2102
      %v2104 = vrot.slane %v2000, 6
      %v2105 = vrot.slane %v2104, 4
      %v2106 = vrot.slane %v2001, 6
      %v2107 = vsel %vm408, %v2105, %v2106
      %v2108 = vrot.slane %v2106, 4
      %v2109 = vrot.slane %v2002, 6
      %v2110 = vsel %vm408, %v2108, %v2109
      %v2111 = vrot.slane %v2003, 6
      %v2112 = vrot.slane %v2111, 4
      %v2113 = vrot.slane %v2004, 6
      %v2114 = vsel %vm408, %v2112, %v2113
      %v2115 = vrot.slane %v2113, 4
      %v2116 = vrot.slane %v2005, 6
      %v2117 = vsel %vm408, %v2115, %v2116
      %v2118 = vrot.slane %v2006, 6
      %v2119 = vrot.slane %v2118, 4
      %v2120 = vrot.slane %v2007, 6
      %v2121 = vsel %vm408, %v2119, %v2120
      %v2122 = vrot.slane %v2120, 4
      %v2123 = vrot.slane %v2008, 6
      %v2124 = vsel %vm408, %v2122, %v2123
      %v2125 = vrot.slane %v2009, 6
      %v2126 = vrot.slane %v2125, 4
      %v2127 = vrot.slane %v2010, 6
      %v2128 = vsel %vm408, %v2126, %v2127
      %v2129 = vrot.slane %v2127, 4
      %v2130 = vrot.slane %v2011, 6
      %v2131 = vsel %vm408, %v2129, %v2130
      %v2132 = vrot.slane %v2012, 6
      %v2133 = vrot.slane %v2132, 4
      %v2134 = vrot.slane %v2013, 6
      %v2135 = vsel %vm408, %v2133, %v2134
      %v2136 = vrot.slane %v2134, 4
      %v2137 = vrot.slane %v2014, 6
      %v2138 = vsel %vm408, %v2136, %v2137
      %v2139 = vrot.slane %v2015, 6
      %v2140 = vrot.slane %v2139, 4
      %v2141 = vrot.slane %v2016, 6
      %v2142 = vsel %vm408, %v2140, %v2141
      %v2143 = vrot.slane %v2141, 4
      %v2144 = vrot.slane %v2017, 6
      %v2145 = vsel %vm408, %v2143, %v2144
      %v2146 = vrot.slane %v2018, 6
      %v2147 = vrot.slane %v2146, 4
      %v2148 = vrot.slane %v2019, 6
      %v2149 = vsel %vm408, %v2147, %v2148
      %v2150 = vrot.slane %v2148, 4
      %v2151 = vrot.slane %v2020, 6
      %v2152 = vsel %vm408, %v2150, %v2151
      %v2153 = vrot.slane %v2021, 6
      %v2154 = vrot.slane %v2153, 4
      %v2155 = vrot.slane %v2022, 6
      %v2156 = vsel %vm408, %v2154, %v2155
      %v2157 = vrot.slane %v2155, 4
      %v2158 = vrot.slane %v2023, 6
      %v2159 = vsel %vm408, %v2157, %v2158
      %v2160 = vrot.slane %v2024, 6
      %v2161 = vrot.slane %v2160, 4
      %v2162 = vrot.slane %v2025, 6
      %v2163 = vsel %vm408, %v2161, %v2162
      %v2164 = vrot.slane %v2162, 4
      %v2165 = vrot.slane %v2026, 6
      %v2166 = vsel %vm408, %v2164, %v2165
      %v2167 = vrot.slane %v2027, 6
      %v2168 = vrot.slane %v2167, 4
      %v2169 = vrot.slane %v2028, 6
      %v2170 = vsel %vm408, %v2168, %v2169
      %v2171 = vrot.slane %v2169, 4
      %v2172 = vrot.slane %v2029, 6
      %v2173 = vsel %vm408, %v2171, %v2172
      %v2174 = vrot.slane %v2030, 6
      %v2175 = vrot.slane %v2174, 4
      %v2176 = vrot.slane %v2031, 6
      %v2177 = vsel %vm408, %v2175, %v2176
      %v2178 = vrot.slane %v2176, 4
      %v2179 = vrot.slane %v2032, 6
      %v2180 = vsel %vm408, %v2178, %v2179
      %v2181 = vrot.slane %v2033, 6
      %v2182 = vrot.slane %v2181, 4
      %v2183 = vrot.slane %v2034, 6
      %v2184 = vsel %vm408, %v2182, %v2183
      %v2185 = vrot.slane %v2183, 4
      %v2186 = vrot.slane %v2035, 6
      %v2187 = vsel %vm408, %v2185, %v2186
      %v2188 = vrot.slane %v2036, 6
      %v2189 = vrot.slane %v2188, 4
      %v2190 = vrot.slane %v2037, 6
      %v2191 = vsel %vm408, %v2189, %v2190
      %v2192 = vrot.slane %v2190, 4
      %v2193 = vrot.slane %v2038, 6
      %v2194 = vsel %vm408, %v2192, %v2193
      %v2195 = vrot.slane %v2039, 6
      %v2196 = vrot.slane %v2195, 4
      %v2197 = vrot.slane %v2040, 6
      %v2198 = vsel %vm408, %v2196, %v2197
      %v2199 = vrot.slane %v2197, 4
      %v2200 = vrot.slane %v2041, 6
      %v2201 = vsel %vm408, %v2199, %v2200
      %2202 = vrot.lane.b32.xlu0 %v2093, 24
      %v2203 = vpop.permute.xlu0 %2202
      %2204 = vrot.lane.b32.xlu0 %v2096, 24
      %v2205 = vpop.permute.xlu0 %2204
      %2206 = vrot.lane.b32.xlu0 %v2100, 24
      %v2207 = vpop.permute.xlu0 %2206
      %2208 = vrot.lane.b32.xlu0 %v2103, 24
      %v2209 = vpop.permute.xlu0 %2208
      %2210 = vrot.lane.b32.xlu0 %v2107, 24
      %v2211 = vpop.permute.xlu0 %2210
      %2212 = vrot.lane.b32.xlu0 %v2110, 24
      %v2213 = vpop.permute.xlu0 %2212
      %2214 = vrot.lane.b32.xlu0 %v2114, 24
      %v2215 = vpop.permute.xlu0 %2214
      %2216 = vrot.lane.b32.xlu0 %v2117, 24
      %v2217 = vpop.permute.xlu0 %2216
      %2218 = vrot.lane.b32.xlu0 %v2121, 24
      %v2219 = vpop.permute.xlu0 %2218
      %2220 = vrot.lane.b32.xlu0 %v2124, 24
      %v2221 = vpop.permute.xlu0 %2220
      %2222 = vrot.lane.b32.xlu0 %v2128, 24
      %v2223 = vpop.permute.xlu0 %2222
      %2224 = vrot.lane.b32.xlu0 %v2131, 24
      %v2225 = vpop.permute.xlu0 %2224
      %2226 = vrot.lane.b32.xlu0 %v2135, 24
      %v2227 = vpop.permute.xlu0 %2226
      %2228 = vrot.lane.b32.xlu0 %v2138, 24
      %v2229 = vpop.permute.xlu0 %2228
      %2230 = vrot.lane.b32.xlu0 %v2142, 24
      %v2231 = vpop.permute.xlu0 %2230
      %2232 = vrot.lane.b32.xlu0 %v2145, 24
      %v2233 = vpop.permute.xlu0 %2232
      %2234 = vrot.lane.b32.xlu0 %v2149, 24
      %v2235 = vpop.permute.xlu0 %2234
      %2236 = vrot.lane.b32.xlu0 %v2152, 24
      %v2237 = vpop.permute.xlu0 %2236
      %2238 = vrot.lane.b32.xlu0 %v2156, 24
      %v2239 = vpop.permute.xlu0 %2238
      %2240 = vrot.lane.b32.xlu0 %v2159, 24
      %v2241 = vpop.permute.xlu0 %2240
      %2242 = vrot.lane.b32.xlu0 %v2163, 24
      %v2243 = vpop.permute.xlu0 %2242
      %2244 = vrot.lane.b32.xlu0 %v2166, 24
      %v2245 = vpop.permute.xlu0 %2244
      %2246 = vrot.lane.b32.xlu0 %v2170, 24
      %v2247 = vpop.permute.xlu0 %2246
      %2248 = vrot.lane.b32.xlu0 %v2173, 24
      %v2249 = vpop.permute.xlu0 %2248
      %2250 = vrot.lane.b32.xlu0 %v2177, 24
      %v2251 = vpop.permute.xlu0 %2250
      %2252 = vrot.lane.b32.xlu0 %v2180, 24
      %v2253 = vpop.permute.xlu0 %2252
      %2254 = vrot.lane.b32.xlu0 %v2184, 24
      %v2255 = vpop.permute.xlu0 %2254
      %2256 = vrot.lane.b32.xlu0 %v2187, 24
      %v2257 = vpop.permute.xlu0 %2256
      %2258 = vrot.lane.b32.xlu0 %v2191, 24
      %v2259 = vpop.permute.xlu0 %2258
      %2260 = vrot.lane.b32.xlu0 %v2194, 24
      %v2261 = vpop.permute.xlu0 %2260
      %2262 = vrot.lane.b32.xlu0 %v2198, 24
      %v2263 = vpop.permute.xlu0 %2262
      %2264 = vrot.lane.b32.xlu0 %v2201, 24
      %v2265 = vpop.permute.xlu0 %2264
      %vm2298 = vcmask 224448
      %2299 = vst.msk [vmem:[#allocation2] sm:$0xf] %vm2298, %v2203
      %2300 = vst.msk [vmem:[#allocation2 + $0x4] sm:$0xf] %vm2298, %v2205
      %2301 = vst.msk [vmem:[#allocation2 + $0x8] sm:$0xf] %vm2298, %v2207
      %2302 = vst.msk [vmem:[#allocation2 + $0xc] sm:$0xf] %vm2298, %v2209
      %2303 = vst.msk [vmem:[#allocation2 + $0x10] sm:$0xf] %vm2298, %v2211
      %2304 = vst.msk [vmem:[#allocation2 + $0x14] sm:$0xf] %vm2298, %v2213
      %2305 = vst.msk [vmem:[#allocation2 + $0x18] sm:$0xf] %vm2298, %v2215
      %2306 = vst.msk [vmem:[#allocation2 + $0x1c] sm:$0xf] %vm2298, %v2217
      %2307 = vst.msk [vmem:[#allocation2 + $0x20] sm:$0xf] %vm2298, %v2219
      %2308 = vst.msk [vmem:[#allocation2 + $0x24] sm:$0xf] %vm2298, %v2221
      %2309 = vst.msk [vmem:[#allocation2 + $0x28] sm:$0xf] %vm2298, %v2223
      %2310 = vst.msk [vmem:[#allocation2 + $0x2c] sm:$0xf] %vm2298, %v2225
      %2311 = vst.msk [vmem:[#allocation2 + $0x30] sm:$0xf] %vm2298, %v2227
      %2312 = vst.msk [vmem:[#allocation2 + $0x34] sm:$0xf] %vm2298, %v2229
      %2313 = vst.msk [vmem:[#allocation2 + $0x38] sm:$0xf] %vm2298, %v2231
      %2314 = vst.msk [vmem:[#allocation2 + $0x3c] sm:$0xf] %vm2298, %v2233
      %2315 = vst.msk [vmem:[#allocation2 + $0x40] sm:$0xf] %vm2298, %v2235
      %2316 = vst.msk [vmem:[#allocation2 + $0x44] sm:$0xf] %vm2298, %v2237
      %2317 = vst.msk [vmem:[#allocation2 + $0x48] sm:$0xf] %vm2298, %v2239
      %2318 = vst.msk [vmem:[#allocation2 + $0x4c] sm:$0xf] %vm2298, %v2241
      %2319 = vst.msk [vmem:[#allocation2 + $0x50] sm:$0xf] %vm2298, %v2243
      %2320 = vst.msk [vmem:[#allocation2 + $0x54] sm:$0xf] %vm2298, %v2245
      %2321 = vst.msk [vmem:[#allocation2 + $0x58] sm:$0xf] %vm2298, %v2247
      %2322 = vst.msk [vmem:[#allocation2 + $0x5c] sm:$0xf] %vm2298, %v2249
      %2323 = vst.msk [vmem:[#allocation2 + $0x60] sm:$0xf] %vm2298, %v2251
      %2324 = vst.msk [vmem:[#allocation2 + $0x64] sm:$0xf] %vm2298, %v2253
      %2325 = vst.msk [vmem:[#allocation2 + $0x68] sm:$0xf] %vm2298, %v2255
      %2326 = vst.msk [vmem:[#allocation2 + $0x6c] sm:$0xf] %vm2298, %v2257
      %2327 = vst.msk [vmem:[#allocation2 + $0x70] sm:$0xf] %vm2298, %v2259
      %2328 = vst.msk [vmem:[#allocation2 + $0x74] sm:$0xf] %vm2298, %v2261
      %2329 = vst.msk [vmem:[#allocation2 + $0x78] sm:$0xf] %vm2298, %v2263
      %2330 = vst.msk [vmem:[#allocation2 + $0x7c] sm:$0xf] %vm2298, %v2265
      %v2331 = vld [vmem:[%s1993 + $0x8] sm:$0xe]
      %v2332 = vld [vmem:[%s1993 + $0xc] sm:$0xf]
      %v2333 = vld [vmem:[%s1993 + $0x10] sm:$0x1]
      %v2334 = vld [vmem:[%s1993 + $0x24] sm:$0xe]
      %v2335 = vld [vmem:[%s1993 + $0x28] sm:$0xf]
      %v2336 = vld [vmem:[%s1993 + $0x2c] sm:$0x1]
      %v2337 = vld [vmem:[%s1993 + $0x40] sm:$0xe]
      %v2338 = vld [vmem:[%s1993 + $0x44] sm:$0xf]
      %v2339 = vld [vmem:[%s1993 + $0x48] sm:$0x1]
      %v2340 = vld [vmem:[%s1993 + $0x5c] sm:$0xe]
      %v2341 = vld [vmem:[%s1993 + $0x60] sm:$0xf]
      %v2342 = vld [vmem:[%s1993 + $0x64] sm:$0x1]
      %v2343 = vld [vmem:[%s1993 + $0x78] sm:$0xe]
      %v2344 = vld [vmem:[%s1993 + $0x7c] sm:$0xf]
      %v2345 = vld [vmem:[%s1993 + $0x80] sm:$0x1]
      %v2346 = vld [vmem:[%s1993 + $0x94] sm:$0xe]
      %v2347 = vld [vmem:[%s1993 + $0x98] sm:$0xf]
      %v2348 = vld [vmem:[%s1993 + $0x9c] sm:$0x1]
      %v2349 = vld [vmem:[%s1993 + $0xb0] sm:$0xe]
      %v2350 = vld [vmem:[%s1993 + $0xb4] sm:$0xf]
      %v2351 = vld [vmem:[%s1993 + $0xb8] sm:$0x1]
      %v2352 = vld [vmem:[%s1993 + $0xcc] sm:$0xe]
      %v2353 = vld [vmem:[%s1993 + $0xd0] sm:$0xf]
      %v2354 = vld [vmem:[%s1993 + $0xd4] sm:$0x1]
      %v2355 = vld [vmem:[%s1993 + $0xe8] sm:$0xe]
      %v2356 = vld [vmem:[%s1993 + $0xec] sm:$0xf]
      %v2357 = vld [vmem:[%s1993 + $0xf0] sm:$0x1]
      %v2358 = vld [vmem:[%s1993 + $0x104] sm:$0xe]
      %v2359 = vld [vmem:[%s1993 + $0x108] sm:$0xf]
      %v2360 = vld [vmem:[%s1993 + $0x10c] sm:$0x1]
      %v2361 = vld [vmem:[%s1993 + $0x120] sm:$0xe]
      %v2362 = vld [vmem:[%s1993 + $0x124] sm:$0xf]
      %v2363 = vld [vmem:[%s1993 + $0x128] sm:$0x1]
      %v2364 = vld [vmem:[%s1993 + $0x13c] sm:$0xe]
      %v2365 = vld [vmem:[%s1993 + $0x140] sm:$0xf]
      %v2366 = vld [vmem:[%s1993 + $0x144] sm:$0x1]
      %v2367 = vld [vmem:[%s1993 + $0x158] sm:$0xe]
      %v2368 = vld [vmem:[%s1993 + $0x15c] sm:$0xf]
      %v2369 = vld [vmem:[%s1993 + $0x160] sm:$0x1]
      %v2370 = vld [vmem:[%s1993 + $0x174] sm:$0xe]
      %v2371 = vld [vmem:[%s1993 + $0x178] sm:$0xf]
      %v2372 = vld [vmem:[%s1993 + $0x17c] sm:$0x1]
      %v2373 = vld [vmem:[%s1993 + $0x190] sm:$0xe]
      %v2374 = vld [vmem:[%s1993 + $0x194] sm:$0xf]
      %v2375 = vld [vmem:[%s1993 + $0x198] sm:$0x1]
      %v2376 = vld [vmem:[%s1993 + $0x1ac] sm:$0xe]
      %v2377 = vld [vmem:[%s1993 + $0x1b0] sm:$0xf]
      %v2378 = vld [vmem:[%s1993 + $0x1b4] sm:$0x1]
      %v2427 = vrot.slane %v2331, 5
      %v2428 = vrot.slane %v2427, 4
      %v2429 = vrot.slane %v2332, 5
      %v2430 = vsel %vm684, %v2428, %v2429
      %v2431 = vrot.slane %v2429, 4
      %v2432 = vrot.slane %v2333, 5
      %v2433 = vsel %vm684, %v2431, %v2432
      %v2434 = vrot.slane %v2334, 5
      %v2435 = vrot.slane %v2434, 4
      %v2436 = vrot.slane %v2335, 5
      %v2437 = vsel %vm684, %v2435, %v2436
      %v2438 = vrot.slane %v2436, 4
      %v2439 = vrot.slane %v2336, 5
      %v2440 = vsel %vm684, %v2438, %v2439
      %v2441 = vrot.slane %v2337, 5
      %v2442 = vrot.slane %v2441, 4
      %v2443 = vrot.slane %v2338, 5
      %v2444 = vsel %vm684, %v2442, %v2443
      %v2445 = vrot.slane %v2443, 4
      %v2446 = vrot.slane %v2339, 5
      %v2447 = vsel %vm684, %v2445, %v2446
      %v2448 = vrot.slane %v2340, 5
      %v2449 = vrot.slane %v2448, 4
      %v2450 = vrot.slane %v2341, 5
      %v2451 = vsel %vm684, %v2449, %v2450
      %v2452 = vrot.slane %v2450, 4
      %v2453 = vrot.slane %v2342, 5
      %v2454 = vsel %vm684, %v2452, %v2453
      %v2455 = vrot.slane %v2343, 5
      %v2456 = vrot.slane %v2455, 4
      %v2457 = vrot.slane %v2344, 5
      %v2458 = vsel %vm684, %v2456, %v2457
      %v2459 = vrot.slane %v2457, 4
      %v2460 = vrot.slane %v2345, 5
      %v2461 = vsel %vm684, %v2459, %v2460
      %v2462 = vrot.slane %v2346, 5
      %v2463 = vrot.slane %v2462, 4
      %v2464 = vrot.slane %v2347, 5
      %v2465 = vsel %vm684, %v2463, %v2464
      %v2466 = vrot.slane %v2464, 4
      %v2467 = vrot.slane %v2348, 5
      %v2468 = vsel %vm684, %v2466, %v2467
      %v2469 = vrot.slane %v2349, 5
      %v2470 = vrot.slane %v2469, 4
      %v2471 = vrot.slane %v2350, 5
      %v2472 = vsel %vm684, %v2470, %v2471
      %v2473 = vrot.slane %v2471, 4
      %v2474 = vrot.slane %v2351, 5
      %v2475 = vsel %vm684, %v2473, %v2474
      %v2476 = vrot.slane %v2352, 5
      %v2477 = vrot.slane %v2476, 4
      %v2478 = vrot.slane %v2353, 5
      %v2479 = vsel %vm684, %v2477, %v2478
      %v2480 = vrot.slane %v2478, 4
      %v2481 = vrot.slane %v2354, 5
      %v2482 = vsel %vm684, %v2480, %v2481
      %v2483 = vrot.slane %v2355, 5
      %v2484 = vrot.slane %v2483, 4
      %v2485 = vrot.slane %v2356, 5
      %v2486 = vsel %vm684, %v2484, %v2485
      %v2487 = vrot.slane %v2485, 4
      %v2488 = vrot.slane %v2357, 5
      %v2489 = vsel %vm684, %v2487, %v2488
      %v2490 = vrot.slane %v2358, 5
      %v2491 = vrot.slane %v2490, 4
      %v2492 = vrot.slane %v2359, 5
      %v2493 = vsel %vm684, %v2491, %v2492
      %v2494 = vrot.slane %v2492, 4
      %v2495 = vrot.slane %v2360, 5
      %v2496 = vsel %vm684, %v2494, %v2495
      %v2497 = vrot.slane %v2361, 5
      %v2498 = vrot.slane %v2497, 4
      %v2499 = vrot.slane %v2362, 5
      %v2500 = vsel %vm684, %v2498, %v2499
      %v2501 = vrot.slane %v2499, 4
      %v2502 = vrot.slane %v2363, 5
      %v2503 = vsel %vm684, %v2501, %v2502
      %v2504 = vrot.slane %v2364, 5
      %v2505 = vrot.slane %v2504, 4
      %v2506 = vrot.slane %v2365, 5
      %v2507 = vsel %vm684, %v2505, %v2506
      %v2508 = vrot.slane %v2506, 4
      %v2509 = vrot.slane %v2366, 5
      %v2510 = vsel %vm684, %v2508, %v2509
      %v2511 = vrot.slane %v2367, 5
      %v2512 = vrot.slane %v2511, 4
      %v2513 = vrot.slane %v2368, 5
      %v2514 = vsel %vm684, %v2512, %v2513
      %v2515 = vrot.slane %v2513, 4
      %v2516 = vrot.slane %v2369, 5
      %v2517 = vsel %vm684, %v2515, %v2516
      %v2518 = vrot.slane %v2370, 5
      %v2519 = vrot.slane %v2518, 4
      %v2520 = vrot.slane %v2371, 5
      %v2521 = vsel %vm684, %v2519, %v2520
      %v2522 = vrot.slane %v2520, 4
      %v2523 = vrot.slane %v2372, 5
      %v2524 = vsel %vm684, %v2522, %v2523
      %v2525 = vrot.slane %v2373, 5
      %v2526 = vrot.slane %v2525, 4
      %v2527 = vrot.slane %v2374, 5
      %v2528 = vsel %vm684, %v2526, %v2527
      %v2529 = vrot.slane %v2527, 4
      %v2530 = vrot.slane %v2375, 5
      %v2531 = vsel %vm684, %v2529, %v2530
      %v2532 = vrot.slane %v2376, 5
      %v2533 = vrot.slane %v2532, 4
      %v2534 = vrot.slane %v2377, 5
      %v2535 = vsel %vm684, %v2533, %v2534
      %v2536 = vrot.slane %v2534, 4
      %v2537 = vrot.slane %v2378, 5
      %v2538 = vsel %vm684, %v2536, %v2537
      %2539 = vrot.lane.b32.xlu0 %v2430, 28
      %v2540 = vpop.permute.xlu0 %2539
      %2541 = vrot.lane.b32.xlu0 %v2433, 28
      %v2542 = vpop.permute.xlu0 %2541
      %2543 = vrot.lane.b32.xlu0 %v2437, 28
      %v2544 = vpop.permute.xlu0 %2543
      %2545 = vrot.lane.b32.xlu0 %v2440, 28
      %v2546 = vpop.permute.xlu0 %2545
      %2547 = vrot.lane.b32.xlu0 %v2444, 28
      %v2548 = vpop.permute.xlu0 %2547
      %2549 = vrot.lane.b32.xlu0 %v2447, 28
      %v2550 = vpop.permute.xlu0 %2549
      %2551 = vrot.lane.b32.xlu0 %v2451, 28
      %v2552 = vpop.permute.xlu0 %2551
      %2553 = vrot.lane.b32.xlu0 %v2454, 28
      %v2554 = vpop.permute.xlu0 %2553
      %2555 = vrot.lane.b32.xlu0 %v2458, 28
      %v2556 = vpop.permute.xlu0 %2555
      %2557 = vrot.lane.b32.xlu0 %v2461, 28
      %v2558 = vpop.permute.xlu0 %2557
      %2559 = vrot.lane.b32.xlu0 %v2465, 28
      %v2560 = vpop.permute.xlu0 %2559
      %2561 = vrot.lane.b32.xlu0 %v2468, 28
      %v2562 = vpop.permute.xlu0 %2561
      %2563 = vrot.lane.b32.xlu0 %v2472, 28
      %v2564 = vpop.permute.xlu0 %2563
      %2565 = vrot.lane.b32.xlu0 %v2475, 28
      %v2566 = vpop.permute.xlu0 %2565
      %2567 = vrot.lane.b32.xlu0 %v2479, 28
      %v2568 = vpop.permute.xlu0 %2567
      %2569 = vrot.lane.b32.xlu0 %v2482, 28
      %v2570 = vpop.permute.xlu0 %2569
      %2571 = vrot.lane.b32.xlu0 %v2486, 28
      %v2572 = vpop.permute.xlu0 %2571
      %2573 = vrot.lane.b32.xlu0 %v2489, 28
      %v2574 = vpop.permute.xlu0 %2573
      %2575 = vrot.lane.b32.xlu0 %v2493, 28
      %v2576 = vpop.permute.xlu0 %2575
      %2577 = vrot.lane.b32.xlu0 %v2496, 28
      %v2578 = vpop.permute.xlu0 %2577
      %2579 = vrot.lane.b32.xlu0 %v2500, 28
      %v2580 = vpop.permute.xlu0 %2579
      %2581 = vrot.lane.b32.xlu0 %v2503, 28
      %v2582 = vpop.permute.xlu0 %2581
      %2583 = vrot.lane.b32.xlu0 %v2507, 28
      %v2584 = vpop.permute.xlu0 %2583
      %2585 = vrot.lane.b32.xlu0 %v2510, 28
      %v2586 = vpop.permute.xlu0 %2585
      %2587 = vrot.lane.b32.xlu0 %v2514, 28
      %v2588 = vpop.permute.xlu0 %2587
      %2589 = vrot.lane.b32.xlu0 %v2517, 28
      %v2590 = vpop.permute.xlu0 %2589
      %2591 = vrot.lane.b32.xlu0 %v2521, 28
      %v2592 = vpop.permute.xlu0 %2591
      %2593 = vrot.lane.b32.xlu0 %v2524, 28
      %v2594 = vpop.permute.xlu0 %2593
      %2595 = vrot.lane.b32.xlu0 %v2528, 28
      %v2596 = vpop.permute.xlu0 %2595
      %2597 = vrot.lane.b32.xlu0 %v2531, 28
      %v2598 = vpop.permute.xlu0 %2597
      %2599 = vrot.lane.b32.xlu0 %v2535, 28
      %v2600 = vpop.permute.xlu0 %2599
      %2601 = vrot.lane.b32.xlu0 %v2538, 28
      %v2602 = vpop.permute.xlu0 %2601
      %vm2635 = vcmask 257248
      %2636 = vst.msk [vmem:[#allocation2] sm:$0xf] %vm2635, %v2540
      %2637 = vst.msk [vmem:[#allocation2 + $0x4] sm:$0xf] %vm2635, %v2542
      %2638 = vst.msk [vmem:[#allocation2 + $0x8] sm:$0xf] %vm2635, %v2544
      %2639 = vst.msk [vmem:[#allocation2 + $0xc] sm:$0xf] %vm2635, %v2546
      %2640 = vst.msk [vmem:[#allocation2 + $0x10] sm:$0xf] %vm2635, %v2548
      %2641 = vst.msk [vmem:[#allocation2 + $0x14] sm:$0xf] %vm2635, %v2550
      %2642 = vst.msk [vmem:[#allocation2 + $0x18] sm:$0xf] %vm2635, %v2552
      %2643 = vst.msk [vmem:[#allocation2 + $0x1c] sm:$0xf] %vm2635, %v2554
      %2644 = vst.msk [vmem:[#allocation2 + $0x20] sm:$0xf] %vm2635, %v2556
      %2645 = vst.msk [vmem:[#allocation2 + $0x24] sm:$0xf] %vm2635, %v2558
      %2646 = vst.msk [vmem:[#allocation2 + $0x28] sm:$0xf] %vm2635, %v2560
      %2647 = vst.msk [vmem:[#allocation2 + $0x2c] sm:$0xf] %vm2635, %v2562
      %2648 = vst.msk [vmem:[#allocation2 + $0x30] sm:$0xf] %vm2635, %v2564
      %2649 = vst.msk [vmem:[#allocation2 + $0x34] sm:$0xf] %vm2635, %v2566
      %2650 = vst.msk [vmem:[#allocation2 + $0x38] sm:$0xf] %vm2635, %v2568
      %2651 = vst.msk [vmem:[#allocation2 + $0x3c] sm:$0xf] %vm2635, %v2570
      %2652 = vst.msk [vmem:[#allocation2 + $0x40] sm:$0xf] %vm2635, %v2572
      %2653 = vst.msk [vmem:[#allocation2 + $0x44] sm:$0xf] %vm2635, %v2574
      %2654 = vst.msk [vmem:[#allocation2 + $0x48] sm:$0xf] %vm2635, %v2576
      %2655 = vst.msk [vmem:[#allocation2 + $0x4c] sm:$0xf] %vm2635, %v2578
      %2656 = vst.msk [vmem:[#allocation2 + $0x50] sm:$0xf] %vm2635, %v2580
      %2657 = vst.msk [vmem:[#allocation2 + $0x54] sm:$0xf] %vm2635, %v2582
      %2658 = vst.msk [vmem:[#allocation2 + $0x58] sm:$0xf] %vm2635, %v2584
      %2659 = vst.msk [vmem:[#allocation2 + $0x5c] sm:$0xf] %vm2635, %v2586
      %2660 = vst.msk [vmem:[#allocation2 + $0x60] sm:$0xf] %vm2635, %v2588
      %2661 = vst.msk [vmem:[#allocation2 + $0x64] sm:$0xf] %vm2635, %v2590
      %2662 = vst.msk [vmem:[#allocation2 + $0x68] sm:$0xf] %vm2635, %v2592
      %2663 = vst.msk [vmem:[#allocation2 + $0x6c] sm:$0xf] %vm2635, %v2594
      %2664 = vst.msk [vmem:[#allocation2 + $0x70] sm:$0xf] %vm2635, %v2596
      %2665 = vst.msk [vmem:[#allocation2 + $0x74] sm:$0xf] %vm2635, %v2598
      %2666 = vst.msk [vmem:[#allocation2 + $0x78] sm:$0xf] %vm2635, %v2600
      %2667 = vst.msk [vmem:[#allocation2 + $0x7c] sm:$0xf] %vm2635, %v2602
      %v2668 = vld [vmem:[%s1993 + $0xc] sm:$0xf]
      %v2669 = vld [vmem:[%s1993 + $0x10] sm:$0xf]
      %v2670 = vld [vmem:[%s1993 + $0x28] sm:$0xf]
      %v2671 = vld [vmem:[%s1993 + $0x2c] sm:$0xf]
      %v2672 = vld [vmem:[%s1993 + $0x44] sm:$0xf]
      %v2673 = vld [vmem:[%s1993 + $0x48] sm:$0xf]
      %v2674 = vld [vmem:[%s1993 + $0x60] sm:$0xf]
      %v2675 = vld [vmem:[%s1993 + $0x64] sm:$0xf]
      %v2676 = vld [vmem:[%s1993 + $0x7c] sm:$0xf]
      %v2677 = vld [vmem:[%s1993 + $0x80] sm:$0xf]
      %v2678 = vld [vmem:[%s1993 + $0x98] sm:$0xf]
      %v2679 = vld [vmem:[%s1993 + $0x9c] sm:$0xf]
      %v2680 = vld [vmem:[%s1993 + $0xb4] sm:$0xf]
      %v2681 = vld [vmem:[%s1993 + $0xb8] sm:$0xf]
      %v2682 = vld [vmem:[%s1993 + $0xd0] sm:$0xf]
      %v2683 = vld [vmem:[%s1993 + $0xd4] sm:$0xf]
      %v2684 = vld [vmem:[%s1993 + $0xec] sm:$0xf]
      %v2685 = vld [vmem:[%s1993 + $0xf0] sm:$0xf]
      %v2686 = vld [vmem:[%s1993 + $0x108] sm:$0xf]
      %v2687 = vld [vmem:[%s1993 + $0x10c] sm:$0xf]
      %v2688 = vld [vmem:[%s1993 + $0x124] sm:$0xf]
      %v2689 = vld [vmem:[%s1993 + $0x128] sm:$0xf]
      %v2690 = vld [vmem:[%s1993 + $0x140] sm:$0xf]
      %v2691 = vld [vmem:[%s1993 + $0x144] sm:$0xf]
      %v2692 = vld [vmem:[%s1993 + $0x15c] sm:$0xf]
      %v2693 = vld [vmem:[%s1993 + $0x160] sm:$0xf]
      %v2694 = vld [vmem:[%s1993 + $0x178] sm:$0xf]
      %v2695 = vld [vmem:[%s1993 + $0x17c] sm:$0xf]
      %v2696 = vld [vmem:[%s1993 + $0x194] sm:$0xf]
      %v2697 = vld [vmem:[%s1993 + $0x198] sm:$0xf]
      %v2698 = vld [vmem:[%s1993 + $0x1b0] sm:$0xf]
      %v2699 = vld [vmem:[%s1993 + $0x1b4] sm:$0xf]
      %2732 = vrot.lane.b32.xlu0 %v2668, 32
      %v2733 = vpop.permute.xlu0 %2732
      %2734 = vrot.lane.b32.xlu0 %v2669, 32
      %v2735 = vpop.permute.xlu0 %2734
      %2736 = vrot.lane.b32.xlu0 %v2670, 32
      %v2737 = vpop.permute.xlu0 %2736
      %2738 = vrot.lane.b32.xlu0 %v2671, 32
      %v2739 = vpop.permute.xlu0 %2738
      %2740 = vrot.lane.b32.xlu0 %v2672, 32
      %v2741 = vpop.permute.xlu0 %2740
      %2742 = vrot.lane.b32.xlu0 %v2673, 32
      %v2743 = vpop.permute.xlu0 %2742
      %2744 = vrot.lane.b32.xlu0 %v2674, 32
      %v2745 = vpop.permute.xlu0 %2744
      %2746 = vrot.lane.b32.xlu0 %v2675, 32
      %v2747 = vpop.permute.xlu0 %2746
      %2748 = vrot.lane.b32.xlu0 %v2676, 32
      %v2749 = vpop.permute.xlu0 %2748
      %2750 = vrot.lane.b32.xlu0 %v2677, 32
      %v2751 = vpop.permute.xlu0 %2750
      %2752 = vrot.lane.b32.xlu0 %v2678, 32
      %v2753 = vpop.permute.xlu0 %2752
      %2754 = vrot.lane.b32.xlu0 %v2679, 32
      %v2755 = vpop.permute.xlu0 %2754
      %2756 = vrot.lane.b32.xlu0 %v2680, 32
      %v2757 = vpop.permute.xlu0 %2756
      %2758 = vrot.lane.b32.xlu0 %v2681, 32
      %v2759 = vpop.permute.xlu0 %2758
      %2760 = vrot.lane.b32.xlu0 %v2682, 32
      %v2761 = vpop.permute.xlu0 %2760
      %2762 = vrot.lane.b32.xlu0 %v2683, 32
      %v2763 = vpop.permute.xlu0 %2762
      %2764 = vrot.lane.b32.xlu0 %v2684, 32
      %v2765 = vpop.permute.xlu0 %2764
      %2766 = vrot.lane.b32.xlu0 %v2685, 32
      %v2767 = vpop.permute.xlu0 %2766
      %2768 = vrot.lane.b32.xlu0 %v2686, 32
      %v2769 = vpop.permute.xlu0 %2768
      %2770 = vrot.lane.b32.xlu0 %v2687, 32
      %v2771 = vpop.permute.xlu0 %2770
      %2772 = vrot.lane.b32.xlu0 %v2688, 32
      %v2773 = vpop.permute.xlu0 %2772
      %2774 = vrot.lane.b32.xlu0 %v2689, 32
      %v2775 = vpop.permute.xlu0 %2774
      %2776 = vrot.lane.b32.xlu0 %v2690, 32
      %v2777 = vpop.permute.xlu0 %2776
      %2778 = vrot.lane.b32.xlu0 %v2691, 32
      %v2779 = vpop.permute.xlu0 %2778
      %2780 = vrot.lane.b32.xlu0 %v2692, 32
      %v2781 = vpop.permute.xlu0 %2780
      %2782 = vrot.lane.b32.xlu0 %v2693, 32
      %v2783 = vpop.permute.xlu0 %2782
      %2784 = vrot.lane.b32.xlu0 %v2694, 32
      %v2785 = vpop.permute.xlu0 %2784
      %2786 = vrot.lane.b32.xlu0 %v2695, 32
      %v2787 = vpop.permute.xlu0 %2786
      %2788 = vrot.lane.b32.xlu0 %v2696, 32
      %v2789 = vpop.permute.xlu0 %2788
      %2790 = vrot.lane.b32.xlu0 %v2697, 32
      %v2791 = vpop.permute.xlu0 %2790
      %2792 = vrot.lane.b32.xlu0 %v2698, 32
      %v2793 = vpop.permute.xlu0 %2792
      %2794 = vrot.lane.b32.xlu0 %v2699, 32
      %v2795 = vpop.permute.xlu0 %2794
      %vm2828 = vcmask 290048
      %2829 = vst.msk [vmem:[#allocation2] sm:$0xf] %vm2828, %v2733
      %2830 = vst.msk [vmem:[#allocation2 + $0x4] sm:$0xf] %vm2828, %v2735
      %2831 = vst.msk [vmem:[#allocation2 + $0x8] sm:$0xf] %vm2828, %v2737
      %2832 = vst.msk [vmem:[#allocation2 + $0xc] sm:$0xf] %vm2828, %v2739
      %2833 = vst.msk [vmem:[#allocation2 + $0x10] sm:$0xf] %vm2828, %v2741
      %2834 = vst.msk [vmem:[#allocation2 + $0x14] sm:$0xf] %vm2828, %v2743
      %2835 = vst.msk [vmem:[#allocation2 + $0x18] sm:$0xf] %vm2828, %v2745
      %2836 = vst.msk [vmem:[#allocation2 + $0x1c] sm:$0xf] %vm2828, %v2747
      %2837 = vst.msk [vmem:[#allocation2 + $0x20] sm:$0xf] %vm2828, %v2749
      %2838 = vst.msk [vmem:[#allocation2 + $0x24] sm:$0xf] %vm2828, %v2751
      %2839 = vst.msk [vmem:[#allocation2 + $0x28] sm:$0xf] %vm2828, %v2753
      %2840 = vst.msk [vmem:[#allocation2 + $0x2c] sm:$0xf] %vm2828, %v2755
      %2841 = vst.msk [vmem:[#allocation2 + $0x30] sm:$0xf] %vm2828, %v2757
      %2842 = vst.msk [vmem:[#allocation2 + $0x34] sm:$0xf] %vm2828, %v2759
      %2843 = vst.msk [vmem:[#allocation2 + $0x38] sm:$0xf] %vm2828, %v2761
      %2844 = vst.msk [vmem:[#allocation2 + $0x3c] sm:$0xf] %vm2828, %v2763
      %2845 = vst.msk [vmem:[#allocation2 + $0x40] sm:$0xf] %vm2828, %v2765
      %2846 = vst.msk [vmem:[#allocation2 + $0x44] sm:$0xf] %vm2828, %v2767
      %2847 = vst.msk [vmem:[#allocation2 + $0x48] sm:$0xf] %vm2828, %v2769
      %2848 = vst.msk [vmem:[#allocation2 + $0x4c] sm:$0xf] %vm2828, %v2771
      %2849 = vst.msk [vmem:[#allocation2 + $0x50] sm:$0xf] %vm2828, %v2773
      %2850 = vst.msk [vmem:[#allocation2 + $0x54] sm:$0xf] %vm2828, %v2775
      %2851 = vst.msk [vmem:[#allocation2 + $0x58] sm:$0xf] %vm2828, %v2777
      %2852 = vst.msk [vmem:[#allocation2 + $0x5c] sm:$0xf] %vm2828, %v2779
      %2853 = vst.msk [vmem:[#allocation2 + $0x60] sm:$0xf] %vm2828, %v2781
      %2854 = vst.msk [vmem:[#allocation2 + $0x64] sm:$0xf] %vm2828, %v2783
      %2855 = vst.msk [vmem:[#allocation2 + $0x68] sm:$0xf] %vm2828, %v2785
      %2856 = vst.msk [vmem:[#allocation2 + $0x6c] sm:$0xf] %vm2828, %v2787
      %2857 = vst.msk [vmem:[#allocation2 + $0x70] sm:$0xf] %vm2828, %v2789
      %2858 = vst.msk [vmem:[#allocation2 + $0x74] sm:$0xf] %vm2828, %v2791
      %2859 = vst.msk [vmem:[#allocation2 + $0x78] sm:$0xf] %vm2828, %v2793
      %2860 = vst.msk [vmem:[#allocation2 + $0x7c] sm:$0xf] %vm2828, %v2795
      %s2861 = sadd.s32 %s305, 6
      %s2862 = smul.u32 %s2861, 7
      %s2863 = smul.addr %s2862, 4
      %s2864 = scalar_lea.vmem %s285, %s2863
      %v2865 = vld [vmem:[%s2864] sm:$0x8]
      %v2866 = vld [vmem:[%s2864 + $0x4] sm:$0xf]
      %v2867 = vld [vmem:[%s2864 + $0x8] sm:$0x7]
      %v2868 = vld [vmem:[%s2864 + $0x1c] sm:$0x8]
      %v2869 = vld [vmem:[%s2864 + $0x20] sm:$0xf]
      %v2870 = vld [vmem:[%s2864 + $0x24] sm:$0x7]
      %v2871 = vld [vmem:[%s2864 + $0x38] sm:$0x8]
      %v2872 = vld [vmem:[%s2864 + $0x3c] sm:$0xf]
      %v2873 = vld [vmem:[%s2864 + $0x40] sm:$0x7]
      %v2874 = vld [vmem:[%s2864 + $0x54] sm:$0x8]
      %v2875 = vld [vmem:[%s2864 + $0x58] sm:$0xf]
      %v2876 = vld [vmem:[%s2864 + $0x5c] sm:$0x7]
      %v2877 = vld [vmem:[%s2864 + $0x70] sm:$0x8]
      %v2878 = vld [vmem:[%s2864 + $0x74] sm:$0xf]
      %v2879 = vld [vmem:[%s2864 + $0x78] sm:$0x7]
      %v2880 = vld [vmem:[%s2864 + $0x8c] sm:$0x8]
      %v2881 = vld [vmem:[%s2864 + $0x90] sm:$0xf]
      %v2882 = vld [vmem:[%s2864 + $0x94] sm:$0x7]
      %v2883 = vld [vmem:[%s2864 + $0xa8] sm:$0x8]
      %v2884 = vld [vmem:[%s2864 + $0xac] sm:$0xf]
      %v2885 = vld [vmem:[%s2864 + $0xb0] sm:$0x7]
      %v2886 = vld [vmem:[%s2864 + $0xc4] sm:$0x8]
      %v2887 = vld [vmem:[%s2864 + $0xc8] sm:$0xf]
      %v2888 = vld [vmem:[%s2864 + $0xcc] sm:$0x7]
      %v2889 = vld [vmem:[%s2864 + $0xe0] sm:$0x8]
      %v2890 = vld [vmem:[%s2864 + $0xe4] sm:$0xf]
      %v2891 = vld [vmem:[%s2864 + $0xe8] sm:$0x7]
      %v2892 = vld [vmem:[%s2864 + $0xfc] sm:$0x8]
      %v2893 = vld [vmem:[%s2864 + $0x100] sm:$0xf]
      %v2894 = vld [vmem:[%s2864 + $0x104] sm:$0x7]
      %v2895 = vld [vmem:[%s2864 + $0x118] sm:$0x8]
      %v2896 = vld [vmem:[%s2864 + $0x11c] sm:$0xf]
      %v2897 = vld [vmem:[%s2864 + $0x120] sm:$0x7]
      %v2898 = vld [vmem:[%s2864 + $0x134] sm:$0x8]
      %v2899 = vld [vmem:[%s2864 + $0x138] sm:$0xf]
      %v2900 = vld [vmem:[%s2864 + $0x13c] sm:$0x7]
      %v2901 = vld [vmem:[%s2864 + $0x150] sm:$0x8]
      %v2902 = vld [vmem:[%s2864 + $0x154] sm:$0xf]
      %v2903 = vld [vmem:[%s2864 + $0x158] sm:$0x7]
      %v2904 = vld [vmem:[%s2864 + $0x16c] sm:$0x8]
      %v2905 = vld [vmem:[%s2864 + $0x170] sm:$0xf]
      %v2906 = vld [vmem:[%s2864 + $0x174] sm:$0x7]
      %v2907 = vld [vmem:[%s2864 + $0x188] sm:$0x8]
      %v2908 = vld [vmem:[%s2864 + $0x18c] sm:$0xf]
      %v2909 = vld [vmem:[%s2864 + $0x190] sm:$0x7]
      %v2910 = vld [vmem:[%s2864 + $0x1a4] sm:$0x8]
      %v2911 = vld [vmem:[%s2864 + $0x1a8] sm:$0xf]
      %v2912 = vld [vmem:[%s2864 + $0x1ac] sm:$0x7]
      %vm2961 = vcmask 1040384
      %vm2962 = vcmask 1044484
      %vm2963 = vmor %vm2961, %vm2962
      %v2964 = vrot.slane %v2865, 7
      %v2965 = vrot.slane %v2964, 4
      %v2966 = vrot.slane %v2866, 7
      %v2967 = vsel %vm2963, %v2965, %v2966
      %v2968 = vrot.slane %v2966, 4
      %v2969 = vrot.slane %v2867, 7
      %v2970 = vsel %vm2963, %v2968, %v2969
      %v2971 = vrot.slane %v2868, 7
      %v2972 = vrot.slane %v2971, 4
      %v2973 = vrot.slane %v2869, 7
      %v2974 = vsel %vm2963, %v2972, %v2973
      %v2975 = vrot.slane %v2973, 4
      %v2976 = vrot.slane %v2870, 7
      %v2977 = vsel %vm2963, %v2975, %v2976
      %v2978 = vrot.slane %v2871, 7
      %v2979 = vrot.slane %v2978, 4
      %v2980 = vrot.slane %v2872, 7
      %v2981 = vsel %vm2963, %v2979, %v2980
      %v2982 = vrot.slane %v2980, 4
      %v2983 = vrot.slane %v2873, 7
      %v2984 = vsel %vm2963, %v2982, %v2983
      %v2985 = vrot.slane %v2874, 7
      %v2986 = vrot.slane %v2985, 4
      %v2987 = vrot.slane %v2875, 7
      %v2988 = vsel %vm2963, %v2986, %v2987
      %v2989 = vrot.slane %v2987, 4
      %v2990 = vrot.slane %v2876, 7
      %v2991 = vsel %vm2963, %v2989, %v2990
      %v2992 = vrot.slane %v2877, 7
      %v2993 = vrot.slane %v2992, 4
      %v2994 = vrot.slane %v2878, 7
      %v2995 = vsel %vm2963, %v2993, %v2994
      %v2996 = vrot.slane %v2994, 4
      %v2997 = vrot.slane %v2879, 7
      %v2998 = vsel %vm2963, %v2996, %v2997
      %v2999 = vrot.slane %v2880, 7
      %v3000 = vrot.slane %v2999, 4
      %v3001 = vrot.slane %v2881, 7
      %v3002 = vsel %vm2963, %v3000, %v3001
      %v3003 = vrot.slane %v3001, 4
      %v3004 = vrot.slane %v2882, 7
      %v3005 = vsel %vm2963, %v3003, %v3004
      %v3006 = vrot.slane %v2883, 7
      %v3007 = vrot.slane %v3006, 4
      %v3008 = vrot.slane %v2884, 7
      %v3009 = vsel %vm2963, %v3007, %v3008
      %v3010 = vrot.slane %v3008, 4
      %v3011 = vrot.slane %v2885, 7
      %v3012 = vsel %vm2963, %v3010, %v3011
      %v3013 = vrot.slane %v2886, 7
      %v3014 = vrot.slane %v3013, 4
      %v3015 = vrot.slane %v2887, 7
      %v3016 = vsel %vm2963, %v3014, %v3015
      %v3017 = vrot.slane %v3015, 4
      %v3018 = vrot.slane %v2888, 7
      %v3019 = vsel %vm2963, %v3017, %v3018
      %v3020 = vrot.slane %v2889, 7
      %v3021 = vrot.slane %v3020, 4
      %v3022 = vrot.slane %v2890, 7
      %v3023 = vsel %vm2963, %v3021, %v3022
      %v3024 = vrot.slane %v3022, 4
      %v3025 = vrot.slane %v2891, 7
      %v3026 = vsel %vm2963, %v3024, %v3025
      %v3027 = vrot.slane %v2892, 7
      %v3028 = vrot.slane %v3027, 4
      %v3029 = vrot.slane %v2893, 7
      %v3030 = vsel %vm2963, %v3028, %v3029
      %v3031 = vrot.slane %v3029, 4
      %v3032 = vrot.slane %v2894, 7
      %v3033 = vsel %vm2963, %v3031, %v3032
      %v3034 = vrot.slane %v2895, 7
      %v3035 = vrot.slane %v3034, 4
      %v3036 = vrot.slane %v2896, 7
      %v3037 = vsel %vm2963, %v3035, %v3036
      %v3038 = vrot.slane %v3036, 4
      %v3039 = vrot.slane %v2897, 7
      %v3040 = vsel %vm2963, %v3038, %v3039
      %v3041 = vrot.slane %v2898, 7
      %v3042 = vrot.slane %v3041, 4
      %v3043 = vrot.slane %v2899, 7
      %v3044 = vsel %vm2963, %v3042, %v3043
      %v3045 = vrot.slane %v3043, 4
      %v3046 = vrot.slane %v2900, 7
      %v3047 = vsel %vm2963, %v3045, %v3046
      %v3048 = vrot.slane %v2901, 7
      %v3049 = vrot.slane %v3048, 4
      %v3050 = vrot.slane %v2902, 7
      %v3051 = vsel %vm2963, %v3049, %v3050
      %v3052 = vrot.slane %v3050, 4
      %v3053 = vrot.slane %v2903, 7
      %v3054 = vsel %vm2963, %v3052, %v3053
      %v3055 = vrot.slane %v2904, 7
      %v3056 = vrot.slane %v3055, 4
      %v3057 = vrot.slane %v2905, 7
      %v3058 = vsel %vm2963, %v3056, %v3057
      %v3059 = vrot.slane %v3057, 4
      %v3060 = vrot.slane %v2906, 7
      %v3061 = vsel %vm2963, %v3059, %v3060
      %v3062 = vrot.slane %v2907, 7
      %v3063 = vrot.slane %v3062, 4
      %v3064 = vrot.slane %v2908, 7
      %v3065 = vsel %vm2963, %v3063, %v3064
      %v3066 = vrot.slane %v3064, 4
      %v3067 = vrot.slane %v2909, 7
      %v3068 = vsel %vm2963, %v3066, %v3067
      %v3069 = vrot.slane %v2910, 7
      %v3070 = vrot.slane %v3069, 4
      %v3071 = vrot.slane %v2911, 7
      %v3072 = vsel %vm2963, %v3070, %v3071
      %v3073 = vrot.slane %v3071, 4
      %v3074 = vrot.slane %v2912, 7
      %v3075 = vsel %vm2963, %v3073, %v3074
      %3076 = vrot.lane.b32.xlu0 %v2967, 36
      %v3077 = vpop.permute.xlu0 %3076
      %3078 = vrot.lane.b32.xlu0 %v2970, 36
      %v3079 = vpop.permute.xlu0 %3078
      %3080 = vrot.lane.b32.xlu0 %v2974, 36
      %v3081 = vpop.permute.xlu0 %3080
      %3082 = vrot.lane.b32.xlu0 %v2977, 36
      %v3083 = vpop.permute.xlu0 %3082
      %3084 = vrot.lane.b32.xlu0 %v2981, 36
      %v3085 = vpop.permute.xlu0 %3084
      %3086 = vrot.lane.b32.xlu0 %v2984, 36
      %v3087 = vpop.permute.xlu0 %3086
      %3088 = vrot.lane.b32.xlu0 %v2988, 36
      %v3089 = vpop.permute.xlu0 %3088
      %3090 = vrot.lane.b32.xlu0 %v2991, 36
      %v3091 = vpop.permute.xlu0 %3090
      %3092 = vrot.lane.b32.xlu0 %v2995, 36
      %v3093 = vpop.permute.xlu0 %3092
      %3094 = vrot.lane.b32.xlu0 %v2998, 36
      %v3095 = vpop.permute.xlu0 %3094
      %3096 = vrot.lane.b32.xlu0 %v3002, 36
      %v3097 = vpop.permute.xlu0 %3096
      %3098 = vrot.lane.b32.xlu0 %v3005, 36
      %v3099 = vpop.permute.xlu0 %3098
      %3100 = vrot.lane.b32.xlu0 %v3009, 36
      %v3101 = vpop.permute.xlu0 %3100
      %3102 = vrot.lane.b32.xlu0 %v3012, 36
      %v3103 = vpop.permute.xlu0 %3102
      %3104 = vrot.lane.b32.xlu0 %v3016, 36
      %v3105 = vpop.permute.xlu0 %3104
      %3106 = vrot.lane.b32.xlu0 %v3019, 36
      %v3107 = vpop.permute.xlu0 %3106
      %3108 = vrot.lane.b32.xlu0 %v3023, 36
      %v3109 = vpop.permute.xlu0 %3108
      %3110 = vrot.lane.b32.xlu0 %v3026, 36
      %v3111 = vpop.permute.xlu0 %3110
      %3112 = vrot.lane.b32.xlu0 %v3030, 36
      %v3113 = vpop.permute.xlu0 %3112
      %3114 = vrot.lane.b32.xlu0 %v3033, 36
      %v3115 = vpop.permute.xlu0 %3114
      %3116 = vrot.lane.b32.xlu0 %v3037, 36
      %v3117 = vpop.permute.xlu0 %3116
      %3118 = vrot.lane.b32.xlu0 %v3040, 36
      %v3119 = vpop.permute.xlu0 %3118
      %3120 = vrot.lane.b32.xlu0 %v3044, 36
      %v3121 = vpop.permute.xlu0 %3120
      %3122 = vrot.lane.b32.xlu0 %v3047, 36
      %v3123 = vpop.permute.xlu0 %3122
      %3124 = vrot.lane.b32.xlu0 %v3051, 36
      %v3125 = vpop.permute.xlu0 %3124
      %3126 = vrot.lane.b32.xlu0 %v3054, 36
      %v3127 = vpop.permute.xlu0 %3126
      %3128 = vrot.lane.b32.xlu0 %v3058, 36
      %v3129 = vpop.permute.xlu0 %3128
      %3130 = vrot.lane.b32.xlu0 %v3061, 36
      %v3131 = vpop.permute.xlu0 %3130
      %3132 = vrot.lane.b32.xlu0 %v3065, 36
      %v3133 = vpop.permute.xlu0 %3132
      %3134 = vrot.lane.b32.xlu0 %v3068, 36
      %v3135 = vpop.permute.xlu0 %3134
      %3136 = vrot.lane.b32.xlu0 %v3072, 36
      %v3137 = vpop.permute.xlu0 %3136
      %3138 = vrot.lane.b32.xlu0 %v3075, 36
      %v3139 = vpop.permute.xlu0 %3138
      %vm3172 = vcmask 322848
      %3173 = vst.msk [vmem:[#allocation2] sm:$0xf] %vm3172, %v3077
      %3174 = vst.msk [vmem:[#allocation2 + $0x4] sm:$0xf] %vm3172, %v3079
      %3175 = vst.msk [vmem:[#allocation2 + $0x8] sm:$0xf] %vm3172, %v3081
      %3176 = vst.msk [vmem:[#allocation2 + $0xc] sm:$0xf] %vm3172, %v3083
      %3177 = vst.msk [vmem:[#allocation2 + $0x10] sm:$0xf] %vm3172, %v3085
      %3178 = vst.msk [vmem:[#allocation2 + $0x14] sm:$0xf] %vm3172, %v3087
      %3179 = vst.msk [vmem:[#allocation2 + $0x18] sm:$0xf] %vm3172, %v3089
      %3180 = vst.msk [vmem:[#allocation2 + $0x1c] sm:$0xf] %vm3172, %v3091
      %3181 = vst.msk [vmem:[#allocation2 + $0x20] sm:$0xf] %vm3172, %v3093
      %3182 = vst.msk [vmem:[#allocation2 + $0x24] sm:$0xf] %vm3172, %v3095
      %3183 = vst.msk [vmem:[#allocation2 + $0x28] sm:$0xf] %vm3172, %v3097
      %3184 = vst.msk [vmem:[#allocation2 + $0x2c] sm:$0xf] %vm3172, %v3099
      %3185 = vst.msk [vmem:[#allocation2 + $0x30] sm:$0xf] %vm3172, %v3101
      %3186 = vst.msk [vmem:[#allocation2 + $0x34] sm:$0xf] %vm3172, %v3103
      %3187 = vst.msk [vmem:[#allocation2 + $0x38] sm:$0xf] %vm3172, %v3105
      %3188 = vst.msk [vmem:[#allocation2 + $0x3c] sm:$0xf] %vm3172, %v3107
      %3189 = vst.msk [vmem:[#allocation2 + $0x40] sm:$0xf] %vm3172, %v3109
      %3190 = vst.msk [vmem:[#allocation2 + $0x44] sm:$0xf] %vm3172, %v3111
      %3191 = vst.msk [vmem:[#allocation2 + $0x48] sm:$0xf] %vm3172, %v3113
      %3192 = vst.msk [vmem:[#allocation2 + $0x4c] sm:$0xf] %vm3172, %v3115
      %3193 = vst.msk [vmem:[#allocation2 + $0x50] sm:$0xf] %vm3172, %v3117
      %3194 = vst.msk [vmem:[#allocation2 + $0x54] sm:$0xf] %vm3172, %v3119
      %3195 = vst.msk [vmem:[#allocation2 + $0x58] sm:$0xf] %vm3172, %v3121
      %3196 = vst.msk [vmem:[#allocation2 + $0x5c] sm:$0xf] %vm3172, %v3123
      %3197 = vst.msk [vmem:[#allocation2 + $0x60] sm:$0xf] %vm3172, %v3125
      %3198 = vst.msk [vmem:[#allocation2 + $0x64] sm:$0xf] %vm3172, %v3127
      %3199 = vst.msk [vmem:[#allocation2 + $0x68] sm:$0xf] %vm3172, %v3129
      %3200 = vst.msk [vmem:[#allocation2 + $0x6c] sm:$0xf] %vm3172, %v3131
      %3201 = vst.msk [vmem:[#allocation2 + $0x70] sm:$0xf] %vm3172, %v3133
      %3202 = vst.msk [vmem:[#allocation2 + $0x74] sm:$0xf] %vm3172, %v3135
      %3203 = vst.msk [vmem:[#allocation2 + $0x78] sm:$0xf] %vm3172, %v3137
      %3204 = vst.msk [vmem:[#allocation2 + $0x7c] sm:$0xf] %vm3172, %v3139
      %v3205 = vld [vmem:[%s2864 + $0x8] sm:$0xe]
      %v3206 = vld [vmem:[%s2864 + $0xc] sm:$0xf]
      %v3207 = vld [vmem:[%s2864 + $0x10] sm:$0x1]
      %v3208 = vld [vmem:[%s2864 + $0x24] sm:$0xe]
      %v3209 = vld [vmem:[%s2864 + $0x28] sm:$0xf]
      %v3210 = vld [vmem:[%s2864 + $0x2c] sm:$0x1]
      %v3211 = vld [vmem:[%s2864 + $0x40] sm:$0xe]
      %v3212 = vld [vmem:[%s2864 + $0x44] sm:$0xf]
      %v3213 = vld [vmem:[%s2864 + $0x48] sm:$0x1]
      %v3214 = vld [vmem:[%s2864 + $0x5c] sm:$0xe]
      %v3215 = vld [vmem:[%s2864 + $0x60] sm:$0xf]
      %v3216 = vld [vmem:[%s2864 + $0x64] sm:$0x1]
      %v3217 = vld [vmem:[%s2864 + $0x78] sm:$0xe]
      %v3218 = vld [vmem:[%s2864 + $0x7c] sm:$0xf]
      %v3219 = vld [vmem:[%s2864 + $0x80] sm:$0x1]
      %v3220 = vld [vmem:[%s2864 + $0x94] sm:$0xe]
      %v3221 = vld [vmem:[%s2864 + $0x98] sm:$0xf]
      %v3222 = vld [vmem:[%s2864 + $0x9c] sm:$0x1]
      %v3223 = vld [vmem:[%s2864 + $0xb0] sm:$0xe]
      %v3224 = vld [vmem:[%s2864 + $0xb4] sm:$0xf]
      %v3225 = vld [vmem:[%s2864 + $0xb8] sm:$0x1]
      %v3226 = vld [vmem:[%s2864 + $0xcc] sm:$0xe]
      %v3227 = vld [vmem:[%s2864 + $0xd0] sm:$0xf]
      %v3228 = vld [vmem:[%s2864 + $0xd4] sm:$0x1]
      %v3229 = vld [vmem:[%s2864 + $0xe8] sm:$0xe]
      %v3230 = vld [vmem:[%s2864 + $0xec] sm:$0xf]
      %v3231 = vld [vmem:[%s2864 + $0xf0] sm:$0x1]
      %v3232 = vld [vmem:[%s2864 + $0x104] sm:$0xe]
      %v3233 = vld [vmem:[%s2864 + $0x108] sm:$0xf]
      %v3234 = vld [vmem:[%s2864 + $0x10c] sm:$0x1]
      %v3235 = vld [vmem:[%s2864 + $0x120] sm:$0xe]
      %v3236 = vld [vmem:[%s2864 + $0x124] sm:$0xf]
      %v3237 = vld [vmem:[%s2864 + $0x128] sm:$0x1]
      %v3238 = vld [vmem:[%s2864 + $0x13c] sm:$0xe]
      %v3239 = vld [vmem:[%s2864 + $0x140] sm:$0xf]
      %v3240 = vld [vmem:[%s2864 + $0x144] sm:$0x1]
      %v3241 = vld [vmem:[%s2864 + $0x158] sm:$0xe]
      %v3242 = vld [vmem:[%s2864 + $0x15c] sm:$0xf]
      %v3243 = vld [vmem:[%s2864 + $0x160] sm:$0x1]
      %v3244 = vld [vmem:[%s2864 + $0x174] sm:$0xe]
      %v3245 = vld [vmem:[%s2864 + $0x178] sm:$0xf]
      %v3246 = vld [vmem:[%s2864 + $0x17c] sm:$0x1]
      %v3247 = vld [vmem:[%s2864 + $0x190] sm:$0xe]
      %v3248 = vld [vmem:[%s2864 + $0x194] sm:$0xf]
      %v3249 = vld [vmem:[%s2864 + $0x198] sm:$0x1]
      %v3250 = vld [vmem:[%s2864 + $0x1ac] sm:$0xe]
      %v3251 = vld [vmem:[%s2864 + $0x1b0] sm:$0xf]
      %v3252 = vld [vmem:[%s2864 + $0x1b4] sm:$0x1]
      %v3301 = vrot.slane %v3205, 5
      %v3302 = vrot.slane %v3301, 4
      %v3303 = vrot.slane %v3206, 5
      %v3304 = vsel %vm684, %v3302, %v3303
      %v3305 = vrot.slane %v3303, 4
      %v3306 = vrot.slane %v3207, 5
      %v3307 = vsel %vm684, %v3305, %v3306
      %v3308 = vrot.slane %v3208, 5
      %v3309 = vrot.slane %v3308, 4
      %v3310 = vrot.slane %v3209, 5
      %v3311 = vsel %vm684, %v3309, %v3310
      %v3312 = vrot.slane %v3310, 4
      %v3313 = vrot.slane %v3210, 5
      %v3314 = vsel %vm684, %v3312, %v3313
      %v3315 = vrot.slane %v3211, 5
      %v3316 = vrot.slane %v3315, 4
      %v3317 = vrot.slane %v3212, 5
      %v3318 = vsel %vm684, %v3316, %v3317
      %v3319 = vrot.slane %v3317, 4
      %v3320 = vrot.slane %v3213, 5
      %v3321 = vsel %vm684, %v3319, %v3320
      %v3322 = vrot.slane %v3214, 5
      %v3323 = vrot.slane %v3322, 4
      %v3324 = vrot.slane %v3215, 5
      %v3325 = vsel %vm684, %v3323, %v3324
      %v3326 = vrot.slane %v3324, 4
      %v3327 = vrot.slane %v3216, 5
      %v3328 = vsel %vm684, %v3326, %v3327
      %v3329 = vrot.slane %v3217, 5
      %v3330 = vrot.slane %v3329, 4
      %v3331 = vrot.slane %v3218, 5
      %v3332 = vsel %vm684, %v3330, %v3331
      %v3333 = vrot.slane %v3331, 4
      %v3334 = vrot.slane %v3219, 5
      %v3335 = vsel %vm684, %v3333, %v3334
      %v3336 = vrot.slane %v3220, 5
      %v3337 = vrot.slane %v3336, 4
      %v3338 = vrot.slane %v3221, 5
      %v3339 = vsel %vm684, %v3337, %v3338
      %v3340 = vrot.slane %v3338, 4
      %v3341 = vrot.slane %v3222, 5
      %v3342 = vsel %vm684, %v3340, %v3341
      %v3343 = vrot.slane %v3223, 5
      %v3344 = vrot.slane %v3343, 4
      %v3345 = vrot.slane %v3224, 5
      %v3346 = vsel %vm684, %v3344, %v3345
      %v3347 = vrot.slane %v3345, 4
      %v3348 = vrot.slane %v3225, 5
      %v3349 = vsel %vm684, %v3347, %v3348
      %v3350 = vrot.slane %v3226, 5
      %v3351 = vrot.slane %v3350, 4
      %v3352 = vrot.slane %v3227, 5
      %v3353 = vsel %vm684, %v3351, %v3352
      %v3354 = vrot.slane %v3352, 4
      %v3355 = vrot.slane %v3228, 5
      %v3356 = vsel %vm684, %v3354, %v3355
      %v3357 = vrot.slane %v3229, 5
      %v3358 = vrot.slane %v3357, 4
      %v3359 = vrot.slane %v3230, 5
      %v3360 = vsel %vm684, %v3358, %v3359
      %v3361 = vrot.slane %v3359, 4
      %v3362 = vrot.slane %v3231, 5
      %v3363 = vsel %vm684, %v3361, %v3362
      %v3364 = vrot.slane %v3232, 5
      %v3365 = vrot.slane %v3364, 4
      %v3366 = vrot.slane %v3233, 5
      %v3367 = vsel %vm684, %v3365, %v3366
      %v3368 = vrot.slane %v3366, 4
      %v3369 = vrot.slane %v3234, 5
      %v3370 = vsel %vm684, %v3368, %v3369
      %v3371 = vrot.slane %v3235, 5
      %v3372 = vrot.slane %v3371, 4
      %v3373 = vrot.slane %v3236, 5
      %v3374 = vsel %vm684, %v3372, %v3373
      %v3375 = vrot.slane %v3373, 4
      %v3376 = vrot.slane %v3237, 5
      %v3377 = vsel %vm684, %v3375, %v3376
      %v3378 = vrot.slane %v3238, 5
      %v3379 = vrot.slane %v3378, 4
      %v3380 = vrot.slane %v3239, 5
      %v3381 = vsel %vm684, %v3379, %v3380
      %v3382 = vrot.slane %v3380, 4
      %v3383 = vrot.slane %v3240, 5
      %v3384 = vsel %vm684, %v3382, %v3383
      %v3385 = vrot.slane %v3241, 5
      %v3386 = vrot.slane %v3385, 4
      %v3387 = vrot.slane %v3242, 5
      %v3388 = vsel %vm684, %v3386, %v3387
      %v3389 = vrot.slane %v3387, 4
      %v3390 = vrot.slane %v3243, 5
      %v3391 = vsel %vm684, %v3389, %v3390
      %v3392 = vrot.slane %v3244, 5
      %v3393 = vrot.slane %v3392, 4
      %v3394 = vrot.slane %v3245, 5
      %v3395 = vsel %vm684, %v3393, %v3394
      %v3396 = vrot.slane %v3394, 4
      %v3397 = vrot.slane %v3246, 5
      %v3398 = vsel %vm684, %v3396, %v3397
      %v3399 = vrot.slane %v3247, 5
      %v3400 = vrot.slane %v3399, 4
      %v3401 = vrot.slane %v3248, 5
      %v3402 = vsel %vm684, %v3400, %v3401
      %v3403 = vrot.slane %v3401, 4
      %v3404 = vrot.slane %v3249, 5
      %v3405 = vsel %vm684, %v3403, %v3404
      %v3406 = vrot.slane %v3250, 5
      %v3407 = vrot.slane %v3406, 4
      %v3408 = vrot.slane %v3251, 5
      %v3409 = vsel %vm684, %v3407, %v3408
      %v3410 = vrot.slane %v3408, 4
      %v3411 = vrot.slane %v3252, 5
      %v3412 = vsel %vm684, %v3410, %v3411
      %3413 = vrot.lane.b32.xlu0 %v3304, 40
      %v3414 = vpop.permute.xlu0 %3413
      %3415 = vrot.lane.b32.xlu0 %v3307, 40
      %v3416 = vpop.permute.xlu0 %3415
      %3417 = vrot.lane.b32.xlu0 %v3311, 40
      %v3418 = vpop.permute.xlu0 %3417
      %3419 = vrot.lane.b32.xlu0 %v3314, 40
      %v3420 = vpop.permute.xlu0 %3419
      %3421 = vrot.lane.b32.xlu0 %v3318, 40
      %v3422 = vpop.permute.xlu0 %3421
      %3423 = vrot.lane.b32.xlu0 %v3321, 40
      %v3424 = vpop.permute.xlu0 %3423
      %3425 = vrot.lane.b32.xlu0 %v3325, 40
      %v3426 = vpop.permute.xlu0 %3425
      %3427 = vrot.lane.b32.xlu0 %v3328, 40
      %v3428 = vpop.permute.xlu0 %3427
      %3429 = vrot.lane.b32.xlu0 %v3332, 40
      %v3430 = vpop.permute.xlu0 %3429
      %3431 = vrot.lane.b32.xlu0 %v3335, 40
      %v3432 = vpop.permute.xlu0 %3431
      %3433 = vrot.lane.b32.xlu0 %v3339, 40
      %v3434 = vpop.permute.xlu0 %3433
      %3435 = vrot.lane.b32.xlu0 %v3342, 40
      %v3436 = vpop.permute.xlu0 %3435
      %3437 = vrot.lane.b32.xlu0 %v3346, 40
      %v3438 = vpop.permute.xlu0 %3437
      %3439 = vrot.lane.b32.xlu0 %v3349, 40
      %v3440 = vpop.permute.xlu0 %3439
      %3441 = vrot.lane.b32.xlu0 %v3353, 40
      %v3442 = vpop.permute.xlu0 %3441
      %3443 = vrot.lane.b32.xlu0 %v3356, 40
      %v3444 = vpop.permute.xlu0 %3443
      %3445 = vrot.lane.b32.xlu0 %v3360, 40
      %v3446 = vpop.permute.xlu0 %3445
      %3447 = vrot.lane.b32.xlu0 %v3363, 40
      %v3448 = vpop.permute.xlu0 %3447
      %3449 = vrot.lane.b32.xlu0 %v3367, 40
      %v3450 = vpop.permute.xlu0 %3449
      %3451 = vrot.lane.b32.xlu0 %v3370, 40
      %v3452 = vpop.permute.xlu0 %3451
      %3453 = vrot.lane.b32.xlu0 %v3374, 40
      %v3454 = vpop.permute.xlu0 %3453
      %3455 = vrot.lane.b32.xlu0 %v3377, 40
      %v3456 = vpop.permute.xlu0 %3455
      %3457 = vrot.lane.b32.xlu0 %v3381, 40
      %v3458 = vpop.permute.xlu0 %3457
      %3459 = vrot.lane.b32.xlu0 %v3384, 40
      %v3460 = vpop.permute.xlu0 %3459
      %3461 = vrot.lane.b32.xlu0 %v3388, 40
      %v3462 = vpop.permute.xlu0 %3461
      %3463 = vrot.lane.b32.xlu0 %v3391, 40
      %v3464 = vpop.permute.xlu0 %3463
      %3465 = vrot.lane.b32.xlu0 %v3395, 40
      %v3466 = vpop.permute.xlu0 %3465
      %3467 = vrot.lane.b32.xlu0 %v3398, 40
      %v3468 = vpop.permute.xlu0 %3467
      %3469 = vrot.lane.b32.xlu0 %v3402, 40
      %v3470 = vpop.permute.xlu0 %3469
      %3471 = vrot.lane.b32.xlu0 %v3405, 40
      %v3472 = vpop.permute.xlu0 %3471
      %3473 = vrot.lane.b32.xlu0 %v3409, 40
      %v3474 = vpop.permute.xlu0 %3473
      %3475 = vrot.lane.b32.xlu0 %v3412, 40
      %v3476 = vpop.permute.xlu0 %3475
      %vm3509 = vcmask 355648
      %3510 = vst.msk [vmem:[#allocation2] sm:$0xf] %vm3509, %v3414
      %3511 = vst.msk [vmem:[#allocation2 + $0x4] sm:$0xf] %vm3509, %v3416
      %3512 = vst.msk [vmem:[#allocation2 + $0x8] sm:$0xf] %vm3509, %v3418
      %3513 = vst.msk [vmem:[#allocation2 + $0xc] sm:$0xf] %vm3509, %v3420
      %3514 = vst.msk [vmem:[#allocation2 + $0x10] sm:$0xf] %vm3509, %v3422
      %3515 = vst.msk [vmem:[#allocation2 + $0x14] sm:$0xf] %vm3509, %v3424
      %3516 = vst.msk [vmem:[#allocation2 + $0x18] sm:$0xf] %vm3509, %v3426
      %3517 = vst.msk [vmem:[#allocation2 + $0x1c] sm:$0xf] %vm3509, %v3428
      %3518 = vst.msk [vmem:[#allocation2 + $0x20] sm:$0xf] %vm3509, %v3430
      %3519 = vst.msk [vmem:[#allocation2 + $0x24] sm:$0xf] %vm3509, %v3432
      %3520 = vst.msk [vmem:[#allocation2 + $0x28] sm:$0xf] %vm3509, %v3434
      %3521 = vst.msk [vmem:[#allocation2 + $0x2c] sm:$0xf] %vm3509, %v3436
      %3522 = vst.msk [vmem:[#allocation2 + $0x30] sm:$0xf] %vm3509, %v3438
      %3523 = vst.msk [vmem:[#allocation2 + $0x34] sm:$0xf] %vm3509, %v3440
      %3524 = vst.msk [vmem:[#allocation2 + $0x38] sm:$0xf] %vm3509, %v3442
      %3525 = vst.msk [vmem:[#allocation2 + $0x3c] sm:$0xf] %vm3509, %v3444
      %3526 = vst.msk [vmem:[#allocation2 + $0x40] sm:$0xf] %vm3509, %v3446
      %3527 = vst.msk [vmem:[#allocation2 + $0x44] sm:$0xf] %vm3509, %v3448
      %3528 = vst.msk [vmem:[#allocation2 + $0x48] sm:$0xf] %vm3509, %v3450
      %3529 = vst.msk [vmem:[#allocation2 + $0x4c] sm:$0xf] %vm3509, %v3452
      %3530 = vst.msk [vmem:[#allocation2 + $0x50] sm:$0xf] %vm3509, %v3454
      %3531 = vst.msk [vmem:[#allocation2 + $0x54] sm:$0xf] %vm3509, %v3456
      %3532 = vst.msk [vmem:[#allocation2 + $0x58] sm:$0xf] %vm3509, %v3458
      %3533 = vst.msk [vmem:[#allocation2 + $0x5c] sm:$0xf] %vm3509, %v3460
      %3534 = vst.msk [vmem:[#allocation2 + $0x60] sm:$0xf] %vm3509, %v3462
      %3535 = vst.msk [vmem:[#allocation2 + $0x64] sm:$0xf] %vm3509, %v3464
      %3536 = vst.msk [vmem:[#allocation2 + $0x68] sm:$0xf] %vm3509, %v3466
      %3537 = vst.msk [vmem:[#allocation2 + $0x6c] sm:$0xf] %vm3509, %v3468
      %3538 = vst.msk [vmem:[#allocation2 + $0x70] sm:$0xf] %vm3509, %v3470
      %3539 = vst.msk [vmem:[#allocation2 + $0x74] sm:$0xf] %vm3509, %v3472
      %3540 = vst.msk [vmem:[#allocation2 + $0x78] sm:$0xf] %vm3509, %v3474
      %3541 = vst.msk [vmem:[#allocation2 + $0x7c] sm:$0xf] %vm3509, %v3476
      %v3542 = vld [vmem:[%s2864 + $0xc] sm:$0x8]
      %v3543 = vld [vmem:[%s2864 + $0x10] sm:$0xf]
      %v3544 = vld [vmem:[%s2864 + $0x14] sm:$0x7]
      %v3545 = vld [vmem:[%s2864 + $0x28] sm:$0x8]
      %v3546 = vld [vmem:[%s2864 + $0x2c] sm:$0xf]
      %v3547 = vld [vmem:[%s2864 + $0x30] sm:$0x7]
      %v3548 = vld [vmem:[%s2864 + $0x44] sm:$0x8]
      %v3549 = vld [vmem:[%s2864 + $0x48] sm:$0xf]
      %v3550 = vld [vmem:[%s2864 + $0x4c] sm:$0x7]
      %v3551 = vld [vmem:[%s2864 + $0x60] sm:$0x8]
      %v3552 = vld [vmem:[%s2864 + $0x64] sm:$0xf]
      %v3553 = vld [vmem:[%s2864 + $0x68] sm:$0x7]
      %v3554 = vld [vmem:[%s2864 + $0x7c] sm:$0x8]
      %v3555 = vld [vmem:[%s2864 + $0x80] sm:$0xf]
      %v3556 = vld [vmem:[%s2864 + $0x84] sm:$0x7]
      %v3557 = vld [vmem:[%s2864 + $0x98] sm:$0x8]
      %v3558 = vld [vmem:[%s2864 + $0x9c] sm:$0xf]
      %v3559 = vld [vmem:[%s2864 + $0xa0] sm:$0x7]
      %v3560 = vld [vmem:[%s2864 + $0xb4] sm:$0x8]
      %v3561 = vld [vmem:[%s2864 + $0xb8] sm:$0xf]
      %v3562 = vld [vmem:[%s2864 + $0xbc] sm:$0x7]
      %v3563 = vld [vmem:[%s2864 + $0xd0] sm:$0x8]
      %v3564 = vld [vmem:[%s2864 + $0xd4] sm:$0xf]
      %v3565 = vld [vmem:[%s2864 + $0xd8] sm:$0x7]
      %v3566 = vld [vmem:[%s2864 + $0xec] sm:$0x8]
      %v3567 = vld [vmem:[%s2864 + $0xf0] sm:$0xf]
      %v3568 = vld [vmem:[%s2864 + $0xf4] sm:$0x7]
      %v3569 = vld [vmem:[%s2864 + $0x108] sm:$0x8]
      %v3570 = vld [vmem:[%s2864 + $0x10c] sm:$0xf]
      %v3571 = vld [vmem:[%s2864 + $0x110] sm:$0x7]
      %v3572 = vld [vmem:[%s2864 + $0x124] sm:$0x8]
      %v3573 = vld [vmem:[%s2864 + $0x128] sm:$0xf]
      %v3574 = vld [vmem:[%s2864 + $0x12c] sm:$0x7]
      %v3575 = vld [vmem:[%s2864 + $0x140] sm:$0x8]
      %v3576 = vld [vmem:[%s2864 + $0x144] sm:$0xf]
      %v3577 = vld [vmem:[%s2864 + $0x148] sm:$0x7]
      %v3578 = vld [vmem:[%s2864 + $0x15c] sm:$0x8]
      %v3579 = vld [vmem:[%s2864 + $0x160] sm:$0xf]
      %v3580 = vld [vmem:[%s2864 + $0x164] sm:$0x7]
      %v3581 = vld [vmem:[%s2864 + $0x178] sm:$0x8]
      %v3582 = vld [vmem:[%s2864 + $0x17c] sm:$0xf]
      %v3583 = vld [vmem:[%s2864 + $0x180] sm:$0x7]
      %v3584 = vld [vmem:[%s2864 + $0x194] sm:$0x8]
      %v3585 = vld [vmem:[%s2864 + $0x198] sm:$0xf]
      %v3586 = vld [vmem:[%s2864 + $0x19c] sm:$0x7]
      %v3587 = vld [vmem:[%s2864 + $0x1b0] sm:$0x8]
      %v3588 = vld [vmem:[%s2864 + $0x1b4] sm:$0xf]
      %v3589 = vld [vmem:[%s2864 + $0x1b8] sm:$0x7]
      %v3638 = vrot.slane %v3542, 7
      %v3639 = vrot.slane %v3638, 4
      %v3640 = vrot.slane %v3543, 7
      %v3641 = vsel %vm2963, %v3639, %v3640
      %v3642 = vrot.slane %v3640, 4
      %v3643 = vrot.slane %v3544, 7
      %v3644 = vsel %vm2963, %v3642, %v3643
      %v3645 = vrot.slane %v3545, 7
      %v3646 = vrot.slane %v3645, 4
      %v3647 = vrot.slane %v3546, 7
      %v3648 = vsel %vm2963, %v3646, %v3647
      %v3649 = vrot.slane %v3647, 4
      %v3650 = vrot.slane %v3547, 7
      %v3651 = vsel %vm2963, %v3649, %v3650
      %v3652 = vrot.slane %v3548, 7
      %v3653 = vrot.slane %v3652, 4
      %v3654 = vrot.slane %v3549, 7
      %v3655 = vsel %vm2963, %v3653, %v3654
      %v3656 = vrot.slane %v3654, 4
      %v3657 = vrot.slane %v3550, 7
      %v3658 = vsel %vm2963, %v3656, %v3657
      %v3659 = vrot.slane %v3551, 7
      %v3660 = vrot.slane %v3659, 4
      %v3661 = vrot.slane %v3552, 7
      %v3662 = vsel %vm2963, %v3660, %v3661
      %v3663 = vrot.slane %v3661, 4
      %v3664 = vrot.slane %v3553, 7
      %v3665 = vsel %vm2963, %v3663, %v3664
      %v3666 = vrot.slane %v3554, 7
      %v3667 = vrot.slane %v3666, 4
      %v3668 = vrot.slane %v3555, 7
      %v3669 = vsel %vm2963, %v3667, %v3668
      %v3670 = vrot.slane %v3668, 4
      %v3671 = vrot.slane %v3556, 7
      %v3672 = vsel %vm2963, %v3670, %v3671
      %v3673 = vrot.slane %v3557, 7
      %v3674 = vrot.slane %v3673, 4
      %v3675 = vrot.slane %v3558, 7
      %v3676 = vsel %vm2963, %v3674, %v3675
      %v3677 = vrot.slane %v3675, 4
      %v3678 = vrot.slane %v3559, 7
      %v3679 = vsel %vm2963, %v3677, %v3678
      %v3680 = vrot.slane %v3560, 7
      %v3681 = vrot.slane %v3680, 4
      %v3682 = vrot.slane %v3561, 7
      %v3683 = vsel %vm2963, %v3681, %v3682
      %v3684 = vrot.slane %v3682, 4
      %v3685 = vrot.slane %v3562, 7
      %v3686 = vsel %vm2963, %v3684, %v3685
      %v3687 = vrot.slane %v3563, 7
      %v3688 = vrot.slane %v3687, 4
      %v3689 = vrot.slane %v3564, 7
      %v3690 = vsel %vm2963, %v3688, %v3689
      %v3691 = vrot.slane %v3689, 4
      %v3692 = vrot.slane %v3565, 7
      %v3693 = vsel %vm2963, %v3691, %v3692
      %v3694 = vrot.slane %v3566, 7
      %v3695 = vrot.slane %v3694, 4
      %v3696 = vrot.slane %v3567, 7
      %v3697 = vsel %vm2963, %v3695, %v3696
      %v3698 = vrot.slane %v3696, 4
      %v3699 = vrot.slane %v3568, 7
      %v3700 = vsel %vm2963, %v3698, %v3699
      %v3701 = vrot.slane %v3569, 7
      %v3702 = vrot.slane %v3701, 4
      %v3703 = vrot.slane %v3570, 7
      %v3704 = vsel %vm2963, %v3702, %v3703
      %v3705 = vrot.slane %v3703, 4
      %v3706 = vrot.slane %v3571, 7
      %v3707 = vsel %vm2963, %v3705, %v3706
      %v3708 = vrot.slane %v3572, 7
      %v3709 = vrot.slane %v3708, 4
      %v3710 = vrot.slane %v3573, 7
      %v3711 = vsel %vm2963, %v3709, %v3710
      %v3712 = vrot.slane %v3710, 4
      %v3713 = vrot.slane %v3574, 7
      %v3714 = vsel %vm2963, %v3712, %v3713
      %v3715 = vrot.slane %v3575, 7
      %v3716 = vrot.slane %v3715, 4
      %v3717 = vrot.slane %v3576, 7
      %v3718 = vsel %vm2963, %v3716, %v3717
      %v3719 = vrot.slane %v3717, 4
      %v3720 = vrot.slane %v3577, 7
      %v3721 = vsel %vm2963, %v3719, %v3720
      %v3722 = vrot.slane %v3578, 7
      %v3723 = vrot.slane %v3722, 4
      %v3724 = vrot.slane %v3579, 7
      %v3725 = vsel %vm2963, %v3723, %v3724
      %v3726 = vrot.slane %v3724, 4
      %v3727 = vrot.slane %v3580, 7
      %v3728 = vsel %vm2963, %v3726, %v3727
      %v3729 = vrot.slane %v3581, 7
      %v3730 = vrot.slane %v3729, 4
      %v3731 = vrot.slane %v3582, 7
      %v3732 = vsel %vm2963, %v3730, %v3731
      %v3733 = vrot.slane %v3731, 4
      %v3734 = vrot.slane %v3583, 7
      %v3735 = vsel %vm2963, %v3733, %v3734
      %v3736 = vrot.slane %v3584, 7
      %v3737 = vrot.slane %v3736, 4
      %v3738 = vrot.slane %v3585, 7
      %v3739 = vsel %vm2963, %v3737, %v3738
      %v3740 = vrot.slane %v3738, 4
      %v3741 = vrot.slane %v3586, 7
      %v3742 = vsel %vm2963, %v3740, %v3741
      %v3743 = vrot.slane %v3587, 7
      %v3744 = vrot.slane %v3743, 4
      %v3745 = vrot.slane %v3588, 7
      %v3746 = vsel %vm2963, %v3744, %v3745
      %v3747 = vrot.slane %v3745, 4
      %v3748 = vrot.slane %v3589, 7
      %v3749 = vsel %vm2963, %v3747, %v3748
      %3750 = vrot.lane.b32.xlu0 %v3641, 44
      %v3751 = vpop.permute.xlu0 %3750
      %3752 = vrot.lane.b32.xlu0 %v3644, 44
      %v3753 = vpop.permute.xlu0 %3752
      %3754 = vrot.lane.b32.xlu0 %v3648, 44
      %v3755 = vpop.permute.xlu0 %3754
      %3756 = vrot.lane.b32.xlu0 %v3651, 44
      %v3757 = vpop.permute.xlu0 %3756
      %3758 = vrot.lane.b32.xlu0 %v3655, 44
      %v3759 = vpop.permute.xlu0 %3758
      %3760 = vrot.lane.b32.xlu0 %v3658, 44
      %v3761 = vpop.permute.xlu0 %3760
      %3762 = vrot.lane.b32.xlu0 %v3662, 44
      %v3763 = vpop.permute.xlu0 %3762
      %3764 = vrot.lane.b32.xlu0 %v3665, 44
      %v3765 = vpop.permute.xlu0 %3764
      %3766 = vrot.lane.b32.xlu0 %v3669, 44
      %v3767 = vpop.permute.xlu0 %3766
      %3768 = vrot.lane.b32.xlu0 %v3672, 44
      %v3769 = vpop.permute.xlu0 %3768
      %3770 = vrot.lane.b32.xlu0 %v3676, 44
      %v3771 = vpop.permute.xlu0 %3770
      %3772 = vrot.lane.b32.xlu0 %v3679, 44
      %v3773 = vpop.permute.xlu0 %3772
      %3774 = vrot.lane.b32.xlu0 %v3683, 44
      %v3775 = vpop.permute.xlu0 %3774
      %3776 = vrot.lane.b32.xlu0 %v3686, 44
      %v3777 = vpop.permute.xlu0 %3776
      %3778 = vrot.lane.b32.xlu0 %v3690, 44
      %v3779 = vpop.permute.xlu0 %3778
      %3780 = vrot.lane.b32.xlu0 %v3693, 44
      %v3781 = vpop.permute.xlu0 %3780
      %3782 = vrot.lane.b32.xlu0 %v3697, 44
      %v3783 = vpop.permute.xlu0 %3782
      %3784 = vrot.lane.b32.xlu0 %v3700, 44
      %v3785 = vpop.permute.xlu0 %3784
      %3786 = vrot.lane.b32.xlu0 %v3704, 44
      %v3787 = vpop.permute.xlu0 %3786
      %3788 = vrot.lane.b32.xlu0 %v3707, 44
      %v3789 = vpop.permute.xlu0 %3788
      %3790 = vrot.lane.b32.xlu0 %v3711, 44
      %v3791 = vpop.permute.xlu0 %3790
      %3792 = vrot.lane.b32.xlu0 %v3714, 44
      %v3793 = vpop.permute.xlu0 %3792
      %3794 = vrot.lane.b32.xlu0 %v3718, 44
      %v3795 = vpop.permute.xlu0 %3794
      %3796 = vrot.lane.b32.xlu0 %v3721, 44
      %v3797 = vpop.permute.xlu0 %3796
      %3798 = vrot.lane.b32.xlu0 %v3725, 44
      %v3799 = vpop.permute.xlu0 %3798
      %3800 = vrot.lane.b32.xlu0 %v3728, 44
      %v3801 = vpop.permute.xlu0 %3800
      %3802 = vrot.lane.b32.xlu0 %v3732, 44
      %v3803 = vpop.permute.xlu0 %3802
      %3804 = vrot.lane.b32.xlu0 %v3735, 44
      %v3805 = vpop.permute.xlu0 %3804
      %3806 = vrot.lane.b32.xlu0 %v3739, 44
      %v3807 = vpop.permute.xlu0 %3806
      %3808 = vrot.lane.b32.xlu0 %v3742, 44
      %v3809 = vpop.permute.xlu0 %3808
      %3810 = vrot.lane.b32.xlu0 %v3746, 44
      %v3811 = vpop.permute.xlu0 %3810
      %3812 = vrot.lane.b32.xlu0 %v3749, 44
      %v3813 = vpop.permute.xlu0 %3812
      %vm3846 = vcmask 388448
      %3847 = vst.msk [vmem:[#allocation2] sm:$0xf] %vm3846, %v3751
      %3848 = vst.msk [vmem:[#allocation2 + $0x4] sm:$0xf] %vm3846, %v3753
      %3849 = vst.msk [vmem:[#allocation2 + $0x8] sm:$0xf] %vm3846, %v3755
      %3850 = vst.msk [vmem:[#allocation2 + $0xc] sm:$0xf] %vm3846, %v3757
      %3851 = vst.msk [vmem:[#allocation2 + $0x10] sm:$0xf] %vm3846, %v3759
      %3852 = vst.msk [vmem:[#allocation2 + $0x14] sm:$0xf] %vm3846, %v3761
      %3853 = vst.msk [vmem:[#allocation2 + $0x18] sm:$0xf] %vm3846, %v3763
      %3854 = vst.msk [vmem:[#allocation2 + $0x1c] sm:$0xf] %vm3846, %v3765
      %3855 = vst.msk [vmem:[#allocation2 + $0x20] sm:$0xf] %vm3846, %v3767
      %3856 = vst.msk [vmem:[#allocation2 + $0x24] sm:$0xf] %vm3846, %v3769
      %3857 = vst.msk [vmem:[#allocation2 + $0x28] sm:$0xf] %vm3846, %v3771
      %3858 = vst.msk [vmem:[#allocation2 + $0x2c] sm:$0xf] %vm3846, %v3773
      %3859 = vst.msk [vmem:[#allocation2 + $0x30] sm:$0xf] %vm3846, %v3775
      %3860 = vst.msk [vmem:[#allocation2 + $0x34] sm:$0xf] %vm3846, %v3777
      %3861 = vst.msk [vmem:[#allocation2 + $0x38] sm:$0xf] %vm3846, %v3779
      %3862 = vst.msk [vmem:[#allocation2 + $0x3c] sm:$0xf] %vm3846, %v3781
      %3863 = vst.msk [vmem:[#allocation2 + $0x40] sm:$0xf] %vm3846, %v3783
      %3864 = vst.msk [vmem:[#allocation2 + $0x44] sm:$0xf] %vm3846, %v3785
      %3865 = vst.msk [vmem:[#allocation2 + $0x48] sm:$0xf] %vm3846, %v3787
      %3866 = vst.msk [vmem:[#allocation2 + $0x4c] sm:$0xf] %vm3846, %v3789
      %3867 = vst.msk [vmem:[#allocation2 + $0x50] sm:$0xf] %vm3846, %v3791
      %3868 = vst.msk [vmem:[#allocation2 + $0x54] sm:$0xf] %vm3846, %v3793
      %3869 = vst.msk [vmem:[#allocation2 + $0x58] sm:$0xf] %vm3846, %v3795
      %3870 = vst.msk [vmem:[#allocation2 + $0x5c] sm:$0xf] %vm3846, %v3797
      %3871 = vst.msk [vmem:[#allocation2 + $0x60] sm:$0xf] %vm3846, %v3799
      %3872 = vst.msk [vmem:[#allocation2 + $0x64] sm:$0xf] %vm3846, %v3801
      %3873 = vst.msk [vmem:[#allocation2 + $0x68] sm:$0xf] %vm3846, %v3803
      %3874 = vst.msk [vmem:[#allocation2 + $0x6c] sm:$0xf] %vm3846, %v3805
      %3875 = vst.msk [vmem:[#allocation2 + $0x70] sm:$0xf] %vm3846, %v3807
      %3876 = vst.msk [vmem:[#allocation2 + $0x74] sm:$0xf] %vm3846, %v3809
      %3877 = vst.msk [vmem:[#allocation2 + $0x78] sm:$0xf] %vm3846, %v3811
      %3878 = vst.msk [vmem:[#allocation2 + $0x7c] sm:$0xf] %vm3846, %v3813
      %v3879 = vld [vmem:[%s1122] sm:$0x8]
      %v3880 = vld [vmem:[%s1122 + $0x4] sm:$0xf]
      %v3881 = vld [vmem:[%s1122 + $0x8] sm:$0x7]
      %v3882 = vld [vmem:[%s1122 + $0x1c] sm:$0x8]
      %v3883 = vld [vmem:[%s1122 + $0x20] sm:$0xf]
      %v3884 = vld [vmem:[%s1122 + $0x24] sm:$0x7]
      %v3885 = vld [vmem:[%s1122 + $0x38] sm:$0x8]
      %v3886 = vld [vmem:[%s1122 + $0x3c] sm:$0xf]
      %v3887 = vld [vmem:[%s1122 + $0x40] sm:$0x7]
      %v3888 = vld [vmem:[%s1122 + $0x54] sm:$0x8]
      %v3889 = vld [vmem:[%s1122 + $0x58] sm:$0xf]
      %v3890 = vld [vmem:[%s1122 + $0x5c] sm:$0x7]
      %v3891 = vld [vmem:[%s1122 + $0x70] sm:$0x8]
      %v3892 = vld [vmem:[%s1122 + $0x74] sm:$0xf]
      %v3893 = vld [vmem:[%s1122 + $0x78] sm:$0x7]
      %v3894 = vld [vmem:[%s1122 + $0x8c] sm:$0x8]
      %v3895 = vld [vmem:[%s1122 + $0x90] sm:$0xf]
      %v3896 = vld [vmem:[%s1122 + $0x94] sm:$0x7]
      %v3897 = vld [vmem:[%s1122 + $0xa8] sm:$0x8]
      %v3898 = vld [vmem:[%s1122 + $0xac] sm:$0xf]
      %v3899 = vld [vmem:[%s1122 + $0xb0] sm:$0x7]
      %v3900 = vld [vmem:[%s1122 + $0xc4] sm:$0x8]
      %v3901 = vld [vmem:[%s1122 + $0xc8] sm:$0xf]
      %v3902 = vld [vmem:[%s1122 + $0xcc] sm:$0x7]
      %v3903 = vld [vmem:[%s1122 + $0xe0] sm:$0x8]
      %v3904 = vld [vmem:[%s1122 + $0xe4] sm:$0xf]
      %v3905 = vld [vmem:[%s1122 + $0xe8] sm:$0x7]
      %v3906 = vld [vmem:[%s1122 + $0xfc] sm:$0x8]
      %v3907 = vld [vmem:[%s1122 + $0x100] sm:$0xf]
      %v3908 = vld [vmem:[%s1122 + $0x104] sm:$0x7]
      %v3909 = vld [vmem:[%s1122 + $0x118] sm:$0x8]
      %v3910 = vld [vmem:[%s1122 + $0x11c] sm:$0xf]
      %v3911 = vld [vmem:[%s1122 + $0x120] sm:$0x7]
      %v3912 = vld [vmem:[%s1122 + $0x134] sm:$0x8]
      %v3913 = vld [vmem:[%s1122 + $0x138] sm:$0xf]
      %v3914 = vld [vmem:[%s1122 + $0x13c] sm:$0x7]
      %v3915 = vld [vmem:[%s1122 + $0x150] sm:$0x8]
      %v3916 = vld [vmem:[%s1122 + $0x154] sm:$0xf]
      %v3917 = vld [vmem:[%s1122 + $0x158] sm:$0x7]
      %v3918 = vld [vmem:[%s1122 + $0x16c] sm:$0x8]
      %v3919 = vld [vmem:[%s1122 + $0x170] sm:$0xf]
      %v3920 = vld [vmem:[%s1122 + $0x174] sm:$0x7]
      %v3921 = vld [vmem:[%s1122 + $0x188] sm:$0x8]
      %v3922 = vld [vmem:[%s1122 + $0x18c] sm:$0xf]
      %v3923 = vld [vmem:[%s1122 + $0x190] sm:$0x7]
      %v3924 = vld [vmem:[%s1122 + $0x1a4] sm:$0x8]
      %v3925 = vld [vmem:[%s1122 + $0x1a8] sm:$0xf]
      %v3926 = vld [vmem:[%s1122 + $0x1ac] sm:$0x7]
      %v3975 = vrot.slane %v3879, 7
      %v3976 = vrot.slane %v3975, 4
      %v3977 = vrot.slane %v3880, 7
      %v3978 = vsel %vm2963, %v3976, %v3977
      %v3979 = vrot.slane %v3977, 4
      %v3980 = vrot.slane %v3881, 7
      %v3981 = vsel %vm2963, %v3979, %v3980
      %v3982 = vrot.slane %v3882, 7
      %v3983 = vrot.slane %v3982, 4
      %v3984 = vrot.slane %v3883, 7
      %v3985 = vsel %vm2963, %v3983, %v3984
      %v3986 = vrot.slane %v3984, 4
      %v3987 = vrot.slane %v3884, 7
      %v3988 = vsel %vm2963, %v3986, %v3987
      %v3989 = vrot.slane %v3885, 7
      %v3990 = vrot.slane %v3989, 4
      %v3991 = vrot.slane %v3886, 7
      %v3992 = vsel %vm2963, %v3990, %v3991
      %v3993 = vrot.slane %v3991, 4
      %v3994 = vrot.slane %v3887, 7
      %v3995 = vsel %vm2963, %v3993, %v3994
      %v3996 = vrot.slane %v3888, 7
      %v3997 = vrot.slane %v3996, 4
      %v3998 = vrot.slane %v3889, 7
      %v3999 = vsel %vm2963, %v3997, %v3998
      %v4000 = vrot.slane %v3998, 4
      %v4001 = vrot.slane %v3890, 7
      %v4002 = vsel %vm2963, %v4000, %v4001
      %v4003 = vrot.slane %v3891, 7
      %v4004 = vrot.slane %v4003, 4
      %v4005 = vrot.slane %v3892, 7
      %v4006 = vsel %vm2963, %v4004, %v4005
      %v4007 = vrot.slane %v4005, 4
      %v4008 = vrot.slane %v3893, 7
      %v4009 = vsel %vm2963, %v4007, %v4008
      %v4010 = vrot.slane %v3894, 7
      %v4011 = vrot.slane %v4010, 4
      %v4012 = vrot.slane %v3895, 7
      %v4013 = vsel %vm2963, %v4011, %v4012
      %v4014 = vrot.slane %v4012, 4
      %v4015 = vrot.slane %v3896, 7
      %v4016 = vsel %vm2963, %v4014, %v4015
      %v4017 = vrot.slane %v3897, 7
      %v4018 = vrot.slane %v4017, 4
      %v4019 = vrot.slane %v3898, 7
      %v4020 = vsel %vm2963, %v4018, %v4019
      %v4021 = vrot.slane %v4019, 4
      %v4022 = vrot.slane %v3899, 7
      %v4023 = vsel %vm2963, %v4021, %v4022
      %v4024 = vrot.slane %v3900, 7
      %v4025 = vrot.slane %v4024, 4
      %v4026 = vrot.slane %v3901, 7
      %v4027 = vsel %vm2963, %v4025, %v4026
      %v4028 = vrot.slane %v4026, 4
      %v4029 = vrot.slane %v3902, 7
      %v4030 = vsel %vm2963, %v4028, %v4029
      %v4031 = vrot.slane %v3903, 7
      %v4032 = vrot.slane %v4031, 4
      %v4033 = vrot.slane %v3904, 7
      %v4034 = vsel %vm2963, %v4032, %v4033
      %v4035 = vrot.slane %v4033, 4
      %v4036 = vrot.slane %v3905, 7
      %v4037 = vsel %vm2963, %v4035, %v4036
      %v4038 = vrot.slane %v3906, 7
      %v4039 = vrot.slane %v4038, 4
      %v4040 = vrot.slane %v3907, 7
      %v4041 = vsel %vm2963, %v4039, %v4040
      %v4042 = vrot.slane %v4040, 4
      %v4043 = vrot.slane %v3908, 7
      %v4044 = vsel %vm2963, %v4042, %v4043
      %v4045 = vrot.slane %v3909, 7
      %v4046 = vrot.slane %v4045, 4
      %v4047 = vrot.slane %v3910, 7
      %v4048 = vsel %vm2963, %v4046, %v4047
      %v4049 = vrot.slane %v4047, 4
      %v4050 = vrot.slane %v3911, 7
      %v4051 = vsel %vm2963, %v4049, %v4050
      %v4052 = vrot.slane %v3912, 7
      %v4053 = vrot.slane %v4052, 4
      %v4054 = vrot.slane %v3913, 7
      %v4055 = vsel %vm2963, %v4053, %v4054
      %v4056 = vrot.slane %v4054, 4
      %v4057 = vrot.slane %v3914, 7
      %v4058 = vsel %vm2963, %v4056, %v4057
      %v4059 = vrot.slane %v3915, 7
      %v4060 = vrot.slane %v4059, 4
      %v4061 = vrot.slane %v3916, 7
      %v4062 = vsel %vm2963, %v4060, %v4061
      %v4063 = vrot.slane %v4061, 4
      %v4064 = vrot.slane %v3917, 7
      %v4065 = vsel %vm2963, %v4063, %v4064
      %v4066 = vrot.slane %v3918, 7
      %v4067 = vrot.slane %v4066, 4
      %v4068 = vrot.slane %v3919, 7
      %v4069 = vsel %vm2963, %v4067, %v4068
      %v4070 = vrot.slane %v4068, 4
      %v4071 = vrot.slane %v3920, 7
      %v4072 = vsel %vm2963, %v4070, %v4071
      %v4073 = vrot.slane %v3921, 7
      %v4074 = vrot.slane %v4073, 4
      %v4075 = vrot.slane %v3922, 7
      %v4076 = vsel %vm2963, %v4074, %v4075
      %v4077 = vrot.slane %v4075, 4
      %v4078 = vrot.slane %v3923, 7
      %v4079 = vsel %vm2963, %v4077, %v4078
      %v4080 = vrot.slane %v3924, 7
      %v4081 = vrot.slane %v4080, 4
      %v4082 = vrot.slane %v3925, 7
      %v4083 = vsel %vm2963, %v4081, %v4082
      %v4084 = vrot.slane %v4082, 4
      %v4085 = vrot.slane %v3926, 7
      %v4086 = vsel %vm2963, %v4084, %v4085
      %4087 = vrot.lane.b32.xlu0 %v3978, 48
      %v4088 = vpop.permute.xlu0 %4087
      %4089 = vrot.lane.b32.xlu0 %v3981, 48
      %v4090 = vpop.permute.xlu0 %4089
      %4091 = vrot.lane.b32.xlu0 %v3985, 48
      %v4092 = vpop.permute.xlu0 %4091
      %4093 = vrot.lane.b32.xlu0 %v3988, 48
      %v4094 = vpop.permute.xlu0 %4093
      %4095 = vrot.lane.b32.xlu0 %v3992, 48
      %v4096 = vpop.permute.xlu0 %4095
      %4097 = vrot.lane.b32.xlu0 %v3995, 48
      %v4098 = vpop.permute.xlu0 %4097
      %4099 = vrot.lane.b32.xlu0 %v3999, 48
      %v4100 = vpop.permute.xlu0 %4099
      %4101 = vrot.lane.b32.xlu0 %v4002, 48
      %v4102 = vpop.permute.xlu0 %4101
      %4103 = vrot.lane.b32.xlu0 %v4006, 48
      %v4104 = vpop.permute.xlu0 %4103
      %4105 = vrot.lane.b32.xlu0 %v4009, 48
      %v4106 = vpop.permute.xlu0 %4105
      %4107 = vrot.lane.b32.xlu0 %v4013, 48
      %v4108 = vpop.permute.xlu0 %4107
      %4109 = vrot.lane.b32.xlu0 %v4016, 48
      %v4110 = vpop.permute.xlu0 %4109
      %4111 = vrot.lane.b32.xlu0 %v4020, 48
      %v4112 = vpop.permute.xlu0 %4111
      %4113 = vrot.lane.b32.xlu0 %v4023, 48
      %v4114 = vpop.permute.xlu0 %4113
      %4115 = vrot.lane.b32.xlu0 %v4027, 48
      %v4116 = vpop.permute.xlu0 %4115
      %4117 = vrot.lane.b32.xlu0 %v4030, 48
      %v4118 = vpop.permute.xlu0 %4117
      %4119 = vrot.lane.b32.xlu0 %v4034, 48
      %v4120 = vpop.permute.xlu0 %4119
      %4121 = vrot.lane.b32.xlu0 %v4037, 48
      %v4122 = vpop.permute.xlu0 %4121
      %4123 = vrot.lane.b32.xlu0 %v4041, 48
      %v4124 = vpop.permute.xlu0 %4123
      %4125 = vrot.lane.b32.xlu0 %v4044, 48
      %v4126 = vpop.permute.xlu0 %4125
      %4127 = vrot.lane.b32.xlu0 %v4048, 48
      %v4128 = vpop.permute.xlu0 %4127
      %4129 = vrot.lane.b32.xlu0 %v4051, 48
      %v4130 = vpop.permute.xlu0 %4129
      %4131 = vrot.lane.b32.xlu0 %v4055, 48
      %v4132 = vpop.permute.xlu0 %4131
      %4133 = vrot.lane.b32.xlu0 %v4058, 48
      %v4134 = vpop.permute.xlu0 %4133
      %4135 = vrot.lane.b32.xlu0 %v4062, 48
      %v4136 = vpop.permute.xlu0 %4135
      %4137 = vrot.lane.b32.xlu0 %v4065, 48
      %v4138 = vpop.permute.xlu0 %4137
      %4139 = vrot.lane.b32.xlu0 %v4069, 48
      %v4140 = vpop.permute.xlu0 %4139
      %4141 = vrot.lane.b32.xlu0 %v4072, 48
      %v4142 = vpop.permute.xlu0 %4141
      %4143 = vrot.lane.b32.xlu0 %v4076, 48
      %v4144 = vpop.permute.xlu0 %4143
      %4145 = vrot.lane.b32.xlu0 %v4079, 48
      %v4146 = vpop.permute.xlu0 %4145
      %4147 = vrot.lane.b32.xlu0 %v4083, 48
      %v4148 = vpop.permute.xlu0 %4147
      %4149 = vrot.lane.b32.xlu0 %v4086, 48
      %v4150 = vpop.permute.xlu0 %4149
      %vm4183 = vcmask 421248
      %4184 = vst.msk [vmem:[#allocation2] sm:$0xf] %vm4183, %v4088
      %4185 = vst.msk [vmem:[#allocation2 + $0x4] sm:$0xf] %vm4183, %v4090
      %4186 = vst.msk [vmem:[#allocation2 + $0x8] sm:$0xf] %vm4183, %v4092
      %4187 = vst.msk [vmem:[#allocation2 + $0xc] sm:$0xf] %vm4183, %v4094
      %4188 = vst.msk [vmem:[#allocation2 + $0x10] sm:$0xf] %vm4183, %v4096
      %4189 = vst.msk [vmem:[#allocation2 + $0x14] sm:$0xf] %vm4183, %v4098
      %4190 = vst.msk [vmem:[#allocation2 + $0x18] sm:$0xf] %vm4183, %v4100
      %4191 = vst.msk [vmem:[#allocation2 + $0x1c] sm:$0xf] %vm4183, %v4102
      %4192 = vst.msk [vmem:[#allocation2 + $0x20] sm:$0xf] %vm4183, %v4104
      %4193 = vst.msk [vmem:[#allocation2 + $0x24] sm:$0xf] %vm4183, %v4106
      %4194 = vst.msk [vmem:[#allocation2 + $0x28] sm:$0xf] %vm4183, %v4108
      %4195 = vst.msk [vmem:[#allocation2 + $0x2c] sm:$0xf] %vm4183, %v4110
      %4196 = vst.msk [vmem:[#allocation2 + $0x30] sm:$0xf] %vm4183, %v4112
      %4197 = vst.msk [vmem:[#allocation2 + $0x34] sm:$0xf] %vm4183, %v4114
      %4198 = vst.msk [vmem:[#allocation2 + $0x38] sm:$0xf] %vm4183, %v4116
      %4199 = vst.msk [vmem:[#allocation2 + $0x3c] sm:$0xf] %vm4183, %v4118
      %4200 = vst.msk [vmem:[#allocation2 + $0x40] sm:$0xf] %vm4183, %v4120
      %4201 = vst.msk [vmem:[#allocation2 + $0x44] sm:$0xf] %vm4183, %v4122
      %4202 = vst.msk [vmem:[#allocation2 + $0x48] sm:$0xf] %vm4183, %v4124
      %4203 = vst.msk [vmem:[#allocation2 + $0x4c] sm:$0xf] %vm4183, %v4126
      %4204 = vst.msk [vmem:[#allocation2 + $0x50] sm:$0xf] %vm4183, %v4128
      %4205 = vst.msk [vmem:[#allocation2 + $0x54] sm:$0xf] %vm4183, %v4130
      %4206 = vst.msk [vmem:[#allocation2 + $0x58] sm:$0xf] %vm4183, %v4132
      %4207 = vst.msk [vmem:[#allocation2 + $0x5c] sm:$0xf] %vm4183, %v4134
      %4208 = vst.msk [vmem:[#allocation2 + $0x60] sm:$0xf] %vm4183, %v4136
      %4209 = vst.msk [vmem:[#allocation2 + $0x64] sm:$0xf] %vm4183, %v4138
      %4210 = vst.msk [vmem:[#allocation2 + $0x68] sm:$0xf] %vm4183, %v4140
      %4211 = vst.msk [vmem:[#allocation2 + $0x6c] sm:$0xf] %vm4183, %v4142
      %4212 = vst.msk [vmem:[#allocation2 + $0x70] sm:$0xf] %vm4183, %v4144
      %4213 = vst.msk [vmem:[#allocation2 + $0x74] sm:$0xf] %vm4183, %v4146
      %4214 = vst.msk [vmem:[#allocation2 + $0x78] sm:$0xf] %vm4183, %v4148
      %4215 = vst.msk [vmem:[#allocation2 + $0x7c] sm:$0xf] %vm4183, %v4150
      %v4216 = vld [vmem:[%s1122 + $0x8] sm:$0xe]
      %v4217 = vld [vmem:[%s1122 + $0xc] sm:$0xf]
      %v4218 = vld [vmem:[%s1122 + $0x10] sm:$0x1]
      %v4219 = vld [vmem:[%s1122 + $0x24] sm:$0xe]
      %v4220 = vld [vmem:[%s1122 + $0x28] sm:$0xf]
      %v4221 = vld [vmem:[%s1122 + $0x2c] sm:$0x1]
      %v4222 = vld [vmem:[%s1122 + $0x40] sm:$0xe]
      %v4223 = vld [vmem:[%s1122 + $0x44] sm:$0xf]
      %v4224 = vld [vmem:[%s1122 + $0x48] sm:$0x1]
      %v4225 = vld [vmem:[%s1122 + $0x5c] sm:$0xe]
      %v4226 = vld [vmem:[%s1122 + $0x60] sm:$0xf]
      %v4227 = vld [vmem:[%s1122 + $0x64] sm:$0x1]
      %v4228 = vld [vmem:[%s1122 + $0x78] sm:$0xe]
      %v4229 = vld [vmem:[%s1122 + $0x7c] sm:$0xf]
      %v4230 = vld [vmem:[%s1122 + $0x80] sm:$0x1]
      %v4231 = vld [vmem:[%s1122 + $0x94] sm:$0xe]
      %v4232 = vld [vmem:[%s1122 + $0x98] sm:$0xf]
      %v4233 = vld [vmem:[%s1122 + $0x9c] sm:$0x1]
      %v4234 = vld [vmem:[%s1122 + $0xb0] sm:$0xe]
      %v4235 = vld [vmem:[%s1122 + $0xb4] sm:$0xf]
      %v4236 = vld [vmem:[%s1122 + $0xb8] sm:$0x1]
      %v4237 = vld [vmem:[%s1122 + $0xcc] sm:$0xe]
      %v4238 = vld [vmem:[%s1122 + $0xd0] sm:$0xf]
      %v4239 = vld [vmem:[%s1122 + $0xd4] sm:$0x1]
      %v4240 = vld [vmem:[%s1122 + $0xe8] sm:$0xe]
      %v4241 = vld [vmem:[%s1122 + $0xec] sm:$0xf]
      %v4242 = vld [vmem:[%s1122 + $0xf0] sm:$0x1]
      %v4243 = vld [vmem:[%s1122 + $0x104] sm:$0xe]
      %v4244 = vld [vmem:[%s1122 + $0x108] sm:$0xf]
      %v4245 = vld [vmem:[%s1122 + $0x10c] sm:$0x1]
      %v4246 = vld [vmem:[%s1122 + $0x120] sm:$0xe]
      %v4247 = vld [vmem:[%s1122 + $0x124] sm:$0xf]
      %v4248 = vld [vmem:[%s1122 + $0x128] sm:$0x1]
      %v4249 = vld [vmem:[%s1122 + $0x13c] sm:$0xe]
      %v4250 = vld [vmem:[%s1122 + $0x140] sm:$0xf]
      %v4251 = vld [vmem:[%s1122 + $0x144] sm:$0x1]
      %v4252 = vld [vmem:[%s1122 + $0x158] sm:$0xe]
      %v4253 = vld [vmem:[%s1122 + $0x15c] sm:$0xf]
      %v4254 = vld [vmem:[%s1122 + $0x160] sm:$0x1]
      %v4255 = vld [vmem:[%s1122 + $0x174] sm:$0xe]
      %v4256 = vld [vmem:[%s1122 + $0x178] sm:$0xf]
      %v4257 = vld [vmem:[%s1122 + $0x17c] sm:$0x1]
      %v4258 = vld [vmem:[%s1122 + $0x190] sm:$0xe]
      %v4259 = vld [vmem:[%s1122 + $0x194] sm:$0xf]
      %v4260 = vld [vmem:[%s1122 + $0x198] sm:$0x1]
      %v4261 = vld [vmem:[%s1122 + $0x1ac] sm:$0xe]
      %v4262 = vld [vmem:[%s1122 + $0x1b0] sm:$0xf]
      %v4263 = vld [vmem:[%s1122 + $0x1b4] sm:$0x1]
      %v4312 = vrot.slane %v4216, 5
      %v4313 = vrot.slane %v4312, 4
      %v4314 = vrot.slane %v4217, 5
      %v4315 = vsel %vm684, %v4313, %v4314
      %v4316 = vrot.slane %v4314, 4
      %v4317 = vrot.slane %v4218, 5
      %v4318 = vsel %vm684, %v4316, %v4317
      %v4319 = vrot.slane %v4219, 5
      %v4320 = vrot.slane %v4319, 4
      %v4321 = vrot.slane %v4220, 5
      %v4322 = vsel %vm684, %v4320, %v4321
      %v4323 = vrot.slane %v4321, 4
      %v4324 = vrot.slane %v4221, 5
      %v4325 = vsel %vm684, %v4323, %v4324
      %v4326 = vrot.slane %v4222, 5
      %v4327 = vrot.slane %v4326, 4
      %v4328 = vrot.slane %v4223, 5
      %v4329 = vsel %vm684, %v4327, %v4328
      %v4330 = vrot.slane %v4328, 4
      %v4331 = vrot.slane %v4224, 5
      %v4332 = vsel %vm684, %v4330, %v4331
      %v4333 = vrot.slane %v4225, 5
      %v4334 = vrot.slane %v4333, 4
      %v4335 = vrot.slane %v4226, 5
      %v4336 = vsel %vm684, %v4334, %v4335
      %v4337 = vrot.slane %v4335, 4
      %v4338 = vrot.slane %v4227, 5
      %v4339 = vsel %vm684, %v4337, %v4338
      %v4340 = vrot.slane %v4228, 5
      %v4341 = vrot.slane %v4340, 4
      %v4342 = vrot.slane %v4229, 5
      %v4343 = vsel %vm684, %v4341, %v4342
      %v4344 = vrot.slane %v4342, 4
      %v4345 = vrot.slane %v4230, 5
      %v4346 = vsel %vm684, %v4344, %v4345
      %v4347 = vrot.slane %v4231, 5
      %v4348 = vrot.slane %v4347, 4
      %v4349 = vrot.slane %v4232, 5
      %v4350 = vsel %vm684, %v4348, %v4349
      %v4351 = vrot.slane %v4349, 4
      %v4352 = vrot.slane %v4233, 5
      %v4353 = vsel %vm684, %v4351, %v4352
      %v4354 = vrot.slane %v4234, 5
      %v4355 = vrot.slane %v4354, 4
      %v4356 = vrot.slane %v4235, 5
      %v4357 = vsel %vm684, %v4355, %v4356
      %v4358 = vrot.slane %v4356, 4
      %v4359 = vrot.slane %v4236, 5
      %v4360 = vsel %vm684, %v4358, %v4359
      %v4361 = vrot.slane %v4237, 5
      %v4362 = vrot.slane %v4361, 4
      %v4363 = vrot.slane %v4238, 5
      %v4364 = vsel %vm684, %v4362, %v4363
      %v4365 = vrot.slane %v4363, 4
      %v4366 = vrot.slane %v4239, 5
      %v4367 = vsel %vm684, %v4365, %v4366
      %v4368 = vrot.slane %v4240, 5
      %v4369 = vrot.slane %v4368, 4
      %v4370 = vrot.slane %v4241, 5
      %v4371 = vsel %vm684, %v4369, %v4370
      %v4372 = vrot.slane %v4370, 4
      %v4373 = vrot.slane %v4242, 5
      %v4374 = vsel %vm684, %v4372, %v4373
      %v4375 = vrot.slane %v4243, 5
      %v4376 = vrot.slane %v4375, 4
      %v4377 = vrot.slane %v4244, 5
      %v4378 = vsel %vm684, %v4376, %v4377
      %v4379 = vrot.slane %v4377, 4
      %v4380 = vrot.slane %v4245, 5
      %v4381 = vsel %vm684, %v4379, %v4380
      %v4382 = vrot.slane %v4246, 5
      %v4383 = vrot.slane %v4382, 4
      %v4384 = vrot.slane %v4247, 5
      %v4385 = vsel %vm684, %v4383, %v4384
      %v4386 = vrot.slane %v4384, 4
      %v4387 = vrot.slane %v4248, 5
      %v4388 = vsel %vm684, %v4386, %v4387
      %v4389 = vrot.slane %v4249, 5
      %v4390 = vrot.slane %v4389, 4
      %v4391 = vrot.slane %v4250, 5
      %v4392 = vsel %vm684, %v4390, %v4391
      %v4393 = vrot.slane %v4391, 4
      %v4394 = vrot.slane %v4251, 5
      %v4395 = vsel %vm684, %v4393, %v4394
      %v4396 = vrot.slane %v4252, 5
      %v4397 = vrot.slane %v4396, 4
      %v4398 = vrot.slane %v4253, 5
      %v4399 = vsel %vm684, %v4397, %v4398
      %v4400 = vrot.slane %v4398, 4
      %v4401 = vrot.slane %v4254, 5
      %v4402 = vsel %vm684, %v4400, %v4401
      %v4403 = vrot.slane %v4255, 5
      %v4404 = vrot.slane %v4403, 4
      %v4405 = vrot.slane %v4256, 5
      %v4406 = vsel %vm684, %v4404, %v4405
      %v4407 = vrot.slane %v4405, 4
      %v4408 = vrot.slane %v4257, 5
      %v4409 = vsel %vm684, %v4407, %v4408
      %v4410 = vrot.slane %v4258, 5
      %v4411 = vrot.slane %v4410, 4
      %v4412 = vrot.slane %v4259, 5
      %v4413 = vsel %vm684, %v4411, %v4412
      %v4414 = vrot.slane %v4412, 4
      %v4415 = vrot.slane %v4260, 5
      %v4416 = vsel %vm684, %v4414, %v4415
      %v4417 = vrot.slane %v4261, 5
      %v4418 = vrot.slane %v4417, 4
      %v4419 = vrot.slane %v4262, 5
      %v4420 = vsel %vm684, %v4418, %v4419
      %v4421 = vrot.slane %v4419, 4
      %v4422 = vrot.slane %v4263, 5
      %v4423 = vsel %vm684, %v4421, %v4422
      %4424 = vrot.lane.b32.xlu0 %v4315, 52
      %v4425 = vpop.permute.xlu0 %4424
      %4426 = vrot.lane.b32.xlu0 %v4318, 52
      %v4427 = vpop.permute.xlu0 %4426
      %4428 = vrot.lane.b32.xlu0 %v4322, 52
      %v4429 = vpop.permute.xlu0 %4428
      %4430 = vrot.lane.b32.xlu0 %v4325, 52
      %v4431 = vpop.permute.xlu0 %4430
      %4432 = vrot.lane.b32.xlu0 %v4329, 52
      %v4433 = vpop.permute.xlu0 %4432
      %4434 = vrot.lane.b32.xlu0 %v4332, 52
      %v4435 = vpop.permute.xlu0 %4434
      %4436 = vrot.lane.b32.xlu0 %v4336, 52
      %v4437 = vpop.permute.xlu0 %4436
      %4438 = vrot.lane.b32.xlu0 %v4339, 52
      %v4439 = vpop.permute.xlu0 %4438
      %4440 = vrot.lane.b32.xlu0 %v4343, 52
      %v4441 = vpop.permute.xlu0 %4440
      %4442 = vrot.lane.b32.xlu0 %v4346, 52
      %v4443 = vpop.permute.xlu0 %4442
      %4444 = vrot.lane.b32.xlu0 %v4350, 52
      %v4445 = vpop.permute.xlu0 %4444
      %4446 = vrot.lane.b32.xlu0 %v4353, 52
      %v4447 = vpop.permute.xlu0 %4446
      %4448 = vrot.lane.b32.xlu0 %v4357, 52
      %v4449 = vpop.permute.xlu0 %4448
      %4450 = vrot.lane.b32.xlu0 %v4360, 52
      %v4451 = vpop.permute.xlu0 %4450
      %4452 = vrot.lane.b32.xlu0 %v4364, 52
      %v4453 = vpop.permute.xlu0 %4452
      %4454 = vrot.lane.b32.xlu0 %v4367, 52
      %v4455 = vpop.permute.xlu0 %4454
      %4456 = vrot.lane.b32.xlu0 %v4371, 52
      %v4457 = vpop.permute.xlu0 %4456
      %4458 = vrot.lane.b32.xlu0 %v4374, 52
      %v4459 = vpop.permute.xlu0 %4458
      %4460 = vrot.lane.b32.xlu0 %v4378, 52
      %v4461 = vpop.permute.xlu0 %4460
      %4462 = vrot.lane.b32.xlu0 %v4381, 52
      %v4463 = vpop.permute.xlu0 %4462
      %4464 = vrot.lane.b32.xlu0 %v4385, 52
      %v4465 = vpop.permute.xlu0 %4464
      %4466 = vrot.lane.b32.xlu0 %v4388, 52
      %v4467 = vpop.permute.xlu0 %4466
      %4468 = vrot.lane.b32.xlu0 %v4392, 52
      %v4469 = vpop.permute.xlu0 %4468
      %4470 = vrot.lane.b32.xlu0 %v4395, 52
      %v4471 = vpop.permute.xlu0 %4470
      %4472 = vrot.lane.b32.xlu0 %v4399, 52
      %v4473 = vpop.permute.xlu0 %4472
      %4474 = vrot.lane.b32.xlu0 %v4402, 52
      %v4475 = vpop.permute.xlu0 %4474
      %4476 = vrot.lane.b32.xlu0 %v4406, 52
      %v4477 = vpop.permute.xlu0 %4476
      %4478 = vrot.lane.b32.xlu0 %v4409, 52
      %v4479 = vpop.permute.xlu0 %4478
      %4480 = vrot.lane.b32.xlu0 %v4413, 52
      %v4481 = vpop.permute.xlu0 %4480
      %4482 = vrot.lane.b32.xlu0 %v4416, 52
      %v4483 = vpop.permute.xlu0 %4482
      %4484 = vrot.lane.b32.xlu0 %v4420, 52
      %v4485 = vpop.permute.xlu0 %4484
      %4486 = vrot.lane.b32.xlu0 %v4423, 52
      %v4487 = vpop.permute.xlu0 %4486
      %vm4520 = vcmask 454048
      %4521 = vst.msk [vmem:[#allocation2] sm:$0xf] %vm4520, %v4425
      %4522 = vst.msk [vmem:[#allocation2 + $0x4] sm:$0xf] %vm4520, %v4427
      %4523 = vst.msk [vmem:[#allocation2 + $0x8] sm:$0xf] %vm4520, %v4429
      %4524 = vst.msk [vmem:[#allocation2 + $0xc] sm:$0xf] %vm4520, %v4431
      %4525 = vst.msk [vmem:[#allocation2 + $0x10] sm:$0xf] %vm4520, %v4433
      %4526 = vst.msk [vmem:[#allocation2 + $0x14] sm:$0xf] %vm4520, %v4435
      %4527 = vst.msk [vmem:[#allocation2 + $0x18] sm:$0xf] %vm4520, %v4437
      %4528 = vst.msk [vmem:[#allocation2 + $0x1c] sm:$0xf] %vm4520, %v4439
      %4529 = vst.msk [vmem:[#allocation2 + $0x20] sm:$0xf] %vm4520, %v4441
      %4530 = vst.msk [vmem:[#allocation2 + $0x24] sm:$0xf] %vm4520, %v4443
      %4531 = vst.msk [vmem:[#allocation2 + $0x28] sm:$0xf] %vm4520, %v4445
      %4532 = vst.msk [vmem:[#allocation2 + $0x2c] sm:$0xf] %vm4520, %v4447
      %4533 = vst.msk [vmem:[#allocation2 + $0x30] sm:$0xf] %vm4520, %v4449
      %4534 = vst.msk [vmem:[#allocation2 + $0x34] sm:$0xf] %vm4520, %v4451
      %4535 = vst.msk [vmem:[#allocation2 + $0x38] sm:$0xf] %vm4520, %v4453
      %4536 = vst.msk [vmem:[#allocation2 + $0x3c] sm:$0xf] %vm4520, %v4455
      %4537 = vst.msk [vmem:[#allocation2 + $0x40] sm:$0xf] %vm4520, %v4457
      %4538 = vst.msk [vmem:[#allocation2 + $0x44] sm:$0xf] %vm4520, %v4459
      %4539 = vst.msk [vmem:[#allocation2 + $0x48] sm:$0xf] %vm4520, %v4461
      %4540 = vst.msk [vmem:[#allocation2 + $0x4c] sm:$0xf] %vm4520, %v4463
      %4541 = vst.msk [vmem:[#allocation2 + $0x50] sm:$0xf] %vm4520, %v4465
      %4542 = vst.msk [vmem:[#allocation2 + $0x54] sm:$0xf] %vm4520, %v4467
      %4543 = vst.msk [vmem:[#allocation2 + $0x58] sm:$0xf] %vm4520, %v4469
      %4544 = vst.msk [vmem:[#allocation2 + $0x5c] sm:$0xf] %vm4520, %v4471
      %4545 = vst.msk [vmem:[#allocation2 + $0x60] sm:$0xf] %vm4520, %v4473
      %4546 = vst.msk [vmem:[#allocation2 + $0x64] sm:$0xf] %vm4520, %v4475
      %4547 = vst.msk [vmem:[#allocation2 + $0x68] sm:$0xf] %vm4520, %v4477
      %4548 = vst.msk [vmem:[#allocation2 + $0x6c] sm:$0xf] %vm4520, %v4479
      %4549 = vst.msk [vmem:[#allocation2 + $0x70] sm:$0xf] %vm4520, %v4481
      %4550 = vst.msk [vmem:[#allocation2 + $0x74] sm:$0xf] %vm4520, %v4483
      %4551 = vst.msk [vmem:[#allocation2 + $0x78] sm:$0xf] %vm4520, %v4485
      %4552 = vst.msk [vmem:[#allocation2 + $0x7c] sm:$0xf] %vm4520, %v4487
      %v4553 = vld [vmem:[%s1122 + $0xc] sm:$0x8]
      %v4554 = vld [vmem:[%s1122 + $0x10] sm:$0xf]
      %v4555 = vld [vmem:[%s1122 + $0x14] sm:$0x7]
      %v4556 = vld [vmem:[%s1122 + $0x28] sm:$0x8]
      %v4557 = vld [vmem:[%s1122 + $0x2c] sm:$0xf]
      %v4558 = vld [vmem:[%s1122 + $0x30] sm:$0x7]
      %v4559 = vld [vmem:[%s1122 + $0x44] sm:$0x8]
      %v4560 = vld [vmem:[%s1122 + $0x48] sm:$0xf]
      %v4561 = vld [vmem:[%s1122 + $0x4c] sm:$0x7]
      %v4562 = vld [vmem:[%s1122 + $0x60] sm:$0x8]
      %v4563 = vld [vmem:[%s1122 + $0x64] sm:$0xf]
      %v4564 = vld [vmem:[%s1122 + $0x68] sm:$0x7]
      %v4565 = vld [vmem:[%s1122 + $0x7c] sm:$0x8]
      %v4566 = vld [vmem:[%s1122 + $0x80] sm:$0xf]
      %v4567 = vld [vmem:[%s1122 + $0x84] sm:$0x7]
      %v4568 = vld [vmem:[%s1122 + $0x98] sm:$0x8]
      %v4569 = vld [vmem:[%s1122 + $0x9c] sm:$0xf]
      %v4570 = vld [vmem:[%s1122 + $0xa0] sm:$0x7]
      %v4571 = vld [vmem:[%s1122 + $0xb4] sm:$0x8]
      %v4572 = vld [vmem:[%s1122 + $0xb8] sm:$0xf]
      %v4573 = vld [vmem:[%s1122 + $0xbc] sm:$0x7]
      %v4574 = vld [vmem:[%s1122 + $0xd0] sm:$0x8]
      %v4575 = vld [vmem:[%s1122 + $0xd4] sm:$0xf]
      %v4576 = vld [vmem:[%s1122 + $0xd8] sm:$0x7]
      %v4577 = vld [vmem:[%s1122 + $0xec] sm:$0x8]
      %v4578 = vld [vmem:[%s1122 + $0xf0] sm:$0xf]
      %v4579 = vld [vmem:[%s1122 + $0xf4] sm:$0x7]
      %v4580 = vld [vmem:[%s1122 + $0x108] sm:$0x8]
      %v4581 = vld [vmem:[%s1122 + $0x10c] sm:$0xf]
      %v4582 = vld [vmem:[%s1122 + $0x110] sm:$0x7]
      %v4583 = vld [vmem:[%s1122 + $0x124] sm:$0x8]
      %v4584 = vld [vmem:[%s1122 + $0x128] sm:$0xf]
      %v4585 = vld [vmem:[%s1122 + $0x12c] sm:$0x7]
      %v4586 = vld [vmem:[%s1122 + $0x140] sm:$0x8]
      %v4587 = vld [vmem:[%s1122 + $0x144] sm:$0xf]
      %v4588 = vld [vmem:[%s1122 + $0x148] sm:$0x7]
      %v4589 = vld [vmem:[%s1122 + $0x15c] sm:$0x8]
      %v4590 = vld [vmem:[%s1122 + $0x160] sm:$0xf]
      %v4591 = vld [vmem:[%s1122 + $0x164] sm:$0x7]
      %v4592 = vld [vmem:[%s1122 + $0x178] sm:$0x8]
      %v4593 = vld [vmem:[%s1122 + $0x17c] sm:$0xf]
      %v4594 = vld [vmem:[%s1122 + $0x180] sm:$0x7]
      %v4595 = vld [vmem:[%s1122 + $0x194] sm:$0x8]
      %v4596 = vld [vmem:[%s1122 + $0x198] sm:$0xf]
      %v4597 = vld [vmem:[%s1122 + $0x19c] sm:$0x7]
      %v4598 = vld [vmem:[%s1122 + $0x1b0] sm:$0x8]
      %v4599 = vld [vmem:[%s1122 + $0x1b4] sm:$0xf]
      %v4600 = vld [vmem:[%s1122 + $0x1b8] sm:$0x7]
      %v4649 = vrot.slane %v4553, 7
      %v4650 = vrot.slane %v4649, 4
      %v4651 = vrot.slane %v4554, 7
      %v4652 = vsel %vm2963, %v4650, %v4651
      %v4653 = vrot.slane %v4651, 4
      %v4654 = vrot.slane %v4555, 7
      %v4655 = vsel %vm2963, %v4653, %v4654
      %v4656 = vrot.slane %v4556, 7
      %v4657 = vrot.slane %v4656, 4
      %v4658 = vrot.slane %v4557, 7
      %v4659 = vsel %vm2963, %v4657, %v4658
      %v4660 = vrot.slane %v4658, 4
      %v4661 = vrot.slane %v4558, 7
      %v4662 = vsel %vm2963, %v4660, %v4661
      %v4663 = vrot.slane %v4559, 7
      %v4664 = vrot.slane %v4663, 4
      %v4665 = vrot.slane %v4560, 7
      %v4666 = vsel %vm2963, %v4664, %v4665
      %v4667 = vrot.slane %v4665, 4
      %v4668 = vrot.slane %v4561, 7
      %v4669 = vsel %vm2963, %v4667, %v4668
      %v4670 = vrot.slane %v4562, 7
      %v4671 = vrot.slane %v4670, 4
      %v4672 = vrot.slane %v4563, 7
      %v4673 = vsel %vm2963, %v4671, %v4672
      %v4674 = vrot.slane %v4672, 4
      %v4675 = vrot.slane %v4564, 7
      %v4676 = vsel %vm2963, %v4674, %v4675
      %v4677 = vrot.slane %v4565, 7
      %v4678 = vrot.slane %v4677, 4
      %v4679 = vrot.slane %v4566, 7
      %v4680 = vsel %vm2963, %v4678, %v4679
      %v4681 = vrot.slane %v4679, 4
      %v4682 = vrot.slane %v4567, 7
      %v4683 = vsel %vm2963, %v4681, %v4682
      %v4684 = vrot.slane %v4568, 7
      %v4685 = vrot.slane %v4684, 4
      %v4686 = vrot.slane %v4569, 7
      %v4687 = vsel %vm2963, %v4685, %v4686
      %v4688 = vrot.slane %v4686, 4
      %v4689 = vrot.slane %v4570, 7
      %v4690 = vsel %vm2963, %v4688, %v4689
      %v4691 = vrot.slane %v4571, 7
      %v4692 = vrot.slane %v4691, 4
      %v4693 = vrot.slane %v4572, 7
      %v4694 = vsel %vm2963, %v4692, %v4693
      %v4695 = vrot.slane %v4693, 4
      %v4696 = vrot.slane %v4573, 7
      %v4697 = vsel %vm2963, %v4695, %v4696
      %v4698 = vrot.slane %v4574, 7
      %v4699 = vrot.slane %v4698, 4
      %v4700 = vrot.slane %v4575, 7
      %v4701 = vsel %vm2963, %v4699, %v4700
      %v4702 = vrot.slane %v4700, 4
      %v4703 = vrot.slane %v4576, 7
      %v4704 = vsel %vm2963, %v4702, %v4703
      %v4705 = vrot.slane %v4577, 7
      %v4706 = vrot.slane %v4705, 4
      %v4707 = vrot.slane %v4578, 7
      %v4708 = vsel %vm2963, %v4706, %v4707
      %v4709 = vrot.slane %v4707, 4
      %v4710 = vrot.slane %v4579, 7
      %v4711 = vsel %vm2963, %v4709, %v4710
      %v4712 = vrot.slane %v4580, 7
      %v4713 = vrot.slane %v4712, 4
      %v4714 = vrot.slane %v4581, 7
      %v4715 = vsel %vm2963, %v4713, %v4714
      %v4716 = vrot.slane %v4714, 4
      %v4717 = vrot.slane %v4582, 7
      %v4718 = vsel %vm2963, %v4716, %v4717
      %v4719 = vrot.slane %v4583, 7
      %v4720 = vrot.slane %v4719, 4
      %v4721 = vrot.slane %v4584, 7
      %v4722 = vsel %vm2963, %v4720, %v4721
      %v4723 = vrot.slane %v4721, 4
      %v4724 = vrot.slane %v4585, 7
      %v4725 = vsel %vm2963, %v4723, %v4724
      %v4726 = vrot.slane %v4586, 7
      %v4727 = vrot.slane %v4726, 4
      %v4728 = vrot.slane %v4587, 7
      %v4729 = vsel %vm2963, %v4727, %v4728
      %v4730 = vrot.slane %v4728, 4
      %v4731 = vrot.slane %v4588, 7
      %v4732 = vsel %vm2963, %v4730, %v4731
      %v4733 = vrot.slane %v4589, 7
      %v4734 = vrot.slane %v4733, 4
      %v4735 = vrot.slane %v4590, 7
      %v4736 = vsel %vm2963, %v4734, %v4735
      %v4737 = vrot.slane %v4735, 4
      %v4738 = vrot.slane %v4591, 7
      %v4739 = vsel %vm2963, %v4737, %v4738
      %v4740 = vrot.slane %v4592, 7
      %v4741 = vrot.slane %v4740, 4
      %v4742 = vrot.slane %v4593, 7
      %v4743 = vsel %vm2963, %v4741, %v4742
      %v4744 = vrot.slane %v4742, 4
      %v4745 = vrot.slane %v4594, 7
      %v4746 = vsel %vm2963, %v4744, %v4745
      %v4747 = vrot.slane %v4595, 7
      %v4748 = vrot.slane %v4747, 4
      %v4749 = vrot.slane %v4596, 7
      %v4750 = vsel %vm2963, %v4748, %v4749
      %v4751 = vrot.slane %v4749, 4
      %v4752 = vrot.slane %v4597, 7
      %v4753 = vsel %vm2963, %v4751, %v4752
      %v4754 = vrot.slane %v4598, 7
      %v4755 = vrot.slane %v4754, 4
      %v4756 = vrot.slane %v4599, 7
      %v4757 = vsel %vm2963, %v4755, %v4756
      %v4758 = vrot.slane %v4756, 4
      %v4759 = vrot.slane %v4600, 7
      %v4760 = vsel %vm2963, %v4758, %v4759
      %4761 = vrot.lane.b32.xlu0 %v4652, 56
      %v4762 = vpop.permute.xlu0 %4761
      %4763 = vrot.lane.b32.xlu0 %v4655, 56
      %v4764 = vpop.permute.xlu0 %4763
      %4765 = vrot.lane.b32.xlu0 %v4659, 56
      %v4766 = vpop.permute.xlu0 %4765
      %4767 = vrot.lane.b32.xlu0 %v4662, 56
      %v4768 = vpop.permute.xlu0 %4767
      %4769 = vrot.lane.b32.xlu0 %v4666, 56
      %v4770 = vpop.permute.xlu0 %4769
      %4771 = vrot.lane.b32.xlu0 %v4669, 56
      %v4772 = vpop.permute.xlu0 %4771
      %4773 = vrot.lane.b32.xlu0 %v4673, 56
      %v4774 = vpop.permute.xlu0 %4773
      %4775 = vrot.lane.b32.xlu0 %v4676, 56
      %v4776 = vpop.permute.xlu0 %4775
      %4777 = vrot.lane.b32.xlu0 %v4680, 56
      %v4778 = vpop.permute.xlu0 %4777
      %4779 = vrot.lane.b32.xlu0 %v4683, 56
      %v4780 = vpop.permute.xlu0 %4779
      %4781 = vrot.lane.b32.xlu0 %v4687, 56
      %v4782 = vpop.permute.xlu0 %4781
      %4783 = vrot.lane.b32.xlu0 %v4690, 56
      %v4784 = vpop.permute.xlu0 %4783
      %4785 = vrot.lane.b32.xlu0 %v4694, 56
      %v4786 = vpop.permute.xlu0 %4785
      %4787 = vrot.lane.b32.xlu0 %v4697, 56
      %v4788 = vpop.permute.xlu0 %4787
      %4789 = vrot.lane.b32.xlu0 %v4701, 56
      %v4790 = vpop.permute.xlu0 %4789
      %4791 = vrot.lane.b32.xlu0 %v4704, 56
      %v4792 = vpop.permute.xlu0 %4791
      %4793 = vrot.lane.b32.xlu0 %v4708, 56
      %v4794 = vpop.permute.xlu0 %4793
      %4795 = vrot.lane.b32.xlu0 %v4711, 56
      %v4796 = vpop.permute.xlu0 %4795
      %4797 = vrot.lane.b32.xlu0 %v4715, 56
      %v4798 = vpop.permute.xlu0 %4797
      %4799 = vrot.lane.b32.xlu0 %v4718, 56
      %v4800 = vpop.permute.xlu0 %4799
      %4801 = vrot.lane.b32.xlu0 %v4722, 56
      %v4802 = vpop.permute.xlu0 %4801
      %4803 = vrot.lane.b32.xlu0 %v4725, 56
      %v4804 = vpop.permute.xlu0 %4803
      %4805 = vrot.lane.b32.xlu0 %v4729, 56
      %v4806 = vpop.permute.xlu0 %4805
      %4807 = vrot.lane.b32.xlu0 %v4732, 56
      %v4808 = vpop.permute.xlu0 %4807
      %4809 = vrot.lane.b32.xlu0 %v4736, 56
      %v4810 = vpop.permute.xlu0 %4809
      %4811 = vrot.lane.b32.xlu0 %v4739, 56
      %v4812 = vpop.permute.xlu0 %4811
      %4813 = vrot.lane.b32.xlu0 %v4743, 56
      %v4814 = vpop.permute.xlu0 %4813
      %4815 = vrot.lane.b32.xlu0 %v4746, 56
      %v4816 = vpop.permute.xlu0 %4815
      %4817 = vrot.lane.b32.xlu0 %v4750, 56
      %v4818 = vpop.permute.xlu0 %4817
      %4819 = vrot.lane.b32.xlu0 %v4753, 56
      %v4820 = vpop.permute.xlu0 %4819
      %4821 = vrot.lane.b32.xlu0 %v4757, 56
      %v4822 = vpop.permute.xlu0 %4821
      %4823 = vrot.lane.b32.xlu0 %v4760, 56
      %v4824 = vpop.permute.xlu0 %4823
      %vm4857 = vcmask 486848
      %4858 = vst.msk [vmem:[#allocation2] sm:$0xf] %vm4857, %v4762
      %4859 = vst.msk [vmem:[#allocation2 + $0x4] sm:$0xf] %vm4857, %v4764
      %4860 = vst.msk [vmem:[#allocation2 + $0x8] sm:$0xf] %vm4857, %v4766
      %4861 = vst.msk [vmem:[#allocation2 + $0xc] sm:$0xf] %vm4857, %v4768
      %4862 = vst.msk [vmem:[#allocation2 + $0x10] sm:$0xf] %vm4857, %v4770
      %4863 = vst.msk [vmem:[#allocation2 + $0x14] sm:$0xf] %vm4857, %v4772
      %4864 = vst.msk [vmem:[#allocation2 + $0x18] sm:$0xf] %vm4857, %v4774
      %4865 = vst.msk [vmem:[#allocation2 + $0x1c] sm:$0xf] %vm4857, %v4776
      %4866 = vst.msk [vmem:[#allocation2 + $0x20] sm:$0xf] %vm4857, %v4778
      %4867 = vst.msk [vmem:[#allocation2 + $0x24] sm:$0xf] %vm4857, %v4780
      %4868 = vst.msk [vmem:[#allocation2 + $0x28] sm:$0xf] %vm4857, %v4782
      %4869 = vst.msk [vmem:[#allocation2 + $0x2c] sm:$0xf] %vm4857, %v4784
      %4870 = vst.msk [vmem:[#allocation2 + $0x30] sm:$0xf] %vm4857, %v4786
      %4871 = vst.msk [vmem:[#allocation2 + $0x34] sm:$0xf] %vm4857, %v4788
      %4872 = vst.msk [vmem:[#allocation2 + $0x38] sm:$0xf] %vm4857, %v4790
      %4873 = vst.msk [vmem:[#allocation2 + $0x3c] sm:$0xf] %vm4857, %v4792
      %4874 = vst.msk [vmem:[#allocation2 + $0x40] sm:$0xf] %vm4857, %v4794
      %4875 = vst.msk [vmem:[#allocation2 + $0x44] sm:$0xf] %vm4857, %v4796
      %4876 = vst.msk [vmem:[#allocation2 + $0x48] sm:$0xf] %vm4857, %v4798
      %4877 = vst.msk [vmem:[#allocation2 + $0x4c] sm:$0xf] %vm4857, %v4800
      %4878 = vst.msk [vmem:[#allocation2 + $0x50] sm:$0xf] %vm4857, %v4802
      %4879 = vst.msk [vmem:[#allocation2 + $0x54] sm:$0xf] %vm4857, %v4804
      %4880 = vst.msk [vmem:[#allocation2 + $0x58] sm:$0xf] %vm4857, %v4806
      %4881 = vst.msk [vmem:[#allocation2 + $0x5c] sm:$0xf] %vm4857, %v4808
      %4882 = vst.msk [vmem:[#allocation2 + $0x60] sm:$0xf] %vm4857, %v4810
      %4883 = vst.msk [vmem:[#allocation2 + $0x64] sm:$0xf] %vm4857, %v4812
      %4884 = vst.msk [vmem:[#allocation2 + $0x68] sm:$0xf] %vm4857, %v4814
      %4885 = vst.msk [vmem:[#allocation2 + $0x6c] sm:$0xf] %vm4857, %v4816
      %4886 = vst.msk [vmem:[#allocation2 + $0x70] sm:$0xf] %vm4857, %v4818
      %4887 = vst.msk [vmem:[#allocation2 + $0x74] sm:$0xf] %vm4857, %v4820
      %4888 = vst.msk [vmem:[#allocation2 + $0x78] sm:$0xf] %vm4857, %v4822
      %4889 = vst.msk [vmem:[#allocation2 + $0x7c] sm:$0xf] %vm4857, %v4824
      %s4890 = sadd.s32 %s305, 30
      %s4891 = smul.u32 %s4890, 7
      %s4892 = smul.addr %s4891, 4
      %s4893 = scalar_lea.vmem %s285, %s4892
      %v4894 = vld [vmem:[%s4893] sm:$0x8]
      %v4895 = vld [vmem:[%s4893 + $0x4] sm:$0xf]
      %v4896 = vld [vmem:[%s4893 + $0x8] sm:$0x7]
      %v4897 = vld [vmem:[%s4893 + $0x1c] sm:$0x8]
      %v4898 = vld [vmem:[%s4893 + $0x20] sm:$0xf]
      %v4899 = vld [vmem:[%s4893 + $0x24] sm:$0x7]
      %v4900 = vld [vmem:[%s4893 + $0x38] sm:$0x8]
      %v4901 = vld [vmem:[%s4893 + $0x3c] sm:$0xf]
      %v4902 = vld [vmem:[%s4893 + $0x40] sm:$0x7]
      %v4903 = vld [vmem:[%s4893 + $0x54] sm:$0x8]
      %v4904 = vld [vmem:[%s4893 + $0x58] sm:$0xf]
      %v4905 = vld [vmem:[%s4893 + $0x5c] sm:$0x7]
      %v4906 = vld [vmem:[%s4893 + $0x70] sm:$0x8]
      %v4907 = vld [vmem:[%s4893 + $0x74] sm:$0xf]
      %v4908 = vld [vmem:[%s4893 + $0x78] sm:$0x7]
      %v4909 = vld [vmem:[%s4893 + $0x8c] sm:$0x8]
      %v4910 = vld [vmem:[%s4893 + $0x90] sm:$0xf]
      %v4911 = vld [vmem:[%s4893 + $0x94] sm:$0x7]
      %v4912 = vld [vmem:[%s4893 + $0xa8] sm:$0x8]
      %v4913 = vld [vmem:[%s4893 + $0xac] sm:$0xf]
      %v4914 = vld [vmem:[%s4893 + $0xb0] sm:$0x7]
      %v4915 = vld [vmem:[%s4893 + $0xc4] sm:$0x8]
      %v4916 = vld [vmem:[%s4893 + $0xc8] sm:$0xf]
      %v4917 = vld [vmem:[%s4893 + $0xcc] sm:$0x7]
      %v4918 = vld [vmem:[%s4893 + $0xe0] sm:$0x8]
      %v4919 = vld [vmem:[%s4893 + $0xe4] sm:$0xf]
      %v4920 = vld [vmem:[%s4893 + $0xe8] sm:$0x7]
      %v4921 = vld [vmem:[%s4893 + $0xfc] sm:$0x8]
      %v4922 = vld [vmem:[%s4893 + $0x100] sm:$0xf]
      %v4923 = vld [vmem:[%s4893 + $0x104] sm:$0x7]
      %v4924 = vld [vmem:[%s4893 + $0x118] sm:$0x8]
      %v4925 = vld [vmem:[%s4893 + $0x11c] sm:$0xf]
      %v4926 = vld [vmem:[%s4893 + $0x120] sm:$0x7]
      %v4927 = vld [vmem:[%s4893 + $0x134] sm:$0x8]
      %v4928 = vld [vmem:[%s4893 + $0x138] sm:$0xf]
      %v4929 = vld [vmem:[%s4893 + $0x13c] sm:$0x7]
      %v4930 = vld [vmem:[%s4893 + $0x150] sm:$0x8]
      %v4931 = vld [vmem:[%s4893 + $0x154] sm:$0xf]
      %v4932 = vld [vmem:[%s4893 + $0x158] sm:$0x7]
      %v4933 = vld [vmem:[%s4893 + $0x16c] sm:$0x8]
      %v4934 = vld [vmem:[%s4893 + $0x170] sm:$0xf]
      %v4935 = vld [vmem:[%s4893 + $0x174] sm:$0x7]
      %v4936 = vld [vmem:[%s4893 + $0x188] sm:$0x8]
      %v4937 = vld [vmem:[%s4893 + $0x18c] sm:$0xf]
      %v4938 = vld [vmem:[%s4893 + $0x190] sm:$0x7]
      %v4939 = vld [vmem:[%s4893 + $0x1a4] sm:$0x8]
      %v4940 = vld [vmem:[%s4893 + $0x1a8] sm:$0xf]
      %v4941 = vld [vmem:[%s4893 + $0x1ac] sm:$0x7]
      %v4990 = vrot.slane %v4894, 7
      %v4991 = vrot.slane %v4990, 4
      %v4992 = vrot.slane %v4895, 7
      %v4993 = vsel %vm2963, %v4991, %v4992
      %v4994 = vrot.slane %v4992, 4
      %v4995 = vrot.slane %v4896, 7
      %v4996 = vsel %vm2963, %v4994, %v4995
      %v4997 = vrot.slane %v4897, 7
      %v4998 = vrot.slane %v4997, 4
      %v4999 = vrot.slane %v4898, 7
      %v5000 = vsel %vm2963, %v4998, %v4999
      %v5001 = vrot.slane %v4999, 4
      %v5002 = vrot.slane %v4899, 7
      %v5003 = vsel %vm2963, %v5001, %v5002
      %v5004 = vrot.slane %v4900, 7
      %v5005 = vrot.slane %v5004, 4
      %v5006 = vrot.slane %v4901, 7
      %v5007 = vsel %vm2963, %v5005, %v5006
      %v5008 = vrot.slane %v5006, 4
      %v5009 = vrot.slane %v4902, 7
      %v5010 = vsel %vm2963, %v5008, %v5009
      %v5011 = vrot.slane %v4903, 7
      %v5012 = vrot.slane %v5011, 4
      %v5013 = vrot.slane %v4904, 7
      %v5014 = vsel %vm2963, %v5012, %v5013
      %v5015 = vrot.slane %v5013, 4
      %v5016 = vrot.slane %v4905, 7
      %v5017 = vsel %vm2963, %v5015, %v5016
      %v5018 = vrot.slane %v4906, 7
      %v5019 = vrot.slane %v5018, 4
      %v5020 = vrot.slane %v4907, 7
      %v5021 = vsel %vm2963, %v5019, %v5020
      %v5022 = vrot.slane %v5020, 4
      %v5023 = vrot.slane %v4908, 7
      %v5024 = vsel %vm2963, %v5022, %v5023
      %v5025 = vrot.slane %v4909, 7
      %v5026 = vrot.slane %v5025, 4
      %v5027 = vrot.slane %v4910, 7
      %v5028 = vsel %vm2963, %v5026, %v5027
      %v5029 = vrot.slane %v5027, 4
      %v5030 = vrot.slane %v4911, 7
      %v5031 = vsel %vm2963, %v5029, %v5030
      %v5032 = vrot.slane %v4912, 7
      %v5033 = vrot.slane %v5032, 4
      %v5034 = vrot.slane %v4913, 7
      %v5035 = vsel %vm2963, %v5033, %v5034
      %v5036 = vrot.slane %v5034, 4
      %v5037 = vrot.slane %v4914, 7
      %v5038 = vsel %vm2963, %v5036, %v5037
      %v5039 = vrot.slane %v4915, 7
      %v5040 = vrot.slane %v5039, 4
      %v5041 = vrot.slane %v4916, 7
      %v5042 = vsel %vm2963, %v5040, %v5041
      %v5043 = vrot.slane %v5041, 4
      %v5044 = vrot.slane %v4917, 7
      %v5045 = vsel %vm2963, %v5043, %v5044
      %v5046 = vrot.slane %v4918, 7
      %v5047 = vrot.slane %v5046, 4
      %v5048 = vrot.slane %v4919, 7
      %v5049 = vsel %vm2963, %v5047, %v5048
      %v5050 = vrot.slane %v5048, 4
      %v5051 = vrot.slane %v4920, 7
      %v5052 = vsel %vm2963, %v5050, %v5051
      %v5053 = vrot.slane %v4921, 7
      %v5054 = vrot.slane %v5053, 4
      %v5055 = vrot.slane %v4922, 7
      %v5056 = vsel %vm2963, %v5054, %v5055
      %v5057 = vrot.slane %v5055, 4
      %v5058 = vrot.slane %v4923, 7
      %v5059 = vsel %vm2963, %v5057, %v5058
      %v5060 = vrot.slane %v4924, 7
      %v5061 = vrot.slane %v5060, 4
      %v5062 = vrot.slane %v4925, 7
      %v5063 = vsel %vm2963, %v5061, %v5062
      %v5064 = vrot.slane %v5062, 4
      %v5065 = vrot.slane %v4926, 7
      %v5066 = vsel %vm2963, %v5064, %v5065
      %v5067 = vrot.slane %v4927, 7
      %v5068 = vrot.slane %v5067, 4
      %v5069 = vrot.slane %v4928, 7
      %v5070 = vsel %vm2963, %v5068, %v5069
      %v5071 = vrot.slane %v5069, 4
      %v5072 = vrot.slane %v4929, 7
      %v5073 = vsel %vm2963, %v5071, %v5072
      %v5074 = vrot.slane %v4930, 7
      %v5075 = vrot.slane %v5074, 4
      %v5076 = vrot.slane %v4931, 7
      %v5077 = vsel %vm2963, %v5075, %v5076
      %v5078 = vrot.slane %v5076, 4
      %v5079 = vrot.slane %v4932, 7
      %v5080 = vsel %vm2963, %v5078, %v5079
      %v5081 = vrot.slane %v4933, 7
      %v5082 = vrot.slane %v5081, 4
      %v5083 = vrot.slane %v4934, 7
      %v5084 = vsel %vm2963, %v5082, %v5083
      %v5085 = vrot.slane %v5083, 4
      %v5086 = vrot.slane %v4935, 7
      %v5087 = vsel %vm2963, %v5085, %v5086
      %v5088 = vrot.slane %v4936, 7
      %v5089 = vrot.slane %v5088, 4
      %v5090 = vrot.slane %v4937, 7
      %v5091 = vsel %vm2963, %v5089, %v5090
      %v5092 = vrot.slane %v5090, 4
      %v5093 = vrot.slane %v4938, 7
      %v5094 = vsel %vm2963, %v5092, %v5093
      %v5095 = vrot.slane %v4939, 7
      %v5096 = vrot.slane %v5095, 4
      %v5097 = vrot.slane %v4940, 7
      %v5098 = vsel %vm2963, %v5096, %v5097
      %v5099 = vrot.slane %v5097, 4
      %v5100 = vrot.slane %v4941, 7
      %v5101 = vsel %vm2963, %v5099, %v5100
      %5102 = vrot.lane.b32.xlu0 %v4993, 60
      %v5103 = vpop.permute.xlu0 %5102
      %5104 = vrot.lane.b32.xlu0 %v4996, 60
      %v5105 = vpop.permute.xlu0 %5104
      %5106 = vrot.lane.b32.xlu0 %v5000, 60
      %v5107 = vpop.permute.xlu0 %5106
      %5108 = vrot.lane.b32.xlu0 %v5003, 60
      %v5109 = vpop.permute.xlu0 %5108
      %5110 = vrot.lane.b32.xlu0 %v5007, 60
      %v5111 = vpop.permute.xlu0 %5110
      %5112 = vrot.lane.b32.xlu0 %v5010, 60
      %v5113 = vpop.permute.xlu0 %5112
      %5114 = vrot.lane.b32.xlu0 %v5014, 60
      %v5115 = vpop.permute.xlu0 %5114
      %5116 = vrot.lane.b32.xlu0 %v5017, 60
      %v5117 = vpop.permute.xlu0 %5116
      %5118 = vrot.lane.b32.xlu0 %v5021, 60
      %v5119 = vpop.permute.xlu0 %5118
      %5120 = vrot.lane.b32.xlu0 %v5024, 60
      %v5121 = vpop.permute.xlu0 %5120
      %5122 = vrot.lane.b32.xlu0 %v5028, 60
      %v5123 = vpop.permute.xlu0 %5122
      %5124 = vrot.lane.b32.xlu0 %v5031, 60
      %v5125 = vpop.permute.xlu0 %5124
      %5126 = vrot.lane.b32.xlu0 %v5035, 60
      %v5127 = vpop.permute.xlu0 %5126
      %5128 = vrot.lane.b32.xlu0 %v5038, 60
      %v5129 = vpop.permute.xlu0 %5128
      %5130 = vrot.lane.b32.xlu0 %v5042, 60
      %v5131 = vpop.permute.xlu0 %5130
      %5132 = vrot.lane.b32.xlu0 %v5045, 60
      %v5133 = vpop.permute.xlu0 %5132
      %5134 = vrot.lane.b32.xlu0 %v5049, 60
      %v5135 = vpop.permute.xlu0 %5134
      %5136 = vrot.lane.b32.xlu0 %v5052, 60
      %v5137 = vpop.permute.xlu0 %5136
      %5138 = vrot.lane.b32.xlu0 %v5056, 60
      %v5139 = vpop.permute.xlu0 %5138
      %5140 = vrot.lane.b32.xlu0 %v5059, 60
      %v5141 = vpop.permute.xlu0 %5140
      %5142 = vrot.lane.b32.xlu0 %v5063, 60
      %v5143 = vpop.permute.xlu0 %5142
      %5144 = vrot.lane.b32.xlu0 %v5066, 60
      %v5145 = vpop.permute.xlu0 %5144
      %5146 = vrot.lane.b32.xlu0 %v5070, 60
      %v5147 = vpop.permute.xlu0 %5146
      %5148 = vrot.lane.b32.xlu0 %v5073, 60
      %v5149 = vpop.permute.xlu0 %5148
      %5150 = vrot.lane.b32.xlu0 %v5077, 60
      %v5151 = vpop.permute.xlu0 %5150
      %5152 = vrot.lane.b32.xlu0 %v5080, 60
      %v5153 = vpop.permute.xlu0 %5152
      %5154 = vrot.lane.b32.xlu0 %v5084, 60
      %v5155 = vpop.permute.xlu0 %5154
      %5156 = vrot.lane.b32.xlu0 %v5087, 60
      %v5157 = vpop.permute.xlu0 %5156
      %5158 = vrot.lane.b32.xlu0 %v5091, 60
      %v5159 = vpop.permute.xlu0 %5158
      %5160 = vrot.lane.b32.xlu0 %v5094, 60
      %v5161 = vpop.permute.xlu0 %5160
      %5162 = vrot.lane.b32.xlu0 %v5098, 60
      %v5163 = vpop.permute.xlu0 %5162
      %5164 = vrot.lane.b32.xlu0 %v5101, 60
      %v5165 = vpop.permute.xlu0 %5164
      %vm5198 = vcmask 519648
      %5199 = vst.msk [vmem:[#allocation2] sm:$0xf] %vm5198, %v5103
      %5200 = vst.msk [vmem:[#allocation2 + $0x4] sm:$0xf] %vm5198, %v5105
      %5201 = vst.msk [vmem:[#allocation2 + $0x8] sm:$0xf] %vm5198, %v5107
      %5202 = vst.msk [vmem:[#allocation2 + $0xc] sm:$0xf] %vm5198, %v5109
      %5203 = vst.msk [vmem:[#allocation2 + $0x10] sm:$0xf] %vm5198, %v5111
      %5204 = vst.msk [vmem:[#allocation2 + $0x14] sm:$0xf] %vm5198, %v5113
      %5205 = vst.msk [vmem:[#allocation2 + $0x18] sm:$0xf] %vm5198, %v5115
      %5206 = vst.msk [vmem:[#allocation2 + $0x1c] sm:$0xf] %vm5198, %v5117
      %5207 = vst.msk [vmem:[#allocation2 + $0x20] sm:$0xf] %vm5198, %v5119
      %5208 = vst.msk [vmem:[#allocation2 + $0x24] sm:$0xf] %vm5198, %v5121
      %5209 = vst.msk [vmem:[#allocation2 + $0x28] sm:$0xf] %vm5198, %v5123
      %5210 = vst.msk [vmem:[#allocation2 + $0x2c] sm:$0xf] %vm5198, %v5125
      %5211 = vst.msk [vmem:[#allocation2 + $0x30] sm:$0xf] %vm5198, %v5127
      %5212 = vst.msk [vmem:[#allocation2 + $0x34] sm:$0xf] %vm5198, %v5129
      %5213 = vst.msk [vmem:[#allocation2 + $0x38] sm:$0xf] %vm5198, %v5131
      %5214 = vst.msk [vmem:[#allocation2 + $0x3c] sm:$0xf] %vm5198, %v5133
      %5215 = vst.msk [vmem:[#allocation2 + $0x40] sm:$0xf] %vm5198, %v5135
      %5216 = vst.msk [vmem:[#allocation2 + $0x44] sm:$0xf] %vm5198, %v5137
      %5217 = vst.msk [vmem:[#allocation2 + $0x48] sm:$0xf] %vm5198, %v5139
      %5218 = vst.msk [vmem:[#allocation2 + $0x4c] sm:$0xf] %vm5198, %v5141
      %5219 = vst.msk [vmem:[#allocation2 + $0x50] sm:$0xf] %vm5198, %v5143
      %5220 = vst.msk [vmem:[#allocation2 + $0x54] sm:$0xf] %vm5198, %v5145
      %5221 = vst.msk [vmem:[#allocation2 + $0x58] sm:$0xf] %vm5198, %v5147
      %5222 = vst.msk [vmem:[#allocation2 + $0x5c] sm:$0xf] %vm5198, %v5149
      %5223 = vst.msk [vmem:[#allocation2 + $0x60] sm:$0xf] %vm5198, %v5151
      %5224 = vst.msk [vmem:[#allocation2 + $0x64] sm:$0xf] %vm5198, %v5153
      %5225 = vst.msk [vmem:[#allocation2 + $0x68] sm:$0xf] %vm5198, %v5155
      %5226 = vst.msk [vmem:[#allocation2 + $0x6c] sm:$0xf] %vm5198, %v5157
      %5227 = vst.msk [vmem:[#allocation2 + $0x70] sm:$0xf] %vm5198, %v5159
      %5228 = vst.msk [vmem:[#allocation2 + $0x74] sm:$0xf] %vm5198, %v5161
      %5229 = vst.msk [vmem:[#allocation2 + $0x78] sm:$0xf] %vm5198, %v5163
      %5230 = vst.msk [vmem:[#allocation2 + $0x7c] sm:$0xf] %vm5198, %v5165
      %v5231 = vld [vmem:[%s4893 + $0x8] sm:$0xe]
      %v5232 = vld [vmem:[%s4893 + $0xc] sm:$0xf]
      %v5233 = vld [vmem:[%s4893 + $0x10] sm:$0x1]
      %v5234 = vld [vmem:[%s4893 + $0x24] sm:$0xe]
      %v5235 = vld [vmem:[%s4893 + $0x28] sm:$0xf]
      %v5236 = vld [vmem:[%s4893 + $0x2c] sm:$0x1]
      %v5237 = vld [vmem:[%s4893 + $0x40] sm:$0xe]
      %v5238 = vld [vmem:[%s4893 + $0x44] sm:$0xf]
      %v5239 = vld [vmem:[%s4893 + $0x48] sm:$0x1]
      %v5240 = vld [vmem:[%s4893 + $0x5c] sm:$0xe]
      %v5241 = vld [vmem:[%s4893 + $0x60] sm:$0xf]
      %v5242 = vld [vmem:[%s4893 + $0x64] sm:$0x1]
      %v5243 = vld [vmem:[%s4893 + $0x78] sm:$0xe]
      %v5244 = vld [vmem:[%s4893 + $0x7c] sm:$0xf]
      %v5245 = vld [vmem:[%s4893 + $0x80] sm:$0x1]
      %v5246 = vld [vmem:[%s4893 + $0x94] sm:$0xe]
      %v5247 = vld [vmem:[%s4893 + $0x98] sm:$0xf]
      %v5248 = vld [vmem:[%s4893 + $0x9c] sm:$0x1]
      %v5249 = vld [vmem:[%s4893 + $0xb0] sm:$0xe]
      %v5250 = vld [vmem:[%s4893 + $0xb4] sm:$0xf]
      %v5251 = vld [vmem:[%s4893 + $0xb8] sm:$0x1]
      %v5252 = vld [vmem:[%s4893 + $0xcc] sm:$0xe]
      %v5253 = vld [vmem:[%s4893 + $0xd0] sm:$0xf]
      %v5254 = vld [vmem:[%s4893 + $0xd4] sm:$0x1]
      %v5255 = vld [vmem:[%s4893 + $0xe8] sm:$0xe]
      %v5256 = vld [vmem:[%s4893 + $0xec] sm:$0xf]
      %v5257 = vld [vmem:[%s4893 + $0xf0] sm:$0x1]
      %v5258 = vld [vmem:[%s4893 + $0x104] sm:$0xe]
      %v5259 = vld [vmem:[%s4893 + $0x108] sm:$0xf]
      %v5260 = vld [vmem:[%s4893 + $0x10c] sm:$0x1]
      %v5261 = vld [vmem:[%s4893 + $0x120] sm:$0xe]
      %v5262 = vld [vmem:[%s4893 + $0x124] sm:$0xf]
      %v5263 = vld [vmem:[%s4893 + $0x128] sm:$0x1]
      %v5264 = vld [vmem:[%s4893 + $0x13c] sm:$0xe]
      %v5265 = vld [vmem:[%s4893 + $0x140] sm:$0xf]
      %v5266 = vld [vmem:[%s4893 + $0x144] sm:$0x1]
      %v5267 = vld [vmem:[%s4893 + $0x158] sm:$0xe]
      %v5268 = vld [vmem:[%s4893 + $0x15c] sm:$0xf]
      %v5269 = vld [vmem:[%s4893 + $0x160] sm:$0x1]
      %v5270 = vld [vmem:[%s4893 + $0x174] sm:$0xe]
      %v5271 = vld [vmem:[%s4893 + $0x178] sm:$0xf]
      %v5272 = vld [vmem:[%s4893 + $0x17c] sm:$0x1]
      %v5273 = vld [vmem:[%s4893 + $0x190] sm:$0xe]
      %v5274 = vld [vmem:[%s4893 + $0x194] sm:$0xf]
      %v5275 = vld [vmem:[%s4893 + $0x198] sm:$0x1]
      %v5276 = vld [vmem:[%s4893 + $0x1ac] sm:$0xe]
      %v5277 = vld [vmem:[%s4893 + $0x1b0] sm:$0xf]
      %v5278 = vld [vmem:[%s4893 + $0x1b4] sm:$0x1]
      %v5327 = vrot.slane %v5231, 5
      %v5328 = vrot.slane %v5327, 4
      %v5329 = vrot.slane %v5232, 5
      %v5330 = vsel %vm684, %v5328, %v5329
      %v5331 = vrot.slane %v5329, 4
      %v5332 = vrot.slane %v5233, 5
      %v5333 = vsel %vm684, %v5331, %v5332
      %v5334 = vrot.slane %v5234, 5
      %v5335 = vrot.slane %v5334, 4
      %v5336 = vrot.slane %v5235, 5
      %v5337 = vsel %vm684, %v5335, %v5336
      %v5338 = vrot.slane %v5336, 4
      %v5339 = vrot.slane %v5236, 5
      %v5340 = vsel %vm684, %v5338, %v5339
      %v5341 = vrot.slane %v5237, 5
      %v5342 = vrot.slane %v5341, 4
      %v5343 = vrot.slane %v5238, 5
      %v5344 = vsel %vm684, %v5342, %v5343
      %v5345 = vrot.slane %v5343, 4
      %v5346 = vrot.slane %v5239, 5
      %v5347 = vsel %vm684, %v5345, %v5346
      %v5348 = vrot.slane %v5240, 5
      %v5349 = vrot.slane %v5348, 4
      %v5350 = vrot.slane %v5241, 5
      %v5351 = vsel %vm684, %v5349, %v5350
      %v5352 = vrot.slane %v5350, 4
      %v5353 = vrot.slane %v5242, 5
      %v5354 = vsel %vm684, %v5352, %v5353
      %v5355 = vrot.slane %v5243, 5
      %v5356 = vrot.slane %v5355, 4
      %v5357 = vrot.slane %v5244, 5
      %v5358 = vsel %vm684, %v5356, %v5357
      %v5359 = vrot.slane %v5357, 4
      %v5360 = vrot.slane %v5245, 5
      %v5361 = vsel %vm684, %v5359, %v5360
      %v5362 = vrot.slane %v5246, 5
      %v5363 = vrot.slane %v5362, 4
      %v5364 = vrot.slane %v5247, 5
      %v5365 = vsel %vm684, %v5363, %v5364
      %v5366 = vrot.slane %v5364, 4
      %v5367 = vrot.slane %v5248, 5
      %v5368 = vsel %vm684, %v5366, %v5367
      %v5369 = vrot.slane %v5249, 5
      %v5370 = vrot.slane %v5369, 4
      %v5371 = vrot.slane %v5250, 5
      %v5372 = vsel %vm684, %v5370, %v5371
      %v5373 = vrot.slane %v5371, 4
      %v5374 = vrot.slane %v5251, 5
      %v5375 = vsel %vm684, %v5373, %v5374
      %v5376 = vrot.slane %v5252, 5
      %v5377 = vrot.slane %v5376, 4
      %v5378 = vrot.slane %v5253, 5
      %v5379 = vsel %vm684, %v5377, %v5378
      %v5380 = vrot.slane %v5378, 4
      %v5381 = vrot.slane %v5254, 5
      %v5382 = vsel %vm684, %v5380, %v5381
      %v5383 = vrot.slane %v5255, 5
      %v5384 = vrot.slane %v5383, 4
      %v5385 = vrot.slane %v5256, 5
      %v5386 = vsel %vm684, %v5384, %v5385
      %v5387 = vrot.slane %v5385, 4
      %v5388 = vrot.slane %v5257, 5
      %v5389 = vsel %vm684, %v5387, %v5388
      %v5390 = vrot.slane %v5258, 5
      %v5391 = vrot.slane %v5390, 4
      %v5392 = vrot.slane %v5259, 5
      %v5393 = vsel %vm684, %v5391, %v5392
      %v5394 = vrot.slane %v5392, 4
      %v5395 = vrot.slane %v5260, 5
      %v5396 = vsel %vm684, %v5394, %v5395
      %v5397 = vrot.slane %v5261, 5
      %v5398 = vrot.slane %v5397, 4
      %v5399 = vrot.slane %v5262, 5
      %v5400 = vsel %vm684, %v5398, %v5399
      %v5401 = vrot.slane %v5399, 4
      %v5402 = vrot.slane %v5263, 5
      %v5403 = vsel %vm684, %v5401, %v5402
      %v5404 = vrot.slane %v5264, 5
      %v5405 = vrot.slane %v5404, 4
      %v5406 = vrot.slane %v5265, 5
      %v5407 = vsel %vm684, %v5405, %v5406
      %v5408 = vrot.slane %v5406, 4
      %v5409 = vrot.slane %v5266, 5
      %v5410 = vsel %vm684, %v5408, %v5409
      %v5411 = vrot.slane %v5267, 5
      %v5412 = vrot.slane %v5411, 4
      %v5413 = vrot.slane %v5268, 5
      %v5414 = vsel %vm684, %v5412, %v5413
      %v5415 = vrot.slane %v5413, 4
      %v5416 = vrot.slane %v5269, 5
      %v5417 = vsel %vm684, %v5415, %v5416
      %v5418 = vrot.slane %v5270, 5
      %v5419 = vrot.slane %v5418, 4
      %v5420 = vrot.slane %v5271, 5
      %v5421 = vsel %vm684, %v5419, %v5420
      %v5422 = vrot.slane %v5420, 4
      %v5423 = vrot.slane %v5272, 5
      %v5424 = vsel %vm684, %v5422, %v5423
      %v5425 = vrot.slane %v5273, 5
      %v5426 = vrot.slane %v5425, 4
      %v5427 = vrot.slane %v5274, 5
      %v5428 = vsel %vm684, %v5426, %v5427
      %v5429 = vrot.slane %v5427, 4
      %v5430 = vrot.slane %v5275, 5
      %v5431 = vsel %vm684, %v5429, %v5430
      %v5432 = vrot.slane %v5276, 5
      %v5433 = vrot.slane %v5432, 4
      %v5434 = vrot.slane %v5277, 5
      %v5435 = vsel %vm684, %v5433, %v5434
      %v5436 = vrot.slane %v5434, 4
      %v5437 = vrot.slane %v5278, 5
      %v5438 = vsel %vm684, %v5436, %v5437
      %5439 = vrot.lane.b32.xlu0 %v5330, 64
      %v5440 = vpop.permute.xlu0 %5439
      %5441 = vrot.lane.b32.xlu0 %v5333, 64
      %v5442 = vpop.permute.xlu0 %5441
      %5443 = vrot.lane.b32.xlu0 %v5337, 64
      %v5444 = vpop.permute.xlu0 %5443
      %5445 = vrot.lane.b32.xlu0 %v5340, 64
      %v5446 = vpop.permute.xlu0 %5445
      %5447 = vrot.lane.b32.xlu0 %v5344, 64
      %v5448 = vpop.permute.xlu0 %5447
      %5449 = vrot.lane.b32.xlu0 %v5347, 64
      %v5450 = vpop.permute.xlu0 %5449
      %5451 = vrot.lane.b32.xlu0 %v5351, 64
      %v5452 = vpop.permute.xlu0 %5451
      %5453 = vrot.lane.b32.xlu0 %v5354, 64
      %v5454 = vpop.permute.xlu0 %5453
      %5455 = vrot.lane.b32.xlu0 %v5358, 64
      %v5456 = vpop.permute.xlu0 %5455
      %5457 = vrot.lane.b32.xlu0 %v5361, 64
      %v5458 = vpop.permute.xlu0 %5457
      %5459 = vrot.lane.b32.xlu0 %v5365, 64
      %v5460 = vpop.permute.xlu0 %5459
      %5461 = vrot.lane.b32.xlu0 %v5368, 64
      %v5462 = vpop.permute.xlu0 %5461
      %5463 = vrot.lane.b32.xlu0 %v5372, 64
      %v5464 = vpop.permute.xlu0 %5463
      %5465 = vrot.lane.b32.xlu0 %v5375, 64
      %v5466 = vpop.permute.xlu0 %5465
      %5467 = vrot.lane.b32.xlu0 %v5379, 64
      %v5468 = vpop.permute.xlu0 %5467
      %5469 = vrot.lane.b32.xlu0 %v5382, 64
      %v5470 = vpop.permute.xlu0 %5469
      %5471 = vrot.lane.b32.xlu0 %v5386, 64
      %v5472 = vpop.permute.xlu0 %5471
      %5473 = vrot.lane.b32.xlu0 %v5389, 64
      %v5474 = vpop.permute.xlu0 %5473
      %5475 = vrot.lane.b32.xlu0 %v5393, 64
      %v5476 = vpop.permute.xlu0 %5475
      %5477 = vrot.lane.b32.xlu0 %v5396, 64
      %v5478 = vpop.permute.xlu0 %5477
      %5479 = vrot.lane.b32.xlu0 %v5400, 64
      %v5480 = vpop.permute.xlu0 %5479
      %5481 = vrot.lane.b32.xlu0 %v5403, 64
      %v5482 = vpop.permute.xlu0 %5481
      %5483 = vrot.lane.b32.xlu0 %v5407, 64
      %v5484 = vpop.permute.xlu0 %5483
      %5485 = vrot.lane.b32.xlu0 %v5410, 64
      %v5486 = vpop.permute.xlu0 %5485
      %5487 = vrot.lane.b32.xlu0 %v5414, 64
      %v5488 = vpop.permute.xlu0 %5487
      %5489 = vrot.lane.b32.xlu0 %v5417, 64
      %v5490 = vpop.permute.xlu0 %5489
      %5491 = vrot.lane.b32.xlu0 %v5421, 64
      %v5492 = vpop.permute.xlu0 %5491
      %5493 = vrot.lane.b32.xlu0 %v5424, 64
      %v5494 = vpop.permute.xlu0 %5493
      %5495 = vrot.lane.b32.xlu0 %v5428, 64
      %v5496 = vpop.permute.xlu0 %5495
      %5497 = vrot.lane.b32.xlu0 %v5431, 64
      %v5498 = vpop.permute.xlu0 %5497
      %5499 = vrot.lane.b32.xlu0 %v5435, 64
      %v5500 = vpop.permute.xlu0 %5499
      %5501 = vrot.lane.b32.xlu0 %v5438, 64
      %v5502 = vpop.permute.xlu0 %5501
      %vm5535 = vcmask 552448
      %5536 = vst.msk [vmem:[#allocation2] sm:$0xf] %vm5535, %v5440
      %5537 = vst.msk [vmem:[#allocation2 + $0x4] sm:$0xf] %vm5535, %v5442
      %5538 = vst.msk [vmem:[#allocation2 + $0x8] sm:$0xf] %vm5535, %v5444
      %5539 = vst.msk [vmem:[#allocation2 + $0xc] sm:$0xf] %vm5535, %v5446
      %5540 = vst.msk [vmem:[#allocation2 + $0x10] sm:$0xf] %vm5535, %v5448
      %5541 = vst.msk [vmem:[#allocation2 + $0x14] sm:$0xf] %vm5535, %v5450
      %5542 = vst.msk [vmem:[#allocation2 + $0x18] sm:$0xf] %vm5535, %v5452
      %5543 = vst.msk [vmem:[#allocation2 + $0x1c] sm:$0xf] %vm5535, %v5454
      %5544 = vst.msk [vmem:[#allocation2 + $0x20] sm:$0xf] %vm5535, %v5456
      %5545 = vst.msk [vmem:[#allocation2 + $0x24] sm:$0xf] %vm5535, %v5458
      %5546 = vst.msk [vmem:[#allocation2 + $0x28] sm:$0xf] %vm5535, %v5460
      %5547 = vst.msk [vmem:[#allocation2 + $0x2c] sm:$0xf] %vm5535, %v5462
      %5548 = vst.msk [vmem:[#allocation2 + $0x30] sm:$0xf] %vm5535, %v5464
      %5549 = vst.msk [vmem:[#allocation2 + $0x34] sm:$0xf] %vm5535, %v5466
      %5550 = vst.msk [vmem:[#allocation2 + $0x38] sm:$0xf] %vm5535, %v5468
      %5551 = vst.msk [vmem:[#allocation2 + $0x3c] sm:$0xf] %vm5535, %v5470
      %5552 = vst.msk [vmem:[#allocation2 + $0x40] sm:$0xf] %vm5535, %v5472
      %5553 = vst.msk [vmem:[#allocation2 + $0x44] sm:$0xf] %vm5535, %v5474
      %5554 = vst.msk [vmem:[#allocation2 + $0x48] sm:$0xf] %vm5535, %v5476
      %5555 = vst.msk [vmem:[#allocation2 + $0x4c] sm:$0xf] %vm5535, %v5478
      %5556 = vst.msk [vmem:[#allocation2 + $0x50] sm:$0xf] %vm5535, %v5480
      %5557 = vst.msk [vmem:[#allocation2 + $0x54] sm:$0xf] %vm5535, %v5482
      %5558 = vst.msk [vmem:[#allocation2 + $0x58] sm:$0xf] %vm5535, %v5484
      %5559 = vst.msk [vmem:[#allocation2 + $0x5c] sm:$0xf] %vm5535, %v5486
      %5560 = vst.msk [vmem:[#allocation2 + $0x60] sm:$0xf] %vm5535, %v5488
      %5561 = vst.msk [vmem:[#allocation2 + $0x64] sm:$0xf] %vm5535, %v5490
      %5562 = vst.msk [vmem:[#allocation2 + $0x68] sm:$0xf] %vm5535, %v5492
      %5563 = vst.msk [vmem:[#allocation2 + $0x6c] sm:$0xf] %vm5535, %v5494
      %5564 = vst.msk [vmem:[#allocation2 + $0x70] sm:$0xf] %vm5535, %v5496
      %5565 = vst.msk [vmem:[#allocation2 + $0x74] sm:$0xf] %vm5535, %v5498
      %5566 = vst.msk [vmem:[#allocation2 + $0x78] sm:$0xf] %vm5535, %v5500
      %5567 = vst.msk [vmem:[#allocation2 + $0x7c] sm:$0xf] %vm5535, %v5502
      %v5568 = vld [vmem:[%s4893 + $0xc] sm:$0x8]
      %v5569 = vld [vmem:[%s4893 + $0x10] sm:$0xf]
      %v5570 = vld [vmem:[%s4893 + $0x14] sm:$0x7]
      %v5571 = vld [vmem:[%s4893 + $0x28] sm:$0x8]
      %v5572 = vld [vmem:[%s4893 + $0x2c] sm:$0xf]
      %v5573 = vld [vmem:[%s4893 + $0x30] sm:$0x7]
      %v5574 = vld [vmem:[%s4893 + $0x44] sm:$0x8]
      %v5575 = vld [vmem:[%s4893 + $0x48] sm:$0xf]
      %v5576 = vld [vmem:[%s4893 + $0x4c] sm:$0x7]
      %v5577 = vld [vmem:[%s4893 + $0x60] sm:$0x8]
      %v5578 = vld [vmem:[%s4893 + $0x64] sm:$0xf]
      %v5579 = vld [vmem:[%s4893 + $0x68] sm:$0x7]
      %v5580 = vld [vmem:[%s4893 + $0x7c] sm:$0x8]
      %v5581 = vld [vmem:[%s4893 + $0x80] sm:$0xf]
      %v5582 = vld [vmem:[%s4893 + $0x84] sm:$0x7]
      %v5583 = vld [vmem:[%s4893 + $0x98] sm:$0x8]
      %v5584 = vld [vmem:[%s4893 + $0x9c] sm:$0xf]
      %v5585 = vld [vmem:[%s4893 + $0xa0] sm:$0x7]
      %v5586 = vld [vmem:[%s4893 + $0xb4] sm:$0x8]
      %v5587 = vld [vmem:[%s4893 + $0xb8] sm:$0xf]
      %v5588 = vld [vmem:[%s4893 + $0xbc] sm:$0x7]
      %v5589 = vld [vmem:[%s4893 + $0xd0] sm:$0x8]
      %v5590 = vld [vmem:[%s4893 + $0xd4] sm:$0xf]
      %v5591 = vld [vmem:[%s4893 + $0xd8] sm:$0x7]
      %v5592 = vld [vmem:[%s4893 + $0xec] sm:$0x8]
      %v5593 = vld [vmem:[%s4893 + $0xf0] sm:$0xf]
      %v5594 = vld [vmem:[%s4893 + $0xf4] sm:$0x7]
      %v5595 = vld [vmem:[%s4893 + $0x108] sm:$0x8]
      %v5596 = vld [vmem:[%s4893 + $0x10c] sm:$0xf]
      %v5597 = vld [vmem:[%s4893 + $0x110] sm:$0x7]
      %v5598 = vld [vmem:[%s4893 + $0x124] sm:$0x8]
      %v5599 = vld [vmem:[%s4893 + $0x128] sm:$0xf]
      %v5600 = vld [vmem:[%s4893 + $0x12c] sm:$0x7]
      %v5601 = vld [vmem:[%s4893 + $0x140] sm:$0x8]
      %v5602 = vld [vmem:[%s4893 + $0x144] sm:$0xf]
      %v5603 = vld [vmem:[%s4893 + $0x148] sm:$0x7]
      %v5604 = vld [vmem:[%s4893 + $0x15c] sm:$0x8]
      %v5605 = vld [vmem:[%s4893 + $0x160] sm:$0xf]
      %v5606 = vld [vmem:[%s4893 + $0x164] sm:$0x7]
      %v5607 = vld [vmem:[%s4893 + $0x178] sm:$0x8]
      %v5608 = vld [vmem:[%s4893 + $0x17c] sm:$0xf]
      %v5609 = vld [vmem:[%s4893 + $0x180] sm:$0x7]
      %v5610 = vld [vmem:[%s4893 + $0x194] sm:$0x8]
      %v5611 = vld [vmem:[%s4893 + $0x198] sm:$0xf]
      %v5612 = vld [vmem:[%s4893 + $0x19c] sm:$0x7]
      %v5613 = vld [vmem:[%s4893 + $0x1b0] sm:$0x8]
      %v5614 = vld [vmem:[%s4893 + $0x1b4] sm:$0xf]
      %v5615 = vld [vmem:[%s4893 + $0x1b8] sm:$0x7]
      %v5664 = vrot.slane %v5568, 7
      %v5665 = vrot.slane %v5664, 4
      %v5666 = vrot.slane %v5569, 7
      %v5667 = vsel %vm2963, %v5665, %v5666
      %v5668 = vrot.slane %v5666, 4
      %v5669 = vrot.slane %v5570, 7
      %v5670 = vsel %vm2963, %v5668, %v5669
      %v5671 = vrot.slane %v5571, 7
      %v5672 = vrot.slane %v5671, 4
      %v5673 = vrot.slane %v5572, 7
      %v5674 = vsel %vm2963, %v5672, %v5673
      %v5675 = vrot.slane %v5673, 4
      %v5676 = vrot.slane %v5573, 7
      %v5677 = vsel %vm2963, %v5675, %v5676
      %v5678 = vrot.slane %v5574, 7
      %v5679 = vrot.slane %v5678, 4
      %v5680 = vrot.slane %v5575, 7
      %v5681 = vsel %vm2963, %v5679, %v5680
      %v5682 = vrot.slane %v5680, 4
      %v5683 = vrot.slane %v5576, 7
      %v5684 = vsel %vm2963, %v5682, %v5683
      %v5685 = vrot.slane %v5577, 7
      %v5686 = vrot.slane %v5685, 4
      %v5687 = vrot.slane %v5578, 7
      %v5688 = vsel %vm2963, %v5686, %v5687
      %v5689 = vrot.slane %v5687, 4
      %v5690 = vrot.slane %v5579, 7
      %v5691 = vsel %vm2963, %v5689, %v5690
      %v5692 = vrot.slane %v5580, 7
      %v5693 = vrot.slane %v5692, 4
      %v5694 = vrot.slane %v5581, 7
      %v5695 = vsel %vm2963, %v5693, %v5694
      %v5696 = vrot.slane %v5694, 4
      %v5697 = vrot.slane %v5582, 7
      %v5698 = vsel %vm2963, %v5696, %v5697
      %v5699 = vrot.slane %v5583, 7
      %v5700 = vrot.slane %v5699, 4
      %v5701 = vrot.slane %v5584, 7
      %v5702 = vsel %vm2963, %v5700, %v5701
      %v5703 = vrot.slane %v5701, 4
      %v5704 = vrot.slane %v5585, 7
      %v5705 = vsel %vm2963, %v5703, %v5704
      %v5706 = vrot.slane %v5586, 7
      %v5707 = vrot.slane %v5706, 4
      %v5708 = vrot.slane %v5587, 7
      %v5709 = vsel %vm2963, %v5707, %v5708
      %v5710 = vrot.slane %v5708, 4
      %v5711 = vrot.slane %v5588, 7
      %v5712 = vsel %vm2963, %v5710, %v5711
      %v5713 = vrot.slane %v5589, 7
      %v5714 = vrot.slane %v5713, 4
      %v5715 = vrot.slane %v5590, 7
      %v5716 = vsel %vm2963, %v5714, %v5715
      %v5717 = vrot.slane %v5715, 4
      %v5718 = vrot.slane %v5591, 7
      %v5719 = vsel %vm2963, %v5717, %v5718
      %v5720 = vrot.slane %v5592, 7
      %v5721 = vrot.slane %v5720, 4
      %v5722 = vrot.slane %v5593, 7
      %v5723 = vsel %vm2963, %v5721, %v5722
      %v5724 = vrot.slane %v5722, 4
      %v5725 = vrot.slane %v5594, 7
      %v5726 = vsel %vm2963, %v5724, %v5725
      %v5727 = vrot.slane %v5595, 7
      %v5728 = vrot.slane %v5727, 4
      %v5729 = vrot.slane %v5596, 7
      %v5730 = vsel %vm2963, %v5728, %v5729
      %v5731 = vrot.slane %v5729, 4
      %v5732 = vrot.slane %v5597, 7
      %v5733 = vsel %vm2963, %v5731, %v5732
      %v5734 = vrot.slane %v5598, 7
      %v5735 = vrot.slane %v5734, 4
      %v5736 = vrot.slane %v5599, 7
      %v5737 = vsel %vm2963, %v5735, %v5736
      %v5738 = vrot.slane %v5736, 4
      %v5739 = vrot.slane %v5600, 7
      %v5740 = vsel %vm2963, %v5738, %v5739
      %v5741 = vrot.slane %v5601, 7
      %v5742 = vrot.slane %v5741, 4
      %v5743 = vrot.slane %v5602, 7
      %v5744 = vsel %vm2963, %v5742, %v5743
      %v5745 = vrot.slane %v5743, 4
      %v5746 = vrot.slane %v5603, 7
      %v5747 = vsel %vm2963, %v5745, %v5746
      %v5748 = vrot.slane %v5604, 7
      %v5749 = vrot.slane %v5748, 4
      %v5750 = vrot.slane %v5605, 7
      %v5751 = vsel %vm2963, %v5749, %v5750
      %v5752 = vrot.slane %v5750, 4
      %v5753 = vrot.slane %v5606, 7
      %v5754 = vsel %vm2963, %v5752, %v5753
      %v5755 = vrot.slane %v5607, 7
      %v5756 = vrot.slane %v5755, 4
      %v5757 = vrot.slane %v5608, 7
      %v5758 = vsel %vm2963, %v5756, %v5757
      %v5759 = vrot.slane %v5757, 4
      %v5760 = vrot.slane %v5609, 7
      %v5761 = vsel %vm2963, %v5759, %v5760
      %v5762 = vrot.slane %v5610, 7
      %v5763 = vrot.slane %v5762, 4
      %v5764 = vrot.slane %v5611, 7
      %v5765 = vsel %vm2963, %v5763, %v5764
      %v5766 = vrot.slane %v5764, 4
      %v5767 = vrot.slane %v5612, 7
      %v5768 = vsel %vm2963, %v5766, %v5767
      %v5769 = vrot.slane %v5613, 7
      %v5770 = vrot.slane %v5769, 4
      %v5771 = vrot.slane %v5614, 7
      %v5772 = vsel %vm2963, %v5770, %v5771
      %v5773 = vrot.slane %v5771, 4
      %v5774 = vrot.slane %v5615, 7
      %v5775 = vsel %vm2963, %v5773, %v5774
      %5776 = vrot.lane.b32.xlu0 %v5667, 68
      %v5777 = vpop.permute.xlu0 %5776
      %5778 = vrot.lane.b32.xlu0 %v5670, 68
      %v5779 = vpop.permute.xlu0 %5778
      %5780 = vrot.lane.b32.xlu0 %v5674, 68
      %v5781 = vpop.permute.xlu0 %5780
      %5782 = vrot.lane.b32.xlu0 %v5677, 68
      %v5783 = vpop.permute.xlu0 %5782
      %5784 = vrot.lane.b32.xlu0 %v5681, 68
      %v5785 = vpop.permute.xlu0 %5784
      %5786 = vrot.lane.b32.xlu0 %v5684, 68
      %v5787 = vpop.permute.xlu0 %5786
      %5788 = vrot.lane.b32.xlu0 %v5688, 68
      %v5789 = vpop.permute.xlu0 %5788
      %5790 = vrot.lane.b32.xlu0 %v5691, 68
      %v5791 = vpop.permute.xlu0 %5790
      %5792 = vrot.lane.b32.xlu0 %v5695, 68
      %v5793 = vpop.permute.xlu0 %5792
      %5794 = vrot.lane.b32.xlu0 %v5698, 68
      %v5795 = vpop.permute.xlu0 %5794
      %5796 = vrot.lane.b32.xlu0 %v5702, 68
      %v5797 = vpop.permute.xlu0 %5796
      %5798 = vrot.lane.b32.xlu0 %v5705, 68
      %v5799 = vpop.permute.xlu0 %5798
      %5800 = vrot.lane.b32.xlu0 %v5709, 68
      %v5801 = vpop.permute.xlu0 %5800
      %5802 = vrot.lane.b32.xlu0 %v5712, 68
      %v5803 = vpop.permute.xlu0 %5802
      %5804 = vrot.lane.b32.xlu0 %v5716, 68
      %v5805 = vpop.permute.xlu0 %5804
      %5806 = vrot.lane.b32.xlu0 %v5719, 68
      %v5807 = vpop.permute.xlu0 %5806
      %5808 = vrot.lane.b32.xlu0 %v5723, 68
      %v5809 = vpop.permute.xlu0 %5808
      %5810 = vrot.lane.b32.xlu0 %v5726, 68
      %v5811 = vpop.permute.xlu0 %5810
      %5812 = vrot.lane.b32.xlu0 %v5730, 68
      %v5813 = vpop.permute.xlu0 %5812
      %5814 = vrot.lane.b32.xlu0 %v5733, 68
      %v5815 = vpop.permute.xlu0 %5814
      %5816 = vrot.lane.b32.xlu0 %v5737, 68
      %v5817 = vpop.permute.xlu0 %5816
      %5818 = vrot.lane.b32.xlu0 %v5740, 68
      %v5819 = vpop.permute.xlu0 %5818
      %5820 = vrot.lane.b32.xlu0 %v5744, 68
      %v5821 = vpop.permute.xlu0 %5820
      %5822 = vrot.lane.b32.xlu0 %v5747, 68
      %v5823 = vpop.permute.xlu0 %5822
      %5824 = vrot.lane.b32.xlu0 %v5751, 68
      %v5825 = vpop.permute.xlu0 %5824
      %5826 = vrot.lane.b32.xlu0 %v5754, 68
      %v5827 = vpop.permute.xlu0 %5826
      %5828 = vrot.lane.b32.xlu0 %v5758, 68
      %v5829 = vpop.permute.xlu0 %5828
      %5830 = vrot.lane.b32.xlu0 %v5761, 68
      %v5831 = vpop.permute.xlu0 %5830
      %5832 = vrot.lane.b32.xlu0 %v5765, 68
      %v5833 = vpop.permute.xlu0 %5832
      %5834 = vrot.lane.b32.xlu0 %v5768, 68
      %v5835 = vpop.permute.xlu0 %5834
      %5836 = vrot.lane.b32.xlu0 %v5772, 68
      %v5837 = vpop.permute.xlu0 %5836
      %5838 = vrot.lane.b32.xlu0 %v5775, 68
      %v5839 = vpop.permute.xlu0 %5838
      %vm5872 = vcmask 585248
      %5873 = vst.msk [vmem:[#allocation2] sm:$0xf] %vm5872, %v5777
      %5874 = vst.msk [vmem:[#allocation2 + $0x4] sm:$0xf] %vm5872, %v5779
      %5875 = vst.msk [vmem:[#allocation2 + $0x8] sm:$0xf] %vm5872, %v5781
      %5876 = vst.msk [vmem:[#allocation2 + $0xc] sm:$0xf] %vm5872, %v5783
      %5877 = vst.msk [vmem:[#allocation2 + $0x10] sm:$0xf] %vm5872, %v5785
      %5878 = vst.msk [vmem:[#allocation2 + $0x14] sm:$0xf] %vm5872, %v5787
      %5879 = vst.msk [vmem:[#allocation2 + $0x18] sm:$0xf] %vm5872, %v5789
      %5880 = vst.msk [vmem:[#allocation2 + $0x1c] sm:$0xf] %vm5872, %v5791
      %5881 = vst.msk [vmem:[#allocation2 + $0x20] sm:$0xf] %vm5872, %v5793
      %5882 = vst.msk [vmem:[#allocation2 + $0x24] sm:$0xf] %vm5872, %v5795
      %5883 = vst.msk [vmem:[#allocation2 + $0x28] sm:$0xf] %vm5872, %v5797
      %5884 = vst.msk [vmem:[#allocation2 + $0x2c] sm:$0xf] %vm5872, %v5799
      %5885 = vst.msk [vmem:[#allocation2 + $0x30] sm:$0xf] %vm5872, %v5801
      %5886 = vst.msk [vmem:[#allocation2 + $0x34] sm:$0xf] %vm5872, %v5803
      %5887 = vst.msk [vmem:[#allocation2 + $0x38] sm:$0xf] %vm5872, %v5805
      %5888 = vst.msk [vmem:[#allocation2 + $0x3c] sm:$0xf] %vm5872, %v5807
      %5889 = vst.msk [vmem:[#allocation2 + $0x40] sm:$0xf] %vm5872, %v5809
      %5890 = vst.msk [vmem:[#allocation2 + $0x44] sm:$0xf] %vm5872, %v5811
      %5891 = vst.msk [vmem:[#allocation2 + $0x48] sm:$0xf] %vm5872, %v5813
      %5892 = vst.msk [vmem:[#allocation2 + $0x4c] sm:$0xf] %vm5872, %v5815
      %5893 = vst.msk [vmem:[#allocation2 + $0x50] sm:$0xf] %vm5872, %v5817
      %5894 = vst.msk [vmem:[#allocation2 + $0x54] sm:$0xf] %vm5872, %v5819
      %5895 = vst.msk [vmem:[#allocation2 + $0x58] sm:$0xf] %vm5872, %v5821
      %5896 = vst.msk [vmem:[#allocation2 + $0x5c] sm:$0xf] %vm5872, %v5823
      %5897 = vst.msk [vmem:[#allocation2 + $0x60] sm:$0xf] %vm5872, %v5825
      %5898 = vst.msk [vmem:[#allocation2 + $0x64] sm:$0xf] %vm5872, %v5827
      %5899 = vst.msk [vmem:[#allocation2 + $0x68] sm:$0xf] %vm5872, %v5829
      %5900 = vst.msk [vmem:[#allocation2 + $0x6c] sm:$0xf] %vm5872, %v5831
      %5901 = vst.msk [vmem:[#allocation2 + $0x70] sm:$0xf] %vm5872, %v5833
      %5902 = vst.msk [vmem:[#allocation2 + $0x74] sm:$0xf] %vm5872, %v5835
      %5903 = vst.msk [vmem:[#allocation2 + $0x78] sm:$0xf] %vm5872, %v5837
      %5904 = vst.msk [vmem:[#allocation2 + $0x7c] sm:$0xf] %vm5872, %v5839
      %s5905 = smul.u32 %s305, 7
      %s5906 = smul.addr %s5905, 4
      %s5907 = scalar_lea.vmem %s285, %s5906
      %v5908 = vld [vmem:[%s5907] sm:$0xf]
      %v5909 = vld [vmem:[%s5907 + $0x4] sm:$0xf]
      %v5910 = vld [vmem:[%s5907 + $0x1c] sm:$0xf]
      %v5911 = vld [vmem:[%s5907 + $0x20] sm:$0xf]
      %v5912 = vld [vmem:[%s5907 + $0x38] sm:$0xf]
      %v5913 = vld [vmem:[%s5907 + $0x3c] sm:$0xf]
      %v5914 = vld [vmem:[%s5907 + $0x54] sm:$0xf]
      %v5915 = vld [vmem:[%s5907 + $0x58] sm:$0xf]
      %v5916 = vld [vmem:[%s5907 + $0x70] sm:$0xf]
      %v5917 = vld [vmem:[%s5907 + $0x74] sm:$0xf]
      %v5918 = vld [vmem:[%s5907 + $0x8c] sm:$0xf]
      %v5919 = vld [vmem:[%s5907 + $0x90] sm:$0xf]
      %v5920 = vld [vmem:[%s5907 + $0xa8] sm:$0xf]
      %v5921 = vld [vmem:[%s5907 + $0xac] sm:$0xf]
      %v5922 = vld [vmem:[%s5907 + $0xc4] sm:$0xf]
      %v5923 = vld [vmem:[%s5907 + $0xc8] sm:$0xf]
      %v5924 = vld [vmem:[%s5907 + $0xe0] sm:$0xf]
      %v5925 = vld [vmem:[%s5907 + $0xe4] sm:$0xf]
      %v5926 = vld [vmem:[%s5907 + $0xfc] sm:$0xf]
      %v5927 = vld [vmem:[%s5907 + $0x100] sm:$0xf]
      %v5928 = vld [vmem:[%s5907 + $0x118] sm:$0xf]
      %v5929 = vld [vmem:[%s5907 + $0x11c] sm:$0xf]
      %v5930 = vld [vmem:[%s5907 + $0x134] sm:$0xf]
      %v5931 = vld [vmem:[%s5907 + $0x138] sm:$0xf]
      %v5932 = vld [vmem:[%s5907 + $0x150] sm:$0xf]
      %v5933 = vld [vmem:[%s5907 + $0x154] sm:$0xf]
      %v5934 = vld [vmem:[%s5907 + $0x16c] sm:$0xf]
      %v5935 = vld [vmem:[%s5907 + $0x170] sm:$0xf]
      %v5936 = vld [vmem:[%s5907 + $0x188] sm:$0xf]
      %v5937 = vld [vmem:[%s5907 + $0x18c] sm:$0xf]
      %v5938 = vld [vmem:[%s5907 + $0x1a4] sm:$0xf]
      %v5939 = vld [vmem:[%s5907 + $0x1a8] sm:$0xf]
      %5972 = vrot.lane.b32.xlu0 %v5908, 72
      %v5973 = vpop.permute.xlu0 %5972
      %5974 = vrot.lane.b32.xlu0 %v5909, 72
      %v5975 = vpop.permute.xlu0 %5974
      %5976 = vrot.lane.b32.xlu0 %v5910, 72
      %v5977 = vpop.permute.xlu0 %5976
      %5978 = vrot.lane.b32.xlu0 %v5911, 72
      %v5979 = vpop.permute.xlu0 %5978
      %5980 = vrot.lane.b32.xlu0 %v5912, 72
      %v5981 = vpop.permute.xlu0 %5980
      %5982 = vrot.lane.b32.xlu0 %v5913, 72
      %v5983 = vpop.permute.xlu0 %5982
      %5984 = vrot.lane.b32.xlu0 %v5914, 72
      %v5985 = vpop.permute.xlu0 %5984
      %5986 = vrot.lane.b32.xlu0 %v5915, 72
      %v5987 = vpop.permute.xlu0 %5986
      %5988 = vrot.lane.b32.xlu0 %v5916, 72
      %v5989 = vpop.permute.xlu0 %5988
      %5990 = vrot.lane.b32.xlu0 %v5917, 72
      %v5991 = vpop.permute.xlu0 %5990
      %5992 = vrot.lane.b32.xlu0 %v5918, 72
      %v5993 = vpop.permute.xlu0 %5992
      %5994 = vrot.lane.b32.xlu0 %v5919, 72
      %v5995 = vpop.permute.xlu0 %5994
      %5996 = vrot.lane.b32.xlu0 %v5920, 72
      %v5997 = vpop.permute.xlu0 %5996
      %5998 = vrot.lane.b32.xlu0 %v5921, 72
      %v5999 = vpop.permute.xlu0 %5998
      %6000 = vrot.lane.b32.xlu0 %v5922, 72
      %v6001 = vpop.permute.xlu0 %6000
      %6002 = vrot.lane.b32.xlu0 %v5923, 72
      %v6003 = vpop.permute.xlu0 %6002
      %6004 = vrot.lane.b32.xlu0 %v5924, 72
      %v6005 = vpop.permute.xlu0 %6004
      %6006 = vrot.lane.b32.xlu0 %v5925, 72
      %v6007 = vpop.permute.xlu0 %6006
      %6008 = vrot.lane.b32.xlu0 %v5926, 72
      %v6009 = vpop.permute.xlu0 %6008
      %6010 = vrot.lane.b32.xlu0 %v5927, 72
      %v6011 = vpop.permute.xlu0 %6010
      %6012 = vrot.lane.b32.xlu0 %v5928, 72
      %v6013 = vpop.permute.xlu0 %6012
      %6014 = vrot.lane.b32.xlu0 %v5929, 72
      %v6015 = vpop.permute.xlu0 %6014
      %6016 = vrot.lane.b32.xlu0 %v5930, 72
      %v6017 = vpop.permute.xlu0 %6016
      %6018 = vrot.lane.b32.xlu0 %v5931, 72
      %v6019 = vpop.permute.xlu0 %6018
      %6020 = vrot.lane.b32.xlu0 %v5932, 72
      %v6021 = vpop.permute.xlu0 %6020
      %6022 = vrot.lane.b32.xlu0 %v5933, 72
      %v6023 = vpop.permute.xlu0 %6022
      %6024 = vrot.lane.b32.xlu0 %v5934, 72
      %v6025 = vpop.permute.xlu0 %6024
      %6026 = vrot.lane.b32.xlu0 %v5935, 72
      %v6027 = vpop.permute.xlu0 %6026
      %6028 = vrot.lane.b32.xlu0 %v5936, 72
      %v6029 = vpop.permute.xlu0 %6028
      %6030 = vrot.lane.b32.xlu0 %v5937, 72
      %v6031 = vpop.permute.xlu0 %6030
      %6032 = vrot.lane.b32.xlu0 %v5938, 72
      %v6033 = vpop.permute.xlu0 %6032
      %6034 = vrot.lane.b32.xlu0 %v5939, 72
      %v6035 = vpop.permute.xlu0 %6034
      %vm6068 = vcmask 618048
      %6069 = vst.msk [vmem:[#allocation2] sm:$0xf] %vm6068, %v5973
      %6070 = vst.msk [vmem:[#allocation2 + $0x4] sm:$0xf] %vm6068, %v5975
      %6071 = vst.msk [vmem:[#allocation2 + $0x8] sm:$0xf] %vm6068, %v5977
      %6072 = vst.msk [vmem:[#allocation2 + $0xc] sm:$0xf] %vm6068, %v5979
      %6073 = vst.msk [vmem:[#allocation2 + $0x10] sm:$0xf] %vm6068, %v5981
      %6074 = vst.msk [vmem:[#allocation2 + $0x14] sm:$0xf] %vm6068, %v5983
      %6075 = vst.msk [vmem:[#allocation2 + $0x18] sm:$0xf] %vm6068, %v5985
      %6076 = vst.msk [vmem:[#allocation2 + $0x1c] sm:$0xf] %vm6068, %v5987
      %6077 = vst.msk [vmem:[#allocation2 + $0x20] sm:$0xf] %vm6068, %v5989
      %6078 = vst.msk [vmem:[#allocation2 + $0x24] sm:$0xf] %vm6068, %v5991
      %6079 = vst.msk [vmem:[#allocation2 + $0x28] sm:$0xf] %vm6068, %v5993
      %6080 = vst.msk [vmem:[#allocation2 + $0x2c] sm:$0xf] %vm6068, %v5995
      %6081 = vst.msk [vmem:[#allocation2 + $0x30] sm:$0xf] %vm6068, %v5997
      %6082 = vst.msk [vmem:[#allocation2 + $0x34] sm:$0xf] %vm6068, %v5999
      %6083 = vst.msk [vmem:[#allocation2 + $0x38] sm:$0xf] %vm6068, %v6001
      %6084 = vst.msk [vmem:[#allocation2 + $0x3c] sm:$0xf] %vm6068, %v6003
      %6085 = vst.msk [vmem:[#allocation2 + $0x40] sm:$0xf] %vm6068, %v6005
      %6086 = vst.msk [vmem:[#allocation2 + $0x44] sm:$0xf] %vm6068, %v6007
      %6087 = vst.msk [vmem:[#allocation2 + $0x48] sm:$0xf] %vm6068, %v6009
      %6088 = vst.msk [vmem:[#allocation2 + $0x4c] sm:$0xf] %vm6068, %v6011
      %6089 = vst.msk [vmem:[#allocation2 + $0x50] sm:$0xf] %vm6068, %v6013
      %6090 = vst.msk [vmem:[#allocation2 + $0x54] sm:$0xf] %vm6068, %v6015
      %6091 = vst.msk [vmem:[#allocation2 + $0x58] sm:$0xf] %vm6068, %v6017
      %6092 = vst.msk [vmem:[#allocation2 + $0x5c] sm:$0xf] %vm6068, %v6019
      %6093 = vst.msk [vmem:[#allocation2 + $0x60] sm:$0xf] %vm6068, %v6021
      %6094 = vst.msk [vmem:[#allocation2 + $0x64] sm:$0xf] %vm6068, %v6023
      %6095 = vst.msk [vmem:[#allocation2 + $0x68] sm:$0xf] %vm6068, %v6025
      %6096 = vst.msk [vmem:[#allocation2 + $0x6c] sm:$0xf] %vm6068, %v6027
      %6097 = vst.msk [vmem:[#allocation2 + $0x70] sm:$0xf] %vm6068, %v6029
      %6098 = vst.msk [vmem:[#allocation2 + $0x74] sm:$0xf] %vm6068, %v6031
      %6099 = vst.msk [vmem:[#allocation2 + $0x78] sm:$0xf] %vm6068, %v6033
      %6100 = vst.msk [vmem:[#allocation2 + $0x7c] sm:$0xf] %vm6068, %v6035
      %v6101 = vld [vmem:[%s5907 + $0x8] sm:$0xe]
      %v6102 = vld [vmem:[%s5907 + $0xc] sm:$0xf]
      %v6103 = vld [vmem:[%s5907 + $0x10] sm:$0x1]
      %v6104 = vld [vmem:[%s5907 + $0x24] sm:$0xe]
      %v6105 = vld [vmem:[%s5907 + $0x28] sm:$0xf]
      %v6106 = vld [vmem:[%s5907 + $0x2c] sm:$0x1]
      %v6107 = vld [vmem:[%s5907 + $0x40] sm:$0xe]
      %v6108 = vld [vmem:[%s5907 + $0x44] sm:$0xf]
      %v6109 = vld [vmem:[%s5907 + $0x48] sm:$0x1]
      %v6110 = vld [vmem:[%s5907 + $0x5c] sm:$0xe]
      %v6111 = vld [vmem:[%s5907 + $0x60] sm:$0xf]
      %v6112 = vld [vmem:[%s5907 + $0x64] sm:$0x1]
      %v6113 = vld [vmem:[%s5907 + $0x78] sm:$0xe]
      %v6114 = vld [vmem:[%s5907 + $0x7c] sm:$0xf]
      %v6115 = vld [vmem:[%s5907 + $0x80] sm:$0x1]
      %v6116 = vld [vmem:[%s5907 + $0x94] sm:$0xe]
      %v6117 = vld [vmem:[%s5907 + $0x98] sm:$0xf]
      %v6118 = vld [vmem:[%s5907 + $0x9c] sm:$0x1]
      %v6119 = vld [vmem:[%s5907 + $0xb0] sm:$0xe]
      %v6120 = vld [vmem:[%s5907 + $0xb4] sm:$0xf]
      %v6121 = vld [vmem:[%s5907 + $0xb8] sm:$0x1]
      %v6122 = vld [vmem:[%s5907 + $0xcc] sm:$0xe]
      %v6123 = vld [vmem:[%s5907 + $0xd0] sm:$0xf]
      %v6124 = vld [vmem:[%s5907 + $0xd4] sm:$0x1]
      %v6125 = vld [vmem:[%s5907 + $0xe8] sm:$0xe]
      %v6126 = vld [vmem:[%s5907 + $0xec] sm:$0xf]
      %v6127 = vld [vmem:[%s5907 + $0xf0] sm:$0x1]
      %v6128 = vld [vmem:[%s5907 + $0x104] sm:$0xe]
      %v6129 = vld [vmem:[%s5907 + $0x108] sm:$0xf]
      %v6130 = vld [vmem:[%s5907 + $0x10c] sm:$0x1]
      %v6131 = vld [vmem:[%s5907 + $0x120] sm:$0xe]
      %v6132 = vld [vmem:[%s5907 + $0x124] sm:$0xf]
      %v6133 = vld [vmem:[%s5907 + $0x128] sm:$0x1]
      %v6134 = vld [vmem:[%s5907 + $0x13c] sm:$0xe]
      %v6135 = vld [vmem:[%s5907 + $0x140] sm:$0xf]
      %v6136 = vld [vmem:[%s5907 + $0x144] sm:$0x1]
      %v6137 = vld [vmem:[%s5907 + $0x158] sm:$0xe]
      %v6138 = vld [vmem:[%s5907 + $0x15c] sm:$0xf]
      %v6139 = vld [vmem:[%s5907 + $0x160] sm:$0x1]
      %v6140 = vld [vmem:[%s5907 + $0x174] sm:$0xe]
      %v6141 = vld [vmem:[%s5907 + $0x178] sm:$0xf]
      %v6142 = vld [vmem:[%s5907 + $0x17c] sm:$0x1]
      %v6143 = vld [vmem:[%s5907 + $0x190] sm:$0xe]
      %v6144 = vld [vmem:[%s5907 + $0x194] sm:$0xf]
      %v6145 = vld [vmem:[%s5907 + $0x198] sm:$0x1]
      %v6146 = vld [vmem:[%s5907 + $0x1ac] sm:$0xe]
      %v6147 = vld [vmem:[%s5907 + $0x1b0] sm:$0xf]
      %v6148 = vld [vmem:[%s5907 + $0x1b4] sm:$0x1]
      %v6197 = vrot.slane %v6101, 5
      %v6198 = vrot.slane %v6197, 4
      %v6199 = vrot.slane %v6102, 5
      %v6200 = vsel %vm684, %v6198, %v6199
      %v6201 = vrot.slane %v6199, 4
      %v6202 = vrot.slane %v6103, 5
      %v6203 = vsel %vm684, %v6201, %v6202
      %v6204 = vrot.slane %v6104, 5
      %v6205 = vrot.slane %v6204, 4
      %v6206 = vrot.slane %v6105, 5
      %v6207 = vsel %vm684, %v6205, %v6206
      %v6208 = vrot.slane %v6206, 4
      %v6209 = vrot.slane %v6106, 5
      %v6210 = vsel %vm684, %v6208, %v6209
      %v6211 = vrot.slane %v6107, 5
      %v6212 = vrot.slane %v6211, 4
      %v6213 = vrot.slane %v6108, 5
      %v6214 = vsel %vm684, %v6212, %v6213
      %v6215 = vrot.slane %v6213, 4
      %v6216 = vrot.slane %v6109, 5
      %v6217 = vsel %vm684, %v6215, %v6216
      %v6218 = vrot.slane %v6110, 5
      %v6219 = vrot.slane %v6218, 4
      %v6220 = vrot.slane %v6111, 5
      %v6221 = vsel %vm684, %v6219, %v6220
      %v6222 = vrot.slane %v6220, 4
      %v6223 = vrot.slane %v6112, 5
      %v6224 = vsel %vm684, %v6222, %v6223
      %v6225 = vrot.slane %v6113, 5
      %v6226 = vrot.slane %v6225, 4
      %v6227 = vrot.slane %v6114, 5
      %v6228 = vsel %vm684, %v6226, %v6227
      %v6229 = vrot.slane %v6227, 4
      %v6230 = vrot.slane %v6115, 5
      %v6231 = vsel %vm684, %v6229, %v6230
      %v6232 = vrot.slane %v6116, 5
      %v6233 = vrot.slane %v6232, 4
      %v6234 = vrot.slane %v6117, 5
      %v6235 = vsel %vm684, %v6233, %v6234
      %v6236 = vrot.slane %v6234, 4
      %v6237 = vrot.slane %v6118, 5
      %v6238 = vsel %vm684, %v6236, %v6237
      %v6239 = vrot.slane %v6119, 5
      %v6240 = vrot.slane %v6239, 4
      %v6241 = vrot.slane %v6120, 5
      %v6242 = vsel %vm684, %v6240, %v6241
      %v6243 = vrot.slane %v6241, 4
      %v6244 = vrot.slane %v6121, 5
      %v6245 = vsel %vm684, %v6243, %v6244
      %v6246 = vrot.slane %v6122, 5
      %v6247 = vrot.slane %v6246, 4
      %v6248 = vrot.slane %v6123, 5
      %v6249 = vsel %vm684, %v6247, %v6248
      %v6250 = vrot.slane %v6248, 4
      %v6251 = vrot.slane %v6124, 5
      %v6252 = vsel %vm684, %v6250, %v6251
      %v6253 = vrot.slane %v6125, 5
      %v6254 = vrot.slane %v6253, 4
      %v6255 = vrot.slane %v6126, 5
      %v6256 = vsel %vm684, %v6254, %v6255
      %v6257 = vrot.slane %v6255, 4
      %v6258 = vrot.slane %v6127, 5
      %v6259 = vsel %vm684, %v6257, %v6258
      %v6260 = vrot.slane %v6128, 5
      %v6261 = vrot.slane %v6260, 4
      %v6262 = vrot.slane %v6129, 5
      %v6263 = vsel %vm684, %v6261, %v6262
      %v6264 = vrot.slane %v6262, 4
      %v6265 = vrot.slane %v6130, 5
      %v6266 = vsel %vm684, %v6264, %v6265
      %v6267 = vrot.slane %v6131, 5
      %v6268 = vrot.slane %v6267, 4
      %v6269 = vrot.slane %v6132, 5
      %v6270 = vsel %vm684, %v6268, %v6269
      %v6271 = vrot.slane %v6269, 4
      %v6272 = vrot.slane %v6133, 5
      %v6273 = vsel %vm684, %v6271, %v6272
      %v6274 = vrot.slane %v6134, 5
      %v6275 = vrot.slane %v6274, 4
      %v6276 = vrot.slane %v6135, 5
      %v6277 = vsel %vm684, %v6275, %v6276
      %v6278 = vrot.slane %v6276, 4
      %v6279 = vrot.slane %v6136, 5
      %v6280 = vsel %vm684, %v6278, %v6279
      %v6281 = vrot.slane %v6137, 5
      %v6282 = vrot.slane %v6281, 4
      %v6283 = vrot.slane %v6138, 5
      %v6284 = vsel %vm684, %v6282, %v6283
      %v6285 = vrot.slane %v6283, 4
      %v6286 = vrot.slane %v6139, 5
      %v6287 = vsel %vm684, %v6285, %v6286
      %v6288 = vrot.slane %v6140, 5
      %v6289 = vrot.slane %v6288, 4
      %v6290 = vrot.slane %v6141, 5
      %v6291 = vsel %vm684, %v6289, %v6290
      %v6292 = vrot.slane %v6290, 4
      %v6293 = vrot.slane %v6142, 5
      %v6294 = vsel %vm684, %v6292, %v6293
      %v6295 = vrot.slane %v6143, 5
      %v6296 = vrot.slane %v6295, 4
      %v6297 = vrot.slane %v6144, 5
      %v6298 = vsel %vm684, %v6296, %v6297
      %v6299 = vrot.slane %v6297, 4
      %v6300 = vrot.slane %v6145, 5
      %v6301 = vsel %vm684, %v6299, %v6300
      %v6302 = vrot.slane %v6146, 5
      %v6303 = vrot.slane %v6302, 4
      %v6304 = vrot.slane %v6147, 5
      %v6305 = vsel %vm684, %v6303, %v6304
      %v6306 = vrot.slane %v6304, 4
      %v6307 = vrot.slane %v6148, 5
      %v6308 = vsel %vm684, %v6306, %v6307
      %6309 = vrot.lane.b32.xlu0 %v6200, 76
      %v6310 = vpop.permute.xlu0 %6309
      %6311 = vrot.lane.b32.xlu0 %v6203, 76
      %v6312 = vpop.permute.xlu0 %6311
      %6313 = vrot.lane.b32.xlu0 %v6207, 76
      %v6314 = vpop.permute.xlu0 %6313
      %6315 = vrot.lane.b32.xlu0 %v6210, 76
      %v6316 = vpop.permute.xlu0 %6315
      %6317 = vrot.lane.b32.xlu0 %v6214, 76
      %v6318 = vpop.permute.xlu0 %6317
      %6319 = vrot.lane.b32.xlu0 %v6217, 76
      %v6320 = vpop.permute.xlu0 %6319
      %6321 = vrot.lane.b32.xlu0 %v6221, 76
      %v6322 = vpop.permute.xlu0 %6321
      %6323 = vrot.lane.b32.xlu0 %v6224, 76
      %v6324 = vpop.permute.xlu0 %6323
      %6325 = vrot.lane.b32.xlu0 %v6228, 76
      %v6326 = vpop.permute.xlu0 %6325
      %6327 = vrot.lane.b32.xlu0 %v6231, 76
      %v6328 = vpop.permute.xlu0 %6327
      %6329 = vrot.lane.b32.xlu0 %v6235, 76
      %v6330 = vpop.permute.xlu0 %6329
      %6331 = vrot.lane.b32.xlu0 %v6238, 76
      %v6332 = vpop.permute.xlu0 %6331
      %6333 = vrot.lane.b32.xlu0 %v6242, 76
      %v6334 = vpop.permute.xlu0 %6333
      %6335 = vrot.lane.b32.xlu0 %v6245, 76
      %v6336 = vpop.permute.xlu0 %6335
      %6337 = vrot.lane.b32.xlu0 %v6249, 76
      %v6338 = vpop.permute.xlu0 %6337
      %6339 = vrot.lane.b32.xlu0 %v6252, 76
      %v6340 = vpop.permute.xlu0 %6339
      %6341 = vrot.lane.b32.xlu0 %v6256, 76
      %v6342 = vpop.permute.xlu0 %6341
      %6343 = vrot.lane.b32.xlu0 %v6259, 76
      %v6344 = vpop.permute.xlu0 %6343
      %6345 = vrot.lane.b32.xlu0 %v6263, 76
      %v6346 = vpop.permute.xlu0 %6345
      %6347 = vrot.lane.b32.xlu0 %v6266, 76
      %v6348 = vpop.permute.xlu0 %6347
      %6349 = vrot.lane.b32.xlu0 %v6270, 76
      %v6350 = vpop.permute.xlu0 %6349
      %6351 = vrot.lane.b32.xlu0 %v6273, 76
      %v6352 = vpop.permute.xlu0 %6351
      %6353 = vrot.lane.b32.xlu0 %v6277, 76
      %v6354 = vpop.permute.xlu0 %6353
      %6355 = vrot.lane.b32.xlu0 %v6280, 76
      %v6356 = vpop.permute.xlu0 %6355
      %6357 = vrot.lane.b32.xlu0 %v6284, 76
      %v6358 = vpop.permute.xlu0 %6357
      %6359 = vrot.lane.b32.xlu0 %v6287, 76
      %v6360 = vpop.permute.xlu0 %6359
      %6361 = vrot.lane.b32.xlu0 %v6291, 76
      %v6362 = vpop.permute.xlu0 %6361
      %6363 = vrot.lane.b32.xlu0 %v6294, 76
      %v6364 = vpop.permute.xlu0 %6363
      %6365 = vrot.lane.b32.xlu0 %v6298, 76
      %v6366 = vpop.permute.xlu0 %6365
      %6367 = vrot.lane.b32.xlu0 %v6301, 76
      %v6368 = vpop.permute.xlu0 %6367
      %6369 = vrot.lane.b32.xlu0 %v6305, 76
      %v6370 = vpop.permute.xlu0 %6369
      %6371 = vrot.lane.b32.xlu0 %v6308, 76
      %v6372 = vpop.permute.xlu0 %6371
      %vm6405 = vcmask 650848
      %6406 = vst.msk [vmem:[#allocation2] sm:$0xf] %vm6405, %v6310
      %6407 = vst.msk [vmem:[#allocation2 + $0x4] sm:$0xf] %vm6405, %v6312
      %6408 = vst.msk [vmem:[#allocation2 + $0x8] sm:$0xf] %vm6405, %v6314
      %6409 = vst.msk [vmem:[#allocation2 + $0xc] sm:$0xf] %vm6405, %v6316
      %6410 = vst.msk [vmem:[#allocation2 + $0x10] sm:$0xf] %vm6405, %v6318
      %6411 = vst.msk [vmem:[#allocation2 + $0x14] sm:$0xf] %vm6405, %v6320
      %6412 = vst.msk [vmem:[#allocation2 + $0x18] sm:$0xf] %vm6405, %v6322
      %6413 = vst.msk [vmem:[#allocation2 + $0x1c] sm:$0xf] %vm6405, %v6324
      %6414 = vst.msk [vmem:[#allocation2 + $0x20] sm:$0xf] %vm6405, %v6326
      %6415 = vst.msk [vmem:[#allocation2 + $0x24] sm:$0xf] %vm6405, %v6328
      %6416 = vst.msk [vmem:[#allocation2 + $0x28] sm:$0xf] %vm6405, %v6330
      %6417 = vst.msk [vmem:[#allocation2 + $0x2c] sm:$0xf] %vm6405, %v6332
      %6418 = vst.msk [vmem:[#allocation2 + $0x30] sm:$0xf] %vm6405, %v6334
      %6419 = vst.msk [vmem:[#allocation2 + $0x34] sm:$0xf] %vm6405, %v6336
      %6420 = vst.msk [vmem:[#allocation2 + $0x38] sm:$0xf] %vm6405, %v6338
      %6421 = vst.msk [vmem:[#allocation2 + $0x3c] sm:$0xf] %vm6405, %v6340
      %6422 = vst.msk [vmem:[#allocation2 + $0x40] sm:$0xf] %vm6405, %v6342
      %6423 = vst.msk [vmem:[#allocation2 + $0x44] sm:$0xf] %vm6405, %v6344
      %6424 = vst.msk [vmem:[#allocation2 + $0x48] sm:$0xf] %vm6405, %v6346
      %6425 = vst.msk [vmem:[#allocation2 + $0x4c] sm:$0xf] %vm6405, %v6348
      %6426 = vst.msk [vmem:[#allocation2 + $0x50] sm:$0xf] %vm6405, %v6350
      %6427 = vst.msk [vmem:[#allocation2 + $0x54] sm:$0xf] %vm6405, %v6352
      %6428 = vst.msk [vmem:[#allocation2 + $0x58] sm:$0xf] %vm6405, %v6354
      %6429 = vst.msk [vmem:[#allocation2 + $0x5c] sm:$0xf] %vm6405, %v6356
      %6430 = vst.msk [vmem:[#allocation2 + $0x60] sm:$0xf] %vm6405, %v6358
      %6431 = vst.msk [vmem:[#allocation2 + $0x64] sm:$0xf] %vm6405, %v6360
      %6432 = vst.msk [vmem:[#allocation2 + $0x68] sm:$0xf] %vm6405, %v6362
      %6433 = vst.msk [vmem:[#allocation2 + $0x6c] sm:$0xf] %vm6405, %v6364
      %6434 = vst.msk [vmem:[#allocation2 + $0x70] sm:$0xf] %vm6405, %v6366
      %6435 = vst.msk [vmem:[#allocation2 + $0x74] sm:$0xf] %vm6405, %v6368
      %6436 = vst.msk [vmem:[#allocation2 + $0x78] sm:$0xf] %vm6405, %v6370
      %6437 = vst.msk [vmem:[#allocation2 + $0x7c] sm:$0xf] %vm6405, %v6372
      %v6438 = vld [vmem:[%s5907 + $0x10] sm:$0xc]
      %v6439 = vld [vmem:[%s5907 + $0x14] sm:$0xf]
      %v6440 = vld [vmem:[%s5907 + $0x18] sm:$0x3]
      %v6441 = vld [vmem:[%s5907 + $0x2c] sm:$0xc]
      %v6442 = vld [vmem:[%s5907 + $0x30] sm:$0xf]
      %v6443 = vld [vmem:[%s5907 + $0x34] sm:$0x3]
      %v6444 = vld [vmem:[%s5907 + $0x48] sm:$0xc]
      %v6445 = vld [vmem:[%s5907 + $0x4c] sm:$0xf]
      %v6446 = vld [vmem:[%s5907 + $0x50] sm:$0x3]
      %v6447 = vld [vmem:[%s5907 + $0x64] sm:$0xc]
      %v6448 = vld [vmem:[%s5907 + $0x68] sm:$0xf]
      %v6449 = vld [vmem:[%s5907 + $0x6c] sm:$0x3]
      %v6450 = vld [vmem:[%s5907 + $0x80] sm:$0xc]
      %v6451 = vld [vmem:[%s5907 + $0x84] sm:$0xf]
      %v6452 = vld [vmem:[%s5907 + $0x88] sm:$0x3]
      %v6453 = vld [vmem:[%s5907 + $0x9c] sm:$0xc]
      %v6454 = vld [vmem:[%s5907 + $0xa0] sm:$0xf]
      %v6455 = vld [vmem:[%s5907 + $0xa4] sm:$0x3]
      %v6456 = vld [vmem:[%s5907 + $0xb8] sm:$0xc]
      %v6457 = vld [vmem:[%s5907 + $0xbc] sm:$0xf]
      %v6458 = vld [vmem:[%s5907 + $0xc0] sm:$0x3]
      %v6459 = vld [vmem:[%s5907 + $0xd4] sm:$0xc]
      %v6460 = vld [vmem:[%s5907 + $0xd8] sm:$0xf]
      %v6461 = vld [vmem:[%s5907 + $0xdc] sm:$0x3]
      %v6462 = vld [vmem:[%s5907 + $0xf0] sm:$0xc]
      %v6463 = vld [vmem:[%s5907 + $0xf4] sm:$0xf]
      %v6464 = vld [vmem:[%s5907 + $0xf8] sm:$0x3]
      %v6465 = vld [vmem:[%s5907 + $0x10c] sm:$0xc]
      %v6466 = vld [vmem:[%s5907 + $0x110] sm:$0xf]
      %v6467 = vld [vmem:[%s5907 + $0x114] sm:$0x3]
      %v6468 = vld [vmem:[%s5907 + $0x128] sm:$0xc]
      %v6469 = vld [vmem:[%s5907 + $0x12c] sm:$0xf]
      %v6470 = vld [vmem:[%s5907 + $0x130] sm:$0x3]
      %v6471 = vld [vmem:[%s5907 + $0x144] sm:$0xc]
      %v6472 = vld [vmem:[%s5907 + $0x148] sm:$0xf]
      %v6473 = vld [vmem:[%s5907 + $0x14c] sm:$0x3]
      %v6474 = vld [vmem:[%s5907 + $0x160] sm:$0xc]
      %v6475 = vld [vmem:[%s5907 + $0x164] sm:$0xf]
      %v6476 = vld [vmem:[%s5907 + $0x168] sm:$0x3]
      %v6477 = vld [vmem:[%s5907 + $0x17c] sm:$0xc]
      %v6478 = vld [vmem:[%s5907 + $0x180] sm:$0xf]
      %v6479 = vld [vmem:[%s5907 + $0x184] sm:$0x3]
      %v6480 = vld [vmem:[%s5907 + $0x198] sm:$0xc]
      %v6481 = vld [vmem:[%s5907 + $0x19c] sm:$0xf]
      %v6482 = vld [vmem:[%s5907 + $0x1a0] sm:$0x3]
      %v6483 = vld [vmem:[%s5907 + $0x1b4] sm:$0xc]
      %v6484 = vld [vmem:[%s5907 + $0x1b8] sm:$0xf]
      %v6485 = vld [vmem:[%s5907 + $0x1bc] sm:$0x3]
      %v6534 = vrot.slane %v6438, 6
      %v6535 = vrot.slane %v6534, 4
      %v6536 = vrot.slane %v6439, 6
      %v6537 = vsel %vm408, %v6535, %v6536
      %v6538 = vrot.slane %v6536, 4
      %v6539 = vrot.slane %v6440, 6
      %v6540 = vsel %vm408, %v6538, %v6539
      %v6541 = vrot.slane %v6441, 6
      %v6542 = vrot.slane %v6541, 4
      %v6543 = vrot.slane %v6442, 6
      %v6544 = vsel %vm408, %v6542, %v6543
      %v6545 = vrot.slane %v6543, 4
      %v6546 = vrot.slane %v6443, 6
      %v6547 = vsel %vm408, %v6545, %v6546
      %v6548 = vrot.slane %v6444, 6
      %v6549 = vrot.slane %v6548, 4
      %v6550 = vrot.slane %v6445, 6
      %v6551 = vsel %vm408, %v6549, %v6550
      %v6552 = vrot.slane %v6550, 4
      %v6553 = vrot.slane %v6446, 6
      %v6554 = vsel %vm408, %v6552, %v6553
      %v6555 = vrot.slane %v6447, 6
      %v6556 = vrot.slane %v6555, 4
      %v6557 = vrot.slane %v6448, 6
      %v6558 = vsel %vm408, %v6556, %v6557
      %v6559 = vrot.slane %v6557, 4
      %v6560 = vrot.slane %v6449, 6
      %v6561 = vsel %vm408, %v6559, %v6560
      %v6562 = vrot.slane %v6450, 6
      %v6563 = vrot.slane %v6562, 4
      %v6564 = vrot.slane %v6451, 6
      %v6565 = vsel %vm408, %v6563, %v6564
      %v6566 = vrot.slane %v6564, 4
      %v6567 = vrot.slane %v6452, 6
      %v6568 = vsel %vm408, %v6566, %v6567
      %v6569 = vrot.slane %v6453, 6
      %v6570 = vrot.slane %v6569, 4
      %v6571 = vrot.slane %v6454, 6
      %v6572 = vsel %vm408, %v6570, %v6571
      %v6573 = vrot.slane %v6571, 4
      %v6574 = vrot.slane %v6455, 6
      %v6575 = vsel %vm408, %v6573, %v6574
      %v6576 = vrot.slane %v6456, 6
      %v6577 = vrot.slane %v6576, 4
      %v6578 = vrot.slane %v6457, 6
      %v6579 = vsel %vm408, %v6577, %v6578
      %v6580 = vrot.slane %v6578, 4
      %v6581 = vrot.slane %v6458, 6
      %v6582 = vsel %vm408, %v6580, %v6581
      %v6583 = vrot.slane %v6459, 6
      %v6584 = vrot.slane %v6583, 4
      %v6585 = vrot.slane %v6460, 6
      %v6586 = vsel %vm408, %v6584, %v6585
      %v6587 = vrot.slane %v6585, 4
      %v6588 = vrot.slane %v6461, 6
      %v6589 = vsel %vm408, %v6587, %v6588
      %v6590 = vrot.slane %v6462, 6
      %v6591 = vrot.slane %v6590, 4
      %v6592 = vrot.slane %v6463, 6
      %v6593 = vsel %vm408, %v6591, %v6592
      %v6594 = vrot.slane %v6592, 4
      %v6595 = vrot.slane %v6464, 6
      %v6596 = vsel %vm408, %v6594, %v6595
      %v6597 = vrot.slane %v6465, 6
      %v6598 = vrot.slane %v6597, 4
      %v6599 = vrot.slane %v6466, 6
      %v6600 = vsel %vm408, %v6598, %v6599
      %v6601 = vrot.slane %v6599, 4
      %v6602 = vrot.slane %v6467, 6
      %v6603 = vsel %vm408, %v6601, %v6602
      %v6604 = vrot.slane %v6468, 6
      %v6605 = vrot.slane %v6604, 4
      %v6606 = vrot.slane %v6469, 6
      %v6607 = vsel %vm408, %v6605, %v6606
      %v6608 = vrot.slane %v6606, 4
      %v6609 = vrot.slane %v6470, 6
      %v6610 = vsel %vm408, %v6608, %v6609
      %v6611 = vrot.slane %v6471, 6
      %v6612 = vrot.slane %v6611, 4
      %v6613 = vrot.slane %v6472, 6
      %v6614 = vsel %vm408, %v6612, %v6613
      %v6615 = vrot.slane %v6613, 4
      %v6616 = vrot.slane %v6473, 6
      %v6617 = vsel %vm408, %v6615, %v6616
      %v6618 = vrot.slane %v6474, 6
      %v6619 = vrot.slane %v6618, 4
      %v6620 = vrot.slane %v6475, 6
      %v6621 = vsel %vm408, %v6619, %v6620
      %v6622 = vrot.slane %v6620, 4
      %v6623 = vrot.slane %v6476, 6
      %v6624 = vsel %vm408, %v6622, %v6623
      %v6625 = vrot.slane %v6477, 6
      %v6626 = vrot.slane %v6625, 4
      %v6627 = vrot.slane %v6478, 6
      %v6628 = vsel %vm408, %v6626, %v6627
      %v6629 = vrot.slane %v6627, 4
      %v6630 = vrot.slane %v6479, 6
      %v6631 = vsel %vm408, %v6629, %v6630
      %v6632 = vrot.slane %v6480, 6
      %v6633 = vrot.slane %v6632, 4
      %v6634 = vrot.slane %v6481, 6
      %v6635 = vsel %vm408, %v6633, %v6634
      %v6636 = vrot.slane %v6634, 4
      %v6637 = vrot.slane %v6482, 6
      %v6638 = vsel %vm408, %v6636, %v6637
      %v6639 = vrot.slane %v6483, 6
      %v6640 = vrot.slane %v6639, 4
      %v6641 = vrot.slane %v6484, 6
      %v6642 = vsel %vm408, %v6640, %v6641
      %v6643 = vrot.slane %v6641, 4
      %v6644 = vrot.slane %v6485, 6
      %v6645 = vsel %vm408, %v6643, %v6644
      %6646 = vrot.lane.b32.xlu0 %v6537, 80
      %v6647 = vpop.permute.xlu0 %6646
      %6648 = vrot.lane.b32.xlu0 %v6540, 80
      %v6649 = vpop.permute.xlu0 %6648
      %6650 = vrot.lane.b32.xlu0 %v6544, 80
      %v6651 = vpop.permute.xlu0 %6650
      %6652 = vrot.lane.b32.xlu0 %v6547, 80
      %v6653 = vpop.permute.xlu0 %6652
      %6654 = vrot.lane.b32.xlu0 %v6551, 80
      %v6655 = vpop.permute.xlu0 %6654
      %6656 = vrot.lane.b32.xlu0 %v6554, 80
      %v6657 = vpop.permute.xlu0 %6656
      %6658 = vrot.lane.b32.xlu0 %v6558, 80
      %v6659 = vpop.permute.xlu0 %6658
      %6660 = vrot.lane.b32.xlu0 %v6561, 80
      %v6661 = vpop.permute.xlu0 %6660
      %6662 = vrot.lane.b32.xlu0 %v6565, 80
      %v6663 = vpop.permute.xlu0 %6662
      %6664 = vrot.lane.b32.xlu0 %v6568, 80
      %v6665 = vpop.permute.xlu0 %6664
      %6666 = vrot.lane.b32.xlu0 %v6572, 80
      %v6667 = vpop.permute.xlu0 %6666
      %6668 = vrot.lane.b32.xlu0 %v6575, 80
      %v6669 = vpop.permute.xlu0 %6668
      %6670 = vrot.lane.b32.xlu0 %v6579, 80
      %v6671 = vpop.permute.xlu0 %6670
      %6672 = vrot.lane.b32.xlu0 %v6582, 80
      %v6673 = vpop.permute.xlu0 %6672
      %6674 = vrot.lane.b32.xlu0 %v6586, 80
      %v6675 = vpop.permute.xlu0 %6674
      %6676 = vrot.lane.b32.xlu0 %v6589, 80
      %v6677 = vpop.permute.xlu0 %6676
      %6678 = vrot.lane.b32.xlu0 %v6593, 80
      %v6679 = vpop.permute.xlu0 %6678
      %6680 = vrot.lane.b32.xlu0 %v6596, 80
      %v6681 = vpop.permute.xlu0 %6680
      %6682 = vrot.lane.b32.xlu0 %v6600, 80
      %v6683 = vpop.permute.xlu0 %6682
      %6684 = vrot.lane.b32.xlu0 %v6603, 80
      %v6685 = vpop.permute.xlu0 %6684
      %6686 = vrot.lane.b32.xlu0 %v6607, 80
      %v6687 = vpop.permute.xlu0 %6686
      %6688 = vrot.lane.b32.xlu0 %v6610, 80
      %v6689 = vpop.permute.xlu0 %6688
      %6690 = vrot.lane.b32.xlu0 %v6614, 80
      %v6691 = vpop.permute.xlu0 %6690
      %6692 = vrot.lane.b32.xlu0 %v6617, 80
      %v6693 = vpop.permute.xlu0 %6692
      %6694 = vrot.lane.b32.xlu0 %v6621, 80
      %v6695 = vpop.permute.xlu0 %6694
      %6696 = vrot.lane.b32.xlu0 %v6624, 80
      %v6697 = vpop.permute.xlu0 %6696
      %6698 = vrot.lane.b32.xlu0 %v6628, 80
      %v6699 = vpop.permute.xlu0 %6698
      %6700 = vrot.lane.b32.xlu0 %v6631, 80
      %v6701 = vpop.permute.xlu0 %6700
      %6702 = vrot.lane.b32.xlu0 %v6635, 80
      %v6703 = vpop.permute.xlu0 %6702
      %6704 = vrot.lane.b32.xlu0 %v6638, 80
      %v6705 = vpop.permute.xlu0 %6704
      %6706 = vrot.lane.b32.xlu0 %v6642, 80
      %v6707 = vpop.permute.xlu0 %6706
      %6708 = vrot.lane.b32.xlu0 %v6645, 80
      %v6709 = vpop.permute.xlu0 %6708
      %vm6742 = vcmask 683648
      %6743 = vst.msk [vmem:[#allocation2] sm:$0xf] %vm6742, %v6647
      %6744 = vst.msk [vmem:[#allocation2 + $0x4] sm:$0xf] %vm6742, %v6649
      %6745 = vst.msk [vmem:[#allocation2 + $0x8] sm:$0xf] %vm6742, %v6651
      %6746 = vst.msk [vmem:[#allocation2 + $0xc] sm:$0xf] %vm6742, %v6653
      %6747 = vst.msk [vmem:[#allocation2 + $0x10] sm:$0xf] %vm6742, %v6655
      %6748 = vst.msk [vmem:[#allocation2 + $0x14] sm:$0xf] %vm6742, %v6657
      %6749 = vst.msk [vmem:[#allocation2 + $0x18] sm:$0xf] %vm6742, %v6659
      %6750 = vst.msk [vmem:[#allocation2 + $0x1c] sm:$0xf] %vm6742, %v6661
      %6751 = vst.msk [vmem:[#allocation2 + $0x20] sm:$0xf] %vm6742, %v6663
      %6752 = vst.msk [vmem:[#allocation2 + $0x24] sm:$0xf] %vm6742, %v6665
      %6753 = vst.msk [vmem:[#allocation2 + $0x28] sm:$0xf] %vm6742, %v6667
      %6754 = vst.msk [vmem:[#allocation2 + $0x2c] sm:$0xf] %vm6742, %v6669
      %6755 = vst.msk [vmem:[#allocation2 + $0x30] sm:$0xf] %vm6742, %v6671
      %6756 = vst.msk [vmem:[#allocation2 + $0x34] sm:$0xf] %vm6742, %v6673
      %6757 = vst.msk [vmem:[#allocation2 + $0x38] sm:$0xf] %vm6742, %v6675
      %6758 = vst.msk [vmem:[#allocation2 + $0x3c] sm:$0xf] %vm6742, %v6677
      %6759 = vst.msk [vmem:[#allocation2 + $0x40] sm:$0xf] %vm6742, %v6679
      %6760 = vst.msk [vmem:[#allocation2 + $0x44] sm:$0xf] %vm6742, %v6681
      %6761 = vst.msk [vmem:[#allocation2 + $0x48] sm:$0xf] %vm6742, %v6683
      %6762 = vst.msk [vmem:[#allocation2 + $0x4c] sm:$0xf] %vm6742, %v6685
      %6763 = vst.msk [vmem:[#allocation2 + $0x50] sm:$0xf] %vm6742, %v6687
      %6764 = vst.msk [vmem:[#allocation2 + $0x54] sm:$0xf] %vm6742, %v6689
      %6765 = vst.msk [vmem:[#allocation2 + $0x58] sm:$0xf] %vm6742, %v6691
      %6766 = vst.msk [vmem:[#allocation2 + $0x5c] sm:$0xf] %vm6742, %v6693
      %6767 = vst.msk [vmem:[#allocation2 + $0x60] sm:$0xf] %vm6742, %v6695
      %6768 = vst.msk [vmem:[#allocation2 + $0x64] sm:$0xf] %vm6742, %v6697
      %6769 = vst.msk [vmem:[#allocation2 + $0x68] sm:$0xf] %vm6742, %v6699
      %6770 = vst.msk [vmem:[#allocation2 + $0x6c] sm:$0xf] %vm6742, %v6701
      %6771 = vst.msk [vmem:[#allocation2 + $0x70] sm:$0xf] %vm6742, %v6703
      %6772 = vst.msk [vmem:[#allocation2 + $0x74] sm:$0xf] %vm6742, %v6705
      %6773 = vst.msk [vmem:[#allocation2 + $0x78] sm:$0xf] %vm6742, %v6707
      %6774 = vst.msk [vmem:[#allocation2 + $0x7c] sm:$0xf] %vm6742, %v6709
      %v6775 = vld [vmem:[%s1122] sm:$0xf]
      %v6776 = vld [vmem:[%s1122 + $0x4] sm:$0xf]
      %v6777 = vld [vmem:[%s1122 + $0x1c] sm:$0xf]
      %v6778 = vld [vmem:[%s1122 + $0x20] sm:$0xf]
      %v6779 = vld [vmem:[%s1122 + $0x38] sm:$0xf]
      %v6780 = vld [vmem:[%s1122 + $0x3c] sm:$0xf]
      %v6781 = vld [vmem:[%s1122 + $0x54] sm:$0xf]
      %v6782 = vld [vmem:[%s1122 + $0x58] sm:$0xf]
      %v6783 = vld [vmem:[%s1122 + $0x70] sm:$0xf]
      %v6784 = vld [vmem:[%s1122 + $0x74] sm:$0xf]
      %v6785 = vld [vmem:[%s1122 + $0x8c] sm:$0xf]
      %v6786 = vld [vmem:[%s1122 + $0x90] sm:$0xf]
      %v6787 = vld [vmem:[%s1122 + $0xa8] sm:$0xf]
      %v6788 = vld [vmem:[%s1122 + $0xac] sm:$0xf]
      %v6789 = vld [vmem:[%s1122 + $0xc4] sm:$0xf]
      %v6790 = vld [vmem:[%s1122 + $0xc8] sm:$0xf]
      %v6791 = vld [vmem:[%s1122 + $0xe0] sm:$0xf]
      %v6792 = vld [vmem:[%s1122 + $0xe4] sm:$0xf]
      %v6793 = vld [vmem:[%s1122 + $0xfc] sm:$0xf]
      %v6794 = vld [vmem:[%s1122 + $0x100] sm:$0xf]
      %v6795 = vld [vmem:[%s1122 + $0x118] sm:$0xf]
      %v6796 = vld [vmem:[%s1122 + $0x11c] sm:$0xf]
      %v6797 = vld [vmem:[%s1122 + $0x134] sm:$0xf]
      %v6798 = vld [vmem:[%s1122 + $0x138] sm:$0xf]
      %v6799 = vld [vmem:[%s1122 + $0x150] sm:$0xf]
      %v6800 = vld [vmem:[%s1122 + $0x154] sm:$0xf]
      %v6801 = vld [vmem:[%s1122 + $0x16c] sm:$0xf]
      %v6802 = vld [vmem:[%s1122 + $0x170] sm:$0xf]
      %v6803 = vld [vmem:[%s1122 + $0x188] sm:$0xf]
      %v6804 = vld [vmem:[%s1122 + $0x18c] sm:$0xf]
      %v6805 = vld [vmem:[%s1122 + $0x1a4] sm:$0xf]
      %v6806 = vld [vmem:[%s1122 + $0x1a8] sm:$0xf]
      %6839 = vrot.lane.b32.xlu0 %v6775, 84
      %v6840 = vpop.permute.xlu0 %6839
      %6841 = vrot.lane.b32.xlu0 %v6776, 84
      %v6842 = vpop.permute.xlu0 %6841
      %6843 = vrot.lane.b32.xlu0 %v6777, 84
      %v6844 = vpop.permute.xlu0 %6843
      %6845 = vrot.lane.b32.xlu0 %v6778, 84
      %v6846 = vpop.permute.xlu0 %6845
      %6847 = vrot.lane.b32.xlu0 %v6779, 84
      %v6848 = vpop.permute.xlu0 %6847
      %6849 = vrot.lane.b32.xlu0 %v6780, 84
      %v6850 = vpop.permute.xlu0 %6849
      %6851 = vrot.lane.b32.xlu0 %v6781, 84
      %v6852 = vpop.permute.xlu0 %6851
      %6853 = vrot.lane.b32.xlu0 %v6782, 84
      %v6854 = vpop.permute.xlu0 %6853
      %6855 = vrot.lane.b32.xlu0 %v6783, 84
      %v6856 = vpop.permute.xlu0 %6855
      %6857 = vrot.lane.b32.xlu0 %v6784, 84
      %v6858 = vpop.permute.xlu0 %6857
      %6859 = vrot.lane.b32.xlu0 %v6785, 84
      %v6860 = vpop.permute.xlu0 %6859
      %6861 = vrot.lane.b32.xlu0 %v6786, 84
      %v6862 = vpop.permute.xlu0 %6861
      %6863 = vrot.lane.b32.xlu0 %v6787, 84
      %v6864 = vpop.permute.xlu0 %6863
      %6865 = vrot.lane.b32.xlu0 %v6788, 84
      %v6866 = vpop.permute.xlu0 %6865
      %6867 = vrot.lane.b32.xlu0 %v6789, 84
      %v6868 = vpop.permute.xlu0 %6867
      %6869 = vrot.lane.b32.xlu0 %v6790, 84
      %v6870 = vpop.permute.xlu0 %6869
      %6871 = vrot.lane.b32.xlu0 %v6791, 84
      %v6872 = vpop.permute.xlu0 %6871
      %6873 = vrot.lane.b32.xlu0 %v6792, 84
      %v6874 = vpop.permute.xlu0 %6873
      %6875 = vrot.lane.b32.xlu0 %v6793, 84
      %v6876 = vpop.permute.xlu0 %6875
      %6877 = vrot.lane.b32.xlu0 %v6794, 84
      %v6878 = vpop.permute.xlu0 %6877
      %6879 = vrot.lane.b32.xlu0 %v6795, 84
      %v6880 = vpop.permute.xlu0 %6879
      %6881 = vrot.lane.b32.xlu0 %v6796, 84
      %v6882 = vpop.permute.xlu0 %6881
      %6883 = vrot.lane.b32.xlu0 %v6797, 84
      %v6884 = vpop.permute.xlu0 %6883
      %6885 = vrot.lane.b32.xlu0 %v6798, 84
      %v6886 = vpop.permute.xlu0 %6885
      %6887 = vrot.lane.b32.xlu0 %v6799, 84
      %v6888 = vpop.permute.xlu0 %6887
      %6889 = vrot.lane.b32.xlu0 %v6800, 84
      %v6890 = vpop.permute.xlu0 %6889
      %6891 = vrot.lane.b32.xlu0 %v6801, 84
      %v6892 = vpop.permute.xlu0 %6891
      %6893 = vrot.lane.b32.xlu0 %v6802, 84
      %v6894 = vpop.permute.xlu0 %6893
      %6895 = vrot.lane.b32.xlu0 %v6803, 84
      %v6896 = vpop.permute.xlu0 %6895
      %6897 = vrot.lane.b32.xlu0 %v6804, 84
      %v6898 = vpop.permute.xlu0 %6897
      %6899 = vrot.lane.b32.xlu0 %v6805, 84
      %v6900 = vpop.permute.xlu0 %6899
      %6901 = vrot.lane.b32.xlu0 %v6806, 84
      %v6902 = vpop.permute.xlu0 %6901
      %vm6935 = vcmask 716448
      %6936 = vst.msk [vmem:[#allocation2] sm:$0xf] %vm6935, %v6840
      %6937 = vst.msk [vmem:[#allocation2 + $0x4] sm:$0xf] %vm6935, %v6842
      %6938 = vst.msk [vmem:[#allocation2 + $0x8] sm:$0xf] %vm6935, %v6844
      %6939 = vst.msk [vmem:[#allocation2 + $0xc] sm:$0xf] %vm6935, %v6846
      %6940 = vst.msk [vmem:[#allocation2 + $0x10] sm:$0xf] %vm6935, %v6848
      %6941 = vst.msk [vmem:[#allocation2 + $0x14] sm:$0xf] %vm6935, %v6850
      %6942 = vst.msk [vmem:[#allocation2 + $0x18] sm:$0xf] %vm6935, %v6852
      %6943 = vst.msk [vmem:[#allocation2 + $0x1c] sm:$0xf] %vm6935, %v6854
      %6944 = vst.msk [vmem:[#allocation2 + $0x20] sm:$0xf] %vm6935, %v6856
      %6945 = vst.msk [vmem:[#allocation2 + $0x24] sm:$0xf] %vm6935, %v6858
      %6946 = vst.msk [vmem:[#allocation2 + $0x28] sm:$0xf] %vm6935, %v6860
      %6947 = vst.msk [vmem:[#allocation2 + $0x2c] sm:$0xf] %vm6935, %v6862
      %6948 = vst.msk [vmem:[#allocation2 + $0x30] sm:$0xf] %vm6935, %v6864
      %6949 = vst.msk [vmem:[#allocation2 + $0x34] sm:$0xf] %vm6935, %v6866
      %6950 = vst.msk [vmem:[#allocation2 + $0x38] sm:$0xf] %vm6935, %v6868
      %6951 = vst.msk [vmem:[#allocation2 + $0x3c] sm:$0xf] %vm6935, %v6870
      %6952 = vst.msk [vmem:[#allocation2 + $0x40] sm:$0xf] %vm6935, %v6872
      %6953 = vst.msk [vmem:[#allocation2 + $0x44] sm:$0xf] %vm6935, %v6874
      %6954 = vst.msk [vmem:[#allocation2 + $0x48] sm:$0xf] %vm6935, %v6876
      %6955 = vst.msk [vmem:[#allocation2 + $0x4c] sm:$0xf] %vm6935, %v6878
      %6956 = vst.msk [vmem:[#allocation2 + $0x50] sm:$0xf] %vm6935, %v6880
      %6957 = vst.msk [vmem:[#allocation2 + $0x54] sm:$0xf] %vm6935, %v6882
      %6958 = vst.msk [vmem:[#allocation2 + $0x58] sm:$0xf] %vm6935, %v6884
      %6959 = vst.msk [vmem:[#allocation2 + $0x5c] sm:$0xf] %vm6935, %v6886
      %6960 = vst.msk [vmem:[#allocation2 + $0x60] sm:$0xf] %vm6935, %v6888
      %6961 = vst.msk [vmem:[#allocation2 + $0x64] sm:$0xf] %vm6935, %v6890
      %6962 = vst.msk [vmem:[#allocation2 + $0x68] sm:$0xf] %vm6935, %v6892
      %6963 = vst.msk [vmem:[#allocation2 + $0x6c] sm:$0xf] %vm6935, %v6894
      %6964 = vst.msk [vmem:[#allocation2 + $0x70] sm:$0xf] %vm6935, %v6896
      %6965 = vst.msk [vmem:[#allocation2 + $0x74] sm:$0xf] %vm6935, %v6898
      %6966 = vst.msk [vmem:[#allocation2 + $0x78] sm:$0xf] %vm6935, %v6900
      %6967 = vst.msk [vmem:[#allocation2 + $0x7c] sm:$0xf] %vm6935, %v6902
      %v6968 = vld [vmem:[%s1122 + $0x8] sm:$0xe]
      %v6969 = vld [vmem:[%s1122 + $0xc] sm:$0xf]
      %v6970 = vld [vmem:[%s1122 + $0x10] sm:$0x1]
      %v6971 = vld [vmem:[%s1122 + $0x24] sm:$0xe]
      %v6972 = vld [vmem:[%s1122 + $0x28] sm:$0xf]
      %v6973 = vld [vmem:[%s1122 + $0x2c] sm:$0x1]
      %v6974 = vld [vmem:[%s1122 + $0x40] sm:$0xe]
      %v6975 = vld [vmem:[%s1122 + $0x44] sm:$0xf]
      %v6976 = vld [vmem:[%s1122 + $0x48] sm:$0x1]
      %v6977 = vld [vmem:[%s1122 + $0x5c] sm:$0xe]
      %v6978 = vld [vmem:[%s1122 + $0x60] sm:$0xf]
      %v6979 = vld [vmem:[%s1122 + $0x64] sm:$0x1]
      %v6980 = vld [vmem:[%s1122 + $0x78] sm:$0xe]
      %v6981 = vld [vmem:[%s1122 + $0x7c] sm:$0xf]
      %v6982 = vld [vmem:[%s1122 + $0x80] sm:$0x1]
      %v6983 = vld [vmem:[%s1122 + $0x94] sm:$0xe]
      %v6984 = vld [vmem:[%s1122 + $0x98] sm:$0xf]
      %v6985 = vld [vmem:[%s1122 + $0x9c] sm:$0x1]
      %v6986 = vld [vmem:[%s1122 + $0xb0] sm:$0xe]
      %v6987 = vld [vmem:[%s1122 + $0xb4] sm:$0xf]
      %v6988 = vld [vmem:[%s1122 + $0xb8] sm:$0x1]
      %v6989 = vld [vmem:[%s1122 + $0xcc] sm:$0xe]
      %v6990 = vld [vmem:[%s1122 + $0xd0] sm:$0xf]
      %v6991 = vld [vmem:[%s1122 + $0xd4] sm:$0x1]
      %v6992 = vld [vmem:[%s1122 + $0xe8] sm:$0xe]
      %v6993 = vld [vmem:[%s1122 + $0xec] sm:$0xf]
      %v6994 = vld [vmem:[%s1122 + $0xf0] sm:$0x1]
      %v6995 = vld [vmem:[%s1122 + $0x104] sm:$0xe]
      %v6996 = vld [vmem:[%s1122 + $0x108] sm:$0xf]
      %v6997 = vld [vmem:[%s1122 + $0x10c] sm:$0x1]
      %v6998 = vld [vmem:[%s1122 + $0x120] sm:$0xe]
      %v6999 = vld [vmem:[%s1122 + $0x124] sm:$0xf]
      %v7000 = vld [vmem:[%s1122 + $0x128] sm:$0x1]
      %v7001 = vld [vmem:[%s1122 + $0x13c] sm:$0xe]
      %v7002 = vld [vmem:[%s1122 + $0x140] sm:$0xf]
      %v7003 = vld [vmem:[%s1122 + $0x144] sm:$0x1]
      %v7004 = vld [vmem:[%s1122 + $0x158] sm:$0xe]
      %v7005 = vld [vmem:[%s1122 + $0x15c] sm:$0xf]
      %v7006 = vld [vmem:[%s1122 + $0x160] sm:$0x1]
      %v7007 = vld [vmem:[%s1122 + $0x174] sm:$0xe]
      %v7008 = vld [vmem:[%s1122 + $0x178] sm:$0xf]
      %v7009 = vld [vmem:[%s1122 + $0x17c] sm:$0x1]
      %v7010 = vld [vmem:[%s1122 + $0x190] sm:$0xe]
      %v7011 = vld [vmem:[%s1122 + $0x194] sm:$0xf]
      %v7012 = vld [vmem:[%s1122 + $0x198] sm:$0x1]
      %v7013 = vld [vmem:[%s1122 + $0x1ac] sm:$0xe]
      %v7014 = vld [vmem:[%s1122 + $0x1b0] sm:$0xf]
      %v7015 = vld [vmem:[%s1122 + $0x1b4] sm:$0x1]
      %v7064 = vrot.slane %v6968, 5
      %v7065 = vrot.slane %v7064, 4
      %v7066 = vrot.slane %v6969, 5
      %v7067 = vsel %vm684, %v7065, %v7066
      %v7068 = vrot.slane %v7066, 4
      %v7069 = vrot.slane %v6970, 5
      %v7070 = vsel %vm684, %v7068, %v7069
      %v7071 = vrot.slane %v6971, 5
      %v7072 = vrot.slane %v7071, 4
      %v7073 = vrot.slane %v6972, 5
      %v7074 = vsel %vm684, %v7072, %v7073
      %v7075 = vrot.slane %v7073, 4
      %v7076 = vrot.slane %v6973, 5
      %v7077 = vsel %vm684, %v7075, %v7076
      %v7078 = vrot.slane %v6974, 5
      %v7079 = vrot.slane %v7078, 4
      %v7080 = vrot.slane %v6975, 5
      %v7081 = vsel %vm684, %v7079, %v7080
      %v7082 = vrot.slane %v7080, 4
      %v7083 = vrot.slane %v6976, 5
      %v7084 = vsel %vm684, %v7082, %v7083
      %v7085 = vrot.slane %v6977, 5
      %v7086 = vrot.slane %v7085, 4
      %v7087 = vrot.slane %v6978, 5
      %v7088 = vsel %vm684, %v7086, %v7087
      %v7089 = vrot.slane %v7087, 4
      %v7090 = vrot.slane %v6979, 5
      %v7091 = vsel %vm684, %v7089, %v7090
      %v7092 = vrot.slane %v6980, 5
      %v7093 = vrot.slane %v7092, 4
      %v7094 = vrot.slane %v6981, 5
      %v7095 = vsel %vm684, %v7093, %v7094
      %v7096 = vrot.slane %v7094, 4
      %v7097 = vrot.slane %v6982, 5
      %v7098 = vsel %vm684, %v7096, %v7097
      %v7099 = vrot.slane %v6983, 5
      %v7100 = vrot.slane %v7099, 4
      %v7101 = vrot.slane %v6984, 5
      %v7102 = vsel %vm684, %v7100, %v7101
      %v7103 = vrot.slane %v7101, 4
      %v7104 = vrot.slane %v6985, 5
      %v7105 = vsel %vm684, %v7103, %v7104
      %v7106 = vrot.slane %v6986, 5
      %v7107 = vrot.slane %v7106, 4
      %v7108 = vrot.slane %v6987, 5
      %v7109 = vsel %vm684, %v7107, %v7108
      %v7110 = vrot.slane %v7108, 4
      %v7111 = vrot.slane %v6988, 5
      %v7112 = vsel %vm684, %v7110, %v7111
      %v7113 = vrot.slane %v6989, 5
      %v7114 = vrot.slane %v7113, 4
      %v7115 = vrot.slane %v6990, 5
      %v7116 = vsel %vm684, %v7114, %v7115
      %v7117 = vrot.slane %v7115, 4
      %v7118 = vrot.slane %v6991, 5
      %v7119 = vsel %vm684, %v7117, %v7118
      %v7120 = vrot.slane %v6992, 5
      %v7121 = vrot.slane %v7120, 4
      %v7122 = vrot.slane %v6993, 5
      %v7123 = vsel %vm684, %v7121, %v7122
      %v7124 = vrot.slane %v7122, 4
      %v7125 = vrot.slane %v6994, 5
      %v7126 = vsel %vm684, %v7124, %v7125
      %v7127 = vrot.slane %v6995, 5
      %v7128 = vrot.slane %v7127, 4
      %v7129 = vrot.slane %v6996, 5
      %v7130 = vsel %vm684, %v7128, %v7129
      %v7131 = vrot.slane %v7129, 4
      %v7132 = vrot.slane %v6997, 5
      %v7133 = vsel %vm684, %v7131, %v7132
      %v7134 = vrot.slane %v6998, 5
      %v7135 = vrot.slane %v7134, 4
      %v7136 = vrot.slane %v6999, 5
      %v7137 = vsel %vm684, %v7135, %v7136
      %v7138 = vrot.slane %v7136, 4
      %v7139 = vrot.slane %v7000, 5
      %v7140 = vsel %vm684, %v7138, %v7139
      %v7141 = vrot.slane %v7001, 5
      %v7142 = vrot.slane %v7141, 4
      %v7143 = vrot.slane %v7002, 5
      %v7144 = vsel %vm684, %v7142, %v7143
      %v7145 = vrot.slane %v7143, 4
      %v7146 = vrot.slane %v7003, 5
      %v7147 = vsel %vm684, %v7145, %v7146
      %v7148 = vrot.slane %v7004, 5
      %v7149 = vrot.slane %v7148, 4
      %v7150 = vrot.slane %v7005, 5
      %v7151 = vsel %vm684, %v7149, %v7150
      %v7152 = vrot.slane %v7150, 4
      %v7153 = vrot.slane %v7006, 5
      %v7154 = vsel %vm684, %v7152, %v7153
      %v7155 = vrot.slane %v7007, 5
      %v7156 = vrot.slane %v7155, 4
      %v7157 = vrot.slane %v7008, 5
      %v7158 = vsel %vm684, %v7156, %v7157
      %v7159 = vrot.slane %v7157, 4
      %v7160 = vrot.slane %v7009, 5
      %v7161 = vsel %vm684, %v7159, %v7160
      %v7162 = vrot.slane %v7010, 5
      %v7163 = vrot.slane %v7162, 4
      %v7164 = vrot.slane %v7011, 5
      %v7165 = vsel %vm684, %v7163, %v7164
      %v7166 = vrot.slane %v7164, 4
      %v7167 = vrot.slane %v7012, 5
      %v7168 = vsel %vm684, %v7166, %v7167
      %v7169 = vrot.slane %v7013, 5
      %v7170 = vrot.slane %v7169, 4
      %v7171 = vrot.slane %v7014, 5
      %v7172 = vsel %vm684, %v7170, %v7171
      %v7173 = vrot.slane %v7171, 4
      %v7174 = vrot.slane %v7015, 5
      %v7175 = vsel %vm684, %v7173, %v7174
      %7176 = vrot.lane.b32.xlu0 %v7067, 88
      %v7177 = vpop.permute.xlu0 %7176
      %7178 = vrot.lane.b32.xlu0 %v7070, 88
      %v7179 = vpop.permute.xlu0 %7178
      %7180 = vrot.lane.b32.xlu0 %v7074, 88
      %v7181 = vpop.permute.xlu0 %7180
      %7182 = vrot.lane.b32.xlu0 %v7077, 88
      %v7183 = vpop.permute.xlu0 %7182
      %7184 = vrot.lane.b32.xlu0 %v7081, 88
      %v7185 = vpop.permute.xlu0 %7184
      %7186 = vrot.lane.b32.xlu0 %v7084, 88
      %v7187 = vpop.permute.xlu0 %7186
      %7188 = vrot.lane.b32.xlu0 %v7088, 88
      %v7189 = vpop.permute.xlu0 %7188
      %7190 = vrot.lane.b32.xlu0 %v7091, 88
      %v7191 = vpop.permute.xlu0 %7190
      %7192 = vrot.lane.b32.xlu0 %v7095, 88
      %v7193 = vpop.permute.xlu0 %7192
      %7194 = vrot.lane.b32.xlu0 %v7098, 88
      %v7195 = vpop.permute.xlu0 %7194
      %7196 = vrot.lane.b32.xlu0 %v7102, 88
      %v7197 = vpop.permute.xlu0 %7196
      %7198 = vrot.lane.b32.xlu0 %v7105, 88
      %v7199 = vpop.permute.xlu0 %7198
      %7200 = vrot.lane.b32.xlu0 %v7109, 88
      %v7201 = vpop.permute.xlu0 %7200
      %7202 = vrot.lane.b32.xlu0 %v7112, 88
      %v7203 = vpop.permute.xlu0 %7202
      %7204 = vrot.lane.b32.xlu0 %v7116, 88
      %v7205 = vpop.permute.xlu0 %7204
      %7206 = vrot.lane.b32.xlu0 %v7119, 88
      %v7207 = vpop.permute.xlu0 %7206
      %7208 = vrot.lane.b32.xlu0 %v7123, 88
      %v7209 = vpop.permute.xlu0 %7208
      %7210 = vrot.lane.b32.xlu0 %v7126, 88
      %v7211 = vpop.permute.xlu0 %7210
      %7212 = vrot.lane.b32.xlu0 %v7130, 88
      %v7213 = vpop.permute.xlu0 %7212
      %7214 = vrot.lane.b32.xlu0 %v7133, 88
      %v7215 = vpop.permute.xlu0 %7214
      %7216 = vrot.lane.b32.xlu0 %v7137, 88
      %v7217 = vpop.permute.xlu0 %7216
      %7218 = vrot.lane.b32.xlu0 %v7140, 88
      %v7219 = vpop.permute.xlu0 %7218
      %7220 = vrot.lane.b32.xlu0 %v7144, 88
      %v7221 = vpop.permute.xlu0 %7220
      %7222 = vrot.lane.b32.xlu0 %v7147, 88
      %v7223 = vpop.permute.xlu0 %7222
      %7224 = vrot.lane.b32.xlu0 %v7151, 88
      %v7225 = vpop.permute.xlu0 %7224
      %7226 = vrot.lane.b32.xlu0 %v7154, 88
      %v7227 = vpop.permute.xlu0 %7226
      %7228 = vrot.lane.b32.xlu0 %v7158, 88
      %v7229 = vpop.permute.xlu0 %7228
      %7230 = vrot.lane.b32.xlu0 %v7161, 88
      %v7231 = vpop.permute.xlu0 %7230
      %7232 = vrot.lane.b32.xlu0 %v7165, 88
      %v7233 = vpop.permute.xlu0 %7232
      %7234 = vrot.lane.b32.xlu0 %v7168, 88
      %v7235 = vpop.permute.xlu0 %7234
      %7236 = vrot.lane.b32.xlu0 %v7172, 88
      %v7237 = vpop.permute.xlu0 %7236
      %7238 = vrot.lane.b32.xlu0 %v7175, 88
      %v7239 = vpop.permute.xlu0 %7238
      %vm7272 = vcmask 749248
      %7273 = vst.msk [vmem:[#allocation2] sm:$0xf] %vm7272, %v7177
      %7274 = vst.msk [vmem:[#allocation2 + $0x4] sm:$0xf] %vm7272, %v7179
      %7275 = vst.msk [vmem:[#allocation2 + $0x8] sm:$0xf] %vm7272, %v7181
      %7276 = vst.msk [vmem:[#allocation2 + $0xc] sm:$0xf] %vm7272, %v7183
      %7277 = vst.msk [vmem:[#allocation2 + $0x10] sm:$0xf] %vm7272, %v7185
      %7278 = vst.msk [vmem:[#allocation2 + $0x14] sm:$0xf] %vm7272, %v7187
      %7279 = vst.msk [vmem:[#allocation2 + $0x18] sm:$0xf] %vm7272, %v7189
      %7280 = vst.msk [vmem:[#allocation2 + $0x1c] sm:$0xf] %vm7272, %v7191
      %7281 = vst.msk [vmem:[#allocation2 + $0x20] sm:$0xf] %vm7272, %v7193
      %7282 = vst.msk [vmem:[#allocation2 + $0x24] sm:$0xf] %vm7272, %v7195
      %7283 = vst.msk [vmem:[#allocation2 + $0x28] sm:$0xf] %vm7272, %v7197
      %7284 = vst.msk [vmem:[#allocation2 + $0x2c] sm:$0xf] %vm7272, %v7199
      %7285 = vst.msk [vmem:[#allocation2 + $0x30] sm:$0xf] %vm7272, %v7201
      %7286 = vst.msk [vmem:[#allocation2 + $0x34] sm:$0xf] %vm7272, %v7203
      %7287 = vst.msk [vmem:[#allocation2 + $0x38] sm:$0xf] %vm7272, %v7205
      %7288 = vst.msk [vmem:[#allocation2 + $0x3c] sm:$0xf] %vm7272, %v7207
      %7289 = vst.msk [vmem:[#allocation2 + $0x40] sm:$0xf] %vm7272, %v7209
      %7290 = vst.msk [vmem:[#allocation2 + $0x44] sm:$0xf] %vm7272, %v7211
      %7291 = vst.msk [vmem:[#allocation2 + $0x48] sm:$0xf] %vm7272, %v7213
      %7292 = vst.msk [vmem:[#allocation2 + $0x4c] sm:$0xf] %vm7272, %v7215
      %7293 = vst.msk [vmem:[#allocation2 + $0x50] sm:$0xf] %vm7272, %v7217
      %7294 = vst.msk [vmem:[#allocation2 + $0x54] sm:$0xf] %vm7272, %v7219
      %7295 = vst.msk [vmem:[#allocation2 + $0x58] sm:$0xf] %vm7272, %v7221
      %7296 = vst.msk [vmem:[#allocation2 + $0x5c] sm:$0xf] %vm7272, %v7223
      %7297 = vst.msk [vmem:[#allocation2 + $0x60] sm:$0xf] %vm7272, %v7225
      %7298 = vst.msk [vmem:[#allocation2 + $0x64] sm:$0xf] %vm7272, %v7227
      %7299 = vst.msk [vmem:[#allocation2 + $0x68] sm:$0xf] %vm7272, %v7229
      %7300 = vst.msk [vmem:[#allocation2 + $0x6c] sm:$0xf] %vm7272, %v7231
      %7301 = vst.msk [vmem:[#allocation2 + $0x70] sm:$0xf] %vm7272, %v7233
      %7302 = vst.msk [vmem:[#allocation2 + $0x74] sm:$0xf] %vm7272, %v7235
      %7303 = vst.msk [vmem:[#allocation2 + $0x78] sm:$0xf] %vm7272, %v7237
      %7304 = vst.msk [vmem:[#allocation2 + $0x7c] sm:$0xf] %vm7272, %v7239
      %v7305 = vld [vmem:[%s1122 + $0x10] sm:$0xc]
      %v7306 = vld [vmem:[%s1122 + $0x14] sm:$0xf]
      %v7307 = vld [vmem:[%s1122 + $0x18] sm:$0x3]
      %v7308 = vld [vmem:[%s1122 + $0x2c] sm:$0xc]
      %v7309 = vld [vmem:[%s1122 + $0x30] sm:$0xf]
      %v7310 = vld [vmem:[%s1122 + $0x34] sm:$0x3]
      %v7311 = vld [vmem:[%s1122 + $0x48] sm:$0xc]
      %v7312 = vld [vmem:[%s1122 + $0x4c] sm:$0xf]
      %v7313 = vld [vmem:[%s1122 + $0x50] sm:$0x3]
      %v7314 = vld [vmem:[%s1122 + $0x64] sm:$0xc]
      %v7315 = vld [vmem:[%s1122 + $0x68] sm:$0xf]
      %v7316 = vld [vmem:[%s1122 + $0x6c] sm:$0x3]
      %v7317 = vld [vmem:[%s1122 + $0x80] sm:$0xc]
      %v7318 = vld [vmem:[%s1122 + $0x84] sm:$0xf]
      %v7319 = vld [vmem:[%s1122 + $0x88] sm:$0x3]
      %v7320 = vld [vmem:[%s1122 + $0x9c] sm:$0xc]
      %v7321 = vld [vmem:[%s1122 + $0xa0] sm:$0xf]
      %v7322 = vld [vmem:[%s1122 + $0xa4] sm:$0x3]
      %v7323 = vld [vmem:[%s1122 + $0xb8] sm:$0xc]
      %v7324 = vld [vmem:[%s1122 + $0xbc] sm:$0xf]
      %v7325 = vld [vmem:[%s1122 + $0xc0] sm:$0x3]
      %v7326 = vld [vmem:[%s1122 + $0xd4] sm:$0xc]
      %v7327 = vld [vmem:[%s1122 + $0xd8] sm:$0xf]
      %v7328 = vld [vmem:[%s1122 + $0xdc] sm:$0x3]
      %v7329 = vld [vmem:[%s1122 + $0xf0] sm:$0xc]
      %v7330 = vld [vmem:[%s1122 + $0xf4] sm:$0xf]
      %v7331 = vld [vmem:[%s1122 + $0xf8] sm:$0x3]
      %v7332 = vld [vmem:[%s1122 + $0x10c] sm:$0xc]
      %v7333 = vld [vmem:[%s1122 + $0x110] sm:$0xf]
      %v7334 = vld [vmem:[%s1122 + $0x114] sm:$0x3]
      %v7335 = vld [vmem:[%s1122 + $0x128] sm:$0xc]
      %v7336 = vld [vmem:[%s1122 + $0x12c] sm:$0xf]
      %v7337 = vld [vmem:[%s1122 + $0x130] sm:$0x3]
      %v7338 = vld [vmem:[%s1122 + $0x144] sm:$0xc]
      %v7339 = vld [vmem:[%s1122 + $0x148] sm:$0xf]
      %v7340 = vld [vmem:[%s1122 + $0x14c] sm:$0x3]
      %v7341 = vld [vmem:[%s1122 + $0x160] sm:$0xc]
      %v7342 = vld [vmem:[%s1122 + $0x164] sm:$0xf]
      %v7343 = vld [vmem:[%s1122 + $0x168] sm:$0x3]
      %v7344 = vld [vmem:[%s1122 + $0x17c] sm:$0xc]
      %v7345 = vld [vmem:[%s1122 + $0x180] sm:$0xf]
      %v7346 = vld [vmem:[%s1122 + $0x184] sm:$0x3]
      %v7347 = vld [vmem:[%s1122 + $0x198] sm:$0xc]
      %v7348 = vld [vmem:[%s1122 + $0x19c] sm:$0xf]
      %v7349 = vld [vmem:[%s1122 + $0x1a0] sm:$0x3]
      %v7350 = vld [vmem:[%s1122 + $0x1b4] sm:$0xc]
      %v7351 = vld [vmem:[%s1122 + $0x1b8] sm:$0xf]
      %v7352 = vld [vmem:[%s1122 + $0x1bc] sm:$0x3]
      %v7401 = vrot.slane %v7305, 6
      %v7402 = vrot.slane %v7401, 4
      %v7403 = vrot.slane %v7306, 6
      %v7404 = vsel %vm408, %v7402, %v7403
      %v7405 = vrot.slane %v7403, 4
      %v7406 = vrot.slane %v7307, 6
      %v7407 = vsel %vm408, %v7405, %v7406
      %v7408 = vrot.slane %v7308, 6
      %v7409 = vrot.slane %v7408, 4
      %v7410 = vrot.slane %v7309, 6
      %v7411 = vsel %vm408, %v7409, %v7410
      %v7412 = vrot.slane %v7410, 4
      %v7413 = vrot.slane %v7310, 6
      %v7414 = vsel %vm408, %v7412, %v7413
      %v7415 = vrot.slane %v7311, 6
      %v7416 = vrot.slane %v7415, 4
      %v7417 = vrot.slane %v7312, 6
      %v7418 = vsel %vm408, %v7416, %v7417
      %v7419 = vrot.slane %v7417, 4
      %v7420 = vrot.slane %v7313, 6
      %v7421 = vsel %vm408, %v7419, %v7420
      %v7422 = vrot.slane %v7314, 6
      %v7423 = vrot.slane %v7422, 4
      %v7424 = vrot.slane %v7315, 6
      %v7425 = vsel %vm408, %v7423, %v7424
      %v7426 = vrot.slane %v7424, 4
      %v7427 = vrot.slane %v7316, 6
      %v7428 = vsel %vm408, %v7426, %v7427
      %v7429 = vrot.slane %v7317, 6
      %v7430 = vrot.slane %v7429, 4
      %v7431 = vrot.slane %v7318, 6
      %v7432 = vsel %vm408, %v7430, %v7431
      %v7433 = vrot.slane %v7431, 4
      %v7434 = vrot.slane %v7319, 6
      %v7435 = vsel %vm408, %v7433, %v7434
      %v7436 = vrot.slane %v7320, 6
      %v7437 = vrot.slane %v7436, 4
      %v7438 = vrot.slane %v7321, 6
      %v7439 = vsel %vm408, %v7437, %v7438
      %v7440 = vrot.slane %v7438, 4
      %v7441 = vrot.slane %v7322, 6
      %v7442 = vsel %vm408, %v7440, %v7441
      %v7443 = vrot.slane %v7323, 6
      %v7444 = vrot.slane %v7443, 4
      %v7445 = vrot.slane %v7324, 6
      %v7446 = vsel %vm408, %v7444, %v7445
      %v7447 = vrot.slane %v7445, 4
      %v7448 = vrot.slane %v7325, 6
      %v7449 = vsel %vm408, %v7447, %v7448
      %v7450 = vrot.slane %v7326, 6
      %v7451 = vrot.slane %v7450, 4
      %v7452 = vrot.slane %v7327, 6
      %v7453 = vsel %vm408, %v7451, %v7452
      %v7454 = vrot.slane %v7452, 4
      %v7455 = vrot.slane %v7328, 6
      %v7456 = vsel %vm408, %v7454, %v7455
      %v7457 = vrot.slane %v7329, 6
      %v7458 = vrot.slane %v7457, 4
      %v7459 = vrot.slane %v7330, 6
      %v7460 = vsel %vm408, %v7458, %v7459
      %v7461 = vrot.slane %v7459, 4
      %v7462 = vrot.slane %v7331, 6
      %v7463 = vsel %vm408, %v7461, %v7462
      %v7464 = vrot.slane %v7332, 6
      %v7465 = vrot.slane %v7464, 4
      %v7466 = vrot.slane %v7333, 6
      %v7467 = vsel %vm408, %v7465, %v7466
      %v7468 = vrot.slane %v7466, 4
      %v7469 = vrot.slane %v7334, 6
      %v7470 = vsel %vm408, %v7468, %v7469
      %v7471 = vrot.slane %v7335, 6
      %v7472 = vrot.slane %v7471, 4
      %v7473 = vrot.slane %v7336, 6
      %v7474 = vsel %vm408, %v7472, %v7473
      %v7475 = vrot.slane %v7473, 4
      %v7476 = vrot.slane %v7337, 6
      %v7477 = vsel %vm408, %v7475, %v7476
      %v7478 = vrot.slane %v7338, 6
      %v7479 = vrot.slane %v7478, 4
      %v7480 = vrot.slane %v7339, 6
      %v7481 = vsel %vm408, %v7479, %v7480
      %v7482 = vrot.slane %v7480, 4
      %v7483 = vrot.slane %v7340, 6
      %v7484 = vsel %vm408, %v7482, %v7483
      %v7485 = vrot.slane %v7341, 6
      %v7486 = vrot.slane %v7485, 4
      %v7487 = vrot.slane %v7342, 6
      %v7488 = vsel %vm408, %v7486, %v7487
      %v7489 = vrot.slane %v7487, 4
      %v7490 = vrot.slane %v7343, 6
      %v7491 = vsel %vm408, %v7489, %v7490
      %v7492 = vrot.slane %v7344, 6
      %v7493 = vrot.slane %v7492, 4
      %v7494 = vrot.slane %v7345, 6
      %v7495 = vsel %vm408, %v7493, %v7494
      %v7496 = vrot.slane %v7494, 4
      %v7497 = vrot.slane %v7346, 6
      %v7498 = vsel %vm408, %v7496, %v7497
      %v7499 = vrot.slane %v7347, 6
      %v7500 = vrot.slane %v7499, 4
      %v7501 = vrot.slane %v7348, 6
      %v7502 = vsel %vm408, %v7500, %v7501
      %v7503 = vrot.slane %v7501, 4
      %v7504 = vrot.slane %v7349, 6
      %v7505 = vsel %vm408, %v7503, %v7504
      %v7506 = vrot.slane %v7350, 6
      %v7507 = vrot.slane %v7506, 4
      %v7508 = vrot.slane %v7351, 6
      %v7509 = vsel %vm408, %v7507, %v7508
      %v7510 = vrot.slane %v7508, 4
      %v7511 = vrot.slane %v7352, 6
      %v7512 = vsel %vm408, %v7510, %v7511
      %7513 = vrot.lane.b32.xlu0 %v7404, 92
      %v7514 = vpop.permute.xlu0 %7513
      %7515 = vrot.lane.b32.xlu0 %v7407, 92
      %v7516 = vpop.permute.xlu0 %7515
      %7517 = vrot.lane.b32.xlu0 %v7411, 92
      %v7518 = vpop.permute.xlu0 %7517
      %7519 = vrot.lane.b32.xlu0 %v7414, 92
      %v7520 = vpop.permute.xlu0 %7519
      %7521 = vrot.lane.b32.xlu0 %v7418, 92
      %v7522 = vpop.permute.xlu0 %7521
      %7523 = vrot.lane.b32.xlu0 %v7421, 92
      %v7524 = vpop.permute.xlu0 %7523
      %7525 = vrot.lane.b32.xlu0 %v7425, 92
      %v7526 = vpop.permute.xlu0 %7525
      %7527 = vrot.lane.b32.xlu0 %v7428, 92
      %v7528 = vpop.permute.xlu0 %7527
      %7529 = vrot.lane.b32.xlu0 %v7432, 92
      %v7530 = vpop.permute.xlu0 %7529
      %7531 = vrot.lane.b32.xlu0 %v7435, 92
      %v7532 = vpop.permute.xlu0 %7531
      %7533 = vrot.lane.b32.xlu0 %v7439, 92
      %v7534 = vpop.permute.xlu0 %7533
      %7535 = vrot.lane.b32.xlu0 %v7442, 92
      %v7536 = vpop.permute.xlu0 %7535
      %7537 = vrot.lane.b32.xlu0 %v7446, 92
      %v7538 = vpop.permute.xlu0 %7537
      %7539 = vrot.lane.b32.xlu0 %v7449, 92
      %v7540 = vpop.permute.xlu0 %7539
      %7541 = vrot.lane.b32.xlu0 %v7453, 92
      %v7542 = vpop.permute.xlu0 %7541
      %7543 = vrot.lane.b32.xlu0 %v7456, 92
      %v7544 = vpop.permute.xlu0 %7543
      %7545 = vrot.lane.b32.xlu0 %v7460, 92
      %v7546 = vpop.permute.xlu0 %7545
      %7547 = vrot.lane.b32.xlu0 %v7463, 92
      %v7548 = vpop.permute.xlu0 %7547
      %7549 = vrot.lane.b32.xlu0 %v7467, 92
      %v7550 = vpop.permute.xlu0 %7549
      %7551 = vrot.lane.b32.xlu0 %v7470, 92
      %v7552 = vpop.permute.xlu0 %7551
      %7553 = vrot.lane.b32.xlu0 %v7474, 92
      %v7554 = vpop.permute.xlu0 %7553
      %7555 = vrot.lane.b32.xlu0 %v7477, 92
      %v7556 = vpop.permute.xlu0 %7555
      %7557 = vrot.lane.b32.xlu0 %v7481, 92
      %v7558 = vpop.permute.xlu0 %7557
      %7559 = vrot.lane.b32.xlu0 %v7484, 92
      %v7560 = vpop.permute.xlu0 %7559
      %7561 = vrot.lane.b32.xlu0 %v7488, 92
      %v7562 = vpop.permute.xlu0 %7561
      %7563 = vrot.lane.b32.xlu0 %v7491, 92
      %v7564 = vpop.permute.xlu0 %7563
      %7565 = vrot.lane.b32.xlu0 %v7495, 92
      %v7566 = vpop.permute.xlu0 %7565
      %7567 = vrot.lane.b32.xlu0 %v7498, 92
      %v7568 = vpop.permute.xlu0 %7567
      %7569 = vrot.lane.b32.xlu0 %v7502, 92
      %v7570 = vpop.permute.xlu0 %7569
      %7571 = vrot.lane.b32.xlu0 %v7505, 92
      %v7572 = vpop.permute.xlu0 %7571
      %7573 = vrot.lane.b32.xlu0 %v7509, 92
      %v7574 = vpop.permute.xlu0 %7573
      %7575 = vrot.lane.b32.xlu0 %v7512, 92
      %v7576 = vpop.permute.xlu0 %7575
      %vm7609 = vcmask 782048
      %7610 = vst.msk [vmem:[#allocation2] sm:$0xf] %vm7609, %v7514
      %7611 = vst.msk [vmem:[#allocation2 + $0x4] sm:$0xf] %vm7609, %v7516
      %7612 = vst.msk [vmem:[#allocation2 + $0x8] sm:$0xf] %vm7609, %v7518
      %7613 = vst.msk [vmem:[#allocation2 + $0xc] sm:$0xf] %vm7609, %v7520
      %7614 = vst.msk [vmem:[#allocation2 + $0x10] sm:$0xf] %vm7609, %v7522
      %7615 = vst.msk [vmem:[#allocation2 + $0x14] sm:$0xf] %vm7609, %v7524
      %7616 = vst.msk [vmem:[#allocation2 + $0x18] sm:$0xf] %vm7609, %v7526
      %7617 = vst.msk [vmem:[#allocation2 + $0x1c] sm:$0xf] %vm7609, %v7528
      %7618 = vst.msk [vmem:[#allocation2 + $0x20] sm:$0xf] %vm7609, %v7530
      %7619 = vst.msk [vmem:[#allocation2 + $0x24] sm:$0xf] %vm7609, %v7532
      %7620 = vst.msk [vmem:[#allocation2 + $0x28] sm:$0xf] %vm7609, %v7534
      %7621 = vst.msk [vmem:[#allocation2 + $0x2c] sm:$0xf] %vm7609, %v7536
      %7622 = vst.msk [vmem:[#allocation2 + $0x30] sm:$0xf] %vm7609, %v7538
      %7623 = vst.msk [vmem:[#allocation2 + $0x34] sm:$0xf] %vm7609, %v7540
      %7624 = vst.msk [vmem:[#allocation2 + $0x38] sm:$0xf] %vm7609, %v7542
      %7625 = vst.msk [vmem:[#allocation2 + $0x3c] sm:$0xf] %vm7609, %v7544
      %7626 = vst.msk [vmem:[#allocation2 + $0x40] sm:$0xf] %vm7609, %v7546
      %7627 = vst.msk [vmem:[#allocation2 + $0x44] sm:$0xf] %vm7609, %v7548
      %7628 = vst.msk [vmem:[#allocation2 + $0x48] sm:$0xf] %vm7609, %v7550
      %7629 = vst.msk [vmem:[#allocation2 + $0x4c] sm:$0xf] %vm7609, %v7552
      %7630 = vst.msk [vmem:[#allocation2 + $0x50] sm:$0xf] %vm7609, %v7554
      %7631 = vst.msk [vmem:[#allocation2 + $0x54] sm:$0xf] %vm7609, %v7556
      %7632 = vst.msk [vmem:[#allocation2 + $0x58] sm:$0xf] %vm7609, %v7558
      %7633 = vst.msk [vmem:[#allocation2 + $0x5c] sm:$0xf] %vm7609, %v7560
      %7634 = vst.msk [vmem:[#allocation2 + $0x60] sm:$0xf] %vm7609, %v7562
      %7635 = vst.msk [vmem:[#allocation2 + $0x64] sm:$0xf] %vm7609, %v7564
      %7636 = vst.msk [vmem:[#allocation2 + $0x68] sm:$0xf] %vm7609, %v7566
      %7637 = vst.msk [vmem:[#allocation2 + $0x6c] sm:$0xf] %vm7609, %v7568
      %7638 = vst.msk [vmem:[#allocation2 + $0x70] sm:$0xf] %vm7609, %v7570
      %7639 = vst.msk [vmem:[#allocation2 + $0x74] sm:$0xf] %vm7609, %v7572
      %7640 = vst.msk [vmem:[#allocation2 + $0x78] sm:$0xf] %vm7609, %v7574
      %7641 = vst.msk [vmem:[#allocation2 + $0x7c] sm:$0xf] %vm7609, %v7576
      %s7642 = sadd.s32 %s305, 36
      %s7643 = smul.u32 %s7642, 7
      %s7644 = smul.addr %s7643, 4
      %s7645 = scalar_lea.vmem %s285, %s7644
      %v7646 = vld [vmem:[%s7645] sm:$0xf]
      %v7647 = vld [vmem:[%s7645 + $0x4] sm:$0xf]
      %v7648 = vld [vmem:[%s7645 + $0x1c] sm:$0xf]
      %v7649 = vld [vmem:[%s7645 + $0x20] sm:$0xf]
      %v7650 = vld [vmem:[%s7645 + $0x38] sm:$0xf]
      %v7651 = vld [vmem:[%s7645 + $0x3c] sm:$0xf]
      %v7652 = vld [vmem:[%s7645 + $0x54] sm:$0xf]
      %v7653 = vld [vmem:[%s7645 + $0x58] sm:$0xf]
      %v7654 = vld [vmem:[%s7645 + $0x70] sm:$0xf]
      %v7655 = vld [vmem:[%s7645 + $0x74] sm:$0xf]
      %v7656 = vld [vmem:[%s7645 + $0x8c] sm:$0xf]
      %v7657 = vld [vmem:[%s7645 + $0x90] sm:$0xf]
      %v7658 = vld [vmem:[%s7645 + $0xa8] sm:$0xf]
      %v7659 = vld [vmem:[%s7645 + $0xac] sm:$0xf]
      %v7660 = vld [vmem:[%s7645 + $0xc4] sm:$0xf]
      %v7661 = vld [vmem:[%s7645 + $0xc8] sm:$0xf]
      %v7662 = vld [vmem:[%s7645 + $0xe0] sm:$0xf]
      %v7663 = vld [vmem:[%s7645 + $0xe4] sm:$0xf]
      %v7664 = vld [vmem:[%s7645 + $0xfc] sm:$0xf]
      %v7665 = vld [vmem:[%s7645 + $0x100] sm:$0xf]
      %v7666 = vld [vmem:[%s7645 + $0x118] sm:$0xf]
      %v7667 = vld [vmem:[%s7645 + $0x11c] sm:$0xf]
      %v7668 = vld [vmem:[%s7645 + $0x134] sm:$0xf]
      %v7669 = vld [vmem:[%s7645 + $0x138] sm:$0xf]
      %v7670 = vld [vmem:[%s7645 + $0x150] sm:$0xf]
      %v7671 = vld [vmem:[%s7645 + $0x154] sm:$0xf]
      %v7672 = vld [vmem:[%s7645 + $0x16c] sm:$0xf]
      %v7673 = vld [vmem:[%s7645 + $0x170] sm:$0xf]
      %v7674 = vld [vmem:[%s7645 + $0x188] sm:$0xf]
      %v7675 = vld [vmem:[%s7645 + $0x18c] sm:$0xf]
      %v7676 = vld [vmem:[%s7645 + $0x1a4] sm:$0xf]
      %v7677 = vld [vmem:[%s7645 + $0x1a8] sm:$0xf]
      %7710 = vrot.lane.b32.xlu0 %v7646, 96
      %v7711 = vpop.permute.xlu0 %7710
      %7712 = vrot.lane.b32.xlu0 %v7647, 96
      %v7713 = vpop.permute.xlu0 %7712
      %7714 = vrot.lane.b32.xlu0 %v7648, 96
      %v7715 = vpop.permute.xlu0 %7714
      %7716 = vrot.lane.b32.xlu0 %v7649, 96
      %v7717 = vpop.permute.xlu0 %7716
      %7718 = vrot.lane.b32.xlu0 %v7650, 96
      %v7719 = vpop.permute.xlu0 %7718
      %7720 = vrot.lane.b32.xlu0 %v7651, 96
      %v7721 = vpop.permute.xlu0 %7720
      %7722 = vrot.lane.b32.xlu0 %v7652, 96
      %v7723 = vpop.permute.xlu0 %7722
      %7724 = vrot.lane.b32.xlu0 %v7653, 96
      %v7725 = vpop.permute.xlu0 %7724
      %7726 = vrot.lane.b32.xlu0 %v7654, 96
      %v7727 = vpop.permute.xlu0 %7726
      %7728 = vrot.lane.b32.xlu0 %v7655, 96
      %v7729 = vpop.permute.xlu0 %7728
      %7730 = vrot.lane.b32.xlu0 %v7656, 96
      %v7731 = vpop.permute.xlu0 %7730
      %7732 = vrot.lane.b32.xlu0 %v7657, 96
      %v7733 = vpop.permute.xlu0 %7732
      %7734 = vrot.lane.b32.xlu0 %v7658, 96
      %v7735 = vpop.permute.xlu0 %7734
      %7736 = vrot.lane.b32.xlu0 %v7659, 96
      %v7737 = vpop.permute.xlu0 %7736
      %7738 = vrot.lane.b32.xlu0 %v7660, 96
      %v7739 = vpop.permute.xlu0 %7738
      %7740 = vrot.lane.b32.xlu0 %v7661, 96
      %v7741 = vpop.permute.xlu0 %7740
      %7742 = vrot.lane.b32.xlu0 %v7662, 96
      %v7743 = vpop.permute.xlu0 %7742
      %7744 = vrot.lane.b32.xlu0 %v7663, 96
      %v7745 = vpop.permute.xlu0 %7744
      %7746 = vrot.lane.b32.xlu0 %v7664, 96
      %v7747 = vpop.permute.xlu0 %7746
      %7748 = vrot.lane.b32.xlu0 %v7665, 96
      %v7749 = vpop.permute.xlu0 %7748
      %7750 = vrot.lane.b32.xlu0 %v7666, 96
      %v7751 = vpop.permute.xlu0 %7750
      %7752 = vrot.lane.b32.xlu0 %v7667, 96
      %v7753 = vpop.permute.xlu0 %7752
      %7754 = vrot.lane.b32.xlu0 %v7668, 96
      %v7755 = vpop.permute.xlu0 %7754
      %7756 = vrot.lane.b32.xlu0 %v7669, 96
      %v7757 = vpop.permute.xlu0 %7756
      %7758 = vrot.lane.b32.xlu0 %v7670, 96
      %v7759 = vpop.permute.xlu0 %7758
      %7760 = vrot.lane.b32.xlu0 %v7671, 96
      %v7761 = vpop.permute.xlu0 %7760
      %7762 = vrot.lane.b32.xlu0 %v7672, 96
      %v7763 = vpop.permute.xlu0 %7762
      %7764 = vrot.lane.b32.xlu0 %v7673, 96
      %v7765 = vpop.permute.xlu0 %7764
      %7766 = vrot.lane.b32.xlu0 %v7674, 96
      %v7767 = vpop.permute.xlu0 %7766
      %7768 = vrot.lane.b32.xlu0 %v7675, 96
      %v7769 = vpop.permute.xlu0 %7768
      %7770 = vrot.lane.b32.xlu0 %v7676, 96
      %v7771 = vpop.permute.xlu0 %7770
      %7772 = vrot.lane.b32.xlu0 %v7677, 96
      %v7773 = vpop.permute.xlu0 %7772
      %vm7806 = vcmask 814848
      %7807 = vst.msk [vmem:[#allocation2] sm:$0xf] %vm7806, %v7711
      %7808 = vst.msk [vmem:[#allocation2 + $0x4] sm:$0xf] %vm7806, %v7713
      %7809 = vst.msk [vmem:[#allocation2 + $0x8] sm:$0xf] %vm7806, %v7715
      %7810 = vst.msk [vmem:[#allocation2 + $0xc] sm:$0xf] %vm7806, %v7717
      %7811 = vst.msk [vmem:[#allocation2 + $0x10] sm:$0xf] %vm7806, %v7719
      %7812 = vst.msk [vmem:[#allocation2 + $0x14] sm:$0xf] %vm7806, %v7721
      %7813 = vst.msk [vmem:[#allocation2 + $0x18] sm:$0xf] %vm7806, %v7723
      %7814 = vst.msk [vmem:[#allocation2 + $0x1c] sm:$0xf] %vm7806, %v7725
      %7815 = vst.msk [vmem:[#allocation2 + $0x20] sm:$0xf] %vm7806, %v7727
      %7816 = vst.msk [vmem:[#allocation2 + $0x24] sm:$0xf] %vm7806, %v7729
      %7817 = vst.msk [vmem:[#allocation2 + $0x28] sm:$0xf] %vm7806, %v7731
      %7818 = vst.msk [vmem:[#allocation2 + $0x2c] sm:$0xf] %vm7806, %v7733
      %7819 = vst.msk [vmem:[#allocation2 + $0x30] sm:$0xf] %vm7806, %v7735
      %7820 = vst.msk [vmem:[#allocation2 + $0x34] sm:$0xf] %vm7806, %v7737
      %7821 = vst.msk [vmem:[#allocation2 + $0x38] sm:$0xf] %vm7806, %v7739
      %7822 = vst.msk [vmem:[#allocation2 + $0x3c] sm:$0xf] %vm7806, %v7741
      %7823 = vst.msk [vmem:[#allocation2 + $0x40] sm:$0xf] %vm7806, %v7743
      %7824 = vst.msk [vmem:[#allocation2 + $0x44] sm:$0xf] %vm7806, %v7745
      %7825 = vst.msk [vmem:[#allocation2 + $0x48] sm:$0xf] %vm7806, %v7747
      %7826 = vst.msk [vmem:[#allocation2 + $0x4c] sm:$0xf] %vm7806, %v7749
      %7827 = vst.msk [vmem:[#allocation2 + $0x50] sm:$0xf] %vm7806, %v7751
      %7828 = vst.msk [vmem:[#allocation2 + $0x54] sm:$0xf] %vm7806, %v7753
      %7829 = vst.msk [vmem:[#allocation2 + $0x58] sm:$0xf] %vm7806, %v7755
      %7830 = vst.msk [vmem:[#allocation2 + $0x5c] sm:$0xf] %vm7806, %v7757
      %7831 = vst.msk [vmem:[#allocation2 + $0x60] sm:$0xf] %vm7806, %v7759
      %7832 = vst.msk [vmem:[#allocation2 + $0x64] sm:$0xf] %vm7806, %v7761
      %7833 = vst.msk [vmem:[#allocation2 + $0x68] sm:$0xf] %vm7806, %v7763
      %7834 = vst.msk [vmem:[#allocation2 + $0x6c] sm:$0xf] %vm7806, %v7765
      %7835 = vst.msk [vmem:[#allocation2 + $0x70] sm:$0xf] %vm7806, %v7767
      %7836 = vst.msk [vmem:[#allocation2 + $0x74] sm:$0xf] %vm7806, %v7769
      %7837 = vst.msk [vmem:[#allocation2 + $0x78] sm:$0xf] %vm7806, %v7771
      %7838 = vst.msk [vmem:[#allocation2 + $0x7c] sm:$0xf] %vm7806, %v7773
      %v7839 = vld [vmem:[%s7645 + $0x8] sm:$0xe]
      %v7840 = vld [vmem:[%s7645 + $0xc] sm:$0xf]
      %v7841 = vld [vmem:[%s7645 + $0x10] sm:$0x1]
      %v7842 = vld [vmem:[%s7645 + $0x24] sm:$0xe]
      %v7843 = vld [vmem:[%s7645 + $0x28] sm:$0xf]
      %v7844 = vld [vmem:[%s7645 + $0x2c] sm:$0x1]
      %v7845 = vld [vmem:[%s7645 + $0x40] sm:$0xe]
      %v7846 = vld [vmem:[%s7645 + $0x44] sm:$0xf]
      %v7847 = vld [vmem:[%s7645 + $0x48] sm:$0x1]
      %v7848 = vld [vmem:[%s7645 + $0x5c] sm:$0xe]
      %v7849 = vld [vmem:[%s7645 + $0x60] sm:$0xf]
      %v7850 = vld [vmem:[%s7645 + $0x64] sm:$0x1]
      %v7851 = vld [vmem:[%s7645 + $0x78] sm:$0xe]
      %v7852 = vld [vmem:[%s7645 + $0x7c] sm:$0xf]
      %v7853 = vld [vmem:[%s7645 + $0x80] sm:$0x1]
      %v7854 = vld [vmem:[%s7645 + $0x94] sm:$0xe]
      %v7855 = vld [vmem:[%s7645 + $0x98] sm:$0xf]
      %v7856 = vld [vmem:[%s7645 + $0x9c] sm:$0x1]
      %v7857 = vld [vmem:[%s7645 + $0xb0] sm:$0xe]
      %v7858 = vld [vmem:[%s7645 + $0xb4] sm:$0xf]
      %v7859 = vld [vmem:[%s7645 + $0xb8] sm:$0x1]
      %v7860 = vld [vmem:[%s7645 + $0xcc] sm:$0xe]
      %v7861 = vld [vmem:[%s7645 + $0xd0] sm:$0xf]
      %v7862 = vld [vmem:[%s7645 + $0xd4] sm:$0x1]
      %v7863 = vld [vmem:[%s7645 + $0xe8] sm:$0xe]
      %v7864 = vld [vmem:[%s7645 + $0xec] sm:$0xf]
      %v7865 = vld [vmem:[%s7645 + $0xf0] sm:$0x1]
      %v7866 = vld [vmem:[%s7645 + $0x104] sm:$0xe]
      %v7867 = vld [vmem:[%s7645 + $0x108] sm:$0xf]
      %v7868 = vld [vmem:[%s7645 + $0x10c] sm:$0x1]
      %v7869 = vld [vmem:[%s7645 + $0x120] sm:$0xe]
      %v7870 = vld [vmem:[%s7645 + $0x124] sm:$0xf]
      %v7871 = vld [vmem:[%s7645 + $0x128] sm:$0x1]
      %v7872 = vld [vmem:[%s7645 + $0x13c] sm:$0xe]
      %v7873 = vld [vmem:[%s7645 + $0x140] sm:$0xf]
      %v7874 = vld [vmem:[%s7645 + $0x144] sm:$0x1]
      %v7875 = vld [vmem:[%s7645 + $0x158] sm:$0xe]
      %v7876 = vld [vmem:[%s7645 + $0x15c] sm:$0xf]
      %v7877 = vld [vmem:[%s7645 + $0x160] sm:$0x1]
      %v7878 = vld [vmem:[%s7645 + $0x174] sm:$0xe]
      %v7879 = vld [vmem:[%s7645 + $0x178] sm:$0xf]
      %v7880 = vld [vmem:[%s7645 + $0x17c] sm:$0x1]
      %v7881 = vld [vmem:[%s7645 + $0x190] sm:$0xe]
      %v7882 = vld [vmem:[%s7645 + $0x194] sm:$0xf]
      %v7883 = vld [vmem:[%s7645 + $0x198] sm:$0x1]
      %v7884 = vld [vmem:[%s7645 + $0x1ac] sm:$0xe]
      %v7885 = vld [vmem:[%s7645 + $0x1b0] sm:$0xf]
      %v7886 = vld [vmem:[%s7645 + $0x1b4] sm:$0x1]
      %v7935 = vrot.slane %v7839, 5
      %v7936 = vrot.slane %v7935, 4
      %v7937 = vrot.slane %v7840, 5
      %v7938 = vsel %vm684, %v7936, %v7937
      %v7939 = vrot.slane %v7937, 4
      %v7940 = vrot.slane %v7841, 5
      %v7941 = vsel %vm684, %v7939, %v7940
      %v7942 = vrot.slane %v7842, 5
      %v7943 = vrot.slane %v7942, 4
      %v7944 = vrot.slane %v7843, 5
      %v7945 = vsel %vm684, %v7943, %v7944
      %v7946 = vrot.slane %v7944, 4
      %v7947 = vrot.slane %v7844, 5
      %v7948 = vsel %vm684, %v7946, %v7947
      %v7949 = vrot.slane %v7845, 5
      %v7950 = vrot.slane %v7949, 4
      %v7951 = vrot.slane %v7846, 5
      %v7952 = vsel %vm684, %v7950, %v7951
      %v7953 = vrot.slane %v7951, 4
      %v7954 = vrot.slane %v7847, 5
      %v7955 = vsel %vm684, %v7953, %v7954
      %v7956 = vrot.slane %v7848, 5
      %v7957 = vrot.slane %v7956, 4
      %v7958 = vrot.slane %v7849, 5
      %v7959 = vsel %vm684, %v7957, %v7958
      %v7960 = vrot.slane %v7958, 4
      %v7961 = vrot.slane %v7850, 5
      %v7962 = vsel %vm684, %v7960, %v7961
      %v7963 = vrot.slane %v7851, 5
      %v7964 = vrot.slane %v7963, 4
      %v7965 = vrot.slane %v7852, 5
      %v7966 = vsel %vm684, %v7964, %v7965
      %v7967 = vrot.slane %v7965, 4
      %v7968 = vrot.slane %v7853, 5
      %v7969 = vsel %vm684, %v7967, %v7968
      %v7970 = vrot.slane %v7854, 5
      %v7971 = vrot.slane %v7970, 4
      %v7972 = vrot.slane %v7855, 5
      %v7973 = vsel %vm684, %v7971, %v7972
      %v7974 = vrot.slane %v7972, 4
      %v7975 = vrot.slane %v7856, 5
      %v7976 = vsel %vm684, %v7974, %v7975
      %v7977 = vrot.slane %v7857, 5
      %v7978 = vrot.slane %v7977, 4
      %v7979 = vrot.slane %v7858, 5
      %v7980 = vsel %vm684, %v7978, %v7979
      %v7981 = vrot.slane %v7979, 4
      %v7982 = vrot.slane %v7859, 5
      %v7983 = vsel %vm684, %v7981, %v7982
      %v7984 = vrot.slane %v7860, 5
      %v7985 = vrot.slane %v7984, 4
      %v7986 = vrot.slane %v7861, 5
      %v7987 = vsel %vm684, %v7985, %v7986
      %v7988 = vrot.slane %v7986, 4
      %v7989 = vrot.slane %v7862, 5
      %v7990 = vsel %vm684, %v7988, %v7989
      %v7991 = vrot.slane %v7863, 5
      %v7992 = vrot.slane %v7991, 4
      %v7993 = vrot.slane %v7864, 5
      %v7994 = vsel %vm684, %v7992, %v7993
      %v7995 = vrot.slane %v7993, 4
      %v7996 = vrot.slane %v7865, 5
      %v7997 = vsel %vm684, %v7995, %v7996
      %v7998 = vrot.slane %v7866, 5
      %v7999 = vrot.slane %v7998, 4
      %v8000 = vrot.slane %v7867, 5
      %v8001 = vsel %vm684, %v7999, %v8000
      %v8002 = vrot.slane %v8000, 4
      %v8003 = vrot.slane %v7868, 5
      %v8004 = vsel %vm684, %v8002, %v8003
      %v8005 = vrot.slane %v7869, 5
      %v8006 = vrot.slane %v8005, 4
      %v8007 = vrot.slane %v7870, 5
      %v8008 = vsel %vm684, %v8006, %v8007
      %v8009 = vrot.slane %v8007, 4
      %v8010 = vrot.slane %v7871, 5
      %v8011 = vsel %vm684, %v8009, %v8010
      %v8012 = vrot.slane %v7872, 5
      %v8013 = vrot.slane %v8012, 4
      %v8014 = vrot.slane %v7873, 5
      %v8015 = vsel %vm684, %v8013, %v8014
      %v8016 = vrot.slane %v8014, 4
      %v8017 = vrot.slane %v7874, 5
      %v8018 = vsel %vm684, %v8016, %v8017
      %v8019 = vrot.slane %v7875, 5
      %v8020 = vrot.slane %v8019, 4
      %v8021 = vrot.slane %v7876, 5
      %v8022 = vsel %vm684, %v8020, %v8021
      %v8023 = vrot.slane %v8021, 4
      %v8024 = vrot.slane %v7877, 5
      %v8025 = vsel %vm684, %v8023, %v8024
      %v8026 = vrot.slane %v7878, 5
      %v8027 = vrot.slane %v8026, 4
      %v8028 = vrot.slane %v7879, 5
      %v8029 = vsel %vm684, %v8027, %v8028
      %v8030 = vrot.slane %v8028, 4
      %v8031 = vrot.slane %v7880, 5
      %v8032 = vsel %vm684, %v8030, %v8031
      %v8033 = vrot.slane %v7881, 5
      %v8034 = vrot.slane %v8033, 4
      %v8035 = vrot.slane %v7882, 5
      %v8036 = vsel %vm684, %v8034, %v8035
      %v8037 = vrot.slane %v8035, 4
      %v8038 = vrot.slane %v7883, 5
      %v8039 = vsel %vm684, %v8037, %v8038
      %v8040 = vrot.slane %v7884, 5
      %v8041 = vrot.slane %v8040, 4
      %v8042 = vrot.slane %v7885, 5
      %v8043 = vsel %vm684, %v8041, %v8042
      %v8044 = vrot.slane %v8042, 4
      %v8045 = vrot.slane %v7886, 5
      %v8046 = vsel %vm684, %v8044, %v8045
      %8047 = vrot.lane.b32.xlu0 %v7938, 100
      %v8048 = vpop.permute.xlu0 %8047
      %8049 = vrot.lane.b32.xlu0 %v7941, 100
      %v8050 = vpop.permute.xlu0 %8049
      %8051 = vrot.lane.b32.xlu0 %v7945, 100
      %v8052 = vpop.permute.xlu0 %8051
      %8053 = vrot.lane.b32.xlu0 %v7948, 100
      %v8054 = vpop.permute.xlu0 %8053
      %8055 = vrot.lane.b32.xlu0 %v7952, 100
      %v8056 = vpop.permute.xlu0 %8055
      %8057 = vrot.lane.b32.xlu0 %v7955, 100
      %v8058 = vpop.permute.xlu0 %8057
      %8059 = vrot.lane.b32.xlu0 %v7959, 100
      %v8060 = vpop.permute.xlu0 %8059
      %8061 = vrot.lane.b32.xlu0 %v7962, 100
      %v8062 = vpop.permute.xlu0 %8061
      %8063 = vrot.lane.b32.xlu0 %v7966, 100
      %v8064 = vpop.permute.xlu0 %8063
      %8065 = vrot.lane.b32.xlu0 %v7969, 100
      %v8066 = vpop.permute.xlu0 %8065
      %8067 = vrot.lane.b32.xlu0 %v7973, 100
      %v8068 = vpop.permute.xlu0 %8067
      %8069 = vrot.lane.b32.xlu0 %v7976, 100
      %v8070 = vpop.permute.xlu0 %8069
      %8071 = vrot.lane.b32.xlu0 %v7980, 100
      %v8072 = vpop.permute.xlu0 %8071
      %8073 = vrot.lane.b32.xlu0 %v7983, 100
      %v8074 = vpop.permute.xlu0 %8073
      %8075 = vrot.lane.b32.xlu0 %v7987, 100
      %v8076 = vpop.permute.xlu0 %8075
      %8077 = vrot.lane.b32.xlu0 %v7990, 100
      %v8078 = vpop.permute.xlu0 %8077
      %8079 = vrot.lane.b32.xlu0 %v7994, 100
      %v8080 = vpop.permute.xlu0 %8079
      %8081 = vrot.lane.b32.xlu0 %v7997, 100
      %v8082 = vpop.permute.xlu0 %8081
      %8083 = vrot.lane.b32.xlu0 %v8001, 100
      %v8084 = vpop.permute.xlu0 %8083
      %8085 = vrot.lane.b32.xlu0 %v8004, 100
      %v8086 = vpop.permute.xlu0 %8085
      %8087 = vrot.lane.b32.xlu0 %v8008, 100
      %v8088 = vpop.permute.xlu0 %8087
      %8089 = vrot.lane.b32.xlu0 %v8011, 100
      %v8090 = vpop.permute.xlu0 %8089
      %8091 = vrot.lane.b32.xlu0 %v8015, 100
      %v8092 = vpop.permute.xlu0 %8091
      %8093 = vrot.lane.b32.xlu0 %v8018, 100
      %v8094 = vpop.permute.xlu0 %8093
      %8095 = vrot.lane.b32.xlu0 %v8022, 100
      %v8096 = vpop.permute.xlu0 %8095
      %8097 = vrot.lane.b32.xlu0 %v8025, 100
      %v8098 = vpop.permute.xlu0 %8097
      %8099 = vrot.lane.b32.xlu0 %v8029, 100
      %v8100 = vpop.permute.xlu0 %8099
      %8101 = vrot.lane.b32.xlu0 %v8032, 100
      %v8102 = vpop.permute.xlu0 %8101
      %8103 = vrot.lane.b32.xlu0 %v8036, 100
      %v8104 = vpop.permute.xlu0 %8103
      %8105 = vrot.lane.b32.xlu0 %v8039, 100
      %v8106 = vpop.permute.xlu0 %8105
      %8107 = vrot.lane.b32.xlu0 %v8043, 100
      %v8108 = vpop.permute.xlu0 %8107
      %8109 = vrot.lane.b32.xlu0 %v8046, 100
      %v8110 = vpop.permute.xlu0 %8109
      %vm8143 = vcmask 847648
      %8144 = vst.msk [vmem:[#allocation2] sm:$0xf] %vm8143, %v8048
      %8145 = vst.msk [vmem:[#allocation2 + $0x4] sm:$0xf] %vm8143, %v8050
      %8146 = vst.msk [vmem:[#allocation2 + $0x8] sm:$0xf] %vm8143, %v8052
      %8147 = vst.msk [vmem:[#allocation2 + $0xc] sm:$0xf] %vm8143, %v8054
      %8148 = vst.msk [vmem:[#allocation2 + $0x10] sm:$0xf] %vm8143, %v8056
      %8149 = vst.msk [vmem:[#allocation2 + $0x14] sm:$0xf] %vm8143, %v8058
      %8150 = vst.msk [vmem:[#allocation2 + $0x18] sm:$0xf] %vm8143, %v8060
      %8151 = vst.msk [vmem:[#allocation2 + $0x1c] sm:$0xf] %vm8143, %v8062
      %8152 = vst.msk [vmem:[#allocation2 + $0x20] sm:$0xf] %vm8143, %v8064
      %8153 = vst.msk [vmem:[#allocation2 + $0x24] sm:$0xf] %vm8143, %v8066
      %8154 = vst.msk [vmem:[#allocation2 + $0x28] sm:$0xf] %vm8143, %v8068
      %8155 = vst.msk [vmem:[#allocation2 + $0x2c] sm:$0xf] %vm8143, %v8070
      %8156 = vst.msk [vmem:[#allocation2 + $0x30] sm:$0xf] %vm8143, %v8072
      %8157 = vst.msk [vmem:[#allocation2 + $0x34] sm:$0xf] %vm8143, %v8074
      %8158 = vst.msk [vmem:[#allocation2 + $0x38] sm:$0xf] %vm8143, %v8076
      %8159 = vst.msk [vmem:[#allocation2 + $0x3c] sm:$0xf] %vm8143, %v8078
      %8160 = vst.msk [vmem:[#allocation2 + $0x40] sm:$0xf] %vm8143, %v8080
      %8161 = vst.msk [vmem:[#allocation2 + $0x44] sm:$0xf] %vm8143, %v8082
      %8162 = vst.msk [vmem:[#allocation2 + $0x48] sm:$0xf] %vm8143, %v8084
      %8163 = vst.msk [vmem:[#allocation2 + $0x4c] sm:$0xf] %vm8143, %v8086
      %8164 = vst.msk [vmem:[#allocation2 + $0x50] sm:$0xf] %vm8143, %v8088
      %8165 = vst.msk [vmem:[#allocation2 + $0x54] sm:$0xf] %vm8143, %v8090
      %8166 = vst.msk [vmem:[#allocation2 + $0x58] sm:$0xf] %vm8143, %v8092
      %8167 = vst.msk [vmem:[#allocation2 + $0x5c] sm:$0xf] %vm8143, %v8094
      %8168 = vst.msk [vmem:[#allocation2 + $0x60] sm:$0xf] %vm8143, %v8096
      %8169 = vst.msk [vmem:[#allocation2 + $0x64] sm:$0xf] %vm8143, %v8098
      %8170 = vst.msk [vmem:[#allocation2 + $0x68] sm:$0xf] %vm8143, %v8100
      %8171 = vst.msk [vmem:[#allocation2 + $0x6c] sm:$0xf] %vm8143, %v8102
      %8172 = vst.msk [vmem:[#allocation2 + $0x70] sm:$0xf] %vm8143, %v8104
      %8173 = vst.msk [vmem:[#allocation2 + $0x74] sm:$0xf] %vm8143, %v8106
      %8174 = vst.msk [vmem:[#allocation2 + $0x78] sm:$0xf] %vm8143, %v8108
      %8175 = vst.msk [vmem:[#allocation2 + $0x7c] sm:$0xf] %vm8143, %v8110
      %v8176 = vld [vmem:[%s7645 + $0x10] sm:$0xc]
      %v8177 = vld [vmem:[%s7645 + $0x14] sm:$0xf]
      %v8178 = vld [vmem:[%s7645 + $0x18] sm:$0x3]
      %v8179 = vld [vmem:[%s7645 + $0x2c] sm:$0xc]
      %v8180 = vld [vmem:[%s7645 + $0x30] sm:$0xf]
      %v8181 = vld [vmem:[%s7645 + $0x34] sm:$0x3]
      %v8182 = vld [vmem:[%s7645 + $0x48] sm:$0xc]
      %v8183 = vld [vmem:[%s7645 + $0x4c] sm:$0xf]
      %v8184 = vld [vmem:[%s7645 + $0x50] sm:$0x3]
      %v8185 = vld [vmem:[%s7645 + $0x64] sm:$0xc]
      %v8186 = vld [vmem:[%s7645 + $0x68] sm:$0xf]
      %v8187 = vld [vmem:[%s7645 + $0x6c] sm:$0x3]
      %v8188 = vld [vmem:[%s7645 + $0x80] sm:$0xc]
      %v8189 = vld [vmem:[%s7645 + $0x84] sm:$0xf]
      %v8190 = vld [vmem:[%s7645 + $0x88] sm:$0x3]
      %v8191 = vld [vmem:[%s7645 + $0x9c] sm:$0xc]
      %v8192 = vld [vmem:[%s7645 + $0xa0] sm:$0xf]
      %v8193 = vld [vmem:[%s7645 + $0xa4] sm:$0x3]
      %v8194 = vld [vmem:[%s7645 + $0xb8] sm:$0xc]
      %v8195 = vld [vmem:[%s7645 + $0xbc] sm:$0xf]
      %v8196 = vld [vmem:[%s7645 + $0xc0] sm:$0x3]
      %v8197 = vld [vmem:[%s7645 + $0xd4] sm:$0xc]
      %v8198 = vld [vmem:[%s7645 + $0xd8] sm:$0xf]
      %v8199 = vld [vmem:[%s7645 + $0xdc] sm:$0x3]
      %v8200 = vld [vmem:[%s7645 + $0xf0] sm:$0xc]
      %v8201 = vld [vmem:[%s7645 + $0xf4] sm:$0xf]
      %v8202 = vld [vmem:[%s7645 + $0xf8] sm:$0x3]
      %v8203 = vld [vmem:[%s7645 + $0x10c] sm:$0xc]
      %v8204 = vld [vmem:[%s7645 + $0x110] sm:$0xf]
      %v8205 = vld [vmem:[%s7645 + $0x114] sm:$0x3]
      %v8206 = vld [vmem:[%s7645 + $0x128] sm:$0xc]
      %v8207 = vld [vmem:[%s7645 + $0x12c] sm:$0xf]
      %v8208 = vld [vmem:[%s7645 + $0x130] sm:$0x3]
      %v8209 = vld [vmem:[%s7645 + $0x144] sm:$0xc]
      %v8210 = vld [vmem:[%s7645 + $0x148] sm:$0xf]
      %v8211 = vld [vmem:[%s7645 + $0x14c] sm:$0x3]
      %v8212 = vld [vmem:[%s7645 + $0x160] sm:$0xc]
      %v8213 = vld [vmem:[%s7645 + $0x164] sm:$0xf]
      %v8214 = vld [vmem:[%s7645 + $0x168] sm:$0x3]
      %v8215 = vld [vmem:[%s7645 + $0x17c] sm:$0xc]
      %v8216 = vld [vmem:[%s7645 + $0x180] sm:$0xf]
      %v8217 = vld [vmem:[%s7645 + $0x184] sm:$0x3]
      %v8218 = vld [vmem:[%s7645 + $0x198] sm:$0xc]
      %v8219 = vld [vmem:[%s7645 + $0x19c] sm:$0xf]
      %v8220 = vld [vmem:[%s7645 + $0x1a0] sm:$0x3]
      %v8221 = vld [vmem:[%s7645 + $0x1b4] sm:$0xc]
      %v8222 = vld [vmem:[%s7645 + $0x1b8] sm:$0xf]
      %v8223 = vld [vmem:[%s7645 + $0x1bc] sm:$0x3]
      %v8272 = vrot.slane %v8176, 6
      %v8273 = vrot.slane %v8272, 4
      %v8274 = vrot.slane %v8177, 6
      %v8275 = vsel %vm408, %v8273, %v8274
      %v8276 = vrot.slane %v8274, 4
      %v8277 = vrot.slane %v8178, 6
      %v8278 = vsel %vm408, %v8276, %v8277
      %v8279 = vrot.slane %v8179, 6
      %v8280 = vrot.slane %v8279, 4
      %v8281 = vrot.slane %v8180, 6
      %v8282 = vsel %vm408, %v8280, %v8281
      %v8283 = vrot.slane %v8281, 4
      %v8284 = vrot.slane %v8181, 6
      %v8285 = vsel %vm408, %v8283, %v8284
      %v8286 = vrot.slane %v8182, 6
      %v8287 = vrot.slane %v8286, 4
      %v8288 = vrot.slane %v8183, 6
      %v8289 = vsel %vm408, %v8287, %v8288
      %v8290 = vrot.slane %v8288, 4
      %v8291 = vrot.slane %v8184, 6
      %v8292 = vsel %vm408, %v8290, %v8291
      %v8293 = vrot.slane %v8185, 6
      %v8294 = vrot.slane %v8293, 4
      %v8295 = vrot.slane %v8186, 6
      %v8296 = vsel %vm408, %v8294, %v8295
      %v8297 = vrot.slane %v8295, 4
      %v8298 = vrot.slane %v8187, 6
      %v8299 = vsel %vm408, %v8297, %v8298
      %v8300 = vrot.slane %v8188, 6
      %v8301 = vrot.slane %v8300, 4
      %v8302 = vrot.slane %v8189, 6
      %v8303 = vsel %vm408, %v8301, %v8302
      %v8304 = vrot.slane %v8302, 4
      %v8305 = vrot.slane %v8190, 6
      %v8306 = vsel %vm408, %v8304, %v8305
      %v8307 = vrot.slane %v8191, 6
      %v8308 = vrot.slane %v8307, 4
      %v8309 = vrot.slane %v8192, 6
      %v8310 = vsel %vm408, %v8308, %v8309
      %v8311 = vrot.slane %v8309, 4
      %v8312 = vrot.slane %v8193, 6
      %v8313 = vsel %vm408, %v8311, %v8312
      %v8314 = vrot.slane %v8194, 6
      %v8315 = vrot.slane %v8314, 4
      %v8316 = vrot.slane %v8195, 6
      %v8317 = vsel %vm408, %v8315, %v8316
      %v8318 = vrot.slane %v8316, 4
      %v8319 = vrot.slane %v8196, 6
      %v8320 = vsel %vm408, %v8318, %v8319
      %v8321 = vrot.slane %v8197, 6
      %v8322 = vrot.slane %v8321, 4
      %v8323 = vrot.slane %v8198, 6
      %v8324 = vsel %vm408, %v8322, %v8323
      %v8325 = vrot.slane %v8323, 4
      %v8326 = vrot.slane %v8199, 6
      %v8327 = vsel %vm408, %v8325, %v8326
      %v8328 = vrot.slane %v8200, 6
      %v8329 = vrot.slane %v8328, 4
      %v8330 = vrot.slane %v8201, 6
      %v8331 = vsel %vm408, %v8329, %v8330
      %v8332 = vrot.slane %v8330, 4
      %v8333 = vrot.slane %v8202, 6
      %v8334 = vsel %vm408, %v8332, %v8333
      %v8335 = vrot.slane %v8203, 6
      %v8336 = vrot.slane %v8335, 4
      %v8337 = vrot.slane %v8204, 6
      %v8338 = vsel %vm408, %v8336, %v8337
      %v8339 = vrot.slane %v8337, 4
      %v8340 = vrot.slane %v8205, 6
      %v8341 = vsel %vm408, %v8339, %v8340
      %v8342 = vrot.slane %v8206, 6
      %v8343 = vrot.slane %v8342, 4
      %v8344 = vrot.slane %v8207, 6
      %v8345 = vsel %vm408, %v8343, %v8344
      %v8346 = vrot.slane %v8344, 4
      %v8347 = vrot.slane %v8208, 6
      %v8348 = vsel %vm408, %v8346, %v8347
      %v8349 = vrot.slane %v8209, 6
      %v8350 = vrot.slane %v8349, 4
      %v8351 = vrot.slane %v8210, 6
      %v8352 = vsel %vm408, %v8350, %v8351
      %v8353 = vrot.slane %v8351, 4
      %v8354 = vrot.slane %v8211, 6
      %v8355 = vsel %vm408, %v8353, %v8354
      %v8356 = vrot.slane %v8212, 6
      %v8357 = vrot.slane %v8356, 4
      %v8358 = vrot.slane %v8213, 6
      %v8359 = vsel %vm408, %v8357, %v8358
      %v8360 = vrot.slane %v8358, 4
      %v8361 = vrot.slane %v8214, 6
      %v8362 = vsel %vm408, %v8360, %v8361
      %v8363 = vrot.slane %v8215, 6
      %v8364 = vrot.slane %v8363, 4
      %v8365 = vrot.slane %v8216, 6
      %v8366 = vsel %vm408, %v8364, %v8365
      %v8367 = vrot.slane %v8365, 4
      %v8368 = vrot.slane %v8217, 6
      %v8369 = vsel %vm408, %v8367, %v8368
      %v8370 = vrot.slane %v8218, 6
      %v8371 = vrot.slane %v8370, 4
      %v8372 = vrot.slane %v8219, 6
      %v8373 = vsel %vm408, %v8371, %v8372
      %v8374 = vrot.slane %v8372, 4
      %v8375 = vrot.slane %v8220, 6
      %v8376 = vsel %vm408, %v8374, %v8375
      %v8377 = vrot.slane %v8221, 6
      %v8378 = vrot.slane %v8377, 4
      %v8379 = vrot.slane %v8222, 6
      %v8380 = vsel %vm408, %v8378, %v8379
      %v8381 = vrot.slane %v8379, 4
      %v8382 = vrot.slane %v8223, 6
      %v8383 = vsel %vm408, %v8381, %v8382
      %8384 = vrot.lane.b32.xlu0 %v8275, 104
      %v8385 = vpop.permute.xlu0 %8384
      %8386 = vrot.lane.b32.xlu0 %v8278, 104
      %v8387 = vpop.permute.xlu0 %8386
      %8388 = vrot.lane.b32.xlu0 %v8282, 104
      %v8389 = vpop.permute.xlu0 %8388
      %8390 = vrot.lane.b32.xlu0 %v8285, 104
      %v8391 = vpop.permute.xlu0 %8390
      %8392 = vrot.lane.b32.xlu0 %v8289, 104
      %v8393 = vpop.permute.xlu0 %8392
      %8394 = vrot.lane.b32.xlu0 %v8292, 104
      %v8395 = vpop.permute.xlu0 %8394
      %8396 = vrot.lane.b32.xlu0 %v8296, 104
      %v8397 = vpop.permute.xlu0 %8396
      %8398 = vrot.lane.b32.xlu0 %v8299, 104
      %v8399 = vpop.permute.xlu0 %8398
      %8400 = vrot.lane.b32.xlu0 %v8303, 104
      %v8401 = vpop.permute.xlu0 %8400
      %8402 = vrot.lane.b32.xlu0 %v8306, 104
      %v8403 = vpop.permute.xlu0 %8402
      %8404 = vrot.lane.b32.xlu0 %v8310, 104
      %v8405 = vpop.permute.xlu0 %8404
      %8406 = vrot.lane.b32.xlu0 %v8313, 104
      %v8407 = vpop.permute.xlu0 %8406
      %8408 = vrot.lane.b32.xlu0 %v8317, 104
      %v8409 = vpop.permute.xlu0 %8408
      %8410 = vrot.lane.b32.xlu0 %v8320, 104
      %v8411 = vpop.permute.xlu0 %8410
      %8412 = vrot.lane.b32.xlu0 %v8324, 104
      %v8413 = vpop.permute.xlu0 %8412
      %8414 = vrot.lane.b32.xlu0 %v8327, 104
      %v8415 = vpop.permute.xlu0 %8414
      %8416 = vrot.lane.b32.xlu0 %v8331, 104
      %v8417 = vpop.permute.xlu0 %8416
      %8418 = vrot.lane.b32.xlu0 %v8334, 104
      %v8419 = vpop.permute.xlu0 %8418
      %8420 = vrot.lane.b32.xlu0 %v8338, 104
      %v8421 = vpop.permute.xlu0 %8420
      %8422 = vrot.lane.b32.xlu0 %v8341, 104
      %v8423 = vpop.permute.xlu0 %8422
      %8424 = vrot.lane.b32.xlu0 %v8345, 104
      %v8425 = vpop.permute.xlu0 %8424
      %8426 = vrot.lane.b32.xlu0 %v8348, 104
      %v8427 = vpop.permute.xlu0 %8426
      %8428 = vrot.lane.b32.xlu0 %v8352, 104
      %v8429 = vpop.permute.xlu0 %8428
      %8430 = vrot.lane.b32.xlu0 %v8355, 104
      %v8431 = vpop.permute.xlu0 %8430
      %8432 = vrot.lane.b32.xlu0 %v8359, 104
      %v8433 = vpop.permute.xlu0 %8432
      %8434 = vrot.lane.b32.xlu0 %v8362, 104
      %v8435 = vpop.permute.xlu0 %8434
      %8436 = vrot.lane.b32.xlu0 %v8366, 104
      %v8437 = vpop.permute.xlu0 %8436
      %8438 = vrot.lane.b32.xlu0 %v8369, 104
      %v8439 = vpop.permute.xlu0 %8438
      %8440 = vrot.lane.b32.xlu0 %v8373, 104
      %v8441 = vpop.permute.xlu0 %8440
      %8442 = vrot.lane.b32.xlu0 %v8376, 104
      %v8443 = vpop.permute.xlu0 %8442
      %8444 = vrot.lane.b32.xlu0 %v8380, 104
      %v8445 = vpop.permute.xlu0 %8444
      %8446 = vrot.lane.b32.xlu0 %v8383, 104
      %v8447 = vpop.permute.xlu0 %8446
      %vm8480 = vcmask 880448
      %8481 = vst.msk [vmem:[#allocation2] sm:$0xf] %vm8480, %v8385
      %8482 = vst.msk [vmem:[#allocation2 + $0x4] sm:$0xf] %vm8480, %v8387
      %8483 = vst.msk [vmem:[#allocation2 + $0x8] sm:$0xf] %vm8480, %v8389
      %8484 = vst.msk [vmem:[#allocation2 + $0xc] sm:$0xf] %vm8480, %v8391
      %8485 = vst.msk [vmem:[#allocation2 + $0x10] sm:$0xf] %vm8480, %v8393
      %8486 = vst.msk [vmem:[#allocation2 + $0x14] sm:$0xf] %vm8480, %v8395
      %8487 = vst.msk [vmem:[#allocation2 + $0x18] sm:$0xf] %vm8480, %v8397
      %8488 = vst.msk [vmem:[#allocation2 + $0x1c] sm:$0xf] %vm8480, %v8399
      %8489 = vst.msk [vmem:[#allocation2 + $0x20] sm:$0xf] %vm8480, %v8401
      %8490 = vst.msk [vmem:[#allocation2 + $0x24] sm:$0xf] %vm8480, %v8403
      %8491 = vst.msk [vmem:[#allocation2 + $0x28] sm:$0xf] %vm8480, %v8405
      %8492 = vst.msk [vmem:[#allocation2 + $0x2c] sm:$0xf] %vm8480, %v8407
      %8493 = vst.msk [vmem:[#allocation2 + $0x30] sm:$0xf] %vm8480, %v8409
      %8494 = vst.msk [vmem:[#allocation2 + $0x34] sm:$0xf] %vm8480, %v8411
      %8495 = vst.msk [vmem:[#allocation2 + $0x38] sm:$0xf] %vm8480, %v8413
      %8496 = vst.msk [vmem:[#allocation2 + $0x3c] sm:$0xf] %vm8480, %v8415
      %8497 = vst.msk [vmem:[#allocation2 + $0x40] sm:$0xf] %vm8480, %v8417
      %8498 = vst.msk [vmem:[#allocation2 + $0x44] sm:$0xf] %vm8480, %v8419
      %8499 = vst.msk [vmem:[#allocation2 + $0x48] sm:$0xf] %vm8480, %v8421
      %8500 = vst.msk [vmem:[#allocation2 + $0x4c] sm:$0xf] %vm8480, %v8423
      %8501 = vst.msk [vmem:[#allocation2 + $0x50] sm:$0xf] %vm8480, %v8425
      %8502 = vst.msk [vmem:[#allocation2 + $0x54] sm:$0xf] %vm8480, %v8427
      %8503 = vst.msk [vmem:[#allocation2 + $0x58] sm:$0xf] %vm8480, %v8429
      %8504 = vst.msk [vmem:[#allocation2 + $0x5c] sm:$0xf] %vm8480, %v8431
      %8505 = vst.msk [vmem:[#allocation2 + $0x60] sm:$0xf] %vm8480, %v8433
      %8506 = vst.msk [vmem:[#allocation2 + $0x64] sm:$0xf] %vm8480, %v8435
      %8507 = vst.msk [vmem:[#allocation2 + $0x68] sm:$0xf] %vm8480, %v8437
      %8508 = vst.msk [vmem:[#allocation2 + $0x6c] sm:$0xf] %vm8480, %v8439
      %8509 = vst.msk [vmem:[#allocation2 + $0x70] sm:$0xf] %vm8480, %v8441
      %8510 = vst.msk [vmem:[#allocation2 + $0x74] sm:$0xf] %vm8480, %v8443
      %8511 = vst.msk [vmem:[#allocation2 + $0x78] sm:$0xf] %vm8480, %v8445
      %8512 = vst.msk [vmem:[#allocation2 + $0x7c] sm:$0xf] %vm8480, %v8447
      %v8513 = vld [vmem:[#allocation2] sm:$0xf]
      %v8514 = vld [vmem:[#allocation2 + $0x4] sm:$0xf]
      %v8515 = vld [vmem:[#allocation2 + $0x8] sm:$0xf]
      %v8516 = vld [vmem:[#allocation2 + $0xc] sm:$0xf]
      %v8517 = vld [vmem:[#allocation2 + $0x10] sm:$0xf]
      %v8518 = vld [vmem:[#allocation2 + $0x14] sm:$0xf]
      %v8519 = vld [vmem:[#allocation2 + $0x18] sm:$0xf]
      %v8520 = vld [vmem:[#allocation2 + $0x1c] sm:$0xf]
      %v8521 = vld [vmem:[#allocation2 + $0x20] sm:$0xf]
      %v8522 = vld [vmem:[#allocation2 + $0x24] sm:$0xf]
      %v8523 = vld [vmem:[#allocation2 + $0x28] sm:$0xf]
      %v8524 = vld [vmem:[#allocation2 + $0x2c] sm:$0xf]
      %v8525 = vld [vmem:[#allocation2 + $0x30] sm:$0xf]
      %v8526 = vld [vmem:[#allocation2 + $0x34] sm:$0xf]
      %v8527 = vld [vmem:[#allocation2 + $0x38] sm:$0xf]
      %v8528 = vld [vmem:[#allocation2 + $0x3c] sm:$0xf]
      %v8529 = vld [vmem:[#allocation2 + $0x40] sm:$0xf]
      %v8530 = vld [vmem:[#allocation2 + $0x44] sm:$0xf]
      %v8531 = vld [vmem:[#allocation2 + $0x48] sm:$0xf]
      %v8532 = vld [vmem:[#allocation2 + $0x4c] sm:$0xf]
      %v8533 = vld [vmem:[#allocation2 + $0x50] sm:$0xf]
      %v8534 = vld [vmem:[#allocation2 + $0x54] sm:$0xf]
      %v8535 = vld [vmem:[#allocation2 + $0x58] sm:$0xf]
      %v8536 = vld [vmem:[#allocation2 + $0x5c] sm:$0xf]
      %v8537 = vld [vmem:[#allocation2 + $0x60] sm:$0xf]
      %v8538 = vld [vmem:[#allocation2 + $0x64] sm:$0xf]
      %v8539 = vld [vmem:[#allocation2 + $0x68] sm:$0xf]
      %v8540 = vld [vmem:[#allocation2 + $0x6c] sm:$0xf]
      %v8541 = vld [vmem:[#allocation2 + $0x70] sm:$0xf]
      %v8542 = vld [vmem:[#allocation2 + $0x74] sm:$0xf]
      %v8543 = vld [vmem:[#allocation2 + $0x78] sm:$0xf]
      %v8544 = vld [vmem:[#allocation2 + $0x7c] sm:$0xf]
      %v8545 = vld [vmem:[%s2] sm:$0xff]
      %v8546 = vld [vmem:[%s2 + $0x8] sm:$0xf]
      %v8547 = vld [vmem:[%s2 + $0xc] sm:$0xff]
      %v8548 = vld [vmem:[%s2 + $0x14] sm:$0xf]
      %v8549 = vld [vmem:[%s2 + $0x18] sm:$0xff]
      %v8550 = vld [vmem:[%s2 + $0x20] sm:$0xf]
      %v8551 = vld [vmem:[%s2 + $0x24] sm:$0xff]
      %v8552 = vld [vmem:[%s2 + $0x2c] sm:$0xf]
      %v8553 = vld [vmem:[%s2 + $0x30] sm:$0xff]
      %v8554 = vld [vmem:[%s2 + $0x38] sm:$0xf]
      %v8555 = vld [vmem:[%s2 + $0x3c] sm:$0xff]
      %v8556 = vld [vmem:[%s2 + $0x44] sm:$0xf]
      %v8557 = vld [vmem:[%s2 + $0x48] sm:$0xff]
      %v8558 = vld [vmem:[%s2 + $0x50] sm:$0xf]
      %v8559 = vld [vmem:[%s2 + $0x54] sm:$0xff]
      %v8560 = vld [vmem:[%s2 + $0x5c] sm:$0xf]
      %v8561 = vld [vmem:[%s2 + $0x60] sm:$0xff]
      %v8562 = vld [vmem:[%s2 + $0x68] sm:$0xf]
      %v8563 = vld [vmem:[%s2 + $0x6c] sm:$0xff]
      %v8564 = vld [vmem:[%s2 + $0x74] sm:$0xf]
      %v8565 = vld [vmem:[%s2 + $0x78] sm:$0xff]
      %v8566 = vld [vmem:[%s2 + $0x80] sm:$0xf]
      %v8567 = vld [vmem:[%s2 + $0x84] sm:$0xff]
      %v8568 = vld [vmem:[%s2 + $0x8c] sm:$0xf]
      %v8569 = vld [vmem:[%s2 + $0x90] sm:$0xff]
      %v8570 = vld [vmem:[%s2 + $0x98] sm:$0xf]
      %v8571 = vld [vmem:[%s2 + $0x9c] sm:$0x33]
      %v8572 = vld [vmem:[%s2 + $0xa4] sm:$0x3]
      %v8573 = vld [vmem:[%s3] sm:$0x7]
      %v8575 = vlaneseq
      %v8576 = vshrl.u32 %v8575, 7
      %v8577 = vsub.s32 0, %v8576
      %v8578 = vrot.slane %v8573, %v8577
      %v8579 = vlaneseq
      %v8580 = vshrl.u32 %v8579, 7
      %v8581 = vsub.s32 1, %v8580
      %v8582 = vrot.slane %v8573, %v8581
      %v8583 = vlaneseq
      %v8584 = vshrl.u32 %v8583, 7
      %v8585 = vsub.s32 2, %v8584
      %v8586 = vrot.slane %v8573, %v8585
      %v8622 = vunpack.c.l.b16 %v8513
      %v8623 = vunpack.c.l.b16 %v8514
      %v8624 = vunpack.c.l.b16 %v8515
      %v8625 = vunpack.c.l.b16 %v8516
      %v8626 = vunpack.c.l.b16 %v8517
      %v8627 = vunpack.c.l.b16 %v8518
      %v8628 = vunpack.c.l.b16 %v8519
      %v8629 = vunpack.c.l.b16 %v8520
      %v8630 = vunpack.c.l.b16 %v8521
      %v8631 = vunpack.c.l.b16 %v8522
      %v8632 = vunpack.c.l.b16 %v8523
      %v8633 = vunpack.c.l.b16 %v8524
      %v8634 = vunpack.c.l.b16 %v8525
      %v8635 = vunpack.c.l.b16 %v8526
      %v8636 = vunpack.c.l.b16 %v8527
      %v8637 = vunpack.c.l.b16 %v8528
      %v8638 = vunpack.c.l.b16 %v8529
      %v8639 = vunpack.c.l.b16 %v8530
      %v8640 = vunpack.c.l.b16 %v8531
      %v8641 = vunpack.c.l.b16 %v8532
      %v8642 = vunpack.c.l.b16 %v8533
      %v8643 = vunpack.c.l.b16 %v8534
      %v8644 = vunpack.c.l.b16 %v8535
      %v8645 = vunpack.c.l.b16 %v8536
      %v8646 = vunpack.c.l.b16 %v8537
      %v8647 = vunpack.c.l.b16 %v8538
      %v8648 = vunpack.c.l.b16 %v8539
      %v8649 = vunpack.c.l.b16 %v8540
      %v8650 = vunpack.c.l.b16 %v8541
      %v8651 = vunpack.c.l.b16 %v8542
      %v8652 = vunpack.c.l.b16 %v8543
      %v8653 = vunpack.c.l.b16 %v8544
      %v8654 = vpack.c.b16 %v8623, %v8622
      %v8655 = vpack.c.b16 %v8625, %v8624
      %v8656 = vpack.c.b16 %v8627, %v8626
      %v8657 = vpack.c.b16 %v8629, %v8628
      %v8658 = vpack.c.b16 %v8631, %v8630
      %v8659 = vpack.c.b16 %v8633, %v8632
      %v8660 = vpack.c.b16 %v8635, %v8634
      %v8661 = vpack.c.b16 %v8637, %v8636
      %v8662 = vpack.c.b16 %v8639, %v8638
      %v8663 = vpack.c.b16 %v8641, %v8640
      %v8664 = vpack.c.b16 %v8643, %v8642
      %v8665 = vpack.c.b16 %v8645, %v8644
      %v8666 = vpack.c.b16 %v8647, %v8646
      %v8667 = vpack.c.b16 %v8649, %v8648
      %v8668 = vpack.c.b16 %v8651, %v8650
      %v8669 = vpack.c.b16 %v8653, %v8652
      %v8698 = vunpack.c.l.b16 %v8545
      %v8699 = vunpack.c.h.b16 %v8545
      %v8700 = vunpack.c.l.b16 %v8546
      %v8701 = vunpack.c.l.b16 %v8547
      %v8702 = vunpack.c.h.b16 %v8547
      %v8703 = vunpack.c.l.b16 %v8548
      %v8704 = vunpack.c.l.b16 %v8549
      %v8705 = vunpack.c.h.b16 %v8549
      %v8706 = vunpack.c.l.b16 %v8550
      %v8707 = vunpack.c.l.b16 %v8551
      %v8708 = vunpack.c.h.b16 %v8551
      %v8709 = vunpack.c.l.b16 %v8552
      %v8710 = vunpack.c.l.b16 %v8553
      %v8711 = vunpack.c.h.b16 %v8553
      %v8712 = vunpack.c.l.b16 %v8554
      %v8713 = vunpack.c.l.b16 %v8555
      %v8714 = vunpack.c.h.b16 %v8555
      %v8715 = vunpack.c.l.b16 %v8556
      %v8716 = vunpack.c.l.b16 %v8557
      %v8717 = vunpack.c.h.b16 %v8557
      %v8718 = vunpack.c.l.b16 %v8558
      %v8719 = vunpack.c.l.b16 %v8559
      %v8720 = vunpack.c.h.b16 %v8559
      %v8721 = vunpack.c.l.b16 %v8560
      %v8722 = vunpack.c.l.b16 %v8561
      %v8723 = vunpack.c.h.b16 %v8561
      %v8724 = vunpack.c.l.b16 %v8562
      %v8725 = vunpack.c.l.b16 %v8563
      %v8726 = vunpack.c.h.b16 %v8563
      %v8727 = vunpack.c.l.b16 %v8564
      %v8728 = vunpack.c.l.b16 %v8565
      %v8729 = vunpack.c.h.b16 %v8565
      %v8730 = vunpack.c.l.b16 %v8566
      %v8731 = vunpack.c.l.b16 %v8567
      %v8732 = vunpack.c.h.b16 %v8567
      %v8733 = vunpack.c.l.b16 %v8568
      %v8734 = vunpack.c.l.b16 %v8569
      %v8735 = vunpack.c.h.b16 %v8569
      %v8736 = vunpack.c.l.b16 %v8570
      %v8737 = vunpack.c.l.b16 %v8571
      %v8738 = vunpack.c.h.b16 %v8571
      %v8739 = vunpack.c.l.b16 %v8572
      %v8740 = vpack.c.b16 %v8701, %v8698
      %v8741 = vpack.c.b16 %v8702, %v8699
      %v8742 = vpack.c.b16 %v8703, %v8700
      %v8743 = vpack.c.b16 %v8707, %v8704
      %v8744 = vpack.c.b16 %v8708, %v8705
      %v8745 = vpack.c.b16 %v8709, %v8706
      %v8746 = vpack.c.b16 %v8713, %v8710
      %v8747 = vpack.c.b16 %v8714, %v8711
      %v8748 = vpack.c.b16 %v8715, %v8712
      %v8749 = vpack.c.b16 %v8719, %v8716
      %v8750 = vpack.c.b16 %v8720, %v8717
      %v8751 = vpack.c.b16 %v8721, %v8718
      %v8752 = vpack.c.b16 %v8725, %v8722
      %v8753 = vpack.c.b16 %v8726, %v8723
      %v8754 = vpack.c.b16 %v8727, %v8724
      %v8755 = vpack.c.b16 %v8731, %v8728
      %v8756 = vpack.c.b16 %v8732, %v8729
      %v8757 = vpack.c.b16 %v8733, %v8730
      %v8758 = vpack.c.b16 %v8737, %v8734
      %v8759 = vpack.c.b16 %v8738, %v8735
      %v8760 = vpack.c.b16 %v8739, %v8736
      %vm8779 = vcmask 883712
      %v8781 = vsel %vm8779, %v8654, 0
      %v8784 = vsel %vm8779, %v8655, 0
      %v8787 = vsel %vm8779, %v8656, 0
      %v8790 = vsel %vm8779, %v8657, 0
      %v8793 = vsel %vm8779, %v8658, 0
      %v8796 = vsel %vm8779, %v8659, 0
      %v8799 = vsel %vm8779, %v8660, 0
      %v8802 = vsel %vm8779, %v8661, 0
      %v8805 = vsel %vm8779, %v8662, 0
      %v8808 = vsel %vm8779, %v8663, 0
      %v8811 = vsel %vm8779, %v8664, 0
      %v8814 = vsel %vm8779, %v8665, 0
      %v8817 = vsel %vm8779, %v8666, 0
      %v8820 = vsel %vm8779, %v8667, 0
      %v8823 = vsel %vm8779, %v8668, 0
      %v8826 = vsel %vm8779, %v8669, 0
      %vm8828 = vcmask 1045504
      %v8830 = vsel %vm8828, %v8758, 0
      %v8833 = vsel %vm8828, %v8759, 0
      %v8836 = vsel %vm8828, %v8760, 0
      %8838 = vmatprep.subr.bf16.mxu0 0
      %8839 = vmatpush1.bf16.msra.mxu0 0
      %8840 = vmatprep.subr.bf16.mxu0 %v8833
      %8841 = vmatpush1.bf16.msra.mxu0 %v8830
      %8842 = vmatprep.subr.bf16.mxu0 %v8756
      %8843 = vmatpush1.bf16.msra.mxu0 %v8755
      %8844 = vmatprep.subr.bf16.mxu0 %v8753
      %8845 = vmatpush1.bf16.msra.mxu0 %v8752
      %8846 = vmatprep.subr.bf16.mxu0 %v8750
      %8847 = vmatpush1.bf16.msra.mxu0 %v8749
      %8848 = vmatprep.subr.bf16.mxu0 %v8747
      %8849 = vmatpush1.bf16.msra.mxu0 %v8746
      %8850 = vmatprep.subr.bf16.mxu0 %v8744
      %8851 = vmatpush1.bf16.msra.mxu0 %v8743
      %8852 = vmatprep.subr.bf16.mxu0 %v8741
      %8853 = vmatpush1.bf16.msra.mxu0 %v8740
      %8854 = vmatprep.subr.bf16.mxu0 0
      %8855 = vmatpush2.bf16.msra.mxu0 0
      %8856 = vmatprep.subr.bf16.mxu0 0
      %8857 = vmatpush2.bf16.msra.mxu0 0
      %8858 = vmatprep.subr.bf16.mxu0 0
      %8859 = vmatpush2.bf16.msra.mxu0 0
      %8860 = vmatprep.subr.bf16.mxu0 0
      %8861 = vmatpush2.bf16.msra.mxu0 0
      %8862 = vmatprep.subr.bf16.mxu0 0
      %8863 = vmatpush2.bf16.msra.mxu0 0
      %8864 = vmatprep.subr.bf16.mxu0 0
      %8865 = vmatpush2.bf16.msra.mxu0 0
      %8866 = vmatprep.subr.bf16.mxu0 0
      %8867 = vmatpush2.bf16.msra.mxu0 0
      %8868 = vmatprep.subr.bf16.mxu0 0
      %8869 = vmatpush2.bf16.msra.mxu0 0
      %8870 = vmatprep.mubr.bf16.mxu0 0
      %8871 = vmatmul.mubr.bf16.gmra.mxu0 %v8781
      %v8872 = vpop.f32.mrf.mxu0
      %v8873 = vadd.f32 %v8578, %v8872
      %v8874 = vpop.f32.mrf.mxu0
      %v8875 = vadd.f32 %v8582, %v8874
      %v8876 = vpop.f32.mrf.mxu0
      %v8877 = vadd.f32 %v8578, %v8876
      %v8878 = vpop.f32.mrf.mxu0
      %v8879 = vadd.f32 %v8582, %v8878
      %8880 = vmatprep.mubr.bf16.mxu0 0
      %8881 = vmatmul.mubr.bf16.gmra.mxu0 %v8784
      %v8882 = vpop.f32.mrf.mxu0
      %v8883 = vadd.f32 %v8578, %v8882
      %v8884 = vpop.f32.mrf.mxu0
      %v8885 = vadd.f32 %v8582, %v8884
      %v8886 = vpop.f32.mrf.mxu0
      %v8887 = vadd.f32 %v8578, %v8886
      %v8888 = vpop.f32.mrf.mxu0
      %v8889 = vadd.f32 %v8582, %v8888
      %8890 = vmatprep.mubr.bf16.mxu0 0
      %8891 = vmatmul.mubr.bf16.gmra.mxu0 %v8787
      %v8892 = vpop.f32.mrf.mxu0
      %v8893 = vadd.f32 %v8578, %v8892
      %v8894 = vpop.f32.mrf.mxu0
      %v8895 = vadd.f32 %v8582, %v8894
      %v8896 = vpop.f32.mrf.mxu0
      %v8897 = vadd.f32 %v8578, %v8896
      %v8898 = vpop.f32.mrf.mxu0
      %v8899 = vadd.f32 %v8582, %v8898
      %8900 = vmatprep.mubr.bf16.mxu0 0
      %8901 = vmatmul.mubr.bf16.gmra.mxu0 %v8790
      %v8902 = vpop.f32.mrf.mxu0
      %v8903 = vadd.f32 %v8578, %v8902
      %v8904 = vpop.f32.mrf.mxu0
      %v8905 = vadd.f32 %v8582, %v8904
      %v8906 = vpop.f32.mrf.mxu0
      %v8907 = vadd.f32 %v8578, %v8906
      %v8908 = vpop.f32.mrf.mxu0
      %v8909 = vadd.f32 %v8582, %v8908
      %8910 = vmatprep.mubr.bf16.mxu0 0
      %8911 = vmatmul.mubr.bf16.gmra.mxu0 %v8793
      %v8912 = vpop.f32.mrf.mxu0
      %v8913 = vadd.f32 %v8578, %v8912
      %v8914 = vpop.f32.mrf.mxu0
      %v8915 = vadd.f32 %v8582, %v8914
      %v8916 = vpop.f32.mrf.mxu0
      %v8917 = vadd.f32 %v8578, %v8916
      %v8918 = vpop.f32.mrf.mxu0
      %v8919 = vadd.f32 %v8582, %v8918
      %8920 = vmatprep.mubr.bf16.mxu0 0
      %8921 = vmatmul.mubr.bf16.gmra.mxu0 %v8796
      %v8922 = vpop.f32.mrf.mxu0
      %v8923 = vadd.f32 %v8578, %v8922
      %v8924 = vpop.f32.mrf.mxu0
      %v8925 = vadd.f32 %v8582, %v8924
      %v8926 = vpop.f32.mrf.mxu0
      %v8927 = vadd.f32 %v8578, %v8926
      %v8928 = vpop.f32.mrf.mxu0
      %v8929 = vadd.f32 %v8582, %v8928
      %8930 = vmatprep.mubr.bf16.mxu0 0
      %8931 = vmatmul.mubr.bf16.gmra.mxu0 %v8799
      %v8932 = vpop.f32.mrf.mxu0
      %v8933 = vadd.f32 %v8578, %v8932
      %v8934 = vpop.f32.mrf.mxu0
      %v8935 = vadd.f32 %v8582, %v8934
      %v8936 = vpop.f32.mrf.mxu0
      %v8937 = vadd.f32 %v8578, %v8936
      %v8938 = vpop.f32.mrf.mxu0
      %v8939 = vadd.f32 %v8582, %v8938
      %8940 = vmatprep.mubr.bf16.mxu0 0
      %8941 = vmatmul.mubr.bf16.gmra.mxu0 %v8802
      %v8942 = vpop.f32.mrf.mxu0
      %v8943 = vadd.f32 %v8578, %v8942
      %v8944 = vpop.f32.mrf.mxu0
      %v8945 = vadd.f32 %v8582, %v8944
      %v8946 = vpop.f32.mrf.mxu0
      %v8947 = vadd.f32 %v8578, %v8946
      %v8948 = vpop.f32.mrf.mxu0
      %v8949 = vadd.f32 %v8582, %v8948
      %8950 = vmatprep.mubr.bf16.mxu0 0
      %8951 = vmatmul.mubr.bf16.gmra.mxu0 %v8805
      %v8952 = vpop.f32.mrf.mxu0
      %v8953 = vadd.f32 %v8578, %v8952
      %v8954 = vpop.f32.mrf.mxu0
      %v8955 = vadd.f32 %v8582, %v8954
      %v8956 = vpop.f32.mrf.mxu0
      %v8957 = vadd.f32 %v8578, %v8956
      %v8958 = vpop.f32.mrf.mxu0
      %v8959 = vadd.f32 %v8582, %v8958
      %8960 = vmatprep.mubr.bf16.mxu0 0
      %8961 = vmatmul.mubr.bf16.gmra.mxu0 %v8808
      %v8962 = vpop.f32.mrf.mxu0
      %v8963 = vadd.f32 %v8578, %v8962
      %v8964 = vpop.f32.mrf.mxu0
      %v8965 = vadd.f32 %v8582, %v8964
      %v8966 = vpop.f32.mrf.mxu0
      %v8967 = vadd.f32 %v8578, %v8966
      %v8968 = vpop.f32.mrf.mxu0
      %v8969 = vadd.f32 %v8582, %v8968
      %8970 = vmatprep.mubr.bf16.mxu0 0
      %8971 = vmatmul.mubr.bf16.gmra.mxu0 %v8811
      %v8972 = vpop.f32.mrf.mxu0
      %v8973 = vadd.f32 %v8578, %v8972
      %v8974 = vpop.f32.mrf.mxu0
      %v8975 = vadd.f32 %v8582, %v8974
      %v8976 = vpop.f32.mrf.mxu0
      %v8977 = vadd.f32 %v8578, %v8976
      %v8978 = vpop.f32.mrf.mxu0
      %v8979 = vadd.f32 %v8582, %v8978
      %8980 = vmatprep.mubr.bf16.mxu0 0
      %8981 = vmatmul.mubr.bf16.gmra.mxu0 %v8814
      %v8982 = vpop.f32.mrf.mxu0
      %v8983 = vadd.f32 %v8578, %v8982
      %v8984 = vpop.f32.mrf.mxu0
      %v8985 = vadd.f32 %v8582, %v8984
      %v8986 = vpop.f32.mrf.mxu0
      %v8987 = vadd.f32 %v8578, %v8986
      %v8988 = vpop.f32.mrf.mxu0
      %v8989 = vadd.f32 %v8582, %v8988
      %8990 = vmatprep.mubr.bf16.mxu0 0
      %8991 = vmatmul.mubr.bf16.gmra.mxu0 %v8817
      %v8992 = vpop.f32.mrf.mxu0
      %v8993 = vadd.f32 %v8578, %v8992
      %v8994 = vpop.f32.mrf.mxu0
      %v8995 = vadd.f32 %v8582, %v8994
      %v8996 = vpop.f32.mrf.mxu0
      %v8997 = vadd.f32 %v8578, %v8996
      %v8998 = vpop.f32.mrf.mxu0
      %v8999 = vadd.f32 %v8582, %v8998
      %9000 = vmatprep.mubr.bf16.mxu0 0
      %9001 = vmatmul.mubr.bf16.gmra.mxu0 %v8820
      %v9002 = vpop.f32.mrf.mxu0
      %v9003 = vadd.f32 %v8578, %v9002
      %v9004 = vpop.f32.mrf.mxu0
      %v9005 = vadd.f32 %v8582, %v9004
      %v9006 = vpop.f32.mrf.mxu0
      %v9007 = vadd.f32 %v8578, %v9006
      %v9008 = vpop.f32.mrf.mxu0
      %v9009 = vadd.f32 %v8582, %v9008
      %9010 = vmatprep.mubr.bf16.mxu0 0
      %9011 = vmatmul.mubr.bf16.gmra.mxu0 %v8823
      %v9012 = vpop.f32.mrf.mxu0
      %v9013 = vadd.f32 %v8578, %v9012
      %v9014 = vpop.f32.mrf.mxu0
      %v9015 = vadd.f32 %v8582, %v9014
      %v9016 = vpop.f32.mrf.mxu0
      %v9017 = vadd.f32 %v8578, %v9016
      %v9018 = vpop.f32.mrf.mxu0
      %v9019 = vadd.f32 %v8582, %v9018
      %9020 = vmatprep.mubr.bf16.mxu0 0
      %9021 = vmatmul.mubr.bf16.gmra.mxu0 %v8826
      %v9022 = vpop.f32.mrf.mxu0
      %v9023 = vadd.f32 %v8578, %v9022
      %v9024 = vpop.f32.mrf.mxu0
      %v9025 = vadd.f32 %v8582, %v9024
      %v9026 = vpop.f32.mrf.mxu0
      %v9027 = vadd.f32 %v8578, %v9026
      %v9028 = vpop.f32.mrf.mxu0
      %v9029 = vadd.f32 %v8582, %v9028
      %9030 = vdwg.mxu0
      %9031 = vmatprep.subr.bf16.mxu0 0
      %9032 = vmatpush1.bf16.msra.mxu0 0
      %9033 = vmatprep.subr.bf16.mxu0 0
      %9034 = vmatpush1.bf16.msra.mxu0 %v8836
      %9035 = vmatprep.subr.bf16.mxu0 0
      %9036 = vmatpush1.bf16.msra.mxu0 %v8757
      %9037 = vmatprep.subr.bf16.mxu0 0
      %9038 = vmatpush1.bf16.msra.mxu0 %v8754
      %9039 = vmatprep.subr.bf16.mxu0 0
      %9040 = vmatpush1.bf16.msra.mxu0 %v8751
      %9041 = vmatprep.subr.bf16.mxu0 0
      %9042 = vmatpush1.bf16.msra.mxu0 %v8748
      %9043 = vmatprep.subr.bf16.mxu0 0
      %9044 = vmatpush1.bf16.msra.mxu0 %v8745
      %9045 = vmatprep.subr.bf16.mxu0 0
      %9046 = vmatpush1.bf16.msra.mxu0 %v8742
      %9047 = vmatprep.subr.bf16.mxu0 0
      %9048 = vmatpush2.bf16.msra.mxu0 0
      %9049 = vmatprep.subr.bf16.mxu0 0
      %9050 = vmatpush2.bf16.msra.mxu0 0
      %9051 = vmatprep.subr.bf16.mxu0 0
      %9052 = vmatpush2.bf16.msra.mxu0 0
      %9053 = vmatprep.subr.bf16.mxu0 0
      %9054 = vmatpush2.bf16.msra.mxu0 0
      %9055 = vmatprep.subr.bf16.mxu0 0
      %9056 = vmatpush2.bf16.msra.mxu0 0
      %9057 = vmatprep.subr.bf16.mxu0 0
      %9058 = vmatpush2.bf16.msra.mxu0 0
      %9059 = vmatprep.subr.bf16.mxu0 0
      %9060 = vmatpush2.bf16.msra.mxu0 0
      %9061 = vmatprep.subr.bf16.mxu0 0
      %9062 = vmatpush2.bf16.msra.mxu0 0
      %9063 = vmatprep.mubr.bf16.mxu0 0
      %9064 = vmatmul.mubr.bf16.gmra.mxu0 %v8781
      %v9065 = vpop.f32.mrf.mxu0
      %v9066 = vadd.f32 %v8586, %v9065
      %v9067 = vpop.f32.mrf.mxu0
      %v9068 = vpop.f32.mrf.mxu0
      %v9069 = vadd.f32 %v8586, %v9068
      %v9070 = vpop.f32.mrf.mxu0
      %9071 = vmatprep.mubr.bf16.mxu0 0
      %9072 = vmatmul.mubr.bf16.gmra.mxu0 %v8784
      %v9073 = vpop.f32.mrf.mxu0
      %v9074 = vadd.f32 %v8586, %v9073
      %v9075 = vpop.f32.mrf.mxu0
      %v9076 = vpop.f32.mrf.mxu0
      %v9077 = vadd.f32 %v8586, %v9076
      %v9078 = vpop.f32.mrf.mxu0
      %9079 = vmatprep.mubr.bf16.mxu0 0
      %9080 = vmatmul.mubr.bf16.gmra.mxu0 %v8787
      %v9081 = vpop.f32.mrf.mxu0
      %v9082 = vadd.f32 %v8586, %v9081
      %v9083 = vpop.f32.mrf.mxu0
      %v9084 = vpop.f32.mrf.mxu0
      %v9085 = vadd.f32 %v8586, %v9084
      %v9086 = vpop.f32.mrf.mxu0
      %9087 = vmatprep.mubr.bf16.mxu0 0
      %9088 = vmatmul.mubr.bf16.gmra.mxu0 %v8790
      %v9089 = vpop.f32.mrf.mxu0
      %v9090 = vadd.f32 %v8586, %v9089
      %v9091 = vpop.f32.mrf.mxu0
      %v9092 = vpop.f32.mrf.mxu0
      %v9093 = vadd.f32 %v8586, %v9092
      %v9094 = vpop.f32.mrf.mxu0
      %9095 = vmatprep.mubr.bf16.mxu0 0
      %9096 = vmatmul.mubr.bf16.gmra.mxu0 %v8793
      %v9097 = vpop.f32.mrf.mxu0
      %v9098 = vadd.f32 %v8586, %v9097
      %v9099 = vpop.f32.mrf.mxu0
      %v9100 = vpop.f32.mrf.mxu0
      %v9101 = vadd.f32 %v8586, %v9100
      %v9102 = vpop.f32.mrf.mxu0
      %9103 = vmatprep.mubr.bf16.mxu0 0
      %9104 = vmatmul.mubr.bf16.gmra.mxu0 %v8796
      %v9105 = vpop.f32.mrf.mxu0
      %v9106 = vadd.f32 %v8586, %v9105
      %v9107 = vpop.f32.mrf.mxu0
      %v9108 = vpop.f32.mrf.mxu0
      %v9109 = vadd.f32 %v8586, %v9108
      %v9110 = vpop.f32.mrf.mxu0
      %9111 = vmatprep.mubr.bf16.mxu0 0
      %9112 = vmatmul.mubr.bf16.gmra.mxu0 %v8799
      %v9113 = vpop.f32.mrf.mxu0
      %v9114 = vadd.f32 %v8586, %v9113
      %v9115 = vpop.f32.mrf.mxu0
      %v9116 = vpop.f32.mrf.mxu0
      %v9117 = vadd.f32 %v8586, %v9116
      %v9118 = vpop.f32.mrf.mxu0
      %9119 = vmatprep.mubr.bf16.mxu0 0
      %9120 = vmatmul.mubr.bf16.gmra.mxu0 %v8802
      %v9121 = vpop.f32.mrf.mxu0
      %v9122 = vadd.f32 %v8586, %v9121
      %v9123 = vpop.f32.mrf.mxu0
      %v9124 = vpop.f32.mrf.mxu0
      %v9125 = vadd.f32 %v8586, %v9124
      %v9126 = vpop.f32.mrf.mxu0
      %9127 = vmatprep.mubr.bf16.mxu0 0
      %9128 = vmatmul.mubr.bf16.gmra.mxu0 %v8805
      %v9129 = vpop.f32.mrf.mxu0
      %v9130 = vadd.f32 %v8586, %v9129
      %v9131 = vpop.f32.mrf.mxu0
      %v9132 = vpop.f32.mrf.mxu0
      %v9133 = vadd.f32 %v8586, %v9132
      %v9134 = vpop.f32.mrf.mxu0
      %9135 = vmatprep.mubr.bf16.mxu0 0
      %9136 = vmatmul.mubr.bf16.gmra.mxu0 %v8808
      %v9137 = vpop.f32.mrf.mxu0
      %v9138 = vadd.f32 %v8586, %v9137
      %v9139 = vpop.f32.mrf.mxu0
      %v9140 = vpop.f32.mrf.mxu0
      %v9141 = vadd.f32 %v8586, %v9140
      %v9142 = vpop.f32.mrf.mxu0
      %9143 = vmatprep.mubr.bf16.mxu0 0
      %9144 = vmatmul.mubr.bf16.gmra.mxu0 %v8811
      %v9145 = vpop.f32.mrf.mxu0
      %v9146 = vadd.f32 %v8586, %v9145
      %v9147 = vpop.f32.mrf.mxu0
      %v9148 = vpop.f32.mrf.mxu0
      %v9149 = vadd.f32 %v8586, %v9148
      %v9150 = vpop.f32.mrf.mxu0
      %9151 = vmatprep.mubr.bf16.mxu0 0
      %9152 = vmatmul.mubr.bf16.gmra.mxu0 %v8814
      %v9153 = vpop.f32.mrf.mxu0
      %v9154 = vadd.f32 %v8586, %v9153
      %v9155 = vpop.f32.mrf.mxu0
      %v9156 = vpop.f32.mrf.mxu0
      %v9157 = vadd.f32 %v8586, %v9156
      %v9158 = vpop.f32.mrf.mxu0
      %9159 = vmatprep.mubr.bf16.mxu0 0
      %9160 = vmatmul.mubr.bf16.gmra.mxu0 %v8817
      %v9161 = vpop.f32.mrf.mxu0
      %v9162 = vadd.f32 %v8586, %v9161
      %v9163 = vpop.f32.mrf.mxu0
      %v9164 = vpop.f32.mrf.mxu0
      %v9165 = vadd.f32 %v8586, %v9164
      %v9166 = vpop.f32.mrf.mxu0
      %9167 = vmatprep.mubr.bf16.mxu0 0
      %9168 = vmatmul.mubr.bf16.gmra.mxu0 %v8820
      %v9169 = vpop.f32.mrf.mxu0
      %v9170 = vadd.f32 %v8586, %v9169
      %v9171 = vpop.f32.mrf.mxu0
      %v9172 = vpop.f32.mrf.mxu0
      %v9173 = vadd.f32 %v8586, %v9172
      %v9174 = vpop.f32.mrf.mxu0
      %9175 = vmatprep.mubr.bf16.mxu0 0
      %9176 = vmatmul.mubr.bf16.gmra.mxu0 %v8823
      %v9177 = vpop.f32.mrf.mxu0
      %v9178 = vadd.f32 %v8586, %v9177
      %v9179 = vpop.f32.mrf.mxu0
      %v9180 = vpop.f32.mrf.mxu0
      %v9181 = vadd.f32 %v8586, %v9180
      %v9182 = vpop.f32.mrf.mxu0
      %9183 = vmatprep.mubr.bf16.mxu0 0
      %9184 = vmatmul.mubr.bf16.gmra.mxu0 %v8826
      %v9185 = vpop.f32.mrf.mxu0
      %v9186 = vadd.f32 %v8586, %v9185
      %v9187 = vpop.f32.mrf.mxu0
      %v9188 = vpop.f32.mrf.mxu0
      %v9189 = vadd.f32 %v8586, %v9188
      %v9190 = vpop.f32.mrf.mxu0
      %9191 = vdwg.mxu0
      %v9192 = vmax.f32 %v8873, 0.0
      %v9193 = vmax.f32 %v8875, 0.0
      %v9194 = vmax.f32 %v9066, 0.0
      %v9195 = vmax.f32 %v8877, 0.0
      %v9196 = vmax.f32 %v8879, 0.0
      %v9197 = vmax.f32 %v9069, 0.0
      %v9198 = vmax.f32 %v8883, 0.0
      %v9199 = vmax.f32 %v8885, 0.0
      %v9200 = vmax.f32 %v9074, 0.0
      %v9201 = vmax.f32 %v8887, 0.0
      %v9202 = vmax.f32 %v8889, 0.0
      %v9203 = vmax.f32 %v9077, 0.0
      %v9204 = vmax.f32 %v8893, 0.0
      %v9205 = vmax.f32 %v8895, 0.0
      %v9206 = vmax.f32 %v9082, 0.0
      %v9207 = vmax.f32 %v8897, 0.0
      %v9208 = vmax.f32 %v8899, 0.0
      %v9209 = vmax.f32 %v9085, 0.0
      %v9210 = vmax.f32 %v8903, 0.0
      %v9211 = vmax.f32 %v8905, 0.0
      %v9212 = vmax.f32 %v9090, 0.0
      %v9213 = vmax.f32 %v8907, 0.0
      %v9214 = vmax.f32 %v8909, 0.0
      %v9215 = vmax.f32 %v9093, 0.0
      %v9216 = vmax.f32 %v8913, 0.0
      %v9217 = vmax.f32 %v8915, 0.0
      %v9218 = vmax.f32 %v9098, 0.0
      %v9219 = vmax.f32 %v8917, 0.0
      %v9220 = vmax.f32 %v8919, 0.0
      %v9221 = vmax.f32 %v9101, 0.0
      %v9222 = vmax.f32 %v8923, 0.0
      %v9223 = vmax.f32 %v8925, 0.0
      %v9224 = vmax.f32 %v9106, 0.0
      %v9225 = vmax.f32 %v8927, 0.0
      %v9226 = vmax.f32 %v8929, 0.0
      %v9227 = vmax.f32 %v9109, 0.0
      %v9228 = vmax.f32 %v8933, 0.0
      %v9229 = vmax.f32 %v8935, 0.0
      %v9230 = vmax.f32 %v9114, 0.0
      %v9231 = vmax.f32 %v8937, 0.0
      %v9232 = vmax.f32 %v8939, 0.0
      %v9233 = vmax.f32 %v9117, 0.0
      %v9234 = vmax.f32 %v8943, 0.0
      %v9235 = vmax.f32 %v8945, 0.0
      %v9236 = vmax.f32 %v9122, 0.0
      %v9237 = vmax.f32 %v8947, 0.0
      %v9238 = vmax.f32 %v8949, 0.0
      %v9239 = vmax.f32 %v9125, 0.0
      %v9240 = vmax.f32 %v8953, 0.0
      %v9241 = vmax.f32 %v8955, 0.0
      %v9242 = vmax.f32 %v9130, 0.0
      %v9243 = vmax.f32 %v8957, 0.0
      %v9244 = vmax.f32 %v8959, 0.0
      %v9245 = vmax.f32 %v9133, 0.0
      %v9246 = vmax.f32 %v8963, 0.0
      %v9247 = vmax.f32 %v8965, 0.0
      %v9248 = vmax.f32 %v9138, 0.0
      %v9249 = vmax.f32 %v8967, 0.0
      %v9250 = vmax.f32 %v8969, 0.0
      %v9251 = vmax.f32 %v9141, 0.0
      %v9252 = vmax.f32 %v8973, 0.0
      %v9253 = vmax.f32 %v8975, 0.0
      %v9254 = vmax.f32 %v9146, 0.0
      %v9255 = vmax.f32 %v8977, 0.0
      %v9256 = vmax.f32 %v8979, 0.0
      %v9257 = vmax.f32 %v9149, 0.0
      %v9258 = vmax.f32 %v8983, 0.0
      %v9259 = vmax.f32 %v8985, 0.0
      %v9260 = vmax.f32 %v9154, 0.0
      %v9261 = vmax.f32 %v8987, 0.0
      %v9262 = vmax.f32 %v8989, 0.0
      %v9263 = vmax.f32 %v9157, 0.0
      %v9264 = vmax.f32 %v8993, 0.0
      %v9265 = vmax.f32 %v8995, 0.0
      %v9266 = vmax.f32 %v9162, 0.0
      %v9267 = vmax.f32 %v8997, 0.0
      %v9268 = vmax.f32 %v8999, 0.0
      %v9269 = vmax.f32 %v9165, 0.0
      %v9270 = vmax.f32 %v9003, 0.0
      %v9271 = vmax.f32 %v9005, 0.0
      %v9272 = vmax.f32 %v9170, 0.0
      %v9273 = vmax.f32 %v9007, 0.0
      %v9274 = vmax.f32 %v9009, 0.0
      %v9275 = vmax.f32 %v9173, 0.0
      %v9276 = vmax.f32 %v9013, 0.0
      %v9277 = vmax.f32 %v9015, 0.0
      %v9278 = vmax.f32 %v9178, 0.0
      %v9279 = vmax.f32 %v9017, 0.0
      %v9280 = vmax.f32 %v9019, 0.0
      %v9281 = vmax.f32 %v9181, 0.0
      %v9282 = vmax.f32 %v9023, 0.0
      %v9283 = vmax.f32 %v9025, 0.0
      %v9284 = vmax.f32 %v9186, 0.0
      %v9285 = vmax.f32 %v9027, 0.0
      %v9286 = vmax.f32 %v9029, 0.0
      %v9287 = vmax.f32 %v9189, 0.0
      %v9288 = vpack.c.bf16 %v9195, %v9192
      %v9289 = vpack.c.bf16 %v9196, %v9193
      %v9290 = vpack.c.bf16 %v9197, %v9194
      %v9291 = vpack.c.bf16 %v9201, %v9198
      %v9292 = vpack.c.bf16 %v9202, %v9199
      %v9293 = vpack.c.bf16 %v9203, %v9200
      %v9294 = vpack.c.bf16 %v9207, %v9204
      %v9295 = vpack.c.bf16 %v9208, %v9205
      %v9296 = vpack.c.bf16 %v9209, %v9206
      %v9297 = vpack.c.bf16 %v9213, %v9210
      %v9298 = vpack.c.bf16 %v9214, %v9211
      %v9299 = vpack.c.bf16 %v9215, %v9212
      %v9300 = vpack.c.bf16 %v9219, %v9216
      %v9301 = vpack.c.bf16 %v9220, %v9217
      %v9302 = vpack.c.bf16 %v9221, %v9218
      %v9303 = vpack.c.bf16 %v9225, %v9222
      %v9304 = vpack.c.bf16 %v9226, %v9223
      %v9305 = vpack.c.bf16 %v9227, %v9224
      %v9306 = vpack.c.bf16 %v9231, %v9228
      %v9307 = vpack.c.bf16 %v9232, %v9229
      %v9308 = vpack.c.bf16 %v9233, %v9230
      %v9309 = vpack.c.bf16 %v9237, %v9234
      %v9310 = vpack.c.bf16 %v9238, %v9235
      %v9311 = vpack.c.bf16 %v9239, %v9236
      %v9312 = vpack.c.bf16 %v9243, %v9240
      %v9313 = vpack.c.bf16 %v9244, %v9241
      %v9314 = vpack.c.bf16 %v9245, %v9242
      %v9315 = vpack.c.bf16 %v9249, %v9246
      %v9316 = vpack.c.bf16 %v9250, %v9247
      %v9317 = vpack.c.bf16 %v9251, %v9248
      %v9318 = vpack.c.bf16 %v9255, %v9252
      %v9319 = vpack.c.bf16 %v9256, %v9253
      %v9320 = vpack.c.bf16 %v9257, %v9254
      %v9321 = vpack.c.bf16 %v9261, %v9258
      %v9322 = vpack.c.bf16 %v9262, %v9259
      %v9323 = vpack.c.bf16 %v9263, %v9260
      %v9324 = vpack.c.bf16 %v9267, %v9264
      %v9325 = vpack.c.bf16 %v9268, %v9265
      %v9326 = vpack.c.bf16 %v9269, %v9266
      %v9327 = vpack.c.bf16 %v9273, %v9270
      %v9328 = vpack.c.bf16 %v9274, %v9271
      %v9329 = vpack.c.bf16 %v9275, %v9272
      %v9330 = vpack.c.bf16 %v9279, %v9276
      %v9331 = vpack.c.bf16 %v9280, %v9277
      %v9332 = vpack.c.bf16 %v9281, %v9278
      %v9333 = vpack.c.bf16 %v9285, %v9282
      %v9334 = vpack.c.bf16 %v9286, %v9283
      %v9335 = vpack.c.bf16 %v9287, %v9284
      %v9336 = vld [vmem:[%s291] sm:$0xf]
      %v9337 = vld [vmem:[%s291 + $0x4] sm:$0xf]
      %v9338 = vld [vmem:[%s291 + $0x8] sm:$0xf]
      %v9339 = vld [vmem:[%s291 + $0xc] sm:$0xf]
      %v9340 = vld [vmem:[%s291 + $0x10] sm:$0xf]
      %v9341 = vld [vmem:[%s291 + $0x14] sm:$0xf]
      %v9342 = vld [vmem:[%s291 + $0x18] sm:$0xf]
      %v9343 = vld [vmem:[%s291 + $0x1c] sm:$0xf]
      %v9344 = vld [vmem:[%s291 + $0x20] sm:$0xf]
      %v9345 = vld [vmem:[%s291 + $0x24] sm:$0xf]
      %v9346 = vld [vmem:[%s291 + $0x28] sm:$0xf]
      %v9347 = vld [vmem:[%s291 + $0x2c] sm:$0xf]
      %v9348 = vld [vmem:[%s291 + $0x30] sm:$0xf]
      %v9349 = vld [vmem:[%s291 + $0x34] sm:$0xf]
      %v9350 = vld [vmem:[%s291 + $0x38] sm:$0xf]
      %v9351 = vld [vmem:[%s291 + $0x3c] sm:$0xf]
      %v9352 = vld [vmem:[%s291 + $0x40] sm:$0xf]
      %v9353 = vld [vmem:[%s291 + $0x44] sm:$0xf]
      %v9354 = vld [vmem:[%s291 + $0x48] sm:$0xf]
      %v9355 = vld [vmem:[%s291 + $0x4c] sm:$0xf]
      %v9356 = vld [vmem:[%s291 + $0x50] sm:$0xf]
      %v9357 = vld [vmem:[%s291 + $0x54] sm:$0xf]
      %v9358 = vld [vmem:[%s291 + $0x58] sm:$0xf]
      %v9359 = vld [vmem:[%s291 + $0x5c] sm:$0xf]
      %v9360 = vld [vmem:[%s291 + $0x60] sm:$0xf]
      %v9361 = vld [vmem:[%s291 + $0x64] sm:$0xf]
      %v9362 = vld [vmem:[%s291 + $0x68] sm:$0xf]
      %v9363 = vld [vmem:[%s291 + $0x6c] sm:$0xf]
      %v9364 = vld [vmem:[%s291 + $0x70] sm:$0xf]
      %v9365 = vld [vmem:[%s291 + $0x74] sm:$0xf]
      %v9366 = vld [vmem:[%s291 + $0x78] sm:$0xf]
      %v9367 = vld [vmem:[%s291 + $0x7c] sm:$0xf]
      %v9400 = vunpack.c.l.b16 %v9336
      %v9401 = vunpack.c.l.b16 %v9337
      %v9402 = vunpack.c.l.b16 %v9338
      %v9403 = vunpack.c.l.b16 %v9339
      %v9404 = vunpack.c.l.b16 %v9340
      %v9405 = vunpack.c.l.b16 %v9341
      %v9406 = vunpack.c.l.b16 %v9342
      %v9407 = vunpack.c.l.b16 %v9343
      %v9408 = vunpack.c.l.b16 %v9344
      %v9409 = vunpack.c.l.b16 %v9345
      %v9410 = vunpack.c.l.b16 %v9346
      %v9411 = vunpack.c.l.b16 %v9347
      %v9412 = vunpack.c.l.b16 %v9348
      %v9413 = vunpack.c.l.b16 %v9349
      %v9414 = vunpack.c.l.b16 %v9350
      %v9415 = vunpack.c.l.b16 %v9351
      %v9416 = vunpack.c.l.b16 %v9352
      %v9417 = vunpack.c.l.b16 %v9353
      %v9418 = vunpack.c.l.b16 %v9354
      %v9419 = vunpack.c.l.b16 %v9355
      %v9420 = vunpack.c.l.b16 %v9356
      %v9421 = vunpack.c.l.b16 %v9357
      %v9422 = vunpack.c.l.b16 %v9358
      %v9423 = vunpack.c.l.b16 %v9359
      %v9424 = vunpack.c.l.b16 %v9360
      %v9425 = vunpack.c.l.b16 %v9361
      %v9426 = vunpack.c.l.b16 %v9362
      %v9427 = vunpack.c.l.b16 %v9363
      %v9428 = vunpack.c.l.b16 %v9364
      %v9429 = vunpack.c.l.b16 %v9365
      %v9430 = vunpack.c.l.b16 %v9366
      %v9431 = vunpack.c.l.b16 %v9367
      %v9432 = vpack.c.b16 %v9401, %v9400
      %v9433 = vpack.c.b16 %v9403, %v9402
      %v9434 = vpack.c.b16 %v9405, %v9404
      %v9435 = vpack.c.b16 %v9407, %v9406
      %v9436 = vpack.c.b16 %v9409, %v9408
      %v9437 = vpack.c.b16 %v9411, %v9410
      %v9438 = vpack.c.b16 %v9413, %v9412
      %v9439 = vpack.c.b16 %v9415, %v9414
      %v9440 = vpack.c.b16 %v9417, %v9416
      %v9441 = vpack.c.b16 %v9419, %v9418
      %v9442 = vpack.c.b16 %v9421, %v9420
      %v9443 = vpack.c.b16 %v9423, %v9422
      %v9444 = vpack.c.b16 %v9425, %v9424
      %v9445 = vpack.c.b16 %v9427, %v9426
      %v9446 = vpack.c.b16 %v9429, %v9428
      %v9447 = vpack.c.b16 %v9431, %v9430
      %v9464 = vld [vmem:[%s4] sm:$0xf]
      %v9465 = vld [vmem:[%s4 + $0x4] sm:$0xf]
      %v9466 = vld [vmem:[%s4 + $0x8] sm:$0xf]
      %v9467 = vld [vmem:[%s4 + $0xc] sm:$0xf]
      %v9468 = vld [vmem:[%s4 + $0x10] sm:$0xf]
      %v9469 = vld [vmem:[%s4 + $0x14] sm:$0xf]
      %v9470 = vld [vmem:[%s4 + $0x18] sm:$0xf]
      %v9471 = vld [vmem:[%s4 + $0x1c] sm:$0xf]
      %v9472 = vld [vmem:[%s4 + $0x20] sm:$0xf]
      %v9473 = vld [vmem:[%s4 + $0x24] sm:$0xf]
      %v9474 = vld [vmem:[%s4 + $0x28] sm:$0xf]
      %v9475 = vld [vmem:[%s4 + $0x2c] sm:$0xf]
      %v9476 = vld [vmem:[%s4 + $0x30] sm:$0xf]
      %v9477 = vld [vmem:[%s4 + $0x34] sm:$0xf]
      %v9478 = vld [vmem:[%s4 + $0x38] sm:$0xf]
      %v9479 = vld [vmem:[%s4 + $0x3c] sm:$0xf]
      %v9480 = vld [vmem:[%s4 + $0x40] sm:$0xf]
      %v9481 = vld [vmem:[%s4 + $0x44] sm:$0xf]
      %v9482 = vld [vmem:[%s4 + $0x48] sm:$0xf]
      %v9483 = vld [vmem:[%s4 + $0x4c] sm:$0xf]
      %v9484 = vld [vmem:[%s4 + $0x50] sm:$0xf]
      %v9485 = vld [vmem:[%s4 + $0x54] sm:$0xf]
      %v9486 = vld [vmem:[%s4 + $0x58] sm:$0xf]
      %v9487 = vld [vmem:[%s4 + $0x5c] sm:$0xf]
      %v9488 = vld [vmem:[%s4 + $0x60] sm:$0xf]
      %v9489 = vld [vmem:[%s4 + $0x64] sm:$0xf]
      %v9490 = vld [vmem:[%s4 + $0x68] sm:$0xf]
      %v9491 = vld [vmem:[%s4 + $0x6c] sm:$0xf]
      %v9492 = vld [vmem:[%s4 + $0x70] sm:$0xf]
      %v9493 = vld [vmem:[%s4 + $0x74] sm:$0xf]
      %v9494 = vld [vmem:[%s4 + $0x78] sm:$0xf]
      %v9495 = vld [vmem:[%s4 + $0x7c] sm:$0xf]
      %v9496 = vld [vmem:[%s4 + $0x80] sm:$0xf]
      %v9497 = vld [vmem:[%s4 + $0x84] sm:$0xf]
      %v9498 = vld [vmem:[%s4 + $0x88] sm:$0xf]
      %v9499 = vld [vmem:[%s4 + $0x8c] sm:$0xf]
      %v9500 = vld [vmem:[%s4 + $0x90] sm:$0xf]
      %v9501 = vld [vmem:[%s4 + $0x94] sm:$0xf]
      %v9502 = vld [vmem:[%s4 + $0x98] sm:$0xf]
      %v9503 = vld [vmem:[%s4 + $0x9c] sm:$0xf]
      %v9504 = vld [vmem:[%s4 + $0xa0] sm:$0xf]
      %v9505 = vld [vmem:[%s4 + $0xa4] sm:$0xf]
      %v9506 = vld [vmem:[%s4 + $0xa8] sm:$0xf]
      %v9507 = vld [vmem:[%s4 + $0xac] sm:$0xf]
      %v9508 = vld [vmem:[%s4 + $0xb0] sm:$0xf]
      %v9509 = vld [vmem:[%s4 + $0xb4] sm:$0xf]
      %v9510 = vld [vmem:[%s4 + $0xb8] sm:$0xf]
      %v9511 = vld [vmem:[%s4 + $0xbc] sm:$0xf]
      %v9512 = vld [vmem:[%s4 + $0xc0] sm:$0xf]
      %v9513 = vld [vmem:[%s4 + $0xc4] sm:$0xf]
      %v9514 = vld [vmem:[%s4 + $0xc8] sm:$0xf]
      %v9515 = vld [vmem:[%s4 + $0xcc] sm:$0xf]
      %v9516 = vld [vmem:[%s4 + $0xd0] sm:$0xf]
      %v9517 = vld [vmem:[%s4 + $0xd4] sm:$0xf]
      %v9518 = vld [vmem:[%s4 + $0xd8] sm:$0xf]
      %v9519 = vld [vmem:[%s4 + $0xdc] sm:$0xf]
      %v9520 = vld [vmem:[%s4 + $0xe0] sm:$0xf]
      %v9521 = vld [vmem:[%s4 + $0xe4] sm:$0xf]
      %v9522 = vld [vmem:[%s4 + $0xe8] sm:$0xf]
      %v9523 = vld [vmem:[%s4 + $0xec] sm:$0xf]
      %v9524 = vld [vmem:[%s4 + $0xf0] sm:$0xf]
      %v9525 = vld [vmem:[%s4 + $0xf4] sm:$0xf]
      %v9526 = vld [vmem:[%s4 + $0xf8] sm:$0xf]
      %v9527 = vld [vmem:[%s4 + $0xfc] sm:$0xf]
      %v9528 = vld [vmem:[%s5] sm:$0x1]
      %v9530 = vlaneseq
      %v9531 = vshrl.u32 %v9530, 7
      %v9532 = vsub.s32 0, %v9531
      %v9533 = vrot.slane %v9528, %v9532
      %v9599 = vunpack.c.l.b16 %v9464
      %v9600 = vunpack.c.l.b16 %v9465
      %v9601 = vunpack.c.l.b16 %v9466
      %v9602 = vunpack.c.l.b16 %v9467
      %v9603 = vunpack.c.l.b16 %v9468
      %v9604 = vunpack.c.l.b16 %v9469
      %v9605 = vunpack.c.l.b16 %v9470
      %v9606 = vunpack.c.l.b16 %v9471
      %v9607 = vunpack.c.l.b16 %v9472
      %v9608 = vunpack.c.l.b16 %v9473
      %v9609 = vunpack.c.l.b16 %v9474
      %v9610 = vunpack.c.l.b16 %v9475
      %v9611 = vunpack.c.l.b16 %v9476
      %v9612 = vunpack.c.l.b16 %v9477
      %v9613 = vunpack.c.l.b16 %v9478
      %v9614 = vunpack.c.l.b16 %v9479
      %v9615 = vunpack.c.l.b16 %v9480
      %v9616 = vunpack.c.l.b16 %v9481
      %v9617 = vunpack.c.l.b16 %v9482
      %v9618 = vunpack.c.l.b16 %v9483
      %v9619 = vunpack.c.l.b16 %v9484
      %v9620 = vunpack.c.l.b16 %v9485
      %v9621 = vunpack.c.l.b16 %v9486
      %v9622 = vunpack.c.l.b16 %v9487
      %v9623 = vunpack.c.l.b16 %v9488
      %v9624 = vunpack.c.l.b16 %v9489
      %v9625 = vunpack.c.l.b16 %v9490
      %v9626 = vunpack.c.l.b16 %v9491
      %v9627 = vunpack.c.l.b16 %v9492
      %v9628 = vunpack.c.l.b16 %v9493
      %v9629 = vunpack.c.l.b16 %v9494
      %v9630 = vunpack.c.l.b16 %v9495
      %v9631 = vunpack.c.l.b16 %v9496
      %v9632 = vunpack.c.l.b16 %v9497
      %v9633 = vunpack.c.l.b16 %v9498
      %v9634 = vunpack.c.l.b16 %v9499
      %v9635 = vunpack.c.l.b16 %v9500
      %v9636 = vunpack.c.l.b16 %v9501
      %v9637 = vunpack.c.l.b16 %v9502
      %v9638 = vunpack.c.l.b16 %v9503
      %v9639 = vunpack.c.l.b16 %v9504
      %v9640 = vunpack.c.l.b16 %v9505
      %v9641 = vunpack.c.l.b16 %v9506
      %v9642 = vunpack.c.l.b16 %v9507
      %v9643 = vunpack.c.l.b16 %v9508
      %v9644 = vunpack.c.l.b16 %v9509
      %v9645 = vunpack.c.l.b16 %v9510
      %v9646 = vunpack.c.l.b16 %v9511
      %v9647 = vunpack.c.l.b16 %v9512
      %v9648 = vunpack.c.l.b16 %v9513
      %v9649 = vunpack.c.l.b16 %v9514
      %v9650 = vunpack.c.l.b16 %v9515
      %v9651 = vunpack.c.l.b16 %v9516
      %v9652 = vunpack.c.l.b16 %v9517
      %v9653 = vunpack.c.l.b16 %v9518
      %v9654 = vunpack.c.l.b16 %v9519
      %v9655 = vunpack.c.l.b16 %v9520
      %v9656 = vunpack.c.l.b16 %v9521
      %v9657 = vunpack.c.l.b16 %v9522
      %v9658 = vunpack.c.l.b16 %v9523
      %v9659 = vunpack.c.l.b16 %v9524
      %v9660 = vunpack.c.l.b16 %v9525
      %v9661 = vunpack.c.l.b16 %v9526
      %v9662 = vunpack.c.l.b16 %v9527
      %v9663 = vpack.c.b16 %v9600, %v9599
      %v9664 = vpack.c.b16 %v9602, %v9601
      %v9665 = vpack.c.b16 %v9604, %v9603
      %v9666 = vpack.c.b16 %v9606, %v9605
      %v9667 = vpack.c.b16 %v9608, %v9607
      %v9668 = vpack.c.b16 %v9610, %v9609
      %v9669 = vpack.c.b16 %v9612, %v9611
      %v9670 = vpack.c.b16 %v9614, %v9613
      %v9671 = vpack.c.b16 %v9616, %v9615
      %v9672 = vpack.c.b16 %v9618, %v9617
      %v9673 = vpack.c.b16 %v9620, %v9619
      %v9674 = vpack.c.b16 %v9622, %v9621
      %v9675 = vpack.c.b16 %v9624, %v9623
      %v9676 = vpack.c.b16 %v9626, %v9625
      %v9677 = vpack.c.b16 %v9628, %v9627
      %v9678 = vpack.c.b16 %v9630, %v9629
      %v9679 = vpack.c.b16 %v9632, %v9631
      %v9680 = vpack.c.b16 %v9634, %v9633
      %v9681 = vpack.c.b16 %v9636, %v9635
      %v9682 = vpack.c.b16 %v9638, %v9637
      %v9683 = vpack.c.b16 %v9640, %v9639
      %v9684 = vpack.c.b16 %v9642, %v9641
      %v9685 = vpack.c.b16 %v9644, %v9643
      %v9686 = vpack.c.b16 %v9646, %v9645
      %v9687 = vpack.c.b16 %v9648, %v9647
      %v9688 = vpack.c.b16 %v9650, %v9649
      %v9689 = vpack.c.b16 %v9652, %v9651
      %v9690 = vpack.c.b16 %v9654, %v9653
      %v9691 = vpack.c.b16 %v9656, %v9655
      %v9692 = vpack.c.b16 %v9658, %v9657
      %v9693 = vpack.c.b16 %v9660, %v9659
      %v9694 = vpack.c.b16 %v9662, %v9661
      %9727 = vmatprep.subr.bf16.mxu0 0
      %9728 = vmatpush1.bf16.msra.mxu0 %v9670
      %9729 = vmatprep.subr.bf16.mxu0 0
      %9730 = vmatpush1.bf16.msra.mxu0 %v9669
      %9731 = vmatprep.subr.bf16.mxu0 0
      %9732 = vmatpush1.bf16.msra.mxu0 %v9668
      %9733 = vmatprep.subr.bf16.mxu0 0
      %9734 = vmatpush1.bf16.msra.mxu0 %v9667
      %9735 = vmatprep.subr.bf16.mxu0 0
      %9736 = vmatpush1.bf16.msra.mxu0 %v9666
      %9737 = vmatprep.subr.bf16.mxu0 0
      %9738 = vmatpush1.bf16.msra.mxu0 %v9665
      %9739 = vmatprep.subr.bf16.mxu0 0
      %9740 = vmatpush1.bf16.msra.mxu0 %v9664
      %9741 = vmatprep.subr.bf16.mxu0 0
      %9742 = vmatpush1.bf16.msra.mxu0 %v9663
      %9743 = vmatprep.subr.bf16.mxu0 0
      %9744 = vmatpush2.bf16.msra.mxu0 %v9678
      %9745 = vmatprep.subr.bf16.mxu0 0
      %9746 = vmatpush2.bf16.msra.mxu0 %v9677
      %9747 = vmatprep.subr.bf16.mxu0 0
      %9748 = vmatpush2.bf16.msra.mxu0 %v9676
      %9749 = vmatprep.subr.bf16.mxu0 0
      %9750 = vmatpush2.bf16.msra.mxu0 %v9675
      %9751 = vmatprep.subr.bf16.mxu0 0
      %9752 = vmatpush2.bf16.msra.mxu0 %v9674
      %9753 = vmatprep.subr.bf16.mxu0 0
      %9754 = vmatpush2.bf16.msra.mxu0 %v9673
      %9755 = vmatprep.subr.bf16.mxu0 0
      %9756 = vmatpush2.bf16.msra.mxu0 %v9672
      %9757 = vmatprep.subr.bf16.mxu0 0
      %9758 = vmatpush2.bf16.msra.mxu0 %v9671
      %9759 = vmatprep.mubr.bf16.mxu0 %v9289
      %9760 = vmatmul.mubr.bf16.gmra.mxu0 %v9288
      %v9761 = vpop.f32.mrf.mxu0
      %v9762 = vadd.f32 %v9533, %v9761
      %v9763 = vpop.f32.mrf.mxu0
      %v9764 = vpop.f32.mrf.mxu0
      %v9765 = vadd.f32 %v9533, %v9764
      %v9766 = vpop.f32.mrf.mxu0
      %9767 = vmatprep.mubr.bf16.mxu0 %v9292
      %9768 = vmatmul.mubr.bf16.gmra.mxu0 %v9291
      %v9769 = vpop.f32.mrf.mxu0
      %v9770 = vadd.f32 %v9533, %v9769
      %v9771 = vpop.f32.mrf.mxu0
      %v9772 = vpop.f32.mrf.mxu0
      %v9773 = vadd.f32 %v9533, %v9772
      %v9774 = vpop.f32.mrf.mxu0
      %9775 = vmatprep.mubr.bf16.mxu0 %v9295
      %9776 = vmatmul.mubr.bf16.gmra.mxu0 %v9294
      %v9777 = vpop.f32.mrf.mxu0
      %v9778 = vadd.f32 %v9533, %v9777
      %v9779 = vpop.f32.mrf.mxu0
      %v9780 = vpop.f32.mrf.mxu0
      %v9781 = vadd.f32 %v9533, %v9780
      %v9782 = vpop.f32.mrf.mxu0
      %9783 = vmatprep.mubr.bf16.mxu0 %v9298
      %9784 = vmatmul.mubr.bf16.gmra.mxu0 %v9297
      %v9785 = vpop.f32.mrf.mxu0
      %v9786 = vadd.f32 %v9533, %v9785
      %v9787 = vpop.f32.mrf.mxu0
      %v9788 = vpop.f32.mrf.mxu0
      %v9789 = vadd.f32 %v9533, %v9788
      %v9790 = vpop.f32.mrf.mxu0
      %9791 = vmatprep.mubr.bf16.mxu0 %v9301
      %9792 = vmatmul.mubr.bf16.gmra.mxu0 %v9300
      %v9793 = vpop.f32.mrf.mxu0
      %v9794 = vadd.f32 %v9533, %v9793
      %v9795 = vpop.f32.mrf.mxu0
      %v9796 = vpop.f32.mrf.mxu0
      %v9797 = vadd.f32 %v9533, %v9796
      %v9798 = vpop.f32.mrf.mxu0
      %9799 = vmatprep.mubr.bf16.mxu0 %v9304
      %9800 = vmatmul.mubr.bf16.gmra.mxu0 %v9303
      %v9801 = vpop.f32.mrf.mxu0
      %v9802 = vadd.f32 %v9533, %v9801
      %v9803 = vpop.f32.mrf.mxu0
      %v9804 = vpop.f32.mrf.mxu0
      %v9805 = vadd.f32 %v9533, %v9804
      %v9806 = vpop.f32.mrf.mxu0
      %9807 = vmatprep.mubr.bf16.mxu0 %v9307
      %9808 = vmatmul.mubr.bf16.gmra.mxu0 %v9306
      %v9809 = vpop.f32.mrf.mxu0
      %v9810 = vadd.f32 %v9533, %v9809
      %v9811 = vpop.f32.mrf.mxu0
      %v9812 = vpop.f32.mrf.mxu0
      %v9813 = vadd.f32 %v9533, %v9812
      %v9814 = vpop.f32.mrf.mxu0
      %9815 = vmatprep.mubr.bf16.mxu0 %v9310
      %9816 = vmatmul.mubr.bf16.gmra.mxu0 %v9309
      %v9817 = vpop.f32.mrf.mxu0
      %v9818 = vadd.f32 %v9533, %v9817
      %v9819 = vpop.f32.mrf.mxu0
      %v9820 = vpop.f32.mrf.mxu0
      %v9821 = vadd.f32 %v9533, %v9820
      %v9822 = vpop.f32.mrf.mxu0
      %9823 = vmatprep.mubr.bf16.mxu0 %v9313
      %9824 = vmatmul.mubr.bf16.gmra.mxu0 %v9312
      %v9825 = vpop.f32.mrf.mxu0
      %v9826 = vadd.f32 %v9533, %v9825
      %v9827 = vpop.f32.mrf.mxu0
      %v9828 = vpop.f32.mrf.mxu0
      %v9829 = vadd.f32 %v9533, %v9828
      %v9830 = vpop.f32.mrf.mxu0
      %9831 = vmatprep.mubr.bf16.mxu0 %v9316
      %9832 = vmatmul.mubr.bf16.gmra.mxu0 %v9315
      %v9833 = vpop.f32.mrf.mxu0
      %v9834 = vadd.f32 %v9533, %v9833
      %v9835 = vpop.f32.mrf.mxu0
      %v9836 = vpop.f32.mrf.mxu0
      %v9837 = vadd.f32 %v9533, %v9836
      %v9838 = vpop.f32.mrf.mxu0
      %9839 = vmatprep.mubr.bf16.mxu0 %v9319
      %9840 = vmatmul.mubr.bf16.gmra.mxu0 %v9318
      %v9841 = vpop.f32.mrf.mxu0
      %v9842 = vadd.f32 %v9533, %v9841
      %v9843 = vpop.f32.mrf.mxu0
      %v9844 = vpop.f32.mrf.mxu0
      %v9845 = vadd.f32 %v9533, %v9844
      %v9846 = vpop.f32.mrf.mxu0
      %9847 = vmatprep.mubr.bf16.mxu0 %v9322
      %9848 = vmatmul.mubr.bf16.gmra.mxu0 %v9321
      %v9849 = vpop.f32.mrf.mxu0
      %v9850 = vadd.f32 %v9533, %v9849
      %v9851 = vpop.f32.mrf.mxu0
      %v9852 = vpop.f32.mrf.mxu0
      %v9853 = vadd.f32 %v9533, %v9852
      %v9854 = vpop.f32.mrf.mxu0
      %9855 = vmatprep.mubr.bf16.mxu0 %v9325
      %9856 = vmatmul.mubr.bf16.gmra.mxu0 %v9324
      %v9857 = vpop.f32.mrf.mxu0
      %v9858 = vadd.f32 %v9533, %v9857
      %v9859 = vpop.f32.mrf.mxu0
      %v9860 = vpop.f32.mrf.mxu0
      %v9861 = vadd.f32 %v9533, %v9860
      %v9862 = vpop.f32.mrf.mxu0
      %9863 = vmatprep.mubr.bf16.mxu0 %v9328
      %9864 = vmatmul.mubr.bf16.gmra.mxu0 %v9327
      %v9865 = vpop.f32.mrf.mxu0
      %v9866 = vadd.f32 %v9533, %v9865
      %v9867 = vpop.f32.mrf.mxu0
      %v9868 = vpop.f32.mrf.mxu0
      %v9869 = vadd.f32 %v9533, %v9868
      %v9870 = vpop.f32.mrf.mxu0
      %9871 = vmatprep.mubr.bf16.mxu0 %v9331
      %9872 = vmatmul.mubr.bf16.gmra.mxu0 %v9330
      %v9873 = vpop.f32.mrf.mxu0
      %v9874 = vadd.f32 %v9533, %v9873
      %v9875 = vpop.f32.mrf.mxu0
      %v9876 = vpop.f32.mrf.mxu0
      %v9877 = vadd.f32 %v9533, %v9876
      %v9878 = vpop.f32.mrf.mxu0
      %9879 = vmatprep.mubr.bf16.mxu0 %v9334
      %9880 = vmatmul.mubr.bf16.gmra.mxu0 %v9333
      %v9881 = vpop.f32.mrf.mxu0
      %v9882 = vadd.f32 %v9533, %v9881
      %v9883 = vpop.f32.mrf.mxu0
      %v9884 = vpop.f32.mrf.mxu0
      %v9885 = vadd.f32 %v9533, %v9884
      %v9886 = vpop.f32.mrf.mxu0
      %9887 = vdwg.mxu0
      %9888 = vmatprep.subr.bf16.mxu0 0
      %9889 = vmatpush1.bf16.msra.mxu0 %v9686
      %9890 = vmatprep.subr.bf16.mxu0 0
      %9891 = vmatpush1.bf16.msra.mxu0 %v9685
      %9892 = vmatprep.subr.bf16.mxu0 0
      %9893 = vmatpush1.bf16.msra.mxu0 %v9684
      %9894 = vmatprep.subr.bf16.mxu0 0
      %9895 = vmatpush1.bf16.msra.mxu0 %v9683
      %9896 = vmatprep.subr.bf16.mxu0 0
      %9897 = vmatpush1.bf16.msra.mxu0 %v9682
      %9898 = vmatprep.subr.bf16.mxu0 0
      %9899 = vmatpush1.bf16.msra.mxu0 %v9681
      %9900 = vmatprep.subr.bf16.mxu0 0
      %9901 = vmatpush1.bf16.msra.mxu0 %v9680
      %9902 = vmatprep.subr.bf16.mxu0 0
      %9903 = vmatpush1.bf16.msra.mxu0 %v9679
      %9904 = vmatprep.subr.bf16.mxu0 0
      %9905 = vmatpush2.bf16.msra.mxu0 %v9694
      %9906 = vmatprep.subr.bf16.mxu0 0
      %9907 = vmatpush2.bf16.msra.mxu0 %v9693
      %9908 = vmatprep.subr.bf16.mxu0 0
      %9909 = vmatpush2.bf16.msra.mxu0 %v9692
      %9910 = vmatprep.subr.bf16.mxu0 0
      %9911 = vmatpush2.bf16.msra.mxu0 %v9691
      %9912 = vmatprep.subr.bf16.mxu0 0
      %9913 = vmatpush2.bf16.msra.mxu0 %v9690
      %9914 = vmatprep.subr.bf16.mxu0 0
      %9915 = vmatpush2.bf16.msra.mxu0 %v9689
      %9916 = vmatprep.subr.bf16.mxu0 0
      %9917 = vmatpush2.bf16.msra.mxu0 %v9688
      %9918 = vmatprep.subr.bf16.mxu0 0
      %9919 = vmatpush2.bf16.msra.mxu0 %v9687
      %9920 = vmatprep.mubr.bf16.mxu0 %v9432
      %9921 = vmatmul.mubr.bf16.gmra.mxu0 %v9290
      %v9922 = vpop.f32.mrf.mxu0
      %v9923 = vadd.f32 %v9762, %v9922
      %v9924 = vpop.f32.mrf.mxu0
      %v9925 = vpop.f32.mrf.mxu0
      %v9926 = vadd.f32 %v9765, %v9925
      %v9927 = vpop.f32.mrf.mxu0
      %9928 = vmatprep.mubr.bf16.mxu0 %v9433
      %9929 = vmatmul.mubr.bf16.gmra.mxu0 %v9293
      %v9930 = vpop.f32.mrf.mxu0
      %v9931 = vadd.f32 %v9770, %v9930
      %v9932 = vpop.f32.mrf.mxu0
      %v9933 = vpop.f32.mrf.mxu0
      %v9934 = vadd.f32 %v9773, %v9933
      %v9935 = vpop.f32.mrf.mxu0
      %9936 = vmatprep.mubr.bf16.mxu0 %v9434
      %9937 = vmatmul.mubr.bf16.gmra.mxu0 %v9296
      %v9938 = vpop.f32.mrf.mxu0
      %v9939 = vadd.f32 %v9778, %v9938
      %v9940 = vpop.f32.mrf.mxu0
      %v9941 = vpop.f32.mrf.mxu0
      %v9942 = vadd.f32 %v9781, %v9941
      %v9943 = vpop.f32.mrf.mxu0
      %9944 = vmatprep.mubr.bf16.mxu0 %v9435
      %9945 = vmatmul.mubr.bf16.gmra.mxu0 %v9299
      %v9946 = vpop.f32.mrf.mxu0
      %v9947 = vadd.f32 %v9786, %v9946
      %v9948 = vpop.f32.mrf.mxu0
      %v9949 = vpop.f32.mrf.mxu0
      %v9950 = vadd.f32 %v9789, %v9949
      %v9951 = vpop.f32.mrf.mxu0
      %9952 = vmatprep.mubr.bf16.mxu0 %v9436
      %9953 = vmatmul.mubr.bf16.gmra.mxu0 %v9302
      %v9954 = vpop.f32.mrf.mxu0
      %v9955 = vadd.f32 %v9794, %v9954
      %v9956 = vpop.f32.mrf.mxu0
      %v9957 = vpop.f32.mrf.mxu0
      %v9958 = vadd.f32 %v9797, %v9957
      %v9959 = vpop.f32.mrf.mxu0
      %9960 = vmatprep.mubr.bf16.mxu0 %v9437
      %9961 = vmatmul.mubr.bf16.gmra.mxu0 %v9305
      %v9962 = vpop.f32.mrf.mxu0
      %v9963 = vadd.f32 %v9802, %v9962
      %v9964 = vpop.f32.mrf.mxu0
      %v9965 = vpop.f32.mrf.mxu0
      %v9966 = vadd.f32 %v9805, %v9965
      %v9967 = vpop.f32.mrf.mxu0
      %9968 = vmatprep.mubr.bf16.mxu0 %v9438
      %9969 = vmatmul.mubr.bf16.gmra.mxu0 %v9308
      %v9970 = vpop.f32.mrf.mxu0
      %v9971 = vadd.f32 %v9810, %v9970
      %v9972 = vpop.f32.mrf.mxu0
      %v9973 = vpop.f32.mrf.mxu0
      %v9974 = vadd.f32 %v9813, %v9973
      %v9975 = vpop.f32.mrf.mxu0
      %9976 = vmatprep.mubr.bf16.mxu0 %v9439
      %9977 = vmatmul.mubr.bf16.gmra.mxu0 %v9311
      %v9978 = vpop.f32.mrf.mxu0
      %v9979 = vadd.f32 %v9818, %v9978
      %v9980 = vpop.f32.mrf.mxu0
      %v9981 = vpop.f32.mrf.mxu0
      %v9982 = vadd.f32 %v9821, %v9981
      %v9983 = vpop.f32.mrf.mxu0
      %9984 = vmatprep.mubr.bf16.mxu0 %v9440
      %9985 = vmatmul.mubr.bf16.gmra.mxu0 %v9314
      %v9986 = vpop.f32.mrf.mxu0
      %v9987 = vadd.f32 %v9826, %v9986
      %v9988 = vpop.f32.mrf.mxu0
      %v9989 = vpop.f32.mrf.mxu0
      %v9990 = vadd.f32 %v9829, %v9989
      %v9991 = vpop.f32.mrf.mxu0
      %9992 = vmatprep.mubr.bf16.mxu0 %v9441
      %9993 = vmatmul.mubr.bf16.gmra.mxu0 %v9317
      %v9994 = vpop.f32.mrf.mxu0
      %v9995 = vadd.f32 %v9834, %v9994
      %v9996 = vpop.f32.mrf.mxu0
      %v9997 = vpop.f32.mrf.mxu0
      %v9998 = vadd.f32 %v9837, %v9997
      %v9999 = vpop.f32.mrf.mxu0
      %10000 = vmatprep.mubr.bf16.mxu0 %v9442
      %10001 = vmatmul.mubr.bf16.gmra.mxu0 %v9320
      %v10002 = vpop.f32.mrf.mxu0
      %v10003 = vadd.f32 %v9842, %v10002
      %v10004 = vpop.f32.mrf.mxu0
      %v10005 = vpop.f32.mrf.mxu0
      %v10006 = vadd.f32 %v9845, %v10005
      %v10007 = vpop.f32.mrf.mxu0
      %10008 = vmatprep.mubr.bf16.mxu0 %v9443
      %10009 = vmatmul.mubr.bf16.gmra.mxu0 %v9323
      %v10010 = vpop.f32.mrf.mxu0
      %v10011 = vadd.f32 %v9850, %v10010
      %v10012 = vpop.f32.mrf.mxu0
      %v10013 = vpop.f32.mrf.mxu0
      %v10014 = vadd.f32 %v9853, %v10013
      %v10015 = vpop.f32.mrf.mxu0
      %10016 = vmatprep.mubr.bf16.mxu0 %v9444
      %10017 = vmatmul.mubr.bf16.gmra.mxu0 %v9326
      %v10018 = vpop.f32.mrf.mxu0
      %v10019 = vadd.f32 %v9858, %v10018
      %v10020 = vpop.f32.mrf.mxu0
      %v10021 = vpop.f32.mrf.mxu0
      %v10022 = vadd.f32 %v9861, %v10021
      %v10023 = vpop.f32.mrf.mxu0
      %10024 = vmatprep.mubr.bf16.mxu0 %v9445
      %10025 = vmatmul.mubr.bf16.gmra.mxu0 %v9329
      %v10026 = vpop.f32.mrf.mxu0
      %v10027 = vadd.f32 %v9866, %v10026
      %v10028 = vpop.f32.mrf.mxu0
      %v10029 = vpop.f32.mrf.mxu0
      %v10030 = vadd.f32 %v9869, %v10029
      %v10031 = vpop.f32.mrf.mxu0
      %10032 = vmatprep.mubr.bf16.mxu0 %v9446
      %10033 = vmatmul.mubr.bf16.gmra.mxu0 %v9332
      %v10034 = vpop.f32.mrf.mxu0
      %v10035 = vadd.f32 %v9874, %v10034
      %v10036 = vpop.f32.mrf.mxu0
      %v10037 = vpop.f32.mrf.mxu0
      %v10038 = vadd.f32 %v9877, %v10037
      %v10039 = vpop.f32.mrf.mxu0
      %10040 = vmatprep.mubr.bf16.mxu0 %v9447
      %10041 = vmatmul.mubr.bf16.gmra.mxu0 %v9335
      %v10042 = vpop.f32.mrf.mxu0
      %v10043 = vadd.f32 %v9882, %v10042
      %v10044 = vpop.f32.mrf.mxu0
      %v10045 = vpop.f32.mrf.mxu0
      %v10046 = vadd.f32 %v9885, %v10045
      %v10047 = vpop.f32.mrf.mxu0
      %10048 = vdwg.mxu0
      %v10049 = vmax.f32 %v9923, 0.0
      %v10050 = vmax.f32 %v9926, 0.0
      %v10051 = vmax.f32 %v9931, 0.0
      %v10052 = vmax.f32 %v9934, 0.0
      %v10053 = vmax.f32 %v9939, 0.0
      %v10054 = vmax.f32 %v9942, 0.0
      %v10055 = vmax.f32 %v9947, 0.0
      %v10056 = vmax.f32 %v9950, 0.0
      %v10057 = vmax.f32 %v9955, 0.0
      %v10058 = vmax.f32 %v9958, 0.0
      %v10059 = vmax.f32 %v9963, 0.0
      %v10060 = vmax.f32 %v9966, 0.0
      %v10061 = vmax.f32 %v9971, 0.0
      %v10062 = vmax.f32 %v9974, 0.0
      %v10063 = vmax.f32 %v9979, 0.0
      %v10064 = vmax.f32 %v9982, 0.0
      %v10065 = vmax.f32 %v9987, 0.0
      %v10066 = vmax.f32 %v9990, 0.0
      %v10067 = vmax.f32 %v9995, 0.0
      %v10068 = vmax.f32 %v9998, 0.0
      %v10069 = vmax.f32 %v10003, 0.0
      %v10070 = vmax.f32 %v10006, 0.0
      %v10071 = vmax.f32 %v10011, 0.0
      %v10072 = vmax.f32 %v10014, 0.0
      %v10073 = vmax.f32 %v10019, 0.0
      %v10074 = vmax.f32 %v10022, 0.0
      %v10075 = vmax.f32 %v10027, 0.0
      %v10076 = vmax.f32 %v10030, 0.0
      %v10077 = vmax.f32 %v10035, 0.0
      %v10078 = vmax.f32 %v10038, 0.0
      %v10079 = vmax.f32 %v10043, 0.0
      %v10080 = vmax.f32 %v10046, 0.0
      %10081 = vxpose.xlu0.b32.start [1/16] %v10049, 128
      %10082 = vxpose.xlu0.b32.cont [2/16] %v10050, 128
      %10083 = vxpose.xlu0.b32.cont [3/16] %v10051, 128
      %10084 = vxpose.xlu0.b32.cont [4/16] %v10052, 128
      %10085 = vxpose.xlu0.b32.cont [5/16] %v10053, 128
      %10086 = vxpose.xlu0.b32.cont [6/16] %v10054, 128
      %10087 = vxpose.xlu0.b32.cont [7/16] %v10055, 128
      %10088 = vxpose.xlu0.b32.cont [8/16] %v10056, 128
      %10089 = vxpose.xlu0.b32.cont [9/16] %v10057, 128
      %10090 = vxpose.xlu0.b32.cont [10/16] %v10058, 128
      %10091 = vxpose.xlu0.b32.cont [11/16] %v10059, 128
      %10092 = vxpose.xlu0.b32.cont [12/16] %v10060, 128
      %10093 = vxpose.xlu0.b32.cont [13/16] %v10061, 128
      %10094 = vxpose.xlu0.b32.cont [14/16] %v10062, 128
      %10095 = vxpose.xlu0.b32.cont [15/16] %v10063, 128
      %10096 = vxpose.xlu0.b32.end [16/16] %v10064, 128
      %v10097 = vpop.trf.xlu0
      %v10098 = vpop.trf.xlu0
      %v10099 = vpop.trf.xlu0
      %v10100 = vpop.trf.xlu0
      %v10101 = vpop.trf.xlu0
      %v10102 = vpop.trf.xlu0
      %v10103 = vpop.trf.xlu0
      %v10104 = vpop.trf.xlu0
      %v10105 = vpop.trf.xlu0
      %v10106 = vpop.trf.xlu0
      %v10107 = vpop.trf.xlu0
      %v10108 = vpop.trf.xlu0
      %v10109 = vpop.trf.xlu0
      %v10110 = vpop.trf.xlu0
      %v10111 = vpop.trf.xlu0
      %v10112 = vpop.trf.xlu0
      %10113 = vxpose.xlu0.b32.start [1/16] %v10065, 128
      %10114 = vxpose.xlu0.b32.cont [2/16] %v10066, 128
      %10115 = vxpose.xlu0.b32.cont [3/16] %v10067, 128
      %10116 = vxpose.xlu0.b32.cont [4/16] %v10068, 128
      %10117 = vxpose.xlu0.b32.cont [5/16] %v10069, 128
      %10118 = vxpose.xlu0.b32.cont [6/16] %v10070, 128
      %10119 = vxpose.xlu0.b32.cont [7/16] %v10071, 128
      %10120 = vxpose.xlu0.b32.cont [8/16] %v10072, 128
      %10121 = vxpose.xlu0.b32.cont [9/16] %v10073, 128
      %10122 = vxpose.xlu0.b32.cont [10/16] %v10074, 128
      %10123 = vxpose.xlu0.b32.cont [11/16] %v10075, 128
      %10124 = vxpose.xlu0.b32.cont [12/16] %v10076, 128
      %10125 = vxpose.xlu0.b32.cont [13/16] %v10077, 128
      %10126 = vxpose.xlu0.b32.cont [14/16] %v10078, 128
      %10127 = vxpose.xlu0.b32.cont [15/16] %v10079, 128
      %10128 = vxpose.xlu0.b32.end [16/16] %v10080, 128
      %v10129 = vpop.trf.xlu0
      %v10130 = vpop.trf.xlu0
      %v10131 = vpop.trf.xlu0
      %v10132 = vpop.trf.xlu0
      %v10133 = vpop.trf.xlu0
      %v10134 = vpop.trf.xlu0
      %v10135 = vpop.trf.xlu0
      %v10136 = vpop.trf.xlu0
      %v10137 = vpop.trf.xlu0
      %v10138 = vpop.trf.xlu0
      %v10139 = vpop.trf.xlu0
      %v10140 = vpop.trf.xlu0
      %v10141 = vpop.trf.xlu0
      %v10142 = vpop.trf.xlu0
      %v10143 = vpop.trf.xlu0
      %v10144 = vpop.trf.xlu0
      %10145 = vst [vmem:[%s302] sm:$0xff] %v10097
      %10146 = vst [vmem:[%s302 + $0x8] sm:$0xff] %v10129
      %s10147 = smul.u32 2, %s22
      %p10148 = scmp.lt.s32.totalorder %s21, 1
      %s10149 = scalar_select %p10148, %s21, 1
      %p10150 = scmp.lt.s32.totalorder %s10147, 1
      %s10151 = scalar_select %p10150, %s10147, 1
      %s10152 = smul.addr %s10149, 2
      %s10153 = sadd.s32 %s10151, %s10152
      %s10154 = smul.addr %s10153, 8
      %s10155 = scalar_lea.vmem %s6, %s10154
      // Predicated region
      $region45: #{aspp_forward_pallas.1} parent=43 // pred_check
        %p10156 = pneg %p187
      $region46: #{aspp_forward_pallas.1} parent=43 // pred_check_branch
        %10158 = sbr.rel (%p10156) target = $region48
      $region47: #{aspp_forward_pallas.1} parent=43 // pred_region
        %s10159 = smul.u32 2, %s22
      $region48: #{aspp_forward_pallas.1} parent=43 // pred_fallthru
        _
    $region44: #{aspp_forward_pallas.1} parent=5 // pred_fallthru
      _
    %p10160 = scmp.le.s32.totalorder 2, %s12
    // Predicated region
    $region49: #{aspp_forward_pallas.1} parent=5 // pred_check
      %p10161 = pneg %p10160
    $region50: #{aspp_forward_pallas.1} parent=5 // pred_check_branch
      %10163 = sbr.rel (%p10161) target = $region52
    $region51: #{aspp_forward_pallas.1} parent=5 // pred_region
      %s10164 = ssub.s32 %s12, 2
      // Predicated region
      $region53: #{aspp_forward_pallas.1} parent=51 // pred_check
        %p10165 = pneg %p193
      $region54: #{aspp_forward_pallas.1} parent=51 // pred_check_branch
        %10167 = sbr.rel (%p10165) target = $region56
      $region55: #{aspp_forward_pallas.1} parent=51 // pred_region
        %s10168 = smul.u32 2, %s24
        %p10169 = scmp.lt.s32.totalorder %s23, 1
        %s10170 = scalar_select %p10169, %s23, 1
        %p10171 = scmp.lt.s32.totalorder %s10168, 1
        %s10172 = scalar_select %p10171, %s10168, 1
        %s10173 = smul.addr %s10170, 2
        %s10174 = sadd.s32 %s10172, %s10173
        %s10175 = smul.addr %s10174, 8
        %s10176 = scalar_lea.vmem %s6, %s10175
      $region56: #{aspp_forward_pallas.1} parent=51 // pred_fallthru
        _
    $region52: #{aspp_forward_pallas.1} parent=5 // pred_fallthru
      _
  $region6: #{aspp_forward_pallas.1} parent=0 // loop_footer
    %s16 = sadd.s32 1, %s12
  $region7: #{aspp_forward_pallas.1} parent=0 // loop_footer_branch
    %11 = sbr.rel target = $region3
  $region8: #{aspp_forward_pallas.1} parent=0 // loop_exit
    _

</llo_original>
